<compile_context>
chip_gen: v7x
topology: tpu7x:2x2x1
jax: 0.10.0
libtpu: 0.0.40
codegen_flags: <defaults>
</compile_context>

<pallas_src>
import numpy as np

import jax
import jax.numpy as jnp
from jax import lax
from jax.experimental import pallas as pl
from jax.experimental.pallas import tpu as pltpu


# ----------------------------------------------------------------------------
# Kernel 1: fused conv1 + ReLU + pool + conv2 + ReLU + pool
#   per-sample layouts (rows = H on sublanes, cols = channel-blocked W on lanes)
#     conv1 out : (60, 6*60)   col = c*60 + ow
#     pooled1   : (30, 6*30)   col = c*30 + ow
#     conv2 out : (28, 16*28)  col = co*28 + ow
#     output    : (14, 16*14)  col = co*14 + ow
# ----------------------------------------------------------------------------
def _conv_pool_stack_kernel(x_ref, a_ref, b1_ref, m_ref, b2_ref,
                            e1_ref, o1_ref, he1_ref, ho1_ref,
                            e2_ref, o2_ref, he2_ref, ho2_ref, out_ref):
    f32 = jnp.float32
    xn = x_ref[0]                                            # (62, 62)

    # conv1 (valid, stride 1) as 3 structured matmuls, one per kernel row.
    acc1 = jnp.dot(xn[0:60, :], a_ref[0], preferred_element_type=f32)
    for kh in range(1, 3):
        acc1 = acc1 + jnp.dot(xn[kh:kh + 60, :], a_ref[kh],
                              preferred_element_type=f32)    # (60, 360)
    y1 = jnp.maximum(acc1 + b1_ref[...], 0.0)                # bias + ReLU

    # exact 2x2/2 max-pool via 0/1 selection matmuls (lane dir, then row dir)
    cm1 = jnp.maximum(jnp.dot(y1, e1_ref[...], preferred_element_type=f32),
                      jnp.dot(y1, o1_ref[...], preferred_element_type=f32))   # (60,180)
    p1 = jnp.maximum(jnp.dot(he1_ref[...], cm1, preferred_element_type=f32),
                     jnp.dot(ho1_ref[...], cm1, preferred_element_type=f32))  # (30,180)

    # conv2 (6 -> 16), ci-contraction folded into the structured matrices.
    acc2 = jnp.dot(p1[0:28, :], m_ref[0], preferred_element_type=f32)
    for kh in range(1, 3):
        acc2 = acc2 + jnp.dot(p1[kh:kh + 28, :], m_ref[kh],
                              preferred_element_type=f32)    # (28, 448)
    y2 = jnp.maximum(acc2 + b2_ref[...], 0.0)

    cm2 = jnp.maximum(jnp.dot(y2, e2_ref[...], preferred_element_type=f32),
                      jnp.dot(y2, o2_ref[...], preferred_element_type=f32))   # (28,224)
    p2 = jnp.maximum(jnp.dot(he2_ref[...], cm2, preferred_element_type=f32),
                     jnp.dot(ho2_ref[...], cm2, preferred_element_type=f32))  # (14,224)

    out_ref[0] = p2.astype(out_ref.dtype)


def conv_pool_stack(x, prep):
    # x: (N, 62, 62) f32  ->  (N, 14, 224) f32  (flat col order = i*224 + co*14 + j)
    n = x.shape[0]
    consts = [prep["A"], prep["bias1"], prep["M"], prep["bias2"],
              prep["E1"], prep["O1"], prep["HE1"], prep["HO1"],
              prep["E2"], prep["O2"], prep["HE2"], prep["HO2"]]

    def const_spec(arr):
        nd = arr.ndim
        return pl.BlockSpec(arr.shape, lambda i, _nd=nd: (0,) * _nd)

    return pl.pallas_call(
        _conv_pool_stack_kernel,
        out_shape=jax.ShapeDtypeStruct((n, 14, 224), jnp.float32),
        grid=(n,),
        in_specs=[pl.BlockSpec((1, 62, 62), lambda i: (i, 0, 0))]
                 + [const_spec(c) for c in consts],
        out_specs=pl.BlockSpec((1, 14, 224), lambda i: (i, 0, 0)),
        compiler_params=pltpu.CompilerParams(
            dimension_semantics=("parallel",)),
    )(x, *consts)


# ----------------------------------------------------------------------------
# Kernel 2: fused fc1 + ReLU + fc2 + ReLU + fc3 + softmax
#   weights stay in torch (out, in) orientation; contraction on last dims;
#   bf16 MXU operands with f32 accumulation; intermediates live in VMEM/vregs.
# ----------------------------------------------------------------------------
def _fc_softmax_kernel(x_ref, w1_ref, b1_ref, w2_ref, b2_ref, w3_ref, b3_ref,
                       o_ref):
    f32 = jnp.float32
    bf16 = jnp.bfloat16
    dn = (((1,), (1,)), ((), ()))            # x @ w.T, no wrapper transpose

    h = lax.dot_general(x_ref[...].astype(bf16), w1_ref[...], dn,
                        preferred_element_type=f32)
    h = jnp.maximum(h + b1_ref[...], 0.0)                    # (N, 120)
    h = lax.dot_general(h.astype(bf16), w2_ref[...], dn,
                        preferred_element_type=f32)
    h = jnp.maximum(h + b2_ref[...], 0.0)                    # (N, 84)
    h = lax.dot_general(h.astype(bf16), w3_ref[...], dn,
                        preferred_element_type=f32)
    h = h + b3_ref[...]                                      # (N, 2)

    h = h - jnp.max(h, axis=-1, keepdims=True)               # softmax (dim=1)
    e = jnp.exp(h)
    o_ref[...] = (e / jnp.sum(e, axis=-1, keepdims=True)).astype(o_ref.dtype)


def fc_softmax_stack(xflat, prep):
    # TODO(synk): for large batches, tile the M (batch) dim with a grid; at
    # batch=2 a single whole-array block is optimal (launch-latency bound).
    n = xflat.shape[0]
    return pl.pallas_call(
        _fc_softmax_kernel,
        out_shape=jax.ShapeDtypeStruct((n, 2), jnp.float32),
    )(xflat, prep["fc1_w"], prep["fc1_b"], prep["fc2_w"], prep["fc2_b"],
      prep["fc3_w"], prep["fc3_b"])


# ----------------------------------------------------------------------------
# Parameters (PyTorch-default-style uniform init)
# ----------------------------------------------------------------------------
def init_params(key):
    keys = jax.random.split(key, 10)

    def u(k, shape, fan_in):
        bound = 1.0 / (fan_in ** 0.5)
        return jax.random.uniform(k, shape, jnp.float32, -bound, bound)

    return {
        "conv1_w": u(keys[0], (6, 1, 3, 3), 1 * 3 * 3),
        "conv1_b": u(keys[1], (6,), 1 * 3 * 3),
        "conv2_w": u(keys[2], (16, 6, 3, 3), 6 * 3 * 3),
        "conv2_b": u(keys[3], (16,), 6 * 3 * 3),
        "fc1_w": u(keys[4], (120, 16 * 14 * 14), 16 * 14 * 14),
        "fc1_b": u(keys[5], (120,), 16 * 14 * 14),
        "fc2_w": u(keys[6], (84, 120), 120),
        "fc2_b": u(keys[7], (84,), 120),
        "fc3_w": u(keys[8], (2, 84), 84),
        "fc3_b": u(keys[9], (2,), 84),
    }


# ----------------------------------------------------------------------------
# One-time parameter preparation (outside jit): structured conv matrices,
# pooling selectors, bias rows, bf16 fc weights, fc1 column permutation.
# ----------------------------------------------------------------------------
def prepare_params(params):
    w1 = np.asarray(params["conv1_w"], np.float32)   # (6, 1, 3, 3)
    b1 = np.asarray(params["conv1_b"], np.float32)
    w2 = np.asarray(params["conv2_w"], np.float32)   # (16, 6, 3, 3)
    b2 = np.asarray(params["conv2_b"], np.float32)

    # conv1 as matmul:  (x[:, kh:kh+60, :] @ A[kh]) summed over kh
    # A[kh][iw, c*60+ow] = w1[c, 0, kh, iw-ow]  for iw-ow in {0,1,2}
    A = np.zeros((3, 62, 6 * 60), np.float32)
    ow = np.arange(60)
    for kh in range(3):
        for kw in range(3):
            for c in range(6):
                A[kh, ow + kw, c * 60 + ow] = w1[c, 0, kh, kw]
    bias1 = np.repeat(b1, 60)[None, :].astype(np.float32)            # (1, 360)

    # conv2 as matmul:  (p1[kh:kh+28, :] @ M[kh]) summed over kh
    # M[kh][ci*30+iw, co*28+ow] = w2[co, ci, kh, iw-ow]
    M = np.zeros((3, 6 * 30, 16 * 28), np.float32)
    ow2 = np.arange(28)
    for kh in range(3):
        for kw in range(3):
            for co in range(16):
                for ci in range(6):
                    M[kh, ci * 30 + ow2 + kw, co * 28 + ow2] = w2[co, ci, kh, kw]
    bias2 = np.repeat(b2, 28)[None, :].astype(np.float32)            # (1, 448)

    def lane_pool_selectors(n_ch, width):
        half = width // 2
        e = np.zeros((n_ch * width, n_ch * half), np.float32)
        o = np.zeros((n_ch * width, n_ch * half), np.float32)
        j = np.arange(half)
        for c in range(n_ch):
            e[c * width + 2 * j, c * half + j] = 1.0
            o[c * width + 2 * j + 1, c * half + j] = 1.0
        return e, o

    def row_pool_selectors(height):
        half = height // 2
        he = np.zeros((half, height), np.float32)
        ho = np.zeros((half, height), np.float32)
        i = np.arange(half)
        he[i, 2 * i] = 1.0
        ho[i, 2 * i + 1] = 1.0
        return he, ho

    E1, O1 = lane_pool_selectors(6, 60)       # (360, 180)
    HE1, HO1 = row_pool_selectors(60)         # (30, 60)
    E2, O2 = lane_pool_selectors(16, 28)      # (448, 224)
    HE2, HO2 = row_pool_selectors(28)         # (14, 28)

    # fc1 weight: permute columns from torch flatten order (co*196 + i*14 + j)
    # to the conv kernel's output order (i*224 + co*14 + j).
    fc1_w = np.asarray(params["fc1_w"], np.float32)                  # (120, 3136)
    co_g, i_g, j_g = np.meshgrid(np.arange(16), np.arange(14), np.arange(14),
                                 indexing="ij")
    new_col = (i_g * 224 + co_g * 14 + j_g).reshape(-1)
    old_col = (co_g * 196 + i_g * 14 + j_g).reshape(-1)
    perm = np.zeros(16 * 14 * 14, np.int64)
    perm[new_col] = old_col
    fc1_wp = fc1_w[:, perm]

    return {
        "A": jnp.asarray(A), "bias1": jnp.asarray(bias1),
        "M": jnp.asarray(M), "bias2": jnp.asarray(bias2),
        "E1": jnp.asarray(E1), "O1": jnp.asarray(O1),
        "HE1": jnp.asarray(HE1), "HO1": jnp.asarray(HO1),
        "E2": jnp.asarray(E2), "O2": jnp.asarray(O2),
        "HE2": jnp.asarray(HE2), "HO2": jnp.asarray(HO2),
        "fc1_w": jnp.asarray(fc1_wp).astype(jnp.bfloat16),
        "fc1_b": jnp.asarray(params["fc1_b"], jnp.float32).reshape(1, -1),
        "fc2_w": jnp.asarray(params["fc2_w"]).astype(jnp.bfloat16),
        "fc2_b": jnp.asarray(params["fc2_b"], jnp.float32).reshape(1, -1),
        "fc3_w": jnp.asarray(params["fc3_w"]).astype(jnp.bfloat16),
        "fc3_b": jnp.asarray(params["fc3_b"], jnp.float32).reshape(1, -1),
    }


# ----------------------------------------------------------------------------
# Forward pass matching Train.forward
# ----------------------------------------------------------------------------
def train_forward(prep, x):
    # x: (N, 1, 62, 62)  (62 is forced by the 16*14*14 flatten in the module)
    n = x.shape[0]
    x2 = x[:, 0, :, :].astype(jnp.float32)           # (N, 62, 62)
    feat = conv_pool_stack(x2, prep)                 # (N, 14, 224)
    xflat = feat.reshape(n, 14 * 224)                # (N, 3136)
    return fc_softmax_stack(xflat, prep)             # (N, 2)


# Plain-JAX mirror of the PyTorch module, used only to validate the kernels.
def reference_forward(params, x):
    def conv(z, w, b):
        out = lax.conv_general_dilated(
            z, w, window_strides=(1, 1), padding="VALID",
            dimension_numbers=("NCHW", "OIHW", "NCHW"))
        return out + b.reshape(1, -1, 1, 1)

    def pool(z):
        return lax.reduce_window(z, -jnp.inf, lax.max,
                                 (1, 1, 2, 2), (1, 1, 2, 2), "VALID")

    y = pool(jax.nn.relu(conv(x, params["conv1_w"], params["conv1_b"])))
    y = pool(jax.nn.relu(conv(y, params["conv2_w"], params["conv2_b"])))
    y = y.reshape(y.shape[0], -1)
    y = jax.nn.relu(y @ params["fc1_w"].T + params["fc1_b"])
    y = jax.nn.relu(y @ params["fc2_w"].T + params["fc2_b"])
    y = y @ params["fc3_w"].T + params["fc3_b"]
    return jax.nn.softmax(y, axis=-1)


if __name__ == "__main__":
    key = jax.random.PRNGKey(0)
    pkey, xkey = jax.random.split(key)
    params = init_params(pkey)
    prep = prepare_params(params)                    # one-time, outside jit
    x = jax.random.normal(xkey, (2, 1, 62, 62), jnp.float32)

    fwd = jax.jit(train_forward)
    out = jax.block_until_ready(fwd(prep, x))

    assert out.shape == (2, 2), out.shape
    row_sums = jnp.sum(out, axis=-1)
    assert bool(jnp.all(jnp.abs(row_sums - 1.0) < 1e-5)), row_sums

    ref = jax.block_until_ready(jax.jit(reference_forward)(params, x))
    max_err = float(jnp.max(jnp.abs(out - ref)))
    assert max_err < 2e-2, f"mismatch vs reference: {max_err}"

    print("KERNEL_OK")
</pallas_src>

<mosaic_0001>
module attributes {stable_mosaic.version = 11 : i64} {
  func.func @_conv_pool_stack_kernel(%arg0: i32, %arg1: memref<1x62x62xf32, #tpu.memory_space<vmem>>, %arg2: memref<3x62x360xf32, #tpu.memory_space<vmem>>, %arg3: memref<1x360xf32, #tpu.memory_space<vmem>>, %arg4: memref<3x180x448xf32, #tpu.memory_space<vmem>>, %arg5: memref<1x448xf32, #tpu.memory_space<vmem>>, %arg6: memref<360x180xf32, #tpu.memory_space<vmem>>, %arg7: memref<360x180xf32, #tpu.memory_space<vmem>>, %arg8: memref<30x60xf32, #tpu.memory_space<vmem>>, %arg9: memref<30x60xf32, #tpu.memory_space<vmem>>, %arg10: memref<448x224xf32, #tpu.memory_space<vmem>>, %arg11: memref<448x224xf32, #tpu.memory_space<vmem>>, %arg12: memref<14x28xf32, #tpu.memory_space<vmem>>, %arg13: memref<14x28xf32, #tpu.memory_space<vmem>>, %arg14: memref<1x14x224xf32, #tpu.memory_space<vmem>>) attributes {dimension_semantics = [#tpu.dimension_semantics<parallel>], iteration_bounds = array<i64: 2>, scalar_prefetch = 0 : i64, scratch_operands = 0 : i64, tpu.core_type = #tpu.core_type<tc>, window_params = [{transform_indices = @transform_0, window_bounds = array<i64: 1, 62, 62>}, {pipeline_mode = #tpu.pipeline_mode<synchronous>, transform_indices = @transform_1, window_bounds = array<i64: 3, 62, 360>}, {pipeline_mode = #tpu.pipeline_mode<synchronous>, transform_indices = @transform_2, window_bounds = array<i64: 1, 360>}, {pipeline_mode = #tpu.pipeline_mode<synchronous>, transform_indices = @transform_3, window_bounds = array<i64: 3, 180, 448>}, {pipeline_mode = #tpu.pipeline_mode<synchronous>, transform_indices = @transform_4, window_bounds = array<i64: 1, 448>}, {pipeline_mode = #tpu.pipeline_mode<synchronous>, transform_indices = @transform_5, window_bounds = array<i64: 360, 180>}, {pipeline_mode = #tpu.pipeline_mode<synchronous>, transform_indices = @transform_6, window_bounds = array<i64: 360, 180>}, {pipeline_mode = #tpu.pipeline_mode<synchronous>, transform_indices = @transform_7, window_bounds = array<i64: 30, 60>}, {pipeline_mode = #tpu.pipeline_mode<synchronous>, transform_indices = @transform_8, window_bounds = array<i64: 30, 60>}, {pipeline_mode = #tpu.pipeline_mode<synchronous>, transform_indices = @transform_9, window_bounds = array<i64: 448, 224>}, {pipeline_mode = #tpu.pipeline_mode<synchronous>, transform_indices = @transform_10, window_bounds = array<i64: 448, 224>}, {pipeline_mode = #tpu.pipeline_mode<synchronous>, transform_indices = @transform_11, window_bounds = array<i64: 14, 28>}, {pipeline_mode = #tpu.pipeline_mode<synchronous>, transform_indices = @transform_12, window_bounds = array<i64: 14, 28>}, {transform_indices = @transform_13, window_bounds = array<i64: 1, 14, 224>}]} {
    %c0 = arith.constant 0 : index
    %c0_0 = arith.constant 0 : index
    %c0_1 = arith.constant 0 : index
    %0 = vector.load %arg1[%c0, %c0_0, %c0_1] : memref<1x62x62xf32, #tpu.memory_space<vmem>>, vector<1x62x62xf32>
    %1 = vector.shape_cast %0 : vector<1x62x62xf32> to vector<62x62xf32>
    %2 = vector.extract_strided_slice %1 {offsets = [0, 0], sizes = [60, 62], strides = [1, 1]} : vector<62x62xf32> to vector<60x62xf32>
    %c0_2 = arith.constant 0 : index
    %c0_3 = arith.constant 0 : index
    %c0_4 = arith.constant 0 : index
    %3 = vector.load %arg2[%c0_2, %c0_3, %c0_4] : memref<3x62x360xf32, #tpu.memory_space<vmem>>, vector<1x62x360xf32>
    %4 = vector.shape_cast %3 : vector<1x62x360xf32> to vector<62x360xf32>
    %cst = arith.constant dense<0.000000e+00> : vector<60x360xf32>
    %5 = tpu.matmul %2, %4, %cst {dimension_numbers = #tpu.dot_dimension_numbers<[1], [0], [0], [1], [0, 0, 1, 1], [], []>} : vector<60x62xf32>, vector<62x360xf32>, vector<60x360xf32> -> vector<60x360xf32>
    %6 = vector.extract_strided_slice %1 {offsets = [1, 0], sizes = [60, 62], strides = [1, 1]} : vector<62x62xf32> to vector<60x62xf32>
    %c1 = arith.constant 1 : index
    %c0_5 = arith.constant 0 : index
    %c0_6 = arith.constant 0 : index
    %7 = vector.load %arg2[%c1, %c0_5, %c0_6] : memref<3x62x360xf32, #tpu.memory_space<vmem>>, vector<1x62x360xf32>
    %8 = vector.shape_cast %7 : vector<1x62x360xf32> to vector<62x360xf32>
    %cst_7 = arith.constant dense<0.000000e+00> : vector<60x360xf32>
    %9 = tpu.matmul %6, %8, %cst_7 {dimension_numbers = #tpu.dot_dimension_numbers<[1], [0], [0], [1], [0, 0, 1, 1], [], []>} : vector<60x62xf32>, vector<62x360xf32>, vector<60x360xf32> -> vector<60x360xf32>
    %10 = arith.addf %5, %9 : vector<60x360xf32>
    %11 = vector.extract_strided_slice %1 {offsets = [2, 0], sizes = [60, 62], strides = [1, 1]} : vector<62x62xf32> to vector<60x62xf32>
    %c2 = arith.constant 2 : index
    %c0_8 = arith.constant 0 : index
    %c0_9 = arith.constant 0 : index
    %12 = vector.load %arg2[%c2, %c0_8, %c0_9] : memref<3x62x360xf32, #tpu.memory_space<vmem>>, vector<1x62x360xf32>
    %13 = vector.shape_cast %12 : vector<1x62x360xf32> to vector<62x360xf32>
    %cst_10 = arith.constant dense<0.000000e+00> : vector<60x360xf32>
    %14 = tpu.matmul %11, %13, %cst_10 {dimension_numbers = #tpu.dot_dimension_numbers<[1], [0], [0], [1], [0, 0, 1, 1], [], []>} : vector<60x62xf32>, vector<62x360xf32>, vector<60x360xf32> -> vector<60x360xf32>
    %15 = arith.addf %10, %14 : vector<60x360xf32>
    %c0_11 = arith.constant 0 : index
    %c0_12 = arith.constant 0 : index
    %16 = vector.load %arg3[%c0_11, %c0_12] : memref<1x360xf32, #tpu.memory_space<vmem>>, vector<1x360xf32>
    %17 = vector.broadcast %16 : vector<1x360xf32> to vector<60x360xf32>
    %18 = arith.addf %15, %17 : vector<60x360xf32>
    %cst_13 = arith.constant 0.000000e+00 : f32
    %19 = vector.broadcast %cst_13 : f32 to vector<60x360xf32>
    %20 = arith.maximumf %18, %19 : vector<60x360xf32>
    %c0_14 = arith.constant 0 : index
    %c0_15 = arith.constant 0 : index
    %21 = vector.load %arg6[%c0_14, %c0_15] : memref<360x180xf32, #tpu.memory_space<vmem>>, vector<360x180xf32>
    %cst_16 = arith.constant dense<0.000000e+00> : vector<60x180xf32>
    %22 = tpu.matmul %20, %21, %cst_16 {dimension_numbers = #tpu.dot_dimension_numbers<[1], [0], [0], [1], [0, 0, 1, 1], [], []>} : vector<60x360xf32>, vector<360x180xf32>, vector<60x180xf32> -> vector<60x180xf32>
    %c0_17 = arith.constant 0 : index
    %c0_18 = arith.constant 0 : index
    %23 = vector.load %arg7[%c0_17, %c0_18] : memref<360x180xf32, #tpu.memory_space<vmem>>, vector<360x180xf32>
    %cst_19 = arith.constant dense<0.000000e+00> : vector<60x180xf32>
    %24 = tpu.matmul %20, %23, %cst_19 {dimension_numbers = #tpu.dot_dimension_numbers<[1], [0], [0], [1], [0, 0, 1, 1], [], []>} : vector<60x360xf32>, vector<360x180xf32>, vector<60x180xf32> -> vector<60x180xf32>
    %25 = arith.maximumf %22, %24 : vector<60x180xf32>
    %c0_20 = arith.constant 0 : index
    %c0_21 = arith.constant 0 : index
    %26 = vector.load %arg8[%c0_20, %c0_21] : memref<30x60xf32, #tpu.memory_space<vmem>>, vector<30x60xf32>
    %cst_22 = arith.constant dense<0.000000e+00> : vector<30x180xf32>
    %27 = tpu.matmul %26, %25, %cst_22 {dimension_numbers = #tpu.dot_dimension_numbers<[1], [0], [0], [1], [0, 0, 1, 1], [], []>} : vector<30x60xf32>, vector<60x180xf32>, vector<30x180xf32> -> vector<30x180xf32>
    %c0_23 = arith.constant 0 : index
    %c0_24 = arith.constant 0 : index
    %28 = vector.load %arg9[%c0_23, %c0_24] : memref<30x60xf32, #tpu.memory_space<vmem>>, vector<30x60xf32>
    %cst_25 = arith.constant dense<0.000000e+00> : vector<30x180xf32>
    %29 = tpu.matmul %28, %25, %cst_25 {dimension_numbers = #tpu.dot_dimension_numbers<[1], [0], [0], [1], [0, 0, 1, 1], [], []>} : vector<30x60xf32>, vector<60x180xf32>, vector<30x180xf32> -> vector<30x180xf32>
    %30 = arith.maximumf %27, %29 : vector<30x180xf32>
    %31 = vector.extract_strided_slice %30 {offsets = [0, 0], sizes = [28, 180], strides = [1, 1]} : vector<30x180xf32> to vector<28x180xf32>
    %c0_26 = arith.constant 0 : index
    %c0_27 = arith.constant 0 : index
    %c0_28 = arith.constant 0 : index
    %32 = vector.load %arg4[%c0_26, %c0_27, %c0_28] : memref<3x180x448xf32, #tpu.memory_space<vmem>>, vector<1x180x448xf32>
    %33 = vector.shape_cast %32 : vector<1x180x448xf32> to vector<180x448xf32>
    %cst_29 = arith.constant dense<0.000000e+00> : vector<28x448xf32>
    %34 = tpu.matmul %31, %33, %cst_29 {dimension_numbers = #tpu.dot_dimension_numbers<[1], [0], [0], [1], [0, 0, 1, 1], [], []>} : vector<28x180xf32>, vector<180x448xf32>, vector<28x448xf32> -> vector<28x448xf32>
    %35 = vector.extract_strided_slice %30 {offsets = [1, 0], sizes = [28, 180], strides = [1, 1]} : vector<30x180xf32> to vector<28x180xf32>
    %c1_30 = arith.constant 1 : index
    %c0_31 = arith.constant 0 : index
    %c0_32 = arith.constant 0 : index
    %36 = vector.load %arg4[%c1_30, %c0_31, %c0_32] : memref<3x180x448xf32, #tpu.memory_space<vmem>>, vector<1x180x448xf32>
    %37 = vector.shape_cast %36 : vector<1x180x448xf32> to vector<180x448xf32>
    %cst_33 = arith.constant dense<0.000000e+00> : vector<28x448xf32>
    %38 = tpu.matmul %35, %37, %cst_33 {dimension_numbers = #tpu.dot_dimension_numbers<[1], [0], [0], [1], [0, 0, 1, 1], [], []>} : vector<28x180xf32>, vector<180x448xf32>, vector<28x448xf32> -> vector<28x448xf32>
    %39 = arith.addf %34, %38 : vector<28x448xf32>
    %40 = vector.extract_strided_slice %30 {offsets = [2, 0], sizes = [28, 180], strides = [1, 1]} : vector<30x180xf32> to vector<28x180xf32>
    %c2_34 = arith.constant 2 : index
    %c0_35 = arith.constant 0 : index
    %c0_36 = arith.constant 0 : index
    %41 = vector.load %arg4[%c2_34, %c0_35, %c0_36] : memref<3x180x448xf32, #tpu.memory_space<vmem>>, vector<1x180x448xf32>
    %42 = vector.shape_cast %41 : vector<1x180x448xf32> to vector<180x448xf32>
    %cst_37 = arith.constant dense<0.000000e+00> : vector<28x448xf32>
    %43 = tpu.matmul %40, %42, %cst_37 {dimension_numbers = #tpu.dot_dimension_numbers<[1], [0], [0], [1], [0, 0, 1, 1], [], []>} : vector<28x180xf32>, vector<180x448xf32>, vector<28x448xf32> -> vector<28x448xf32>
    %44 = arith.addf %39, %43 : vector<28x448xf32>
    %c0_38 = arith.constant 0 : index
    %c0_39 = arith.constant 0 : index
    %45 = vector.load %arg5[%c0_38, %c0_39] : memref<1x448xf32, #tpu.memory_space<vmem>>, vector<1x448xf32>
    %46 = vector.broadcast %45 : vector<1x448xf32> to vector<28x448xf32>
    %47 = arith.addf %44, %46 : vector<28x448xf32>
    %cst_40 = arith.constant 0.000000e+00 : f32
    %48 = vector.broadcast %cst_40 : f32 to vector<28x448xf32>
    %49 = arith.maximumf %47, %48 : vector<28x448xf32>
    %c0_41 = arith.constant 0 : index
    %c0_42 = arith.constant 0 : index
    %50 = vector.load %arg10[%c0_41, %c0_42] : memref<448x224xf32, #tpu.memory_space<vmem>>, vector<448x224xf32>
    %cst_43 = arith.constant dense<0.000000e+00> : vector<28x224xf32>
    %51 = tpu.matmul %49, %50, %cst_43 {dimension_numbers = #tpu.dot_dimension_numbers<[1], [0], [0], [1], [0, 0, 1, 1], [], []>} : vector<28x448xf32>, vector<448x224xf32>, vector<28x224xf32> -> vector<28x224xf32>
    %c0_44 = arith.constant 0 : index
    %c0_45 = arith.constant 0 : index
    %52 = vector.load %arg11[%c0_44, %c0_45] : memref<448x224xf32, #tpu.memory_space<vmem>>, vector<448x224xf32>
    %cst_46 = arith.constant dense<0.000000e+00> : vector<28x224xf32>
    %53 = tpu.matmul %49, %52, %cst_46 {dimension_numbers = #tpu.dot_dimension_numbers<[1], [0], [0], [1], [0, 0, 1, 1], [], []>} : vector<28x448xf32>, vector<448x224xf32>, vector<28x224xf32> -> vector<28x224xf32>
    %54 = arith.maximumf %51, %53 : vector<28x224xf32>
    %c0_47 = arith.constant 0 : index
    %c0_48 = arith.constant 0 : index
    %55 = vector.load %arg12[%c0_47, %c0_48] : memref<14x28xf32, #tpu.memory_space<vmem>>, vector<14x28xf32>
    %cst_49 = arith.constant dense<0.000000e+00> : vector<14x224xf32>
    %56 = tpu.matmul %55, %54, %cst_49 {dimension_numbers = #tpu.dot_dimension_numbers<[1], [0], [0], [1], [0, 0, 1, 1], [], []>} : vector<14x28xf32>, vector<28x224xf32>, vector<14x224xf32> -> vector<14x224xf32>
    %c0_50 = arith.constant 0 : index
    %c0_51 = arith.constant 0 : index
    %57 = vector.load %arg13[%c0_50, %c0_51] : memref<14x28xf32, #tpu.memory_space<vmem>>, vector<14x28xf32>
    %cst_52 = arith.constant dense<0.000000e+00> : vector<14x224xf32>
    %58 = tpu.matmul %57, %54, %cst_52 {dimension_numbers = #tpu.dot_dimension_numbers<[1], [0], [0], [1], [0, 0, 1, 1], [], []>} : vector<14x28xf32>, vector<28x224xf32>, vector<14x224xf32> -> vector<14x224xf32>
    %59 = arith.maximumf %56, %58 : vector<14x224xf32>
    %c0_53 = arith.constant 0 : index
    %c0_54 = arith.constant 0 : index
    %c0_55 = arith.constant 0 : index
    %60 = vector.load %arg14[%c0_53, %c0_54, %c0_55] : memref<1x14x224xf32, #tpu.memory_space<vmem>>, vector<1x14x224xf32>
    %61 = vector.shape_cast %60 : vector<1x14x224xf32> to vector<14x224xf32>
    %62 = vector.shape_cast %59 : vector<14x224xf32> to vector<1x14x224xf32>
    tpu.vector_store %arg14[%c0_53, %c0_54, %c0_55], %62 {strides = array<i32>} : memref<1x14x224xf32, #tpu.memory_space<vmem>>, vector<1x14x224xf32>,
    return
  }
  func.func @transform_0(%arg0: i32) -> (i32, i32, i32) {
    %c0_i32 = arith.constant 0 : i32
    %c0_i32_0 = arith.constant 0 : i32
    %c0_i32_1 = arith.constant 0 : i32
    return %arg0, %c0_i32, %c0_i32_0 : i32, i32, i32
  }
  func.func @transform_1(%arg0: i32) -> (i32, i32, i32) {
    %c0_i32 = arith.constant 0 : i32
    %c0_i32_0 = arith.constant 0 : i32
    %c0_i32_1 = arith.constant 0 : i32
    %c0_i32_2 = arith.constant 0 : i32
    return %c0_i32, %c0_i32_0, %c0_i32_1 : i32, i32, i32
  }
  func.func @transform_2(%arg0: i32) -> (i32, i32) {
    %c0_i32 = arith.constant 0 : i32
    %c0_i32_0 = arith.constant 0 : i32
    %c0_i32_1 = arith.constant 0 : i32
    return %c0_i32, %c0_i32_0 : i32, i32
  }
  func.func @transform_3(%arg0: i32) -> (i32, i32, i32) {
    %c0_i32 = arith.constant 0 : i32
    %c0_i32_0 = arith.constant 0 : i32
    %c0_i32_1 = arith.constant 0 : i32
    %c0_i32_2 = arith.constant 0 : i32
    return %c0_i32, %c0_i32_0, %c0_i32_1 : i32, i32, i32
  }
  func.func @transform_4(%arg0: i32) -> (i32, i32) {
    %c0_i32 = arith.constant 0 : i32
    %c0_i32_0 = arith.constant 0 : i32
    %c0_i32_1 = arith.constant 0 : i32
    return %c0_i32, %c0_i32_0 : i32, i32
  }
  func.func @transform_5(%arg0: i32) -> (i32, i32) {
    %c0_i32 = arith.constant 0 : i32
    %c0_i32_0 = arith.constant 0 : i32
    %c0_i32_1 = arith.constant 0 : i32
    return %c0_i32, %c0_i32_0 : i32, i32
  }
  func.func @transform_6(%arg0: i32) -> (i32, i32) {
    %c0_i32 = arith.constant 0 : i32
    %c0_i32_0 = arith.constant 0 : i32
    %c0_i32_1 = arith.constant 0 : i32
    return %c0_i32, %c0_i32_0 : i32, i32
  }
  func.func @transform_7(%arg0: i32) -> (i32, i32) {
    %c0_i32 = arith.constant 0 : i32
    %c0_i32_0 = arith.constant 0 : i32
    %c0_i32_1 = arith.constant 0 : i32
    return %c0_i32, %c0_i32_0 : i32, i32
  }
  func.func @transform_8(%arg0: i32) -> (i32, i32) {
    %c0_i32 = arith.constant 0 : i32
    %c0_i32_0 = arith.constant 0 : i32
    %c0_i32_1 = arith.constant 0 : i32
    return %c0_i32, %c0_i32_0 : i32, i32
  }
  func.func @transform_9(%arg0: i32) -> (i32, i32) {
    %c0_i32 = arith.constant 0 : i32
    %c0_i32_0 = arith.constant 0 : i32
    %c0_i32_1 = arith.constant 0 : i32
    return %c0_i32, %c0_i32_0 : i32, i32
  }
  func.func @transform_10(%arg0: i32) -> (i32, i32) {
    %c0_i32 = arith.constant 0 : i32
    %c0_i32_0 = arith.constant 0 : i32
    %c0_i32_1 = arith.constant 0 : i32
    return %c0_i32, %c0_i32_0 : i32, i32
  }
  func.func @transform_11(%arg0: i32) -> (i32, i32) {
    %c0_i32 = arith.constant 0 : i32
    %c0_i32_0 = arith.constant 0 : i32
    %c0_i32_1 = arith.constant 0 : i32
    return %c0_i32, %c0_i32_0 : i32, i32
  }
  func.func @transform_12(%arg0: i32) -> (i32, i32) {
    %c0_i32 = arith.constant 0 : i32
    %c0_i32_0 = arith.constant 0 : i32
    %c0_i32_1 = arith.constant 0 : i32
    return %c0_i32, %c0_i32_0 : i32, i32
  }
  func.func @transform_13(%arg0: i32) -> (i32, i32, i32) {
    %c0_i32 = arith.constant 0 : i32
    %c0_i32_0 = arith.constant 0 : i32
    %c0_i32_1 = arith.constant 0 : i32
    return %arg0, %c0_i32, %c0_i32_0 : i32, i32, i32
  }
}

module attributes {stable_mosaic.version = 11 : i64} {
  func.func @_fc_softmax_kernel(%arg0: memref<2x3136xf32, #tpu.memory_space<vmem>>, %arg1: memref<120x3136xbf16, #tpu.memory_space<vmem>>, %arg2: memref<1x120xf32, #tpu.memory_space<vmem>>, %arg3: memref<84x120xbf16, #tpu.memory_space<vmem>>, %arg4: memref<1x84xf32, #tpu.memory_space<vmem>>, %arg5: memref<2x84xbf16, #tpu.memory_space<vmem>>, %arg6: memref<1x2xf32, #tpu.memory_space<vmem>>, %arg7: memref<2x2xf32, #tpu.memory_space<vmem>>) attributes {dimension_semantics = [], scalar_prefetch = 0 : i64, scratch_operands = 0 : i64, tpu.core_type = #tpu.core_type<tc>} {
    %c0 = arith.constant 0 : index
    %c0_0 = arith.constant 0 : index
    %0 = vector.load %arg0[%c0, %c0_0] : memref<2x3136xf32, #tpu.memory_space<vmem>>, vector<2x3136xf32>
    %1 = arith.truncf %0 : vector<2x3136xf32> to vector<2x3136xbf16>
    %c0_1 = arith.constant 0 : index
    %c0_2 = arith.constant 0 : index
    %2 = vector.load %arg1[%c0_1, %c0_2] : memref<120x3136xbf16, #tpu.memory_space<vmem>>, vector<120x3136xbf16>
    %cst = arith.constant dense<0.000000e+00> : vector<2x120xf32>
    %3 = tpu.matmul %1, %2, %cst {dimension_numbers = #tpu.dot_dimension_numbers<[1], [1], [0], [0], [0, 0, 1, 0], [], []>} : vector<2x3136xbf16>, vector<120x3136xbf16>, vector<2x120xf32> -> vector<2x120xf32>
    %c0_3 = arith.constant 0 : index
    %c0_4 = arith.constant 0 : index
    %4 = vector.load %arg2[%c0_3, %c0_4] : memref<1x120xf32, #tpu.memory_space<vmem>>, vector<1x120xf32>
    %5 = vector.broadcast %4 : vector<1x120xf32> to vector<2x120xf32>
    %6 = arith.addf %3, %5 : vector<2x120xf32>
    %cst_5 = arith.constant 0.000000e+00 : f32
    %7 = vector.broadcast %cst_5 : f32 to vector<2x120xf32>
    %8 = arith.maximumf %6, %7 : vector<2x120xf32>
    %9 = arith.truncf %8 : vector<2x120xf32> to vector<2x120xbf16>
    %c0_6 = arith.constant 0 : index
    %c0_7 = arith.constant 0 : index
    %10 = vector.load %arg3[%c0_6, %c0_7] : memref<84x120xbf16, #tpu.memory_space<vmem>>, vector<84x120xbf16>
    %cst_8 = arith.constant dense<0.000000e+00> : vector<2x84xf32>
    %11 = tpu.matmul %9, %10, %cst_8 {dimension_numbers = #tpu.dot_dimension_numbers<[1], [1], [0], [0], [0, 0, 1, 0], [], []>} : vector<2x120xbf16>, vector<84x120xbf16>, vector<2x84xf32> -> vector<2x84xf32>
    %c0_9 = arith.constant 0 : index
    %c0_10 = arith.constant 0 : index
    %12 = vector.load %arg4[%c0_9, %c0_10] : memref<1x84xf32, #tpu.memory_space<vmem>>, vector<1x84xf32>
    %13 = vector.broadcast %12 : vector<1x84xf32> to vector<2x84xf32>
    %14 = arith.addf %11, %13 : vector<2x84xf32>
    %cst_11 = arith.constant 0.000000e+00 : f32
    %15 = vector.broadcast %cst_11 : f32 to vector<2x84xf32>
    %16 = arith.maximumf %14, %15 : vector<2x84xf32>
    %17 = arith.truncf %16 : vector<2x84xf32> to vector<2x84xbf16>
    %c0_12 = arith.constant 0 : index
    %c0_13 = arith.constant 0 : index
    %18 = vector.load %arg5[%c0_12, %c0_13] : memref<2x84xbf16, #tpu.memory_space<vmem>>, vector<2x84xbf16>
    %cst_14 = arith.constant dense<0.000000e+00> : vector<2x2xf32>
    %19 = tpu.matmul %17, %18, %cst_14 {dimension_numbers = #tpu.dot_dimension_numbers<[1], [1], [0], [0], [0, 0, 1, 0], [], []>} : vector<2x84xbf16>, vector<2x84xbf16>, vector<2x2xf32> -> vector<2x2xf32>
    %c0_15 = arith.constant 0 : index
    %c0_16 = arith.constant 0 : index
    %20 = vector.load %arg6[%c0_15, %c0_16] : memref<1x2xf32, #tpu.memory_space<vmem>>, vector<1x2xf32>
    %21 = vector.broadcast %20 : vector<1x2xf32> to vector<2x2xf32>
    %22 = arith.addf %19, %21 : vector<2x2xf32>
    %cst_17 = arith.constant dense<0xFF800000> : vector<2xf32>
    %23 = vector.multi_reduction <maximumf>, %22, %cst_17 [1] : vector<2x2xf32> to vector<2xf32>
    %24 = vector.shape_cast %23 : vector<2xf32> to vector<2x1xf32>
    %25 = vector.broadcast %24 : vector<2x1xf32> to vector<2x2xf32>
    %26 = arith.subf %22, %25 : vector<2x2xf32>
    %27 = math.exp %26 : vector<2x2xf32>
    %cst_18 = arith.constant dense<0.000000e+00> : vector<2xf32>
    %28 = vector.multi_reduction <add>, %27, %cst_18 [1] : vector<2x2xf32> to vector<2xf32>
    %29 = vector.shape_cast %28 : vector<2xf32> to vector<2x1xf32>
    %30 = vector.broadcast %29 : vector<2x1xf32> to vector<2x2xf32>
    %31 = arith.divf %27, %30 : vector<2x2xf32>
    %c0_19 = arith.constant 0 : index
    %c0_20 = arith.constant 0 : index
    %32 = vector.load %arg7[%c0_19, %c0_20] : memref<2x2xf32, #tpu.memory_space<vmem>>, vector<2x2xf32>
    tpu.vector_store %arg7[%c0_19, %c0_20], %31 {strides = array<i32>} : memref<2x2xf32, #tpu.memory_space<vmem>>, vector<2x2xf32>,
    return
  }
}

</mosaic_0001>

<llo_original>
// kernel: train_forward.3
$region0: #{train_forward.3}
  #allocation0 [shape = 'u32[]', space=smem, size = 0x4, offset = 0x4, fixed_abs, tag = 'smem constant byte address 0x4 - core index']
  #allocation1 [shape = 'u32[144,128]{1,0:T(1,128)}', space=vmem, size = 0x12000, scoped, tag = 'internal scratch']
  %s0 = inlined_call_operand.vmem [shape: f32[2,3136], index: 0, kind: input, shape index: {}]
  %s1 = inlined_call_operand.vmem [shape: bf16[120,3136], index: 1, kind: input, shape index: {}]
  %s2 = inlined_call_operand.vmem [shape: f32[1,120], index: 2, kind: input, shape index: {}]
  %s3 = inlined_call_operand.vmem [shape: bf16[84,120], index: 3, kind: input, shape index: {}]
  %s4 = inlined_call_operand.vmem [shape: f32[1,84], index: 4, kind: input, shape index: {}]
  %s5 = inlined_call_operand.vmem [shape: bf16[2,84], index: 5, kind: input, shape index: {}]
  %s6 = inlined_call_operand.vmem [shape: f32[1,2], index: 6, kind: input, shape index: {}]
  %s7 = inlined_call_operand.hbm [shape: f32[2,2], index: 7, kind: output, shape index: {}]
  %s8 = sld [smem:[#allocation0]]
  $region38: #{train_forward.3} parent=0
    _
  %s10 = ssub.s32 1, %s8
  %s11 = scalar_select 0, %s10, %s8
  $region1: #{train_forward.3} parent=0
    #allocation2 [shape = 'u8[1024]{0}', space=vmem, size = 0x400, scoped, tag = 'output window, operand 0, single buffered']
    #allocation3 [shape = 's32[1]{0}', space=sflag, size = 0x4, scoped, tag = 'scoped memory for train_forward.3']
    %12 = vsyncpa [#allocation3], 0
    // Predicated region
    $region2: #{train_forward.3} parent=1 // pred_check
      _
    $region3: #{train_forward.3} parent=1 // pred_check_branch
      %14 = sbr.rel (0) target = $region5
    $region4: #{train_forward.3} parent=1 // pred_region
      _
    $region5: #{train_forward.3} parent=1 // pred_fallthru
      _
    // Predicated region
    $region6: #{train_forward.3} parent=1 // pred_check
      _
    $region7: #{train_forward.3} parent=1 // pred_check_branch
      %16 = sbr.rel (0) target = $region9
    $region8: #{train_forward.3} parent=1 // pred_region
      _
    $region9: #{train_forward.3} parent=1 // pred_fallthru
      _
    // Predicated region
    $region10: #{train_forward.3} parent=1 // pred_check
      _
    $region11: #{train_forward.3} parent=1 // pred_check_branch
      %18 = sbr.rel (0) target = $region13
    $region12: #{train_forward.3} parent=1 // pred_region
      _
    $region13: #{train_forward.3} parent=1 // pred_fallthru
      _
    // Predicated region
    $region14: #{train_forward.3} parent=1 // pred_check
      _
    $region15: #{train_forward.3} parent=1 // pred_check_branch
      %20 = sbr.rel (0) target = $region17
    $region16: #{train_forward.3} parent=1 // pred_region
      _
    $region17: #{train_forward.3} parent=1 // pred_fallthru
      _
    // Predicated region
    $region18: #{train_forward.3} parent=1 // pred_check
      _
    $region19: #{train_forward.3} parent=1 // pred_check_branch
      %22 = sbr.rel (0) target = $region21
    $region20: #{train_forward.3} parent=1 // pred_region
      _
    $region21: #{train_forward.3} parent=1 // pred_fallthru
      _
    // Predicated region
    $region22: #{train_forward.3} parent=1 // pred_check
      _
    $region23: #{train_forward.3} parent=1 // pred_check_branch
      %24 = sbr.rel (0) target = $region25
    $region24: #{train_forward.3} parent=1 // pred_region
      _
    $region25: #{train_forward.3} parent=1 // pred_fallthru
      _
    // Predicated region
    $region26: #{train_forward.3} parent=1 // pred_check
      _
    $region27: #{train_forward.3} parent=1 // pred_check_branch
      %26 = sbr.rel (0) target = $region29
    $region28: #{train_forward.3} parent=1 // pred_region
      _
    $region29: #{train_forward.3} parent=1 // pred_fallthru
      _
    %v28 = vld [vmem:[%s0] sm:$0xff]
    %v29 = vld [vmem:[%s0 + $0x8] sm:$0xff]
    %v30 = vld [vmem:[%s0 + $0x10] sm:$0xff]
    %v31 = vld [vmem:[%s0 + $0x18] sm:$0xff]
    %v32 = vld [vmem:[%s0 + $0x20] sm:$0xff]
    %v33 = vld [vmem:[%s0 + $0x28] sm:$0xff]
    %v34 = vld [vmem:[%s0 + $0x30] sm:$0x3]
    %v42 = vcombine.high %v28, %v28
    %v44 = vunpack.c.l.s4 1983009808
    %v45 = vunpack.c.0.s8 %v44
    %v46 = vlaneseq
    %v47 = vshrl.u32 %v46, 7
    %v48 = vsub.s32 %v45, %v47
    %v49 = vrot.slane %v28, %v48
    %v51 = vunpack.c.l.s4 1983009808
    %v52 = vunpack.c.0.s8 %v51
    %v53 = vlaneseq
    %v54 = vshrl.u32 %v53, 7
    %v55 = vsub.s32 %v52, %v54
    %v56 = vrot.slane %v42, %v55
    %v57 = vcombine.high %v49, %v49
    %v58 = vcombine.high %v56, %v56
    %v59 = vcombine.high %v29, %v29
    %v61 = vunpack.c.l.s4 1983009808
    %v62 = vunpack.c.0.s8 %v61
    %v63 = vlaneseq
    %v64 = vshrl.u32 %v63, 7
    %v65 = vsub.s32 %v62, %v64
    %v66 = vrot.slane %v29, %v65
    %v68 = vunpack.c.l.s4 1983009808
    %v69 = vunpack.c.0.s8 %v68
    %v70 = vlaneseq
    %v71 = vshrl.u32 %v70, 7
    %v72 = vsub.s32 %v69, %v71
    %v73 = vrot.slane %v59, %v72
    %v74 = vcombine.high %v66, %v66
    %v75 = vcombine.high %v73, %v73
    %v76 = vcombine.high %v30, %v30
    %v78 = vunpack.c.l.s4 1983009808
    %v79 = vunpack.c.0.s8 %v78
    %v80 = vlaneseq
    %v81 = vshrl.u32 %v80, 7
    %v82 = vsub.s32 %v79, %v81
    %v83 = vrot.slane %v30, %v82
    %v85 = vunpack.c.l.s4 1983009808
    %v86 = vunpack.c.0.s8 %v85
    %v87 = vlaneseq
    %v88 = vshrl.u32 %v87, 7
    %v89 = vsub.s32 %v86, %v88
    %v90 = vrot.slane %v76, %v89
    %v91 = vcombine.high %v83, %v83
    %v92 = vcombine.high %v90, %v90
    %v93 = vcombine.high %v31, %v31
    %v95 = vunpack.c.l.s4 1983009808
    %v96 = vunpack.c.0.s8 %v95
    %v97 = vlaneseq
    %v98 = vshrl.u32 %v97, 7
    %v99 = vsub.s32 %v96, %v98
    %v100 = vrot.slane %v31, %v99
    %v102 = vunpack.c.l.s4 1983009808
    %v103 = vunpack.c.0.s8 %v102
    %v104 = vlaneseq
    %v105 = vshrl.u32 %v104, 7
    %v106 = vsub.s32 %v103, %v105
    %v107 = vrot.slane %v93, %v106
    %v108 = vcombine.high %v100, %v100
    %v109 = vcombine.high %v107, %v107
    %v110 = vcombine.high %v32, %v32
    %v112 = vunpack.c.l.s4 1983009808
    %v113 = vunpack.c.0.s8 %v112
    %v114 = vlaneseq
    %v115 = vshrl.u32 %v114, 7
    %v116 = vsub.s32 %v113, %v115
    %v117 = vrot.slane %v32, %v116
    %v119 = vunpack.c.l.s4 1983009808
    %v120 = vunpack.c.0.s8 %v119
    %v121 = vlaneseq
    %v122 = vshrl.u32 %v121, 7
    %v123 = vsub.s32 %v120, %v122
    %v124 = vrot.slane %v110, %v123
    %v125 = vcombine.high %v117, %v117
    %v126 = vcombine.high %v124, %v124
    %v127 = vcombine.high %v33, %v33
    %v129 = vunpack.c.l.s4 1983009808
    %v130 = vunpack.c.0.s8 %v129
    %v131 = vlaneseq
    %v132 = vshrl.u32 %v131, 7
    %v133 = vsub.s32 %v130, %v132
    %v134 = vrot.slane %v33, %v133
    %v136 = vunpack.c.l.s4 1983009808
    %v137 = vunpack.c.0.s8 %v136
    %v138 = vlaneseq
    %v139 = vshrl.u32 %v138, 7
    %v140 = vsub.s32 %v137, %v139
    %v141 = vrot.slane %v127, %v140
    %v142 = vcombine.high %v134, %v134
    %v143 = vcombine.high %v141, %v141
    %v145 = vunpack.c.l.s4 1983009808
    %v146 = vunpack.c.0.s8 %v145
    %v147 = vlaneseq
    %v148 = vshrl.u32 %v147, 7
    %v149 = vsub.s32 %v146, %v148
    %v150 = vrot.slane %v34, %v149
    %v176 = vpack.c.bf16 %v49, %v49
    %v177 = vpack.c.bf16 %v57, %v57
    %v178 = vpack.c.bf16 %v56, %v56
    %v179 = vpack.c.bf16 %v58, %v58
    %v180 = vpack.c.bf16 %v66, %v66
    %v181 = vpack.c.bf16 %v74, %v74
    %v182 = vpack.c.bf16 %v73, %v73
    %v183 = vpack.c.bf16 %v75, %v75
    %v184 = vpack.c.bf16 %v83, %v83
    %v185 = vpack.c.bf16 %v91, %v91
    %v186 = vpack.c.bf16 %v90, %v90
    %v187 = vpack.c.bf16 %v92, %v92
    %v188 = vpack.c.bf16 %v100, %v100
    %v189 = vpack.c.bf16 %v108, %v108
    %v190 = vpack.c.bf16 %v107, %v107
    %v191 = vpack.c.bf16 %v109, %v109
    %v192 = vpack.c.bf16 %v117, %v117
    %v193 = vpack.c.bf16 %v125, %v125
    %v194 = vpack.c.bf16 %v124, %v124
    %v195 = vpack.c.bf16 %v126, %v126
    %v196 = vpack.c.bf16 %v134, %v134
    %v197 = vpack.c.bf16 %v142, %v142
    %v198 = vpack.c.bf16 %v141, %v141
    %v199 = vpack.c.bf16 %v143, %v143
    %v200 = vpack.c.bf16 %v150, %v150
    %v201 = vld [vmem:[%s1] sm:$0xff]
    %v202 = vld [vmem:[%s1 + $0x8] sm:$0xff]
    %v203 = vld [vmem:[%s1 + $0x10] sm:$0xff]
    %v204 = vld [vmem:[%s1 + $0x18] sm:$0xff]
    %v205 = vld [vmem:[%s1 + $0x20] sm:$0xff]
    %v206 = vld [vmem:[%s1 + $0x28] sm:$0xff]
    %v207 = vld [vmem:[%s1 + $0x30] sm:$0xff]
    %v208 = vld [vmem:[%s1 + $0x38] sm:$0xff]
    %v209 = vld [vmem:[%s1 + $0x40] sm:$0xff]
    %v210 = vld [vmem:[%s1 + $0x48] sm:$0xff]
    %v211 = vld [vmem:[%s1 + $0x50] sm:$0xff]
    %v212 = vld [vmem:[%s1 + $0x58] sm:$0xff]
    %v213 = vld [vmem:[%s1 + $0x60] sm:$0xf]
    %v214 = vld [vmem:[%s1 + $0x64] sm:$0xff]
    %v215 = vld [vmem:[%s1 + $0x6c] sm:$0xff]
    %v216 = vld [vmem:[%s1 + $0x74] sm:$0xff]
    %v217 = vld [vmem:[%s1 + $0x7c] sm:$0xff]
    %v218 = vld [vmem:[%s1 + $0x84] sm:$0xff]
    %v219 = vld [vmem:[%s1 + $0x8c] sm:$0xff]
    %v220 = vld [vmem:[%s1 + $0x94] sm:$0xff]
    %v221 = vld [vmem:[%s1 + $0x9c] sm:$0xff]
    %v222 = vld [vmem:[%s1 + $0xa4] sm:$0xff]
    %v223 = vld [vmem:[%s1 + $0xac] sm:$0xff]
    %v224 = vld [vmem:[%s1 + $0xb4] sm:$0xff]
    %v225 = vld [vmem:[%s1 + $0xbc] sm:$0xff]
    %v226 = vld [vmem:[%s1 + $0xc4] sm:$0xf]
    %v227 = vld [vmem:[%s1 + $0xc8] sm:$0xff]
    %v228 = vld [vmem:[%s1 + $0xd0] sm:$0xff]
    %v229 = vld [vmem:[%s1 + $0xd8] sm:$0xff]
    %v230 = vld [vmem:[%s1 + $0xe0] sm:$0xff]
    %v231 = vld [vmem:[%s1 + $0xe8] sm:$0xff]
    %v232 = vld [vmem:[%s1 + $0xf0] sm:$0xff]
    %v233 = vld [vmem:[%s1 + $0xf8] sm:$0xff]
    %v234 = vld [vmem:[%s1 + $0x100] sm:$0xff]
    %v235 = vld [vmem:[%s1 + $0x108] sm:$0xff]
    %v236 = vld [vmem:[%s1 + $0x110] sm:$0xff]
    %v237 = vld [vmem:[%s1 + $0x118] sm:$0xff]
    %v238 = vld [vmem:[%s1 + $0x120] sm:$0xff]
    %v239 = vld [vmem:[%s1 + $0x128] sm:$0xf]
    %v240 = vld [vmem:[%s1 + $0x12c] sm:$0xff]
    %v241 = vld [vmem:[%s1 + $0x134] sm:$0xff]
    %v242 = vld [vmem:[%s1 + $0x13c] sm:$0xff]
    %v243 = vld [vmem:[%s1 + $0x144] sm:$0xff]
    %v244 = vld [vmem:[%s1 + $0x14c] sm:$0xff]
    %v245 = vld [vmem:[%s1 + $0x154] sm:$0xff]
    %v246 = vld [vmem:[%s1 + $0x15c] sm:$0xff]
    %v247 = vld [vmem:[%s1 + $0x164] sm:$0xff]
    %v248 = vld [vmem:[%s1 + $0x16c] sm:$0xff]
    %v249 = vld [vmem:[%s1 + $0x174] sm:$0xff]
    %v250 = vld [vmem:[%s1 + $0x17c] sm:$0xff]
    %v251 = vld [vmem:[%s1 + $0x184] sm:$0xff]
    %v252 = vld [vmem:[%s1 + $0x18c] sm:$0xf]
    %v253 = vld [vmem:[%s1 + $0x190] sm:$0xff]
    %v254 = vld [vmem:[%s1 + $0x198] sm:$0xff]
    %v255 = vld [vmem:[%s1 + $0x1a0] sm:$0xff]
    %v256 = vld [vmem:[%s1 + $0x1a8] sm:$0xff]
    %v257 = vld [vmem:[%s1 + $0x1b0] sm:$0xff]
    %v258 = vld [vmem:[%s1 + $0x1b8] sm:$0xff]
    %v259 = vld [vmem:[%s1 + $0x1c0] sm:$0xff]
    %v260 = vld [vmem:[%s1 + $0x1c8] sm:$0xff]
    %v261 = vld [vmem:[%s1 + $0x1d0] sm:$0xff]
    %v262 = vld [vmem:[%s1 + $0x1d8] sm:$0xff]
    %v263 = vld [vmem:[%s1 + $0x1e0] sm:$0xff]
    %v264 = vld [vmem:[%s1 + $0x1e8] sm:$0xff]
    %v265 = vld [vmem:[%s1 + $0x1f0] sm:$0xf]
    %v266 = vld [vmem:[%s1 + $0x1f4] sm:$0xff]
    %v267 = vld [vmem:[%s1 + $0x1fc] sm:$0xff]
    %v268 = vld [vmem:[%s1 + $0x204] sm:$0xff]
    %v269 = vld [vmem:[%s1 + $0x20c] sm:$0xff]
    %v270 = vld [vmem:[%s1 + $0x214] sm:$0xff]
    %v271 = vld [vmem:[%s1 + $0x21c] sm:$0xff]
    %v272 = vld [vmem:[%s1 + $0x224] sm:$0xff]
    %v273 = vld [vmem:[%s1 + $0x22c] sm:$0xff]
    %v274 = vld [vmem:[%s1 + $0x234] sm:$0xff]
    %v275 = vld [vmem:[%s1 + $0x23c] sm:$0xff]
    %v276 = vld [vmem:[%s1 + $0x244] sm:$0xff]
    %v277 = vld [vmem:[%s1 + $0x24c] sm:$0xff]
    %v278 = vld [vmem:[%s1 + $0x254] sm:$0xf]
    %v279 = vld [vmem:[%s1 + $0x258] sm:$0xff]
    %v280 = vld [vmem:[%s1 + $0x260] sm:$0xff]
    %v281 = vld [vmem:[%s1 + $0x268] sm:$0xff]
    %v282 = vld [vmem:[%s1 + $0x270] sm:$0xff]
    %v283 = vld [vmem:[%s1 + $0x278] sm:$0xff]
    %v284 = vld [vmem:[%s1 + $0x280] sm:$0xff]
    %v285 = vld [vmem:[%s1 + $0x288] sm:$0xff]
    %v286 = vld [vmem:[%s1 + $0x290] sm:$0xff]
    %v287 = vld [vmem:[%s1 + $0x298] sm:$0xff]
    %v288 = vld [vmem:[%s1 + $0x2a0] sm:$0xff]
    %v289 = vld [vmem:[%s1 + $0x2a8] sm:$0xff]
    %v290 = vld [vmem:[%s1 + $0x2b0] sm:$0xff]
    %v291 = vld [vmem:[%s1 + $0x2b8] sm:$0xf]
    %v292 = vld [vmem:[%s1 + $0x2bc] sm:$0xff]
    %v293 = vld [vmem:[%s1 + $0x2c4] sm:$0xff]
    %v294 = vld [vmem:[%s1 + $0x2cc] sm:$0xff]
    %v295 = vld [vmem:[%s1 + $0x2d4] sm:$0xff]
    %v296 = vld [vmem:[%s1 + $0x2dc] sm:$0xff]
    %v297 = vld [vmem:[%s1 + $0x2e4] sm:$0xff]
    %v298 = vld [vmem:[%s1 + $0x2ec] sm:$0xff]
    %v299 = vld [vmem:[%s1 + $0x2f4] sm:$0xff]
    %v300 = vld [vmem:[%s1 + $0x2fc] sm:$0xff]
    %v301 = vld [vmem:[%s1 + $0x304] sm:$0xff]
    %v302 = vld [vmem:[%s1 + $0x30c] sm:$0xff]
    %v303 = vld [vmem:[%s1 + $0x314] sm:$0xff]
    %v304 = vld [vmem:[%s1 + $0x31c] sm:$0xf]
    %v305 = vld [vmem:[%s1 + $0x320] sm:$0xff]
    %v306 = vld [vmem:[%s1 + $0x328] sm:$0xff]
    %v307 = vld [vmem:[%s1 + $0x330] sm:$0xff]
    %v308 = vld [vmem:[%s1 + $0x338] sm:$0xff]
    %v309 = vld [vmem:[%s1 + $0x340] sm:$0xff]
    %v310 = vld [vmem:[%s1 + $0x348] sm:$0xff]
    %v311 = vld [vmem:[%s1 + $0x350] sm:$0xff]
    %v312 = vld [vmem:[%s1 + $0x358] sm:$0xff]
    %v313 = vld [vmem:[%s1 + $0x360] sm:$0xff]
    %v314 = vld [vmem:[%s1 + $0x368] sm:$0xff]
    %v315 = vld [vmem:[%s1 + $0x370] sm:$0xff]
    %v316 = vld [vmem:[%s1 + $0x378] sm:$0xff]
    %v317 = vld [vmem:[%s1 + $0x380] sm:$0xf]
    %v318 = vld [vmem:[%s1 + $0x384] sm:$0xff]
    %v319 = vld [vmem:[%s1 + $0x38c] sm:$0xff]
    %v320 = vld [vmem:[%s1 + $0x394] sm:$0xff]
    %v321 = vld [vmem:[%s1 + $0x39c] sm:$0xff]
    %v322 = vld [vmem:[%s1 + $0x3a4] sm:$0xff]
    %v323 = vld [vmem:[%s1 + $0x3ac] sm:$0xff]
    %v324 = vld [vmem:[%s1 + $0x3b4] sm:$0xff]
    %v325 = vld [vmem:[%s1 + $0x3bc] sm:$0xff]
    %v326 = vld [vmem:[%s1 + $0x3c4] sm:$0xff]
    %v327 = vld [vmem:[%s1 + $0x3cc] sm:$0xff]
    %v328 = vld [vmem:[%s1 + $0x3d4] sm:$0xff]
    %v329 = vld [vmem:[%s1 + $0x3dc] sm:$0xff]
    %v330 = vld [vmem:[%s1 + $0x3e4] sm:$0xf]
    %v331 = vld [vmem:[%s1 + $0x3e8] sm:$0xff]
    %v332 = vld [vmem:[%s1 + $0x3f0] sm:$0xff]
    %v333 = vld [vmem:[%s1 + $0x3f8] sm:$0xff]
    %v334 = vld [vmem:[%s1 + $0x400] sm:$0xff]
    %v335 = vld [vmem:[%s1 + $0x408] sm:$0xff]
    %v336 = vld [vmem:[%s1 + $0x410] sm:$0xff]
    %v337 = vld [vmem:[%s1 + $0x418] sm:$0xff]
    %v338 = vld [vmem:[%s1 + $0x420] sm:$0xff]
    %v339 = vld [vmem:[%s1 + $0x428] sm:$0xff]
    %v340 = vld [vmem:[%s1 + $0x430] sm:$0xff]
    %v341 = vld [vmem:[%s1 + $0x438] sm:$0xff]
    %v342 = vld [vmem:[%s1 + $0x440] sm:$0xff]
    %v343 = vld [vmem:[%s1 + $0x448] sm:$0xf]
    %v344 = vld [vmem:[%s1 + $0x44c] sm:$0xff]
    %v345 = vld [vmem:[%s1 + $0x454] sm:$0xff]
    %v346 = vld [vmem:[%s1 + $0x45c] sm:$0xff]
    %v347 = vld [vmem:[%s1 + $0x464] sm:$0xff]
    %v348 = vld [vmem:[%s1 + $0x46c] sm:$0xff]
    %v349 = vld [vmem:[%s1 + $0x474] sm:$0xff]
    %v350 = vld [vmem:[%s1 + $0x47c] sm:$0xff]
    %v351 = vld [vmem:[%s1 + $0x484] sm:$0xff]
    %v352 = vld [vmem:[%s1 + $0x48c] sm:$0xff]
    %v353 = vld [vmem:[%s1 + $0x494] sm:$0xff]
    %v354 = vld [vmem:[%s1 + $0x49c] sm:$0xff]
    %v355 = vld [vmem:[%s1 + $0x4a4] sm:$0xff]
    %v356 = vld [vmem:[%s1 + $0x4ac] sm:$0xf]
    %v357 = vld [vmem:[%s1 + $0x4b0] sm:$0xff]
    %v358 = vld [vmem:[%s1 + $0x4b8] sm:$0xff]
    %v359 = vld [vmem:[%s1 + $0x4c0] sm:$0xff]
    %v360 = vld [vmem:[%s1 + $0x4c8] sm:$0xff]
    %v361 = vld [vmem:[%s1 + $0x4d0] sm:$0xff]
    %v362 = vld [vmem:[%s1 + $0x4d8] sm:$0xff]
    %v363 = vld [vmem:[%s1 + $0x4e0] sm:$0xff]
    %v364 = vld [vmem:[%s1 + $0x4e8] sm:$0xff]
    %v365 = vld [vmem:[%s1 + $0x4f0] sm:$0xff]
    %v366 = vld [vmem:[%s1 + $0x4f8] sm:$0xff]
    %v367 = vld [vmem:[%s1 + $0x500] sm:$0xff]
    %v368 = vld [vmem:[%s1 + $0x508] sm:$0xff]
    %v369 = vld [vmem:[%s1 + $0x510] sm:$0xf]
    %v370 = vld [vmem:[%s1 + $0x514] sm:$0xff]
    %v371 = vld [vmem:[%s1 + $0x51c] sm:$0xff]
    %v372 = vld [vmem:[%s1 + $0x524] sm:$0xff]
    %v373 = vld [vmem:[%s1 + $0x52c] sm:$0xff]
    %v374 = vld [vmem:[%s1 + $0x534] sm:$0xff]
    %v375 = vld [vmem:[%s1 + $0x53c] sm:$0xff]
    %v376 = vld [vmem:[%s1 + $0x544] sm:$0xff]
    %v377 = vld [vmem:[%s1 + $0x54c] sm:$0xff]
    %v378 = vld [vmem:[%s1 + $0x554] sm:$0xff]
    %v379 = vld [vmem:[%s1 + $0x55c] sm:$0xff]
    %v380 = vld [vmem:[%s1 + $0x564] sm:$0xff]
    %v381 = vld [vmem:[%s1 + $0x56c] sm:$0xff]
    %v382 = vld [vmem:[%s1 + $0x574] sm:$0xf]
    %v383 = vld [vmem:[%s1 + $0x578] sm:$0xff]
    %v384 = vld [vmem:[%s1 + $0x580] sm:$0xff]
    %v385 = vld [vmem:[%s1 + $0x588] sm:$0xff]
    %v386 = vld [vmem:[%s1 + $0x590] sm:$0xff]
    %v387 = vld [vmem:[%s1 + $0x598] sm:$0xff]
    %v388 = vld [vmem:[%s1 + $0x5a0] sm:$0xff]
    %v389 = vld [vmem:[%s1 + $0x5a8] sm:$0xff]
    %v390 = vld [vmem:[%s1 + $0x5b0] sm:$0xff]
    %v391 = vld [vmem:[%s1 + $0x5b8] sm:$0xff]
    %v392 = vld [vmem:[%s1 + $0x5c0] sm:$0xff]
    %v393 = vld [vmem:[%s1 + $0x5c8] sm:$0xff]
    %v394 = vld [vmem:[%s1 + $0x5d0] sm:$0xff]
    %v395 = vld [vmem:[%s1 + $0x5d8] sm:$0xf]
    %v396 = vld [vmem:[%s2] sm:$0x1]
    %v398 = vlaneseq
    %v399 = vshrl.u32 %v398, 7
    %v400 = vsub.s32 0, %v399
    %v401 = vrot.slane %v396, %v400
    %v598 = vunpack.c.l.b16 %v201
    %v599 = vunpack.c.h.b16 %v201
    %v600 = vunpack.c.l.b16 %v202
    %v601 = vunpack.c.h.b16 %v202
    %v602 = vunpack.c.l.b16 %v203
    %v603 = vunpack.c.h.b16 %v203
    %v604 = vunpack.c.l.b16 %v204
    %v605 = vunpack.c.h.b16 %v204
    %v606 = vunpack.c.l.b16 %v205
    %v607 = vunpack.c.h.b16 %v205
    %v608 = vunpack.c.l.b16 %v206
    %v609 = vunpack.c.h.b16 %v206
    %v610 = vunpack.c.l.b16 %v207
    %v611 = vunpack.c.h.b16 %v207
    %v612 = vunpack.c.l.b16 %v208
    %v613 = vunpack.c.h.b16 %v208
    %v614 = vunpack.c.l.b16 %v209
    %v615 = vunpack.c.h.b16 %v209
    %v616 = vunpack.c.l.b16 %v210
    %v617 = vunpack.c.h.b16 %v210
    %v618 = vunpack.c.l.b16 %v211
    %v619 = vunpack.c.h.b16 %v211
    %v620 = vunpack.c.l.b16 %v212
    %v621 = vunpack.c.h.b16 %v212
    %v622 = vunpack.c.l.b16 %v213
    %v623 = vunpack.c.l.b16 %v214
    %v624 = vunpack.c.h.b16 %v214
    %v625 = vunpack.c.l.b16 %v215
    %v626 = vunpack.c.h.b16 %v215
    %v627 = vunpack.c.l.b16 %v216
    %v628 = vunpack.c.h.b16 %v216
    %v629 = vunpack.c.l.b16 %v217
    %v630 = vunpack.c.h.b16 %v217
    %v631 = vunpack.c.l.b16 %v218
    %v632 = vunpack.c.h.b16 %v218
    %v633 = vunpack.c.l.b16 %v219
    %v634 = vunpack.c.h.b16 %v219
    %v635 = vunpack.c.l.b16 %v220
    %v636 = vunpack.c.h.b16 %v220
    %v637 = vunpack.c.l.b16 %v221
    %v638 = vunpack.c.h.b16 %v221
    %v639 = vunpack.c.l.b16 %v222
    %v640 = vunpack.c.h.b16 %v222
    %v641 = vunpack.c.l.b16 %v223
    %v642 = vunpack.c.h.b16 %v223
    %v643 = vunpack.c.l.b16 %v224
    %v644 = vunpack.c.h.b16 %v224
    %v645 = vunpack.c.l.b16 %v225
    %v646 = vunpack.c.h.b16 %v225
    %v647 = vunpack.c.l.b16 %v226
    %v648 = vunpack.c.l.b16 %v227
    %v649 = vunpack.c.h.b16 %v227
    %v650 = vunpack.c.l.b16 %v228
    %v651 = vunpack.c.h.b16 %v228
    %v652 = vunpack.c.l.b16 %v229
    %v653 = vunpack.c.h.b16 %v229
    %v654 = vunpack.c.l.b16 %v230
    %v655 = vunpack.c.h.b16 %v230
    %v656 = vunpack.c.l.b16 %v231
    %v657 = vunpack.c.h.b16 %v231
    %v658 = vunpack.c.l.b16 %v232
    %v659 = vunpack.c.h.b16 %v232
    %v660 = vunpack.c.l.b16 %v233
    %v661 = vunpack.c.h.b16 %v233
    %v662 = vunpack.c.l.b16 %v234
    %v663 = vunpack.c.h.b16 %v234
    %v664 = vunpack.c.l.b16 %v235
    %v665 = vunpack.c.h.b16 %v235
    %v666 = vunpack.c.l.b16 %v236
    %v667 = vunpack.c.h.b16 %v236
    %v668 = vunpack.c.l.b16 %v237
    %v669 = vunpack.c.h.b16 %v237
    %v670 = vunpack.c.l.b16 %v238
    %v671 = vunpack.c.h.b16 %v238
    %v672 = vunpack.c.l.b16 %v239
    %v673 = vunpack.c.l.b16 %v240
    %v674 = vunpack.c.h.b16 %v240
    %v675 = vunpack.c.l.b16 %v241
    %v676 = vunpack.c.h.b16 %v241
    %v677 = vunpack.c.l.b16 %v242
    %v678 = vunpack.c.h.b16 %v242
    %v679 = vunpack.c.l.b16 %v243
    %v680 = vunpack.c.h.b16 %v243
    %v681 = vunpack.c.l.b16 %v244
    %v682 = vunpack.c.h.b16 %v244
    %v683 = vunpack.c.l.b16 %v245
    %v684 = vunpack.c.h.b16 %v245
    %v685 = vunpack.c.l.b16 %v246
    %v686 = vunpack.c.h.b16 %v246
    %v687 = vunpack.c.l.b16 %v247
    %v688 = vunpack.c.h.b16 %v247
    %v689 = vunpack.c.l.b16 %v248
    %v690 = vunpack.c.h.b16 %v248
    %v691 = vunpack.c.l.b16 %v249
    %v692 = vunpack.c.h.b16 %v249
    %v693 = vunpack.c.l.b16 %v250
    %v694 = vunpack.c.h.b16 %v250
    %v695 = vunpack.c.l.b16 %v251
    %v696 = vunpack.c.h.b16 %v251
    %v697 = vunpack.c.l.b16 %v252
    %v698 = vunpack.c.l.b16 %v253
    %v699 = vunpack.c.h.b16 %v253
    %v700 = vunpack.c.l.b16 %v254
    %v701 = vunpack.c.h.b16 %v254
    %v702 = vunpack.c.l.b16 %v255
    %v703 = vunpack.c.h.b16 %v255
    %v704 = vunpack.c.l.b16 %v256
    %v705 = vunpack.c.h.b16 %v256
    %v706 = vunpack.c.l.b16 %v257
    %v707 = vunpack.c.h.b16 %v257
    %v708 = vunpack.c.l.b16 %v258
    %v709 = vunpack.c.h.b16 %v258
    %v710 = vunpack.c.l.b16 %v259
    %v711 = vunpack.c.h.b16 %v259
    %v712 = vunpack.c.l.b16 %v260
    %v713 = vunpack.c.h.b16 %v260
    %v714 = vunpack.c.l.b16 %v261
    %v715 = vunpack.c.h.b16 %v261
    %v716 = vunpack.c.l.b16 %v262
    %v717 = vunpack.c.h.b16 %v262
    %v718 = vunpack.c.l.b16 %v263
    %v719 = vunpack.c.h.b16 %v263
    %v720 = vunpack.c.l.b16 %v264
    %v721 = vunpack.c.h.b16 %v264
    %v722 = vunpack.c.l.b16 %v265
    %v723 = vunpack.c.l.b16 %v266
    %v724 = vunpack.c.h.b16 %v266
    %v725 = vunpack.c.l.b16 %v267
    %v726 = vunpack.c.h.b16 %v267
    %v727 = vunpack.c.l.b16 %v268
    %v728 = vunpack.c.h.b16 %v268
    %v729 = vunpack.c.l.b16 %v269
    %v730 = vunpack.c.h.b16 %v269
    %v731 = vunpack.c.l.b16 %v270
    %v732 = vunpack.c.h.b16 %v270
    %v733 = vunpack.c.l.b16 %v271
    %v734 = vunpack.c.h.b16 %v271
    %v735 = vunpack.c.l.b16 %v272
    %v736 = vunpack.c.h.b16 %v272
    %v737 = vunpack.c.l.b16 %v273
    %v738 = vunpack.c.h.b16 %v273
    %v739 = vunpack.c.l.b16 %v274
    %v740 = vunpack.c.h.b16 %v274
    %v741 = vunpack.c.l.b16 %v275
    %v742 = vunpack.c.h.b16 %v275
    %v743 = vunpack.c.l.b16 %v276
    %v744 = vunpack.c.h.b16 %v276
    %v745 = vunpack.c.l.b16 %v277
    %v746 = vunpack.c.h.b16 %v277
    %v747 = vunpack.c.l.b16 %v278
    %v748 = vunpack.c.l.b16 %v279
    %v749 = vunpack.c.h.b16 %v279
    %v750 = vunpack.c.l.b16 %v280
    %v751 = vunpack.c.h.b16 %v280
    %v752 = vunpack.c.l.b16 %v281
    %v753 = vunpack.c.h.b16 %v281
    %v754 = vunpack.c.l.b16 %v282
    %v755 = vunpack.c.h.b16 %v282
    %v756 = vunpack.c.l.b16 %v283
    %v757 = vunpack.c.h.b16 %v283
    %v758 = vunpack.c.l.b16 %v284
    %v759 = vunpack.c.h.b16 %v284
    %v760 = vunpack.c.l.b16 %v285
    %v761 = vunpack.c.h.b16 %v285
    %v762 = vunpack.c.l.b16 %v286
    %v763 = vunpack.c.h.b16 %v286
    %v764 = vunpack.c.l.b16 %v287
    %v765 = vunpack.c.h.b16 %v287
    %v766 = vunpack.c.l.b16 %v288
    %v767 = vunpack.c.h.b16 %v288
    %v768 = vunpack.c.l.b16 %v289
    %v769 = vunpack.c.h.b16 %v289
    %v770 = vunpack.c.l.b16 %v290
    %v771 = vunpack.c.h.b16 %v290
    %v772 = vunpack.c.l.b16 %v291
    %v773 = vunpack.c.l.b16 %v292
    %v774 = vunpack.c.h.b16 %v292
    %v775 = vunpack.c.l.b16 %v293
    %v776 = vunpack.c.h.b16 %v293
    %v777 = vunpack.c.l.b16 %v294
    %v778 = vunpack.c.h.b16 %v294
    %v779 = vunpack.c.l.b16 %v295
    %v780 = vunpack.c.h.b16 %v295
    %v781 = vunpack.c.l.b16 %v296
    %v782 = vunpack.c.h.b16 %v296
    %v783 = vunpack.c.l.b16 %v297
    %v784 = vunpack.c.h.b16 %v297
    %v785 = vunpack.c.l.b16 %v298
    %v786 = vunpack.c.h.b16 %v298
    %v787 = vunpack.c.l.b16 %v299
    %v788 = vunpack.c.h.b16 %v299
    %v789 = vunpack.c.l.b16 %v300
    %v790 = vunpack.c.h.b16 %v300
    %v791 = vunpack.c.l.b16 %v301
    %v792 = vunpack.c.h.b16 %v301
    %v793 = vunpack.c.l.b16 %v302
    %v794 = vunpack.c.h.b16 %v302
    %v795 = vunpack.c.l.b16 %v303
    %v796 = vunpack.c.h.b16 %v303
    %v797 = vunpack.c.l.b16 %v304
    %v798 = vunpack.c.l.b16 %v305
    %v799 = vunpack.c.h.b16 %v305
    %v800 = vunpack.c.l.b16 %v306
    %v801 = vunpack.c.h.b16 %v306
    %v802 = vunpack.c.l.b16 %v307
    %v803 = vunpack.c.h.b16 %v307
    %v804 = vunpack.c.l.b16 %v308
    %v805 = vunpack.c.h.b16 %v308
    %v806 = vunpack.c.l.b16 %v309
    %v807 = vunpack.c.h.b16 %v309
    %v808 = vunpack.c.l.b16 %v310
    %v809 = vunpack.c.h.b16 %v310
    %v810 = vunpack.c.l.b16 %v311
    %v811 = vunpack.c.h.b16 %v311
    %v812 = vunpack.c.l.b16 %v312
    %v813 = vunpack.c.h.b16 %v312
    %v814 = vunpack.c.l.b16 %v313
    %v815 = vunpack.c.h.b16 %v313
    %v816 = vunpack.c.l.b16 %v314
    %v817 = vunpack.c.h.b16 %v314
    %v818 = vunpack.c.l.b16 %v315
    %v819 = vunpack.c.h.b16 %v315
    %v820 = vunpack.c.l.b16 %v316
    %v821 = vunpack.c.h.b16 %v316
    %v822 = vunpack.c.l.b16 %v317
    %v823 = vunpack.c.l.b16 %v318
    %v824 = vunpack.c.h.b16 %v318
    %v825 = vunpack.c.l.b16 %v319
    %v826 = vunpack.c.h.b16 %v319
    %v827 = vunpack.c.l.b16 %v320
    %v828 = vunpack.c.h.b16 %v320
    %v829 = vunpack.c.l.b16 %v321
    %v830 = vunpack.c.h.b16 %v321
    %v831 = vunpack.c.l.b16 %v322
    %v832 = vunpack.c.h.b16 %v322
    %v833 = vunpack.c.l.b16 %v323
    %v834 = vunpack.c.h.b16 %v323
    %v835 = vunpack.c.l.b16 %v324
    %v836 = vunpack.c.h.b16 %v324
    %v837 = vunpack.c.l.b16 %v325
    %v838 = vunpack.c.h.b16 %v325
    %v839 = vunpack.c.l.b16 %v326
    %v840 = vunpack.c.h.b16 %v326
    %v841 = vunpack.c.l.b16 %v327
    %v842 = vunpack.c.h.b16 %v327
    %v843 = vunpack.c.l.b16 %v328
    %v844 = vunpack.c.h.b16 %v328
    %v845 = vunpack.c.l.b16 %v329
    %v846 = vunpack.c.h.b16 %v329
    %v847 = vunpack.c.l.b16 %v330
    %v848 = vunpack.c.l.b16 %v331
    %v849 = vunpack.c.h.b16 %v331
    %v850 = vunpack.c.l.b16 %v332
    %v851 = vunpack.c.h.b16 %v332
    %v852 = vunpack.c.l.b16 %v333
    %v853 = vunpack.c.h.b16 %v333
    %v854 = vunpack.c.l.b16 %v334
    %v855 = vunpack.c.h.b16 %v334
    %v856 = vunpack.c.l.b16 %v335
    %v857 = vunpack.c.h.b16 %v335
    %v858 = vunpack.c.l.b16 %v336
    %v859 = vunpack.c.h.b16 %v336
    %v860 = vunpack.c.l.b16 %v337
    %v861 = vunpack.c.h.b16 %v337
    %v862 = vunpack.c.l.b16 %v338
    %v863 = vunpack.c.h.b16 %v338
    %v864 = vunpack.c.l.b16 %v339
    %v865 = vunpack.c.h.b16 %v339
    %v866 = vunpack.c.l.b16 %v340
    %v867 = vunpack.c.h.b16 %v340
    %v868 = vunpack.c.l.b16 %v341
    %v869 = vunpack.c.h.b16 %v341
    %v870 = vunpack.c.l.b16 %v342
    %v871 = vunpack.c.h.b16 %v342
    %v872 = vunpack.c.l.b16 %v343
    %v873 = vunpack.c.l.b16 %v344
    %v874 = vunpack.c.h.b16 %v344
    %v875 = vunpack.c.l.b16 %v345
    %v876 = vunpack.c.h.b16 %v345
    %v877 = vunpack.c.l.b16 %v346
    %v878 = vunpack.c.h.b16 %v346
    %v879 = vunpack.c.l.b16 %v347
    %v880 = vunpack.c.h.b16 %v347
    %v881 = vunpack.c.l.b16 %v348
    %v882 = vunpack.c.h.b16 %v348
    %v883 = vunpack.c.l.b16 %v349
    %v884 = vunpack.c.h.b16 %v349
    %v885 = vunpack.c.l.b16 %v350
    %v886 = vunpack.c.h.b16 %v350
    %v887 = vunpack.c.l.b16 %v351
    %v888 = vunpack.c.h.b16 %v351
    %v889 = vunpack.c.l.b16 %v352
    %v890 = vunpack.c.h.b16 %v352
    %v891 = vunpack.c.l.b16 %v353
    %v892 = vunpack.c.h.b16 %v353
    %v893 = vunpack.c.l.b16 %v354
    %v894 = vunpack.c.h.b16 %v354
    %v895 = vunpack.c.l.b16 %v355
    %v896 = vunpack.c.h.b16 %v355
    %v897 = vunpack.c.l.b16 %v356
    %v898 = vunpack.c.l.b16 %v357
    %v899 = vunpack.c.h.b16 %v357
    %v900 = vunpack.c.l.b16 %v358
    %v901 = vunpack.c.h.b16 %v358
    %v902 = vunpack.c.l.b16 %v359
    %v903 = vunpack.c.h.b16 %v359
    %v904 = vunpack.c.l.b16 %v360
    %v905 = vunpack.c.h.b16 %v360
    %v906 = vunpack.c.l.b16 %v361
    %v907 = vunpack.c.h.b16 %v361
    %v908 = vunpack.c.l.b16 %v362
    %v909 = vunpack.c.h.b16 %v362
    %v910 = vunpack.c.l.b16 %v363
    %v911 = vunpack.c.h.b16 %v363
    %v912 = vunpack.c.l.b16 %v364
    %v913 = vunpack.c.h.b16 %v364
    %v914 = vunpack.c.l.b16 %v365
    %v915 = vunpack.c.h.b16 %v365
    %v916 = vunpack.c.l.b16 %v366
    %v917 = vunpack.c.h.b16 %v366
    %v918 = vunpack.c.l.b16 %v367
    %v919 = vunpack.c.h.b16 %v367
    %v920 = vunpack.c.l.b16 %v368
    %v921 = vunpack.c.h.b16 %v368
    %v922 = vunpack.c.l.b16 %v369
    %v923 = vunpack.c.l.b16 %v370
    %v924 = vunpack.c.h.b16 %v370
    %v925 = vunpack.c.l.b16 %v371
    %v926 = vunpack.c.h.b16 %v371
    %v927 = vunpack.c.l.b16 %v372
    %v928 = vunpack.c.h.b16 %v372
    %v929 = vunpack.c.l.b16 %v373
    %v930 = vunpack.c.h.b16 %v373
    %v931 = vunpack.c.l.b16 %v374
    %v932 = vunpack.c.h.b16 %v374
    %v933 = vunpack.c.l.b16 %v375
    %v934 = vunpack.c.h.b16 %v375
    %v935 = vunpack.c.l.b16 %v376
    %v936 = vunpack.c.h.b16 %v376
    %v937 = vunpack.c.l.b16 %v377
    %v938 = vunpack.c.h.b16 %v377
    %v939 = vunpack.c.l.b16 %v378
    %v940 = vunpack.c.h.b16 %v378
    %v941 = vunpack.c.l.b16 %v379
    %v942 = vunpack.c.h.b16 %v379
    %v943 = vunpack.c.l.b16 %v380
    %v944 = vunpack.c.h.b16 %v380
    %v945 = vunpack.c.l.b16 %v381
    %v946 = vunpack.c.h.b16 %v381
    %v947 = vunpack.c.l.b16 %v382
    %v948 = vunpack.c.l.b16 %v383
    %v949 = vunpack.c.h.b16 %v383
    %v950 = vunpack.c.l.b16 %v384
    %v951 = vunpack.c.h.b16 %v384
    %v952 = vunpack.c.l.b16 %v385
    %v953 = vunpack.c.h.b16 %v385
    %v954 = vunpack.c.l.b16 %v386
    %v955 = vunpack.c.h.b16 %v386
    %v956 = vunpack.c.l.b16 %v387
    %v957 = vunpack.c.h.b16 %v387
    %v958 = vunpack.c.l.b16 %v388
    %v959 = vunpack.c.h.b16 %v388
    %v960 = vunpack.c.l.b16 %v389
    %v961 = vunpack.c.h.b16 %v389
    %v962 = vunpack.c.l.b16 %v390
    %v963 = vunpack.c.h.b16 %v390
    %v964 = vunpack.c.l.b16 %v391
    %v965 = vunpack.c.h.b16 %v391
    %v966 = vunpack.c.l.b16 %v392
    %v967 = vunpack.c.h.b16 %v392
    %v968 = vunpack.c.l.b16 %v393
    %v969 = vunpack.c.h.b16 %v393
    %v970 = vunpack.c.l.b16 %v394
    %v971 = vunpack.c.h.b16 %v394
    %v972 = vunpack.c.l.b16 %v395
    %v973 = vpack.c.b16 %v623, %v598
    %v974 = vpack.c.b16 %v624, %v599
    %v975 = vpack.c.b16 %v625, %v600
    %v976 = vpack.c.b16 %v626, %v601
    %v977 = vpack.c.b16 %v627, %v602
    %v978 = vpack.c.b16 %v628, %v603
    %v979 = vpack.c.b16 %v629, %v604
    %v980 = vpack.c.b16 %v630, %v605
    %v981 = vpack.c.b16 %v631, %v606
    %v982 = vpack.c.b16 %v632, %v607
    %v983 = vpack.c.b16 %v633, %v608
    %v984 = vpack.c.b16 %v634, %v609
    %v985 = vpack.c.b16 %v635, %v610
    %v986 = vpack.c.b16 %v636, %v611
    %v987 = vpack.c.b16 %v637, %v612
    %v988 = vpack.c.b16 %v638, %v613
    %v989 = vpack.c.b16 %v639, %v614
    %v990 = vpack.c.b16 %v640, %v615
    %v991 = vpack.c.b16 %v641, %v616
    %v992 = vpack.c.b16 %v642, %v617
    %v993 = vpack.c.b16 %v643, %v618
    %v994 = vpack.c.b16 %v644, %v619
    %v995 = vpack.c.b16 %v645, %v620
    %v996 = vpack.c.b16 %v646, %v621
    %v997 = vpack.c.b16 %v647, %v622
    %v998 = vpack.c.b16 %v673, %v648
    %v999 = vpack.c.b16 %v674, %v649
    %v1000 = vpack.c.b16 %v675, %v650
    %v1001 = vpack.c.b16 %v676, %v651
    %v1002 = vpack.c.b16 %v677, %v652
    %v1003 = vpack.c.b16 %v678, %v653
    %v1004 = vpack.c.b16 %v679, %v654
    %v1005 = vpack.c.b16 %v680, %v655
    %v1006 = vpack.c.b16 %v681, %v656
    %v1007 = vpack.c.b16 %v682, %v657
    %v1008 = vpack.c.b16 %v683, %v658
    %v1009 = vpack.c.b16 %v684, %v659
    %v1010 = vpack.c.b16 %v685, %v660
    %v1011 = vpack.c.b16 %v686, %v661
    %v1012 = vpack.c.b16 %v687, %v662
    %v1013 = vpack.c.b16 %v688, %v663
    %v1014 = vpack.c.b16 %v689, %v664
    %v1015 = vpack.c.b16 %v690, %v665
    %v1016 = vpack.c.b16 %v691, %v666
    %v1017 = vpack.c.b16 %v692, %v667
    %v1018 = vpack.c.b16 %v693, %v668
    %v1019 = vpack.c.b16 %v694, %v669
    %v1020 = vpack.c.b16 %v695, %v670
    %v1021 = vpack.c.b16 %v696, %v671
    %v1022 = vpack.c.b16 %v697, %v672
    %v1023 = vpack.c.b16 %v723, %v698
    %v1024 = vpack.c.b16 %v724, %v699
    %v1025 = vpack.c.b16 %v725, %v700
    %v1026 = vpack.c.b16 %v726, %v701
    %v1027 = vpack.c.b16 %v727, %v702
    %v1028 = vpack.c.b16 %v728, %v703
    %v1029 = vpack.c.b16 %v729, %v704
    %v1030 = vpack.c.b16 %v730, %v705
    %v1031 = vpack.c.b16 %v731, %v706
    %v1032 = vpack.c.b16 %v732, %v707
    %v1033 = vpack.c.b16 %v733, %v708
    %v1034 = vpack.c.b16 %v734, %v709
    %v1035 = vpack.c.b16 %v735, %v710
    %v1036 = vpack.c.b16 %v736, %v711
    %v1037 = vpack.c.b16 %v737, %v712
    %v1038 = vpack.c.b16 %v738, %v713
    %v1039 = vpack.c.b16 %v739, %v714
    %v1040 = vpack.c.b16 %v740, %v715
    %v1041 = vpack.c.b16 %v741, %v716
    %v1042 = vpack.c.b16 %v742, %v717
    %v1043 = vpack.c.b16 %v743, %v718
    %v1044 = vpack.c.b16 %v744, %v719
    %v1045 = vpack.c.b16 %v745, %v720
    %v1046 = vpack.c.b16 %v746, %v721
    %v1047 = vpack.c.b16 %v747, %v722
    %v1048 = vpack.c.b16 %v773, %v748
    %v1049 = vpack.c.b16 %v774, %v749
    %v1050 = vpack.c.b16 %v775, %v750
    %v1051 = vpack.c.b16 %v776, %v751
    %v1052 = vpack.c.b16 %v777, %v752
    %v1053 = vpack.c.b16 %v778, %v753
    %v1054 = vpack.c.b16 %v779, %v754
    %v1055 = vpack.c.b16 %v780, %v755
    %v1056 = vpack.c.b16 %v781, %v756
    %v1057 = vpack.c.b16 %v782, %v757
    %v1058 = vpack.c.b16 %v783, %v758
    %v1059 = vpack.c.b16 %v784, %v759
    %v1060 = vpack.c.b16 %v785, %v760
    %v1061 = vpack.c.b16 %v786, %v761
    %v1062 = vpack.c.b16 %v787, %v762
    %v1063 = vpack.c.b16 %v788, %v763
    %v1064 = vpack.c.b16 %v789, %v764
    %v1065 = vpack.c.b16 %v790, %v765
    %v1066 = vpack.c.b16 %v791, %v766
    %v1067 = vpack.c.b16 %v792, %v767
    %v1068 = vpack.c.b16 %v793, %v768
    %v1069 = vpack.c.b16 %v794, %v769
    %v1070 = vpack.c.b16 %v795, %v770
    %v1071 = vpack.c.b16 %v796, %v771
    %v1072 = vpack.c.b16 %v797, %v772
    %v1073 = vpack.c.b16 %v823, %v798
    %v1074 = vpack.c.b16 %v824, %v799
    %v1075 = vpack.c.b16 %v825, %v800
    %v1076 = vpack.c.b16 %v826, %v801
    %v1077 = vpack.c.b16 %v827, %v802
    %v1078 = vpack.c.b16 %v828, %v803
    %v1079 = vpack.c.b16 %v829, %v804
    %v1080 = vpack.c.b16 %v830, %v805
    %v1081 = vpack.c.b16 %v831, %v806
    %v1082 = vpack.c.b16 %v832, %v807
    %v1083 = vpack.c.b16 %v833, %v808
    %v1084 = vpack.c.b16 %v834, %v809
    %v1085 = vpack.c.b16 %v835, %v810
    %v1086 = vpack.c.b16 %v836, %v811
    %v1087 = vpack.c.b16 %v837, %v812
    %v1088 = vpack.c.b16 %v838, %v813
    %v1089 = vpack.c.b16 %v839, %v814
    %v1090 = vpack.c.b16 %v840, %v815
    %v1091 = vpack.c.b16 %v841, %v816
    %v1092 = vpack.c.b16 %v842, %v817
    %v1093 = vpack.c.b16 %v843, %v818
    %v1094 = vpack.c.b16 %v844, %v819
    %v1095 = vpack.c.b16 %v845, %v820
    %v1096 = vpack.c.b16 %v846, %v821
    %v1097 = vpack.c.b16 %v847, %v822
    %v1098 = vpack.c.b16 %v873, %v848
    %v1099 = vpack.c.b16 %v874, %v849
    %v1100 = vpack.c.b16 %v875, %v850
    %v1101 = vpack.c.b16 %v876, %v851
    %v1102 = vpack.c.b16 %v877, %v852
    %v1103 = vpack.c.b16 %v878, %v853
    %v1104 = vpack.c.b16 %v879, %v854
    %v1105 = vpack.c.b16 %v880, %v855
    %v1106 = vpack.c.b16 %v881, %v856
    %v1107 = vpack.c.b16 %v882, %v857
    %v1108 = vpack.c.b16 %v883, %v858
    %v1109 = vpack.c.b16 %v884, %v859
    %v1110 = vpack.c.b16 %v885, %v860
    %v1111 = vpack.c.b16 %v886, %v861
    %v1112 = vpack.c.b16 %v887, %v862
    %v1113 = vpack.c.b16 %v888, %v863
    %v1114 = vpack.c.b16 %v889, %v864
    %v1115 = vpack.c.b16 %v890, %v865
    %v1116 = vpack.c.b16 %v891, %v866
    %v1117 = vpack.c.b16 %v892, %v867
    %v1118 = vpack.c.b16 %v893, %v868
    %v1119 = vpack.c.b16 %v894, %v869
    %v1120 = vpack.c.b16 %v895, %v870
    %v1121 = vpack.c.b16 %v896, %v871
    %v1122 = vpack.c.b16 %v897, %v872
    %v1123 = vpack.c.b16 %v923, %v898
    %v1124 = vpack.c.b16 %v924, %v899
    %v1125 = vpack.c.b16 %v925, %v900
    %v1126 = vpack.c.b16 %v926, %v901
    %v1127 = vpack.c.b16 %v927, %v902
    %v1128 = vpack.c.b16 %v928, %v903
    %v1129 = vpack.c.b16 %v929, %v904
    %v1130 = vpack.c.b16 %v930, %v905
    %v1131 = vpack.c.b16 %v931, %v906
    %v1132 = vpack.c.b16 %v932, %v907
    %v1133 = vpack.c.b16 %v933, %v908
    %v1134 = vpack.c.b16 %v934, %v909
    %v1135 = vpack.c.b16 %v935, %v910
    %v1136 = vpack.c.b16 %v936, %v911
    %v1137 = vpack.c.b16 %v937, %v912
    %v1138 = vpack.c.b16 %v938, %v913
    %v1139 = vpack.c.b16 %v939, %v914
    %v1140 = vpack.c.b16 %v940, %v915
    %v1141 = vpack.c.b16 %v941, %v916
    %v1142 = vpack.c.b16 %v942, %v917
    %v1143 = vpack.c.b16 %v943, %v918
    %v1144 = vpack.c.b16 %v944, %v919
    %v1145 = vpack.c.b16 %v945, %v920
    %v1146 = vpack.c.b16 %v946, %v921
    %v1147 = vpack.c.b16 %v947, %v922
    %v1148 = vpack.c.b16 %v948, %v948
    %v1149 = vpack.c.b16 %v949, %v949
    %v1150 = vpack.c.b16 %v950, %v950
    %v1151 = vpack.c.b16 %v951, %v951
    %v1152 = vpack.c.b16 %v952, %v952
    %v1153 = vpack.c.b16 %v953, %v953
    %v1154 = vpack.c.b16 %v954, %v954
    %v1155 = vpack.c.b16 %v955, %v955
    %v1156 = vpack.c.b16 %v956, %v956
    %v1157 = vpack.c.b16 %v957, %v957
    %v1158 = vpack.c.b16 %v958, %v958
    %v1159 = vpack.c.b16 %v959, %v959
    %v1160 = vpack.c.b16 %v960, %v960
    %v1161 = vpack.c.b16 %v961, %v961
    %v1162 = vpack.c.b16 %v962, %v962
    %v1163 = vpack.c.b16 %v963, %v963
    %v1164 = vpack.c.b16 %v964, %v964
    %v1165 = vpack.c.b16 %v965, %v965
    %v1166 = vpack.c.b16 %v966, %v966
    %v1167 = vpack.c.b16 %v967, %v967
    %v1168 = vpack.c.b16 %v968, %v968
    %v1169 = vpack.c.b16 %v969, %v969
    %v1170 = vpack.c.b16 %v970, %v970
    %v1171 = vpack.c.b16 %v971, %v971
    %v1172 = vpack.c.b16 %v972, %v972
    %vm1365 = vcmask 523264
    %v1367 = vsel %vm1365, %v200, 0
    %v1370 = vsel %vm1365, %v997, 0
    %v1373 = vsel %vm1365, %v1022, 0
    %v1376 = vsel %vm1365, %v1047, 0
    %v1379 = vsel %vm1365, %v1072, 0
    %v1382 = vsel %vm1365, %v1097, 0
    %v1385 = vsel %vm1365, %v1122, 0
    %v1388 = vsel %vm1365, %v1147, 0
    %v1391 = vsel %vm1365, %v1172, 0
    %1393 = vmatprep.subr.bf16.mxu0 %v974
    %1394 = vmatpush1.bf16.xpose.msra.mxu0 %v973
    %1395 = vmatprep.subr.bf16.mxu0 %v999
    %1396 = vmatpush1.bf16.xpose.msra.mxu0 %v998
    %1397 = vmatprep.subr.bf16.mxu0 %v1024
    %1398 = vmatpush1.bf16.xpose.msra.mxu0 %v1023
    %1399 = vmatprep.subr.bf16.mxu0 %v1049
    %1400 = vmatpush1.bf16.xpose.msra.mxu0 %v1048
    %1401 = vmatprep.subr.bf16.mxu0 %v1074
    %1402 = vmatpush1.bf16.xpose.msra.mxu0 %v1073
    %1403 = vmatprep.subr.bf16.mxu0 %v1099
    %1404 = vmatpush1.bf16.xpose.msra.mxu0 %v1098
    %1405 = vmatprep.subr.bf16.mxu0 %v1124
    %1406 = vmatpush1.bf16.xpose.msra.mxu0 %v1123
    %1407 = vmatprep.subr.bf16.mxu0 %v1149
    %1408 = vmatpush1.bf16.xpose.msra.mxu0 %v1148
    %1409 = vmatprep.subr.bf16.mxu0 0
    %1410 = vmatpush1.bf16.xpose.msra.mxu0 0
    %1411 = vmatprep.subr.bf16.mxu0 0
    %1412 = vmatpush1.bf16.xpose.msra.mxu0 0
    %1413 = vmatprep.subr.bf16.mxu0 0
    %1414 = vmatpush1.bf16.xpose.msra.mxu0 0
    %1415 = vmatprep.subr.bf16.mxu0 0
    %1416 = vmatpush1.bf16.xpose.msra.mxu0 0
    %1417 = vmatprep.subr.bf16.mxu0 0
    %1418 = vmatpush1.bf16.xpose.msra.mxu0 0
    %1419 = vmatprep.subr.bf16.mxu0 0
    %1420 = vmatpush1.bf16.xpose.msra.mxu0 0
    %1421 = vmatprep.subr.bf16.mxu0 0
    %1422 = vmatpush1.bf16.xpose.msra.mxu0 0
    %1423 = vmatprep.subr.bf16.mxu0 0
    %1424 = vmatpush1.bf16.xpose.msra.mxu0 0
    %1425 = vmatprep.mubr.bf16.mxu0 %v177
    %1426 = vmatmul.mubr.bf16.gmra.mrb[0].mxu0 %v176
    %v1427 = vpop.f32.mrb[0].mxu0
    %v1428 = vadd.f32 %v401, %v1427
    %v1429 = vpop.f32.mrb[0].mxu0
    %v1430 = vpop.f32.mrb[0].mxu0
    %v1431 = vpop.f32.mrb[0].mxu0
    %1432 = vdwg.mxu0
    %1433 = vmatprep.subr.bf16.mxu0 %v976
    %1434 = vmatpush1.bf16.xpose.msra.mxu0 %v975
    %1435 = vmatprep.subr.bf16.mxu0 %v1001
    %1436 = vmatpush1.bf16.xpose.msra.mxu0 %v1000
    %1437 = vmatprep.subr.bf16.mxu0 %v1026
    %1438 = vmatpush1.bf16.xpose.msra.mxu0 %v1025
    %1439 = vmatprep.subr.bf16.mxu0 %v1051
    %1440 = vmatpush1.bf16.xpose.msra.mxu0 %v1050
    %1441 = vmatprep.subr.bf16.mxu0 %v1076
    %1442 = vmatpush1.bf16.xpose.msra.mxu0 %v1075
    %1443 = vmatprep.subr.bf16.mxu0 %v1101
    %1444 = vmatpush1.bf16.xpose.msra.mxu0 %v1100
    %1445 = vmatprep.subr.bf16.mxu0 %v1126
    %1446 = vmatpush1.bf16.xpose.msra.mxu0 %v1125
    %1447 = vmatprep.subr.bf16.mxu0 %v1151
    %1448 = vmatpush1.bf16.xpose.msra.mxu0 %v1150
    %1449 = vmatprep.subr.bf16.mxu0 0
    %1450 = vmatpush1.bf16.xpose.msra.mxu0 0
    %1451 = vmatprep.subr.bf16.mxu0 0
    %1452 = vmatpush1.bf16.xpose.msra.mxu0 0
    %1453 = vmatprep.subr.bf16.mxu0 0
    %1454 = vmatpush1.bf16.xpose.msra.mxu0 0
    %1455 = vmatprep.subr.bf16.mxu0 0
    %1456 = vmatpush1.bf16.xpose.msra.mxu0 0
    %1457 = vmatprep.subr.bf16.mxu0 0
    %1458 = vmatpush1.bf16.xpose.msra.mxu0 0
    %1459 = vmatprep.subr.bf16.mxu0 0
    %1460 = vmatpush1.bf16.xpose.msra.mxu0 0
    %1461 = vmatprep.subr.bf16.mxu0 0
    %1462 = vmatpush1.bf16.xpose.msra.mxu0 0
    %1463 = vmatprep.subr.bf16.mxu0 0
    %1464 = vmatpush1.bf16.xpose.msra.mxu0 0
    %1465 = vmatprep.mubr.bf16.mxu0 %v179
    %1466 = vmatmul.mubr.bf16.gmra.mrb[0].mxu0 %v178
    %v1467 = vpop.f32.mrb[0].mxu0
    %v1468 = vadd.f32 %v1428, %v1467
    %v1469 = vpop.f32.mrb[0].mxu0
    %v1470 = vpop.f32.mrb[0].mxu0
    %v1471 = vpop.f32.mrb[0].mxu0
    %1472 = vdwg.mxu0
    %1473 = vmatprep.subr.bf16.mxu0 %v978
    %1474 = vmatpush1.bf16.xpose.msra.mxu0 %v977
    %1475 = vmatprep.subr.bf16.mxu0 %v1003
    %1476 = vmatpush1.bf16.xpose.msra.mxu0 %v1002
    %1477 = vmatprep.subr.bf16.mxu0 %v1028
    %1478 = vmatpush1.bf16.xpose.msra.mxu0 %v1027
    %1479 = vmatprep.subr.bf16.mxu0 %v1053
    %1480 = vmatpush1.bf16.xpose.msra.mxu0 %v1052
    %1481 = vmatprep.subr.bf16.mxu0 %v1078
    %1482 = vmatpush1.bf16.xpose.msra.mxu0 %v1077
    %1483 = vmatprep.subr.bf16.mxu0 %v1103
    %1484 = vmatpush1.bf16.xpose.msra.mxu0 %v1102
    %1485 = vmatprep.subr.bf16.mxu0 %v1128
    %1486 = vmatpush1.bf16.xpose.msra.mxu0 %v1127
    %1487 = vmatprep.subr.bf16.mxu0 %v1153
    %1488 = vmatpush1.bf16.xpose.msra.mxu0 %v1152
    %1489 = vmatprep.subr.bf16.mxu0 0
    %1490 = vmatpush1.bf16.xpose.msra.mxu0 0
    %1491 = vmatprep.subr.bf16.mxu0 0
    %1492 = vmatpush1.bf16.xpose.msra.mxu0 0
    %1493 = vmatprep.subr.bf16.mxu0 0
    %1494 = vmatpush1.bf16.xpose.msra.mxu0 0
    %1495 = vmatprep.subr.bf16.mxu0 0
    %1496 = vmatpush1.bf16.xpose.msra.mxu0 0
    %1497 = vmatprep.subr.bf16.mxu0 0
    %1498 = vmatpush1.bf16.xpose.msra.mxu0 0
    %1499 = vmatprep.subr.bf16.mxu0 0
    %1500 = vmatpush1.bf16.xpose.msra.mxu0 0
    %1501 = vmatprep.subr.bf16.mxu0 0
    %1502 = vmatpush1.bf16.xpose.msra.mxu0 0
    %1503 = vmatprep.subr.bf16.mxu0 0
    %1504 = vmatpush1.bf16.xpose.msra.mxu0 0
    %1505 = vmatprep.mubr.bf16.mxu0 %v181
    %1506 = vmatmul.mubr.bf16.gmra.mrb[0].mxu0 %v180
    %v1507 = vpop.f32.mrb[0].mxu0
    %v1508 = vadd.f32 %v1468, %v1507
    %v1509 = vpop.f32.mrb[0].mxu0
    %v1510 = vpop.f32.mrb[0].mxu0
    %v1511 = vpop.f32.mrb[0].mxu0
    %1512 = vdwg.mxu0
    %1513 = vmatprep.subr.bf16.mxu0 %v980
    %1514 = vmatpush1.bf16.xpose.msra.mxu0 %v979
    %1515 = vmatprep.subr.bf16.mxu0 %v1005
    %1516 = vmatpush1.bf16.xpose.msra.mxu0 %v1004
    %1517 = vmatprep.subr.bf16.mxu0 %v1030
    %1518 = vmatpush1.bf16.xpose.msra.mxu0 %v1029
    %1519 = vmatprep.subr.bf16.mxu0 %v1055
    %1520 = vmatpush1.bf16.xpose.msra.mxu0 %v1054
    %1521 = vmatprep.subr.bf16.mxu0 %v1080
    %1522 = vmatpush1.bf16.xpose.msra.mxu0 %v1079
    %1523 = vmatprep.subr.bf16.mxu0 %v1105
    %1524 = vmatpush1.bf16.xpose.msra.mxu0 %v1104
    %1525 = vmatprep.subr.bf16.mxu0 %v1130
    %1526 = vmatpush1.bf16.xpose.msra.mxu0 %v1129
    %1527 = vmatprep.subr.bf16.mxu0 %v1155
    %1528 = vmatpush1.bf16.xpose.msra.mxu0 %v1154
    %1529 = vmatprep.subr.bf16.mxu0 0
    %1530 = vmatpush1.bf16.xpose.msra.mxu0 0
    %1531 = vmatprep.subr.bf16.mxu0 0
    %1532 = vmatpush1.bf16.xpose.msra.mxu0 0
    %1533 = vmatprep.subr.bf16.mxu0 0
    %1534 = vmatpush1.bf16.xpose.msra.mxu0 0
    %1535 = vmatprep.subr.bf16.mxu0 0
    %1536 = vmatpush1.bf16.xpose.msra.mxu0 0
    %1537 = vmatprep.subr.bf16.mxu0 0
    %1538 = vmatpush1.bf16.xpose.msra.mxu0 0
    %1539 = vmatprep.subr.bf16.mxu0 0
    %1540 = vmatpush1.bf16.xpose.msra.mxu0 0
    %1541 = vmatprep.subr.bf16.mxu0 0
    %1542 = vmatpush1.bf16.xpose.msra.mxu0 0
    %1543 = vmatprep.subr.bf16.mxu0 0
    %1544 = vmatpush1.bf16.xpose.msra.mxu0 0
    %1545 = vmatprep.mubr.bf16.mxu0 %v183
    %1546 = vmatmul.mubr.bf16.gmra.mrb[0].mxu0 %v182
    %v1547 = vpop.f32.mrb[0].mxu0
    %v1548 = vadd.f32 %v1508, %v1547
    %v1549 = vpop.f32.mrb[0].mxu0
    %v1550 = vpop.f32.mrb[0].mxu0
    %v1551 = vpop.f32.mrb[0].mxu0
    %1552 = vdwg.mxu0
    %1553 = vmatprep.subr.bf16.mxu0 %v982
    %1554 = vmatpush1.bf16.xpose.msra.mxu0 %v981
    %1555 = vmatprep.subr.bf16.mxu0 %v1007
    %1556 = vmatpush1.bf16.xpose.msra.mxu0 %v1006
    %1557 = vmatprep.subr.bf16.mxu0 %v1032
    %1558 = vmatpush1.bf16.xpose.msra.mxu0 %v1031
    %1559 = vmatprep.subr.bf16.mxu0 %v1057
    %1560 = vmatpush1.bf16.xpose.msra.mxu0 %v1056
    %1561 = vmatprep.subr.bf16.mxu0 %v1082
    %1562 = vmatpush1.bf16.xpose.msra.mxu0 %v1081
    %1563 = vmatprep.subr.bf16.mxu0 %v1107
    %1564 = vmatpush1.bf16.xpose.msra.mxu0 %v1106
    %1565 = vmatprep.subr.bf16.mxu0 %v1132
    %1566 = vmatpush1.bf16.xpose.msra.mxu0 %v1131
    %1567 = vmatprep.subr.bf16.mxu0 %v1157
    %1568 = vmatpush1.bf16.xpose.msra.mxu0 %v1156
    %1569 = vmatprep.subr.bf16.mxu0 0
    %1570 = vmatpush1.bf16.xpose.msra.mxu0 0
    %1571 = vmatprep.subr.bf16.mxu0 0
    %1572 = vmatpush1.bf16.xpose.msra.mxu0 0
    %1573 = vmatprep.subr.bf16.mxu0 0
    %1574 = vmatpush1.bf16.xpose.msra.mxu0 0
    %1575 = vmatprep.subr.bf16.mxu0 0
    %1576 = vmatpush1.bf16.xpose.msra.mxu0 0
    %1577 = vmatprep.subr.bf16.mxu0 0
    %1578 = vmatpush1.bf16.xpose.msra.mxu0 0
    %1579 = vmatprep.subr.bf16.mxu0 0
    %1580 = vmatpush1.bf16.xpose.msra.mxu0 0
    %1581 = vmatprep.subr.bf16.mxu0 0
    %1582 = vmatpush1.bf16.xpose.msra.mxu0 0
    %1583 = vmatprep.subr.bf16.mxu0 0
    %1584 = vmatpush1.bf16.xpose.msra.mxu0 0
    %1585 = vmatprep.mubr.bf16.mxu0 %v185
    %1586 = vmatmul.mubr.bf16.gmra.mrb[0].mxu0 %v184
    %v1587 = vpop.f32.mrb[0].mxu0
    %v1588 = vadd.f32 %v1548, %v1587
    %v1589 = vpop.f32.mrb[0].mxu0
    %v1590 = vpop.f32.mrb[0].mxu0
    %v1591 = vpop.f32.mrb[0].mxu0
    %1592 = vdwg.mxu0
    %1593 = vmatprep.subr.bf16.mxu0 %v984
    %1594 = vmatpush1.bf16.xpose.msra.mxu0 %v983
    %1595 = vmatprep.subr.bf16.mxu0 %v1009
    %1596 = vmatpush1.bf16.xpose.msra.mxu0 %v1008
    %1597 = vmatprep.subr.bf16.mxu0 %v1034
    %1598 = vmatpush1.bf16.xpose.msra.mxu0 %v1033
    %1599 = vmatprep.subr.bf16.mxu0 %v1059
    %1600 = vmatpush1.bf16.xpose.msra.mxu0 %v1058
    %1601 = vmatprep.subr.bf16.mxu0 %v1084
    %1602 = vmatpush1.bf16.xpose.msra.mxu0 %v1083
    %1603 = vmatprep.subr.bf16.mxu0 %v1109
    %1604 = vmatpush1.bf16.xpose.msra.mxu0 %v1108
    %1605 = vmatprep.subr.bf16.mxu0 %v1134
    %1606 = vmatpush1.bf16.xpose.msra.mxu0 %v1133
    %1607 = vmatprep.subr.bf16.mxu0 %v1159
    %1608 = vmatpush1.bf16.xpose.msra.mxu0 %v1158
    %1609 = vmatprep.subr.bf16.mxu0 0
    %1610 = vmatpush1.bf16.xpose.msra.mxu0 0
    %1611 = vmatprep.subr.bf16.mxu0 0
    %1612 = vmatpush1.bf16.xpose.msra.mxu0 0
    %1613 = vmatprep.subr.bf16.mxu0 0
    %1614 = vmatpush1.bf16.xpose.msra.mxu0 0
    %1615 = vmatprep.subr.bf16.mxu0 0
    %1616 = vmatpush1.bf16.xpose.msra.mxu0 0
    %1617 = vmatprep.subr.bf16.mxu0 0
    %1618 = vmatpush1.bf16.xpose.msra.mxu0 0
    %1619 = vmatprep.subr.bf16.mxu0 0
    %1620 = vmatpush1.bf16.xpose.msra.mxu0 0
    %1621 = vmatprep.subr.bf16.mxu0 0
    %1622 = vmatpush1.bf16.xpose.msra.mxu0 0
    %1623 = vmatprep.subr.bf16.mxu0 0
    %1624 = vmatpush1.bf16.xpose.msra.mxu0 0
    %1625 = vmatprep.mubr.bf16.mxu0 %v187
    %1626 = vmatmul.mubr.bf16.gmra.mrb[0].mxu0 %v186
    %v1627 = vpop.f32.mrb[0].mxu0
    %v1628 = vadd.f32 %v1588, %v1627
    %v1629 = vpop.f32.mrb[0].mxu0
    %v1630 = vpop.f32.mrb[0].mxu0
    %v1631 = vpop.f32.mrb[0].mxu0
    %1632 = vdwg.mxu0
    %1633 = vmatprep.subr.bf16.mxu0 %v986
    %1634 = vmatpush1.bf16.xpose.msra.mxu0 %v985
    %1635 = vmatprep.subr.bf16.mxu0 %v1011
    %1636 = vmatpush1.bf16.xpose.msra.mxu0 %v1010
    %1637 = vmatprep.subr.bf16.mxu0 %v1036
    %1638 = vmatpush1.bf16.xpose.msra.mxu0 %v1035
    %1639 = vmatprep.subr.bf16.mxu0 %v1061
    %1640 = vmatpush1.bf16.xpose.msra.mxu0 %v1060
    %1641 = vmatprep.subr.bf16.mxu0 %v1086
    %1642 = vmatpush1.bf16.xpose.msra.mxu0 %v1085
    %1643 = vmatprep.subr.bf16.mxu0 %v1111
    %1644 = vmatpush1.bf16.xpose.msra.mxu0 %v1110
    %1645 = vmatprep.subr.bf16.mxu0 %v1136
    %1646 = vmatpush1.bf16.xpose.msra.mxu0 %v1135
    %1647 = vmatprep.subr.bf16.mxu0 %v1161
    %1648 = vmatpush1.bf16.xpose.msra.mxu0 %v1160
    %1649 = vmatprep.subr.bf16.mxu0 0
    %1650 = vmatpush1.bf16.xpose.msra.mxu0 0
    %1651 = vmatprep.subr.bf16.mxu0 0
    %1652 = vmatpush1.bf16.xpose.msra.mxu0 0
    %1653 = vmatprep.subr.bf16.mxu0 0
    %1654 = vmatpush1.bf16.xpose.msra.mxu0 0
    %1655 = vmatprep.subr.bf16.mxu0 0
    %1656 = vmatpush1.bf16.xpose.msra.mxu0 0
    %1657 = vmatprep.subr.bf16.mxu0 0
    %1658 = vmatpush1.bf16.xpose.msra.mxu0 0
    %1659 = vmatprep.subr.bf16.mxu0 0
    %1660 = vmatpush1.bf16.xpose.msra.mxu0 0
    %1661 = vmatprep.subr.bf16.mxu0 0
    %1662 = vmatpush1.bf16.xpose.msra.mxu0 0
    %1663 = vmatprep.subr.bf16.mxu0 0
    %1664 = vmatpush1.bf16.xpose.msra.mxu0 0
    %1665 = vmatprep.mubr.bf16.mxu0 %v189
    %1666 = vmatmul.mubr.bf16.gmra.mrb[0].mxu0 %v188
    %v1667 = vpop.f32.mrb[0].mxu0
    %v1668 = vadd.f32 %v1628, %v1667
    %v1669 = vpop.f32.mrb[0].mxu0
    %v1670 = vpop.f32.mrb[0].mxu0
    %v1671 = vpop.f32.mrb[0].mxu0
    %1672 = vdwg.mxu0
    %1673 = vmatprep.subr.bf16.mxu0 %v988
    %1674 = vmatpush1.bf16.xpose.msra.mxu0 %v987
    %1675 = vmatprep.subr.bf16.mxu0 %v1013
    %1676 = vmatpush1.bf16.xpose.msra.mxu0 %v1012
    %1677 = vmatprep.subr.bf16.mxu0 %v1038
    %1678 = vmatpush1.bf16.xpose.msra.mxu0 %v1037
    %1679 = vmatprep.subr.bf16.mxu0 %v1063
    %1680 = vmatpush1.bf16.xpose.msra.mxu0 %v1062
    %1681 = vmatprep.subr.bf16.mxu0 %v1088
    %1682 = vmatpush1.bf16.xpose.msra.mxu0 %v1087
    %1683 = vmatprep.subr.bf16.mxu0 %v1113
    %1684 = vmatpush1.bf16.xpose.msra.mxu0 %v1112
    %1685 = vmatprep.subr.bf16.mxu0 %v1138
    %1686 = vmatpush1.bf16.xpose.msra.mxu0 %v1137
    %1687 = vmatprep.subr.bf16.mxu0 %v1163
    %1688 = vmatpush1.bf16.xpose.msra.mxu0 %v1162
    %1689 = vmatprep.subr.bf16.mxu0 0
    %1690 = vmatpush1.bf16.xpose.msra.mxu0 0
    %1691 = vmatprep.subr.bf16.mxu0 0
    %1692 = vmatpush1.bf16.xpose.msra.mxu0 0
    %1693 = vmatprep.subr.bf16.mxu0 0
    %1694 = vmatpush1.bf16.xpose.msra.mxu0 0
    %1695 = vmatprep.subr.bf16.mxu0 0
    %1696 = vmatpush1.bf16.xpose.msra.mxu0 0
    %1697 = vmatprep.subr.bf16.mxu0 0
    %1698 = vmatpush1.bf16.xpose.msra.mxu0 0
    %1699 = vmatprep.subr.bf16.mxu0 0
    %1700 = vmatpush1.bf16.xpose.msra.mxu0 0
    %1701 = vmatprep.subr.bf16.mxu0 0
    %1702 = vmatpush1.bf16.xpose.msra.mxu0 0
    %1703 = vmatprep.subr.bf16.mxu0 0
    %1704 = vmatpush1.bf16.xpose.msra.mxu0 0
    %1705 = vmatprep.mubr.bf16.mxu0 %v191
    %1706 = vmatmul.mubr.bf16.gmra.mrb[0].mxu0 %v190
    %v1707 = vpop.f32.mrb[0].mxu0
    %v1708 = vadd.f32 %v1668, %v1707
    %v1709 = vpop.f32.mrb[0].mxu0
    %v1710 = vpop.f32.mrb[0].mxu0
    %v1711 = vpop.f32.mrb[0].mxu0
    %1712 = vdwg.mxu0
    %1713 = vmatprep.subr.bf16.mxu0 %v990
    %1714 = vmatpush1.bf16.xpose.msra.mxu0 %v989
    %1715 = vmatprep.subr.bf16.mxu0 %v1015
    %1716 = vmatpush1.bf16.xpose.msra.mxu0 %v1014
    %1717 = vmatprep.subr.bf16.mxu0 %v1040
    %1718 = vmatpush1.bf16.xpose.msra.mxu0 %v1039
    %1719 = vmatprep.subr.bf16.mxu0 %v1065
    %1720 = vmatpush1.bf16.xpose.msra.mxu0 %v1064
    %1721 = vmatprep.subr.bf16.mxu0 %v1090
    %1722 = vmatpush1.bf16.xpose.msra.mxu0 %v1089
    %1723 = vmatprep.subr.bf16.mxu0 %v1115
    %1724 = vmatpush1.bf16.xpose.msra.mxu0 %v1114
    %1725 = vmatprep.subr.bf16.mxu0 %v1140
    %1726 = vmatpush1.bf16.xpose.msra.mxu0 %v1139
    %1727 = vmatprep.subr.bf16.mxu0 %v1165
    %1728 = vmatpush1.bf16.xpose.msra.mxu0 %v1164
    %1729 = vmatprep.subr.bf16.mxu0 0
    %1730 = vmatpush1.bf16.xpose.msra.mxu0 0
    %1731 = vmatprep.subr.bf16.mxu0 0
    %1732 = vmatpush1.bf16.xpose.msra.mxu0 0
    %1733 = vmatprep.subr.bf16.mxu0 0
    %1734 = vmatpush1.bf16.xpose.msra.mxu0 0
    %1735 = vmatprep.subr.bf16.mxu0 0
    %1736 = vmatpush1.bf16.xpose.msra.mxu0 0
    %1737 = vmatprep.subr.bf16.mxu0 0
    %1738 = vmatpush1.bf16.xpose.msra.mxu0 0
    %1739 = vmatprep.subr.bf16.mxu0 0
    %1740 = vmatpush1.bf16.xpose.msra.mxu0 0
    %1741 = vmatprep.subr.bf16.mxu0 0
    %1742 = vmatpush1.bf16.xpose.msra.mxu0 0
    %1743 = vmatprep.subr.bf16.mxu0 0
    %1744 = vmatpush1.bf16.xpose.msra.mxu0 0
    %1745 = vmatprep.mubr.bf16.mxu0 %v193
    %1746 = vmatmul.mubr.bf16.gmra.mrb[0].mxu0 %v192
    %v1747 = vpop.f32.mrb[0].mxu0
    %v1748 = vadd.f32 %v1708, %v1747
    %v1749 = vpop.f32.mrb[0].mxu0
    %v1750 = vpop.f32.mrb[0].mxu0
    %v1751 = vpop.f32.mrb[0].mxu0
    %1752 = vdwg.mxu0
    %1753 = vmatprep.subr.bf16.mxu0 %v992
    %1754 = vmatpush1.bf16.xpose.msra.mxu0 %v991
    %1755 = vmatprep.subr.bf16.mxu0 %v1017
    %1756 = vmatpush1.bf16.xpose.msra.mxu0 %v1016
    %1757 = vmatprep.subr.bf16.mxu0 %v1042
    %1758 = vmatpush1.bf16.xpose.msra.mxu0 %v1041
    %1759 = vmatprep.subr.bf16.mxu0 %v1067
    %1760 = vmatpush1.bf16.xpose.msra.mxu0 %v1066
    %1761 = vmatprep.subr.bf16.mxu0 %v1092
    %1762 = vmatpush1.bf16.xpose.msra.mxu0 %v1091
    %1763 = vmatprep.subr.bf16.mxu0 %v1117
    %1764 = vmatpush1.bf16.xpose.msra.mxu0 %v1116
    %1765 = vmatprep.subr.bf16.mxu0 %v1142
    %1766 = vmatpush1.bf16.xpose.msra.mxu0 %v1141
    %1767 = vmatprep.subr.bf16.mxu0 %v1167
    %1768 = vmatpush1.bf16.xpose.msra.mxu0 %v1166
    %1769 = vmatprep.subr.bf16.mxu0 0
    %1770 = vmatpush1.bf16.xpose.msra.mxu0 0
    %1771 = vmatprep.subr.bf16.mxu0 0
    %1772 = vmatpush1.bf16.xpose.msra.mxu0 0
    %1773 = vmatprep.subr.bf16.mxu0 0
    %1774 = vmatpush1.bf16.xpose.msra.mxu0 0
    %1775 = vmatprep.subr.bf16.mxu0 0
    %1776 = vmatpush1.bf16.xpose.msra.mxu0 0
    %1777 = vmatprep.subr.bf16.mxu0 0
    %1778 = vmatpush1.bf16.xpose.msra.mxu0 0
    %1779 = vmatprep.subr.bf16.mxu0 0
    %1780 = vmatpush1.bf16.xpose.msra.mxu0 0
    %1781 = vmatprep.subr.bf16.mxu0 0
    %1782 = vmatpush1.bf16.xpose.msra.mxu0 0
    %1783 = vmatprep.subr.bf16.mxu0 0
    %1784 = vmatpush1.bf16.xpose.msra.mxu0 0
    %1785 = vmatprep.mubr.bf16.mxu0 %v195
    %1786 = vmatmul.mubr.bf16.gmra.mrb[0].mxu0 %v194
    %v1787 = vpop.f32.mrb[0].mxu0
    %v1788 = vadd.f32 %v1748, %v1787
    %v1789 = vpop.f32.mrb[0].mxu0
    %v1790 = vpop.f32.mrb[0].mxu0
    %v1791 = vpop.f32.mrb[0].mxu0
    %1792 = vdwg.mxu0
    %1793 = vmatprep.subr.bf16.mxu0 %v994
    %1794 = vmatpush1.bf16.xpose.msra.mxu0 %v993
    %1795 = vmatprep.subr.bf16.mxu0 %v1019
    %1796 = vmatpush1.bf16.xpose.msra.mxu0 %v1018
    %1797 = vmatprep.subr.bf16.mxu0 %v1044
    %1798 = vmatpush1.bf16.xpose.msra.mxu0 %v1043
    %1799 = vmatprep.subr.bf16.mxu0 %v1069
    %1800 = vmatpush1.bf16.xpose.msra.mxu0 %v1068
    %1801 = vmatprep.subr.bf16.mxu0 %v1094
    %1802 = vmatpush1.bf16.xpose.msra.mxu0 %v1093
    %1803 = vmatprep.subr.bf16.mxu0 %v1119
    %1804 = vmatpush1.bf16.xpose.msra.mxu0 %v1118
    %1805 = vmatprep.subr.bf16.mxu0 %v1144
    %1806 = vmatpush1.bf16.xpose.msra.mxu0 %v1143
    %1807 = vmatprep.subr.bf16.mxu0 %v1169
    %1808 = vmatpush1.bf16.xpose.msra.mxu0 %v1168
    %1809 = vmatprep.subr.bf16.mxu0 0
    %1810 = vmatpush1.bf16.xpose.msra.mxu0 0
    %1811 = vmatprep.subr.bf16.mxu0 0
    %1812 = vmatpush1.bf16.xpose.msra.mxu0 0
    %1813 = vmatprep.subr.bf16.mxu0 0
    %1814 = vmatpush1.bf16.xpose.msra.mxu0 0
    %1815 = vmatprep.subr.bf16.mxu0 0
    %1816 = vmatpush1.bf16.xpose.msra.mxu0 0
    %1817 = vmatprep.subr.bf16.mxu0 0
    %1818 = vmatpush1.bf16.xpose.msra.mxu0 0
    %1819 = vmatprep.subr.bf16.mxu0 0
    %1820 = vmatpush1.bf16.xpose.msra.mxu0 0
    %1821 = vmatprep.subr.bf16.mxu0 0
    %1822 = vmatpush1.bf16.xpose.msra.mxu0 0
    %1823 = vmatprep.subr.bf16.mxu0 0
    %1824 = vmatpush1.bf16.xpose.msra.mxu0 0
    %1825 = vmatprep.mubr.bf16.mxu0 %v197
    %1826 = vmatmul.mubr.bf16.gmra.mrb[0].mxu0 %v196
    %v1827 = vpop.f32.mrb[0].mxu0
    %v1828 = vadd.f32 %v1788, %v1827
    %v1829 = vpop.f32.mrb[0].mxu0
    %v1830 = vpop.f32.mrb[0].mxu0
    %v1831 = vpop.f32.mrb[0].mxu0
    %1832 = vdwg.mxu0
    %1833 = vmatprep.subr.bf16.mxu0 %v996
    %1834 = vmatpush1.bf16.xpose.msra.mxu0 %v995
    %1835 = vmatprep.subr.bf16.mxu0 %v1021
    %1836 = vmatpush1.bf16.xpose.msra.mxu0 %v1020
    %1837 = vmatprep.subr.bf16.mxu0 %v1046
    %1838 = vmatpush1.bf16.xpose.msra.mxu0 %v1045
    %1839 = vmatprep.subr.bf16.mxu0 %v1071
    %1840 = vmatpush1.bf16.xpose.msra.mxu0 %v1070
    %1841 = vmatprep.subr.bf16.mxu0 %v1096
    %1842 = vmatpush1.bf16.xpose.msra.mxu0 %v1095
    %1843 = vmatprep.subr.bf16.mxu0 %v1121
    %1844 = vmatpush1.bf16.xpose.msra.mxu0 %v1120
    %1845 = vmatprep.subr.bf16.mxu0 %v1146
    %1846 = vmatpush1.bf16.xpose.msra.mxu0 %v1145
    %1847 = vmatprep.subr.bf16.mxu0 %v1171
    %1848 = vmatpush1.bf16.xpose.msra.mxu0 %v1170
    %1849 = vmatprep.subr.bf16.mxu0 0
    %1850 = vmatpush1.bf16.xpose.msra.mxu0 0
    %1851 = vmatprep.subr.bf16.mxu0 0
    %1852 = vmatpush1.bf16.xpose.msra.mxu0 0
    %1853 = vmatprep.subr.bf16.mxu0 0
    %1854 = vmatpush1.bf16.xpose.msra.mxu0 0
    %1855 = vmatprep.subr.bf16.mxu0 0
    %1856 = vmatpush1.bf16.xpose.msra.mxu0 0
    %1857 = vmatprep.subr.bf16.mxu0 0
    %1858 = vmatpush1.bf16.xpose.msra.mxu0 0
    %1859 = vmatprep.subr.bf16.mxu0 0
    %1860 = vmatpush1.bf16.xpose.msra.mxu0 0
    %1861 = vmatprep.subr.bf16.mxu0 0
    %1862 = vmatpush1.bf16.xpose.msra.mxu0 0
    %1863 = vmatprep.subr.bf16.mxu0 0
    %1864 = vmatpush1.bf16.xpose.msra.mxu0 0
    %1865 = vmatprep.mubr.bf16.mxu0 %v199
    %1866 = vmatmul.mubr.bf16.gmra.mrb[0].mxu0 %v198
    %v1867 = vpop.f32.mrb[0].mxu0
    %v1868 = vadd.f32 %v1828, %v1867
    %v1869 = vpop.f32.mrb[0].mxu0
    %v1870 = vpop.f32.mrb[0].mxu0
    %v1871 = vpop.f32.mrb[0].mxu0
    %1872 = vdwg.mxu0
    %1873 = vmatprep.subr.bf16.mxu0 0
    %1874 = vmatpush1.bf16.xpose.msra.mxu0 %v1370
    %1875 = vmatprep.subr.bf16.mxu0 0
    %1876 = vmatpush1.bf16.xpose.msra.mxu0 %v1373
    %1877 = vmatprep.subr.bf16.mxu0 0
    %1878 = vmatpush1.bf16.xpose.msra.mxu0 %v1376
    %1879 = vmatprep.subr.bf16.mxu0 0
    %1880 = vmatpush1.bf16.xpose.msra.mxu0 %v1379
    %1881 = vmatprep.subr.bf16.mxu0 0
    %1882 = vmatpush1.bf16.xpose.msra.mxu0 %v1382
    %1883 = vmatprep.subr.bf16.mxu0 0
    %1884 = vmatpush1.bf16.xpose.msra.mxu0 %v1385
    %1885 = vmatprep.subr.bf16.mxu0 0
    %1886 = vmatpush1.bf16.xpose.msra.mxu0 %v1388
    %1887 = vmatprep.subr.bf16.mxu0 0
    %1888 = vmatpush1.bf16.xpose.msra.mxu0 %v1391
    %1889 = vmatprep.subr.bf16.mxu0 0
    %1890 = vmatpush1.bf16.xpose.msra.mxu0 0
    %1891 = vmatprep.subr.bf16.mxu0 0
    %1892 = vmatpush1.bf16.xpose.msra.mxu0 0
    %1893 = vmatprep.subr.bf16.mxu0 0
    %1894 = vmatpush1.bf16.xpose.msra.mxu0 0
    %1895 = vmatprep.subr.bf16.mxu0 0
    %1896 = vmatpush1.bf16.xpose.msra.mxu0 0
    %1897 = vmatprep.subr.bf16.mxu0 0
    %1898 = vmatpush1.bf16.xpose.msra.mxu0 0
    %1899 = vmatprep.subr.bf16.mxu0 0
    %1900 = vmatpush1.bf16.xpose.msra.mxu0 0
    %1901 = vmatprep.subr.bf16.mxu0 0
    %1902 = vmatpush1.bf16.xpose.msra.mxu0 0
    %1903 = vmatprep.subr.bf16.mxu0 0
    %1904 = vmatpush1.bf16.xpose.msra.mxu0 0
    %1905 = vmatprep.mubr.bf16.mxu0 0
    %1906 = vmatmul.mubr.bf16.gmra.mrb[0].mxu0 %v1367
    %v1907 = vpop.f32.mrb[0].mxu0
    %v1908 = vadd.f32 %v1868, %v1907
    %v1909 = vpop.f32.mrb[0].mxu0
    %v1910 = vpop.f32.mrb[0].mxu0
    %v1911 = vpop.f32.mrb[0].mxu0
    %1912 = vdwg.mxu0
    %v1913 = vmax.f32 %v1908, 0.0
    %v1914 = vpack.c.bf16 %v1913, %v1913
    %v1915 = vld [vmem:[%s3] sm:$0xf]
    %v1916 = vld [vmem:[%s3 + $0x4] sm:$0xf]
    %v1917 = vld [vmem:[%s3 + $0x8] sm:$0xf]
    %v1918 = vld [vmem:[%s3 + $0xc] sm:$0xf]
    %v1919 = vld [vmem:[%s3 + $0x10] sm:$0xf]
    %v1920 = vld [vmem:[%s3 + $0x14] sm:$0xf]
    %v1921 = vld [vmem:[%s3 + $0x18] sm:$0xf]
    %v1922 = vld [vmem:[%s3 + $0x1c] sm:$0xf]
    %v1923 = vld [vmem:[%s3 + $0x20] sm:$0xf]
    %v1924 = vld [vmem:[%s3 + $0x24] sm:$0xf]
    %v1925 = vld [vmem:[%s3 + $0x28] sm:$0x3]
    %v1926 = vld [vmem:[%s4] sm:$0x1]
    %v1928 = vlaneseq
    %v1929 = vshrl.u32 %v1928, 7
    %v1930 = vsub.s32 0, %v1929
    %v1931 = vrot.slane %v1926, %v1930
    %v1944 = vunpack.c.l.b16 %v1915
    %v1945 = vunpack.c.l.b16 %v1916
    %v1946 = vunpack.c.l.b16 %v1917
    %v1947 = vunpack.c.l.b16 %v1918
    %v1948 = vunpack.c.l.b16 %v1919
    %v1949 = vunpack.c.l.b16 %v1920
    %v1950 = vunpack.c.l.b16 %v1921
    %v1951 = vunpack.c.l.b16 %v1922
    %v1952 = vunpack.c.l.b16 %v1923
    %v1953 = vunpack.c.l.b16 %v1924
    %v1954 = vunpack.c.l.b16 %v1925
    %v1955 = vpack.c.b16 %v1945, %v1944
    %v1956 = vpack.c.b16 %v1947, %v1946
    %v1957 = vpack.c.b16 %v1949, %v1948
    %v1958 = vpack.c.b16 %v1951, %v1950
    %v1959 = vpack.c.b16 %v1953, %v1952
    %v1960 = vpack.c.b16 %v1954, %v1954
    %vm1961 = vcmask 982016
    %v1963 = vsel %vm1961, %v1914, 0
    %v1966 = vsel %vm1961, %v1955, 0
    %v1969 = vsel %vm1961, %v1956, 0
    %v1972 = vsel %vm1961, %v1957, 0
    %v1975 = vsel %vm1961, %v1958, 0
    %v1978 = vsel %vm1961, %v1959, 0
    %v1981 = vsel %vm1961, %v1960, 0
    %1983 = vmatprep.subr.bf16.mxu0 0
    %1984 = vmatpush1.bf16.xpose.msra.mxu0 %v1966
    %1985 = vmatprep.subr.bf16.mxu0 0
    %1986 = vmatpush1.bf16.xpose.msra.mxu0 %v1969
    %1987 = vmatprep.subr.bf16.mxu0 0
    %1988 = vmatpush1.bf16.xpose.msra.mxu0 %v1972
    %1989 = vmatprep.subr.bf16.mxu0 0
    %1990 = vmatpush1.bf16.xpose.msra.mxu0 %v1975
    %1991 = vmatprep.subr.bf16.mxu0 0
    %1992 = vmatpush1.bf16.xpose.msra.mxu0 %v1978
    %1993 = vmatprep.subr.bf16.mxu0 0
    %1994 = vmatpush1.bf16.xpose.msra.mxu0 %v1981
    %1995 = vmatprep.subr.bf16.mxu0 0
    %1996 = vmatpush1.bf16.xpose.msra.mxu0 0
    %1997 = vmatprep.subr.bf16.mxu0 0
    %1998 = vmatpush1.bf16.xpose.msra.mxu0 0
    %1999 = vmatprep.subr.bf16.mxu0 0
    %2000 = vmatpush1.bf16.xpose.msra.mxu0 0
    %2001 = vmatprep.subr.bf16.mxu0 0
    %2002 = vmatpush1.bf16.xpose.msra.mxu0 0
    %2003 = vmatprep.subr.bf16.mxu0 0
    %2004 = vmatpush1.bf16.xpose.msra.mxu0 0
    %2005 = vmatprep.subr.bf16.mxu0 0
    %2006 = vmatpush1.bf16.xpose.msra.mxu0 0
    %2007 = vmatprep.subr.bf16.mxu0 0
    %2008 = vmatpush1.bf16.xpose.msra.mxu0 0
    %2009 = vmatprep.subr.bf16.mxu0 0
    %2010 = vmatpush1.bf16.xpose.msra.mxu0 0
    %2011 = vmatprep.subr.bf16.mxu0 0
    %2012 = vmatpush1.bf16.xpose.msra.mxu0 0
    %2013 = vmatprep.subr.bf16.mxu0 0
    %2014 = vmatpush1.bf16.xpose.msra.mxu0 0
    %2015 = vmatprep.mubr.bf16.mxu0 0
    %2016 = vmatmul.mubr.bf16.gmra.mrb[0].mxu0 %v1963
    %v2017 = vpop.f32.mrb[0].mxu0
    %v2018 = vadd.f32 %v1931, %v2017
    %v2019 = vpop.f32.mrb[0].mxu0
    %v2020 = vpop.f32.mrb[0].mxu0
    %v2021 = vpop.f32.mrb[0].mxu0
    %2022 = vdwg.mxu0
    %v2023 = vmax.f32 %v2018, 0.0
    %v2024 = vpack.c.bf16 %v2023, %v2023
    %v2025 = vld [vmem:[%s5] sm:$0x1]
    %v2026 = vld [vmem:[%s6] sm:$0x1]
    %v2028 = vlaneseq
    %v2029 = vshrl.u32 %v2028, 7
    %v2030 = vsub.s32 0, %v2029
    %v2031 = vrot.slane %v2026, %v2030
    %vm2033 = vcmask 687104
    %v2035 = vsel %vm2033, %v2024, 0
    %v2038 = vsel %vm2033, %v2025, 0
    %2040 = vmatprep.subr.bf16.mxu0 0
    %2041 = vmatpush1.bf16.xpose.msra.mxu0 %v2038
    %2042 = vmatprep.subr.bf16.mxu0 0
    %2043 = vmatpush1.bf16.xpose.msra.mxu0 0
    %2044 = vmatprep.subr.bf16.mxu0 0
    %2045 = vmatpush1.bf16.xpose.msra.mxu0 0
    %2046 = vmatprep.subr.bf16.mxu0 0
    %2047 = vmatpush1.bf16.xpose.msra.mxu0 0
    %2048 = vmatprep.subr.bf16.mxu0 0
    %2049 = vmatpush1.bf16.xpose.msra.mxu0 0
    %2050 = vmatprep.subr.bf16.mxu0 0
    %2051 = vmatpush1.bf16.xpose.msra.mxu0 0
    %2052 = vmatprep.subr.bf16.mxu0 0
    %2053 = vmatpush1.bf16.xpose.msra.mxu0 0
    %2054 = vmatprep.subr.bf16.mxu0 0
    %2055 = vmatpush1.bf16.xpose.msra.mxu0 0
    %2056 = vmatprep.subr.bf16.mxu0 0
    %2057 = vmatpush1.bf16.xpose.msra.mxu0 0
    %2058 = vmatprep.subr.bf16.mxu0 0
    %2059 = vmatpush1.bf16.xpose.msra.mxu0 0
    %2060 = vmatprep.subr.bf16.mxu0 0
    %2061 = vmatpush1.bf16.xpose.msra.mxu0 0
    %2062 = vmatprep.subr.bf16.mxu0 0
    %2063 = vmatpush1.bf16.xpose.msra.mxu0 0
    %2064 = vmatprep.subr.bf16.mxu0 0
    %2065 = vmatpush1.bf16.xpose.msra.mxu0 0
    %2066 = vmatprep.subr.bf16.mxu0 0
    %2067 = vmatpush1.bf16.xpose.msra.mxu0 0
    %2068 = vmatprep.subr.bf16.mxu0 0
    %2069 = vmatpush1.bf16.xpose.msra.mxu0 0
    %2070 = vmatprep.subr.bf16.mxu0 0
    %2071 = vmatpush1.bf16.xpose.msra.mxu0 0
    %2072 = vmatprep.mubr.bf16.mxu0 0
    %2073 = vmatmul.mubr.bf16.gmra.mrb[0].mxu0 %v2035
    %v2074 = vpop.f32.mrb[0].mxu0
    %v2075 = vadd.f32 %v2031, %v2074
    %v2076 = vpop.f32.mrb[0].mxu0
    %v2077 = vpop.f32.mrb[0].mxu0
    %v2078 = vpop.f32.mrb[0].mxu0
    %2079 = vdwg.mxu0
    %vm2080 = vcmask 9216
    %v2081 = vsel %vm2080, %v2075, -inf
    %2082 = vmax.xlane.f32.xlu0 %v2081
    %v2083 = vpop.xlane.xlu0 %2082
    %v2084 = vsub.f32 %v2075, %v2083
    %v2085 = vmul.f32 %v2084, 1.442695
    %v2086 = vpow.pop %v2085
    %v2087 = vsel %vm2080, %v2086, 0.0
    %2088 = vadd.xlane.f32.xlu0 %v2087
    %v2089 = vpop.xlane.xlu0 %2088
    %v2090 = vrcp.pop %v2089
    %v2091 = vmul.f32 %v2086, %v2090
    %2092 = vst.msk [vmem:[#allocation2] sm:$0x3] %vm2080, %v2091
    // Predicated region
    $region30: #{train_forward.3} parent=1 // pred_check
      _
    $region31: #{train_forward.3} parent=1 // pred_check_branch
      %2094 = sbr.rel (0) target = $region33
    $region32: #{train_forward.3} parent=1 // pred_region
      %s2096 = ssub.s32 32, 32
      %2097 = vsyncadd [#allocation3], %s2096
      %s2099 = sshll.u32 [#allocation2], 4
      %s2100 = int_to_ptr.vmem [resolvable:$true] %s2099
      %2102 = dma.vmem_to_hbm [thread:$0]  %s2100, 32, %s7, [#allocation3]
    $region33: #{train_forward.3} parent=1 // pred_fallthru
      _
    // Predicated region
    $region34: #{train_forward.3} parent=1 // pred_check
      _
    $region35: #{train_forward.3} parent=1 // pred_check_branch
      %2104 = sbr.rel (0) target = $region37
    $region36: #{train_forward.3} parent=1 // pred_region
      %2105 = dma.done [#allocation3], 32
    $region37: #{train_forward.3} parent=1 // pred_fallthru
      _
    %2106 = vsyncpa [#allocation3], 1

// kernel: train_forward.2
$region0: #{train_forward.2}
  #allocation0 [shape = 'u32[]', space=smem, size = 0x4, offset = 0x4, fixed_abs, tag = 'smem constant byte address 0x4 - core index']
  #allocation1 [shape = 'u32[144,128]{1,0:T(1,128)}', space=vmem, size = 0x12000, scoped, tag = 'internal scratch']
  %s0 = inlined_call_operand.vmem [shape: f32[2,62,62], index: 0, kind: input, shape index: {}]
  %s1 = inlined_call_operand.vmem [shape: f32[3,62,360], index: 1, kind: input, shape index: {}]
  %s2 = inlined_call_operand.vmem [shape: f32[1,360], index: 2, kind: input, shape index: {}]
  %s3 = inlined_call_operand.vmem [shape: f32[3,180,448], index: 3, kind: input, shape index: {}]
  %s4 = inlined_call_operand.vmem [shape: f32[1,448], index: 4, kind: input, shape index: {}]
  %s5 = inlined_call_operand.vmem [shape: f32[360,180], index: 5, kind: input, shape index: {}]
  %s6 = inlined_call_operand.vmem [shape: f32[360,180], index: 6, kind: input, shape index: {}]
  %s7 = inlined_call_operand.vmem [shape: f32[30,60], index: 7, kind: input, shape index: {}]
  %s8 = inlined_call_operand.hbm [shape: f32[30,60], index: 8, kind: input, shape index: {}]
  %s9 = inlined_call_operand.hbm [shape: f32[448,224], index: 9, kind: input, shape index: {}]
  %s10 = inlined_call_operand.hbm [shape: f32[448,224], index: 10, kind: input, shape index: {}]
  %s11 = inlined_call_operand.hbm [shape: f32[14,28], index: 11, kind: input, shape index: {}]
  %s12 = inlined_call_operand.hbm [shape: f32[14,28], index: 12, kind: input, shape index: {}]
  %s13 = inlined_call_operand.vmem [shape: f32[2,14,224], index: 13, kind: output, shape index: {}]
  %s14 = sld [smem:[#allocation0]]
  $region105: #{train_forward.2} parent=0
    _
  %s16 = ssub.s32 1, %s14
  %s17 = scalar_select 0, %s16, %s14
  $region1: #{train_forward.2} parent=0
    #allocation2 [shape = 'u8[16384]{0}', space=vmem, size = 0x4000, scoped, tag = 'input window, operand 8, single buffered']
    #allocation3 [shape = 's32[2]{0}', space=sflag, size = 0x8, scoped, tag = 'scoped memory for train_forward.2']
    #allocation4 [shape = 'u8[458752]{0}', space=vmem, size = 0x70000, scoped, tag = 'input window, operand 9, single buffered']
    #allocation5 [shape = 's32[1]{0}', space=sflag, size = 0x4, scoped, tag = 'scoped memory for train_forward.2']
    #allocation6 [shape = 'u8[458752]{0}', space=vmem, size = 0x70000, scoped, tag = 'input window, operand 10, single buffered']
    #allocation7 [shape = 'u8[8192]{0}', space=vmem, size = 0x2000, scoped, tag = 'input window, operand 11, single buffered']
    #allocation8 [shape = 's32[1]{0}', space=sflag, size = 0x4, scoped, tag = 'scoped memory for train_forward.2']
    #allocation9 [shape = 'u8[8192]{0}', space=vmem, size = 0x2000, scoped, tag = 'input window, operand 12, single buffered']
    %18 = vsyncpa [#allocation3], 0
    %19 = vsyncpa [#allocation5], 0
    %20 = vsyncpa [#allocation8], 0
    loop: start=0, step=1, limit=4
    $region2: #{train_forward.2} parent=1 // loop_pre_header
      _
    $region3: #{train_forward.2} parent=1 // loop_header
      %s22 = sphi 0, %s26
      %p23 = scmp.ge.s32.totalorder %s22, 4
      %s32 = sphi 0, %s34
      %s35 = sphi 0, %s32
      %s36 = sphi 0, %s35
      %s52 = sphi 0, %s36
      %s56 = sphi 0, %s56
      %s58 = sphi 0, %s56
      %s59 = sphi 0, %s58
      %s73 = sphi 0, %s59
      %s77 = sphi 0, %s77
      %s79 = sphi 0, %s77
      %s80 = sphi 0, %s79
      %s94 = sphi 0, %s80
      %s98 = sphi 0, %s98
      %s100 = sphi 0, %s98
      %s101 = sphi 0, %s100
      %s115 = sphi 0, %s101
      %s119 = sphi 0, %s119
      %s121 = sphi 0, %s119
      %s122 = sphi 0, %s121
      %s136 = sphi 0, %s122
      %s140 = sphi 0, %s140
      %s142 = sphi 0, %s140
      %s143 = sphi 0, %s142
      %s157 = sphi 0, %s143
      %s161 = sphi 0, %s161
      %s163 = sphi 0, %s161
      %s164 = sphi 0, %s163
      %s178 = sphi 0, %s164
      %s182 = sphi 0, %s182
      %s184 = sphi 0, %s182
      %s185 = sphi 0, %s184
      %s199 = sphi 0, %s185
      %s203 = sphi 0, %s203
      %s205 = sphi 0, %s203
      %s206 = sphi 0, %s205
      %s220 = sphi 0, %s206
      %s224 = sphi 0, %s224
      %s226 = sphi 0, %s224
      %s227 = sphi 0, %s226
      %s241 = sphi 0, %s227
      %s245 = sphi 0, %s245
      %s247 = sphi 0, %s245
      %s248 = sphi 0, %s247
      %s262 = sphi 0, %s248
      %s266 = sphi 0, %s266
      %s268 = sphi 0, %s266
      %s269 = sphi 0, %s268
      %s283 = sphi 0, %s269
      %s287 = sphi 0, %s287
      %s289 = sphi 0, %s287
      %s290 = sphi 0, %s289
      %s304 = sphi 0, %s290
      %s310 = sphi 0, %s312
      %s313 = sphi 0, %s310
      %s314 = sphi 0, %s313
      %s330 = sphi 0, %s314
    $region4: #{train_forward.2} parent=1 // loop_header_branch
      %25 = sbr.rel (%p23) target = $region8
    $region5: #{train_forward.2} parent=1 // loop_body
      %s27 = ssub.s32 %s22, 1
      %s28 = ssub.s32 %s22, 2
      %s29 = sadd.s32 %s22, 1
      %s30 = ssub.s32 %s22, %s29
      %p31 = scmp.eq.s32.totalorder %s30, 0
      %s33 = sadd.s32 %s32, 1
      %s34 = scalar_select %p31, %s32, %s33
      %p37 = pneg %p31
      %p38 = scmp.eq.s32.totalorder %s22, 1
      %p39 = por %p37, %p38
      %p40 = scmp.ne.s32.totalorder %s32, %s35
      %p41 = scmp.eq.s32.totalorder %s22, 0
      %p42 = por %p40, %p41
      %p43 = scmp.ne.s32.totalorder %s32, %s35
      %p44 = scmp.eq.s32.totalorder %s27, 1
      %p45 = por %p43, %p44
      %p46 = scmp.ne.s32.totalorder %s35, %s36
      %p47 = scmp.eq.s32.totalorder %s27, 0
      %p48 = por %p46, %p47
      %p49 = scmp.ne.s32.totalorder %s35, %s36
      %p50 = scmp.eq.s32.totalorder %s28, 1
      %p51 = por %p49, %p50
      %p53 = scmp.ne.s32.totalorder %s36, %s52
      %p54 = scmp.eq.s32.totalorder %s28, 0
      %p55 = por %p53, %p54
      %s57 = sadd.s32 %s56, 1
      %p60 = scmp.eq.s32.totalorder %s22, 1
      %p61 = scmp.ne.s32.totalorder %s56, %s58
      %p62 = scmp.eq.s32.totalorder %s22, 0
      %p63 = por %p61, %p62
      %p64 = scmp.ne.s32.totalorder %s56, %s58
      %p65 = scmp.eq.s32.totalorder %s27, 1
      %p66 = por %p64, %p65
      %p67 = scmp.ne.s32.totalorder %s58, %s59
      %p68 = scmp.eq.s32.totalorder %s27, 0
      %p69 = por %p67, %p68
      %p70 = scmp.ne.s32.totalorder %s58, %s59
      %p71 = scmp.eq.s32.totalorder %s28, 1
      %p72 = por %p70, %p71
      %p74 = scmp.ne.s32.totalorder %s59, %s73
      %p75 = scmp.eq.s32.totalorder %s28, 0
      %p76 = por %p74, %p75
      %s78 = sadd.s32 %s77, 1
      %p81 = scmp.eq.s32.totalorder %s22, 1
      %p82 = scmp.ne.s32.totalorder %s77, %s79
      %p83 = scmp.eq.s32.totalorder %s22, 0
      %p84 = por %p82, %p83
      %p85 = scmp.ne.s32.totalorder %s77, %s79
      %p86 = scmp.eq.s32.totalorder %s27, 1
      %p87 = por %p85, %p86
      %p88 = scmp.ne.s32.totalorder %s79, %s80
      %p89 = scmp.eq.s32.totalorder %s27, 0
      %p90 = por %p88, %p89
      %p91 = scmp.ne.s32.totalorder %s79, %s80
      %p92 = scmp.eq.s32.totalorder %s28, 1
      %p93 = por %p91, %p92
      %p95 = scmp.ne.s32.totalorder %s80, %s94
      %p96 = scmp.eq.s32.totalorder %s28, 0
      %p97 = por %p95, %p96
      %s99 = sadd.s32 %s98, 1
      %p102 = scmp.eq.s32.totalorder %s22, 1
      %p103 = scmp.ne.s32.totalorder %s98, %s100
      %p104 = scmp.eq.s32.totalorder %s22, 0
      %p105 = por %p103, %p104
      %p106 = scmp.ne.s32.totalorder %s98, %s100
      %p107 = scmp.eq.s32.totalorder %s27, 1
      %p108 = por %p106, %p107
      %p109 = scmp.ne.s32.totalorder %s100, %s101
      %p110 = scmp.eq.s32.totalorder %s27, 0
      %p111 = por %p109, %p110
      %p112 = scmp.ne.s32.totalorder %s100, %s101
      %p113 = scmp.eq.s32.totalorder %s28, 1
      %p114 = por %p112, %p113
      %p116 = scmp.ne.s32.totalorder %s101, %s115
      %p117 = scmp.eq.s32.totalorder %s28, 0
      %p118 = por %p116, %p117
      %s120 = sadd.s32 %s119, 1
      %p123 = scmp.eq.s32.totalorder %s22, 1
      %p124 = scmp.ne.s32.totalorder %s119, %s121
      %p125 = scmp.eq.s32.totalorder %s22, 0
      %p126 = por %p124, %p125
      %p127 = scmp.ne.s32.totalorder %s119, %s121
      %p128 = scmp.eq.s32.totalorder %s27, 1
      %p129 = por %p127, %p128
      %p130 = scmp.ne.s32.totalorder %s121, %s122
      %p131 = scmp.eq.s32.totalorder %s27, 0
      %p132 = por %p130, %p131
      %p133 = scmp.ne.s32.totalorder %s121, %s122
      %p134 = scmp.eq.s32.totalorder %s28, 1
      %p135 = por %p133, %p134
      %p137 = scmp.ne.s32.totalorder %s122, %s136
      %p138 = scmp.eq.s32.totalorder %s28, 0
      %p139 = por %p137, %p138
      %s141 = sadd.s32 %s140, 1
      %p144 = scmp.eq.s32.totalorder %s22, 1
      %p145 = scmp.ne.s32.totalorder %s140, %s142
      %p146 = scmp.eq.s32.totalorder %s22, 0
      %p147 = por %p145, %p146
      %p148 = scmp.ne.s32.totalorder %s140, %s142
      %p149 = scmp.eq.s32.totalorder %s27, 1
      %p150 = por %p148, %p149
      %p151 = scmp.ne.s32.totalorder %s142, %s143
      %p152 = scmp.eq.s32.totalorder %s27, 0
      %p153 = por %p151, %p152
      %p154 = scmp.ne.s32.totalorder %s142, %s143
      %p155 = scmp.eq.s32.totalorder %s28, 1
      %p156 = por %p154, %p155
      %p158 = scmp.ne.s32.totalorder %s143, %s157
      %p159 = scmp.eq.s32.totalorder %s28, 0
      %p160 = por %p158, %p159
      %s162 = sadd.s32 %s161, 1
      %p165 = scmp.eq.s32.totalorder %s22, 1
      %p166 = scmp.ne.s32.totalorder %s161, %s163
      %p167 = scmp.eq.s32.totalorder %s22, 0
      %p168 = por %p166, %p167
      %p169 = scmp.ne.s32.totalorder %s161, %s163
      %p170 = scmp.eq.s32.totalorder %s27, 1
      %p171 = por %p169, %p170
      %p172 = scmp.ne.s32.totalorder %s163, %s164
      %p173 = scmp.eq.s32.totalorder %s27, 0
      %p174 = por %p172, %p173
      %p175 = scmp.ne.s32.totalorder %s163, %s164
      %p176 = scmp.eq.s32.totalorder %s28, 1
      %p177 = por %p175, %p176
      %p179 = scmp.ne.s32.totalorder %s164, %s178
      %p180 = scmp.eq.s32.totalorder %s28, 0
      %p181 = por %p179, %p180
      %s183 = sadd.s32 %s182, 1
      %p186 = scmp.eq.s32.totalorder %s22, 1
      %p187 = scmp.ne.s32.totalorder %s182, %s184
      %p188 = scmp.eq.s32.totalorder %s22, 0
      %p189 = por %p187, %p188
      %p190 = scmp.ne.s32.totalorder %s182, %s184
      %p191 = scmp.eq.s32.totalorder %s27, 1
      %p192 = por %p190, %p191
      %p193 = scmp.ne.s32.totalorder %s184, %s185
      %p194 = scmp.eq.s32.totalorder %s27, 0
      %p195 = por %p193, %p194
      %p196 = scmp.ne.s32.totalorder %s184, %s185
      %p197 = scmp.eq.s32.totalorder %s28, 1
      %p198 = por %p196, %p197
      %p200 = scmp.ne.s32.totalorder %s185, %s199
      %p201 = scmp.eq.s32.totalorder %s28, 0
      %p202 = por %p200, %p201
      %s204 = sadd.s32 %s203, 1
      %p207 = scmp.eq.s32.totalorder %s22, 1
      %p208 = scmp.ne.s32.totalorder %s203, %s205
      %p209 = scmp.eq.s32.totalorder %s22, 0
      %p210 = por %p208, %p209
      %p211 = scmp.ne.s32.totalorder %s203, %s205
      %p212 = scmp.eq.s32.totalorder %s27, 1
      %p213 = por %p211, %p212
      %p214 = scmp.ne.s32.totalorder %s205, %s206
      %p215 = scmp.eq.s32.totalorder %s27, 0
      %p216 = por %p214, %p215
      %p217 = scmp.ne.s32.totalorder %s205, %s206
      %p218 = scmp.eq.s32.totalorder %s28, 1
      %p219 = por %p217, %p218
      %p221 = scmp.ne.s32.totalorder %s206, %s220
      %p222 = scmp.eq.s32.totalorder %s28, 0
      %p223 = por %p221, %p222
      %s225 = sadd.s32 %s224, 1
      %p228 = scmp.eq.s32.totalorder %s22, 1
      %p229 = scmp.ne.s32.totalorder %s224, %s226
      %p230 = scmp.eq.s32.totalorder %s22, 0
      %p231 = por %p229, %p230
      %p232 = scmp.ne.s32.totalorder %s224, %s226
      %p233 = scmp.eq.s32.totalorder %s27, 1
      %p234 = por %p232, %p233
      %p235 = scmp.ne.s32.totalorder %s226, %s227
      %p236 = scmp.eq.s32.totalorder %s27, 0
      %p237 = por %p235, %p236
      %p238 = scmp.ne.s32.totalorder %s226, %s227
      %p239 = scmp.eq.s32.totalorder %s28, 1
      %p240 = por %p238, %p239
      %p242 = scmp.ne.s32.totalorder %s227, %s241
      %p243 = scmp.eq.s32.totalorder %s28, 0
      %p244 = por %p242, %p243
      %s246 = sadd.s32 %s245, 1
      %p249 = scmp.eq.s32.totalorder %s22, 1
      %p250 = scmp.ne.s32.totalorder %s245, %s247
      %p251 = scmp.eq.s32.totalorder %s22, 0
      %p252 = por %p250, %p251
      %p253 = scmp.ne.s32.totalorder %s245, %s247
      %p254 = scmp.eq.s32.totalorder %s27, 1
      %p255 = por %p253, %p254
      %p256 = scmp.ne.s32.totalorder %s247, %s248
      %p257 = scmp.eq.s32.totalorder %s27, 0
      %p258 = por %p256, %p257
      %p259 = scmp.ne.s32.totalorder %s247, %s248
      %p260 = scmp.eq.s32.totalorder %s28, 1
      %p261 = por %p259, %p260
      %p263 = scmp.ne.s32.totalorder %s248, %s262
      %p264 = scmp.eq.s32.totalorder %s28, 0
      %p265 = por %p263, %p264
      %s267 = sadd.s32 %s266, 1
      %p270 = scmp.eq.s32.totalorder %s22, 1
      %p271 = scmp.ne.s32.totalorder %s266, %s268
      %p272 = scmp.eq.s32.totalorder %s22, 0
      %p273 = por %p271, %p272
      %p274 = scmp.ne.s32.totalorder %s266, %s268
      %p275 = scmp.eq.s32.totalorder %s27, 1
      %p276 = por %p274, %p275
      %p277 = scmp.ne.s32.totalorder %s268, %s269
      %p278 = scmp.eq.s32.totalorder %s27, 0
      %p279 = por %p277, %p278
      %p280 = scmp.ne.s32.totalorder %s268, %s269
      %p281 = scmp.eq.s32.totalorder %s28, 1
      %p282 = por %p280, %p281
      %p284 = scmp.ne.s32.totalorder %s269, %s283
      %p285 = scmp.eq.s32.totalorder %s28, 0
      %p286 = por %p284, %p285
      %s288 = sadd.s32 %s287, 1
      %p291 = scmp.eq.s32.totalorder %s22, 1
      %p292 = scmp.ne.s32.totalorder %s287, %s289
      %p293 = scmp.eq.s32.totalorder %s22, 0
      %p294 = por %p292, %p293
      %p295 = scmp.ne.s32.totalorder %s287, %s289
      %p296 = scmp.eq.s32.totalorder %s27, 1
      %p297 = por %p295, %p296
      %p298 = scmp.ne.s32.totalorder %s289, %s290
      %p299 = scmp.eq.s32.totalorder %s27, 0
      %p300 = por %p298, %p299
      %p301 = scmp.ne.s32.totalorder %s289, %s290
      %p302 = scmp.eq.s32.totalorder %s28, 1
      %p303 = por %p301, %p302
      %p305 = scmp.ne.s32.totalorder %s290, %s304
      %p306 = scmp.eq.s32.totalorder %s28, 0
      %p307 = por %p305, %p306
      %s308 = ssub.s32 %s22, %s29
      %p309 = scmp.eq.s32.totalorder %s308, 0
      %s311 = sadd.s32 %s310, 1
      %s312 = scalar_select %p309, %s310, %s311
      %p315 = pneg %p309
      %p316 = scmp.eq.s32.totalorder %s22, 1
      %p317 = por %p315, %p316
      %p318 = scmp.ne.s32.totalorder %s310, %s313
      %p319 = scmp.eq.s32.totalorder %s22, 0
      %p320 = por %p318, %p319
      %p321 = scmp.ne.s32.totalorder %s310, %s313
      %p322 = scmp.eq.s32.totalorder %s27, 1
      %p323 = por %p321, %p322
      %p324 = scmp.ne.s32.totalorder %s313, %s314
      %p325 = scmp.eq.s32.totalorder %s27, 0
      %p326 = por %p324, %p325
      %p327 = scmp.ne.s32.totalorder %s313, %s314
      %p328 = scmp.eq.s32.totalorder %s28, 1
      %p329 = por %p327, %p328
      %p331 = scmp.ne.s32.totalorder %s314, %s330
      %p332 = scmp.eq.s32.totalorder %s28, 0
      %p333 = por %p331, %p332
      %p334 = scmp.le.s32.totalorder 1, %s22
      %p335 = scmp.lt.s32.totalorder %s22, 3
      %p336 = pnand %p334, %p335
      %p337 = pneg %p336
      // Predicated region
      $region9: #{train_forward.2} parent=5 // pred_check
        _
      $region10: #{train_forward.2} parent=5 // pred_check_branch
        %339 = sbr.rel (%p336) target = $region12
      $region11: #{train_forward.2} parent=5 // pred_region
        %s340 = ssub.s32 %s22, 1
        // Predicated region
        $region13: #{train_forward.2} parent=11 // pred_check
          %p341 = pneg %p69
        $region14: #{train_forward.2} parent=11 // pred_check_branch
          %343 = sbr.rel (%p341) target = $region16
        $region15: #{train_forward.2} parent=11 // pred_region
          _
        $region16: #{train_forward.2} parent=11 // pred_fallthru
          _
        // Predicated region
        $region17: #{train_forward.2} parent=11 // pred_check
          %p344 = pneg %p90
        $region18: #{train_forward.2} parent=11 // pred_check_branch
          %346 = sbr.rel (%p344) target = $region20
        $region19: #{train_forward.2} parent=11 // pred_region
          _
        $region20: #{train_forward.2} parent=11 // pred_fallthru
          _
        // Predicated region
        $region21: #{train_forward.2} parent=11 // pred_check
          %p347 = pneg %p111
        $region22: #{train_forward.2} parent=11 // pred_check_branch
          %349 = sbr.rel (%p347) target = $region24
        $region23: #{train_forward.2} parent=11 // pred_region
          _
        $region24: #{train_forward.2} parent=11 // pred_fallthru
          _
        // Predicated region
        $region25: #{train_forward.2} parent=11 // pred_check
          %p350 = pneg %p132
        $region26: #{train_forward.2} parent=11 // pred_check_branch
          %352 = sbr.rel (%p350) target = $region28
        $region27: #{train_forward.2} parent=11 // pred_region
          _
        $region28: #{train_forward.2} parent=11 // pred_fallthru
          _
        // Predicated region
        $region29: #{train_forward.2} parent=11 // pred_check
          %p353 = pneg %p153
        $region30: #{train_forward.2} parent=11 // pred_check_branch
          %355 = sbr.rel (%p353) target = $region32
        $region31: #{train_forward.2} parent=11 // pred_region
          _
        $region32: #{train_forward.2} parent=11 // pred_fallthru
          _
        // Predicated region
        $region33: #{train_forward.2} parent=11 // pred_check
          %p356 = pneg %p174
        $region34: #{train_forward.2} parent=11 // pred_check_branch
          %358 = sbr.rel (%p356) target = $region36
        $region35: #{train_forward.2} parent=11 // pred_region
          _
        $region36: #{train_forward.2} parent=11 // pred_fallthru
          _
        // Predicated region
        $region37: #{train_forward.2} parent=11 // pred_check
          %p359 = pneg %p195
        $region38: #{train_forward.2} parent=11 // pred_check_branch
          %361 = sbr.rel (%p359) target = $region40
        $region39: #{train_forward.2} parent=11 // pred_region
          _
        $region40: #{train_forward.2} parent=11 // pred_fallthru
          _
        // Predicated region
        $region41: #{train_forward.2} parent=11 // pred_check
          %p362 = pneg %p216
        $region42: #{train_forward.2} parent=11 // pred_check_branch
          %364 = sbr.rel (%p362) target = $region44
        $region43: #{train_forward.2} parent=11 // pred_region
          %s366 = ssub.s32 512, 512
          %367 = vsyncadd [#allocation3], %s366
          %s368 = sshll.u32 [#allocation2], 4
          %s369 = int_to_ptr.vmem [resolvable:$true] %s368
          %374 = dma.hbm_to_vmem [thread:$0]  %s8, 512, %s369, [#allocation3], 128, 128, 8
        $region44: #{train_forward.2} parent=11 // pred_fallthru
          _
        // Predicated region
        $region45: #{train_forward.2} parent=11 // pred_check
          %p375 = pneg %p237
        $region46: #{train_forward.2} parent=11 // pred_check_branch
          %377 = sbr.rel (%p375) target = $region48
        $region47: #{train_forward.2} parent=11 // pred_region
          %s379 = ssub.s32 14336, 14336
          %380 = vsyncadd [#allocation5], %s379
          %s381 = sshll.u32 [#allocation4], 4
          %s382 = int_to_ptr.vmem [resolvable:$true] %s381
          %387 = dma.hbm_to_vmem [thread:$0]  %s9, 14336, %s382, [#allocation5], 256, 256, 16
        $region48: #{train_forward.2} parent=11 // pred_fallthru
          _
        // Predicated region
        $region49: #{train_forward.2} parent=11 // pred_check
          %p388 = pneg %p258
        $region50: #{train_forward.2} parent=11 // pred_check_branch
          %390 = sbr.rel (%p388) target = $region52
        $region51: #{train_forward.2} parent=11 // pred_region
          %s392 = ssub.s32 14336, 14336
          %393 = vsyncadd [#allocation5], %s392
          %s394 = sshll.u32 [#allocation6], 4
          %s395 = int_to_ptr.vmem [resolvable:$true] %s394
          %400 = dma.hbm_to_vmem [thread:$0]  %s10, 14336, %s395, [#allocation5], 256, 256, 16
        $region52: #{train_forward.2} parent=11 // pred_fallthru
          _
        // Predicated region
        $region53: #{train_forward.2} parent=11 // pred_check
          %p401 = pneg %p279
        $region54: #{train_forward.2} parent=11 // pred_check_branch
          %403 = sbr.rel (%p401) target = $region56
        $region55: #{train_forward.2} parent=11 // pred_region
          %s405 = ssub.s32 256, 256
          %406 = vsyncadd [#allocation8], %s405
          %s407 = sshll.u32 [#allocation7], 4
          %s408 = int_to_ptr.vmem [resolvable:$true] %s407
          %413 = dma.hbm_to_vmem [thread:$0]  %s11, 256, %s408, [#allocation8], 128, 128, 8
        $region56: #{train_forward.2} parent=11 // pred_fallthru
          _
        // Predicated region
        $region57: #{train_forward.2} parent=11 // pred_check
          %p414 = pneg %p300
        $region58: #{train_forward.2} parent=11 // pred_check_branch
          %416 = sbr.rel (%p414) target = $region60
        $region59: #{train_forward.2} parent=11 // pred_region
          %s418 = ssub.s32 256, 256
          %419 = vsyncadd [#allocation8], %s418
          %s420 = sshll.u32 [#allocation9], 4
          %s421 = int_to_ptr.vmem [resolvable:$true] %s420
          %426 = dma.hbm_to_vmem [thread:$0]  %s12, 256, %s421, [#allocation8], 128, 128, 8
        $region60: #{train_forward.2} parent=11 // pred_fallthru
          _
      $region12: #{train_forward.2} parent=5 // pred_fallthru
        _
      %p427 = scmp.lt.s32.totalorder %s22, 2
      // Predicated region
      $region61: #{train_forward.2} parent=5 // pred_check
        %p428 = pneg %p427
      $region62: #{train_forward.2} parent=5 // pred_check_branch
        %430 = sbr.rel (%p428) target = $region64
      $region63: #{train_forward.2} parent=5 // pred_region
        // Predicated region
        $region65: #{train_forward.2} parent=63 // pred_check
          %p431 = pneg %p42
        $region66: #{train_forward.2} parent=63 // pred_check_branch
          %433 = sbr.rel (%p431) target = $region68
        $region67: #{train_forward.2} parent=63 // pred_region
          %p434 = scmp.lt.s32.totalorder %s22, 1
          %s435 = scalar_select %p434, %s22, 1
          %s436 = smul.addr %s435, 8
          %s437 = smul.addr %s436, 8
          %s438 = scalar_lea.vmem %s0, %s437
        $region68: #{train_forward.2} parent=63 // pred_fallthru
          _
      $region64: #{train_forward.2} parent=5 // pred_fallthru
        _
      %p439 = scmp.le.s32.totalorder 1, %s22
      %p440 = scmp.lt.s32.totalorder %s22, 3
      %p441 = pnand %p439, %p440
      %p442 = pneg %p441
      // Predicated region
      $region69: #{train_forward.2} parent=5 // pred_check
        _
      $region70: #{train_forward.2} parent=5 // pred_check_branch
        %444 = sbr.rel (%p441) target = $region72
      $region71: #{train_forward.2} parent=5 // pred_region
        %s445 = ssub.s32 %s22, 1
        // Predicated region
        $region73: #{train_forward.2} parent=71 // pred_check
          %p446 = pneg %p216
        $region74: #{train_forward.2} parent=71 // pred_check_branch
          %448 = sbr.rel (%p446) target = $region76
        $region75: #{train_forward.2} parent=71 // pred_region
          %449 = dma.done [#allocation3], 512
        $region76: #{train_forward.2} parent=71 // pred_fallthru
          _
        // Predicated region
        $region77: #{train_forward.2} parent=71 // pred_check
          %p450 = pneg %p237
        $region78: #{train_forward.2} parent=71 // pred_check_branch
          %452 = sbr.rel (%p450) target = $region80
        $region79: #{train_forward.2} parent=71 // pred_region
          %453 = dma.done [#allocation5], 14336
        $region80: #{train_forward.2} parent=71 // pred_fallthru
          _
        // Predicated region
        $region81: #{train_forward.2} parent=71 // pred_check
          %p454 = pneg %p258
        $region82: #{train_forward.2} parent=71 // pred_check_branch
          %456 = sbr.rel (%p454) target = $region84
        $region83: #{train_forward.2} parent=71 // pred_region
          %457 = dma.done [#allocation5], 14336
        $region84: #{train_forward.2} parent=71 // pred_fallthru
          _
        // Predicated region
        $region85: #{train_forward.2} parent=71 // pred_check
          %p458 = pneg %p279
        $region86: #{train_forward.2} parent=71 // pred_check_branch
          %460 = sbr.rel (%p458) target = $region88
        $region87: #{train_forward.2} parent=71 // pred_region
          %461 = dma.done [#allocation8], 256
        $region88: #{train_forward.2} parent=71 // pred_fallthru
          _
        // Predicated region
        $region89: #{train_forward.2} parent=71 // pred_check
          %p462 = pneg %p300
        $region90: #{train_forward.2} parent=71 // pred_check_branch
          %464 = sbr.rel (%p462) target = $region92
        $region91: #{train_forward.2} parent=71 // pred_region
          %465 = dma.done [#allocation8], 256
        $region92: #{train_forward.2} parent=71 // pred_fallthru
          _
        %p466 = scmp.lt.s32.totalorder %s27, 1
        %s467 = scalar_select %p466, %s27, 1
        %s468 = smul.addr %s467, 8
        %s469 = smul.addr %s468, 8
        %s470 = scalar_lea.vmem %s0, %s469
        %p471 = pneg %p48
        %p472 = pneg %p45
        %p473 = pneg %p69
        %p474 = pneg %p66
        %p475 = pneg %p90
        %p476 = pneg %p87
        %p477 = pneg %p111
        %p478 = pneg %p108
        %p479 = pneg %p132
        %p480 = pneg %p129
        %p481 = pneg %p153
        %p482 = pneg %p150
        %p483 = pneg %p174
        %p484 = pneg %p171
        %p485 = pneg %p195
        %p486 = pneg %p192
        %p487 = pneg %p216
        %p488 = pneg %p213
        %p489 = pneg %p237
        %p490 = pneg %p234
        %p491 = pneg %p258
        %p492 = pneg %p255
        %p493 = pneg %p279
        %p494 = pneg %p276
        %p495 = pneg %p300
        %p496 = pneg %p297
        %p497 = pneg %p326
        %p498 = pneg %p323
        %p499 = scmp.lt.s32.totalorder %s27, 1
        %s500 = scalar_select %p499, %s27, 1
        %s501 = smul.addr %s500, 4
        %s502 = smul.addr %s501, 8
        %s503 = scalar_lea.vmem %s13, %s502
        %p504 = scmp.lt.s32.totalorder %s27, 1
        %s505 = scalar_select %p504, %s27, 1
        %s506 = smul.addr %s505, 8
        %s507 = smul.addr %s506, 8
        %s508 = scalar_lea.vmem %s0, %s507
        %p509 = scmp.lt.s32.totalorder %s27, 1
        %s510 = scalar_select %p509, %s27, 1
        %s511 = smul.addr %s510, 4
        %s512 = smul.addr %s511, 8
        %s513 = scalar_lea.vmem %s13, %s512
        %v514 = vld [vmem:[%s508] sm:$0xff]
        %v515 = vld [vmem:[%s508 + $0x8] sm:$0xff]
        %v516 = vld [vmem:[%s508 + $0x10] sm:$0xff]
        %v517 = vld [vmem:[%s508 + $0x18] sm:$0xff]
        %v518 = vld [vmem:[%s508 + $0x20] sm:$0xff]
        %v519 = vld [vmem:[%s508 + $0x28] sm:$0xff]
        %v520 = vld [vmem:[%s508 + $0x30] sm:$0xff]
        %v521 = vld [vmem:[%s508 + $0x38] sm:$0x3f]
        %v522 = vld [vmem:[%s1] sm:$0xff]
        %v523 = vld [vmem:[%s1 + $0x8] sm:$0xff]
        %v524 = vld [vmem:[%s1 + $0x10] sm:$0xff]
        %v525 = vld [vmem:[%s1 + $0x18] sm:$0xff]
        %v526 = vld [vmem:[%s1 + $0x20] sm:$0xff]
        %v527 = vld [vmem:[%s1 + $0x28] sm:$0xff]
        %v528 = vld [vmem:[%s1 + $0x30] sm:$0xff]
        %v529 = vld [vmem:[%s1 + $0x38] sm:$0xff]
        %v530 = vld [vmem:[%s1 + $0x40] sm:$0xff]
        %v531 = vld [vmem:[%s1 + $0x48] sm:$0xff]
        %v532 = vld [vmem:[%s1 + $0x50] sm:$0xff]
        %v533 = vld [vmem:[%s1 + $0x58] sm:$0xff]
        %v534 = vld [vmem:[%s1 + $0x60] sm:$0xff]
        %v535 = vld [vmem:[%s1 + $0x68] sm:$0xff]
        %v536 = vld [vmem:[%s1 + $0x70] sm:$0xff]
        %v537 = vld [vmem:[%s1 + $0x78] sm:$0xff]
        %v538 = vld [vmem:[%s1 + $0x80] sm:$0xff]
        %v539 = vld [vmem:[%s1 + $0x88] sm:$0xff]
        %v540 = vld [vmem:[%s1 + $0x90] sm:$0xff]
        %v541 = vld [vmem:[%s1 + $0x98] sm:$0xff]
        %v542 = vld [vmem:[%s1 + $0xa0] sm:$0xff]
        %v543 = vld [vmem:[%s1 + $0xa8] sm:$0x3f]
        %v544 = vld [vmem:[%s1 + $0xb0] sm:$0x3f]
        %v545 = vld [vmem:[%s1 + $0xb8] sm:$0x3f]
        %s546 = scalar_lea.vmem %s1, 192
        %v547 = vld [vmem:[%s546] sm:$0xff]
        %v548 = vld [vmem:[%s546 + $0x8] sm:$0xff]
        %v549 = vld [vmem:[%s546 + $0x10] sm:$0xff]
        %v550 = vld [vmem:[%s546 + $0x18] sm:$0xff]
        %v551 = vld [vmem:[%s546 + $0x20] sm:$0xff]
        %v552 = vld [vmem:[%s546 + $0x28] sm:$0xff]
        %v553 = vld [vmem:[%s546 + $0x30] sm:$0xff]
        %v554 = vld [vmem:[%s546 + $0x38] sm:$0xff]
        %v555 = vld [vmem:[%s546 + $0x40] sm:$0xff]
        %v556 = vld [vmem:[%s546 + $0x48] sm:$0xff]
        %v557 = vld [vmem:[%s546 + $0x50] sm:$0xff]
        %v558 = vld [vmem:[%s546 + $0x58] sm:$0xff]
        %v559 = vld [vmem:[%s546 + $0x60] sm:$0xff]
        %v560 = vld [vmem:[%s546 + $0x68] sm:$0xff]
        %v561 = vld [vmem:[%s546 + $0x70] sm:$0xff]
        %v562 = vld [vmem:[%s546 + $0x78] sm:$0xff]
        %v563 = vld [vmem:[%s546 + $0x80] sm:$0xff]
        %v564 = vld [vmem:[%s546 + $0x88] sm:$0xff]
        %v565 = vld [vmem:[%s546 + $0x90] sm:$0xff]
        %v566 = vld [vmem:[%s546 + $0x98] sm:$0xff]
        %v567 = vld [vmem:[%s546 + $0xa0] sm:$0xff]
        %v568 = vld [vmem:[%s546 + $0xa8] sm:$0x3f]
        %v569 = vld [vmem:[%s546 + $0xb0] sm:$0x3f]
        %v570 = vld [vmem:[%s546 + $0xb8] sm:$0x3f]
        %vm579 = vcmask 1046528
        %v580 = vrot.slane %v514, 1
        %v581 = vrot.slane %v515, 1
        %v582 = vsel %vm579, %v580, %v581
        %v583 = vrot.slane %v516, 1
        %v584 = vsel %vm579, %v581, %v583
        %v585 = vrot.slane %v517, 1
        %v586 = vsel %vm579, %v583, %v585
        %v587 = vrot.slane %v518, 1
        %v588 = vsel %vm579, %v585, %v587
        %v589 = vrot.slane %v519, 1
        %v590 = vsel %vm579, %v587, %v589
        %v591 = vrot.slane %v520, 1
        %v592 = vsel %vm579, %v589, %v591
        %v593 = vrot.slane %v521, 1
        %v594 = vsel %vm579, %v591, %v593
        %vm595 = vcmask 506880
        %v596 = vsel %vm595, %v582, 0
        %v598 = vsel %vm595, %v584, 0
        %v600 = vsel %vm595, %v586, 0
        %v602 = vsel %vm595, %v588, 0
        %v604 = vsel %vm595, %v590, 0
        %v606 = vsel %vm595, %v592, 0
        %v608 = vsel %vm595, %v594, 0
        %v610 = vsel %vm595, %v593, 0
        %vm612 = vcmask 1045504
        %v614 = vsel %vm612, %v568, 0
        %v617 = vsel %vm612, %v569, 0
        %v620 = vsel %vm612, %v570, 0
        %622 = vmatprep.subr.mxu0 %v548
        %623 = vmatpush1.msra.mxu0 %v547
        %624 = vmatprep.subr.mxu0 %v551
        %625 = vmatpush1.msra.mxu0 %v550
        %626 = vmatprep.subr.mxu0 %v554
        %627 = vmatpush1.msra.mxu0 %v553
        %628 = vmatprep.subr.mxu0 %v557
        %629 = vmatpush1.msra.mxu0 %v556
        %630 = vmatprep.subr.mxu0 %v560
        %631 = vmatpush1.msra.mxu0 %v559
        %632 = vmatprep.subr.mxu0 %v563
        %633 = vmatpush1.msra.mxu0 %v562
        %634 = vmatprep.subr.mxu0 %v566
        %635 = vmatpush1.msra.mxu0 %v565
        %636 = vmatprep.subr.mxu0 %v617
        %637 = vmatpush1.msra.mxu0 %v614
        %638 = vmatprep.subr.mxu0 0.0
        %639 = vmatpush1.msra.mxu0 0.0
        %640 = vmatprep.subr.mxu0 0.0
        %641 = vmatpush1.msra.mxu0 0.0
        %642 = vmatprep.subr.mxu0 0.0
        %643 = vmatpush1.msra.mxu0 0.0
        %644 = vmatprep.subr.mxu0 0.0
        %645 = vmatpush1.msra.mxu0 0.0
        %646 = vmatprep.subr.mxu0 0.0
        %647 = vmatpush1.msra.mxu0 0.0
        %648 = vmatprep.subr.mxu0 0.0
        %649 = vmatpush1.msra.mxu0 0.0
        %650 = vmatprep.subr.mxu0 0.0
        %651 = vmatpush1.msra.mxu0 0.0
        %652 = vmatprep.subr.mxu0 0.0
        %653 = vmatpush1.msra.mxu0 0.0
        %654 = vmatprep.subr.mxu0 0.0
        %655 = vmatpush1.msra.mxu0 0.0
        %656 = vmatprep.subr.mxu0 0.0
        %657 = vmatpush1.msra.mxu0 0.0
        %658 = vmatprep.subr.mxu0 0.0
        %659 = vmatpush1.msra.mxu0 0.0
        %660 = vmatprep.subr.mxu0 0.0
        %661 = vmatpush1.msra.mxu0 0.0
        %662 = vmatprep.subr.mxu0 0.0
        %663 = vmatpush1.msra.mxu0 0.0
        %664 = vmatprep.subr.mxu0 0.0
        %665 = vmatpush1.msra.mxu0 0.0
        %666 = vmatprep.subr.mxu0 0.0
        %667 = vmatpush1.msra.mxu0 0.0
        %668 = vmatprep.subr.mxu0 0.0
        %669 = vmatpush1.msra.mxu0 0.0
        %670 = vmatprep.subr.mxu0 0.0
        %671 = vmatpush1.msra.mxu0 0.0
        %672 = vmatprep.subr.mxu0 0.0
        %673 = vmatpush1.msra.mxu0 0.0
        %674 = vmatprep.subr.mxu0 0.0
        %675 = vmatpush1.msra.mxu0 0.0
        %676 = vmatprep.subr.mxu0 0.0
        %677 = vmatpush1.msra.mxu0 0.0
        %678 = vmatprep.subr.mxu0 0.0
        %679 = vmatpush1.msra.mxu0 0.0
        %680 = vmatprep.subr.mxu0 0.0
        %681 = vmatpush1.msra.mxu0 0.0
        %682 = vmatprep.subr.mxu0 0.0
        %683 = vmatpush1.msra.mxu0 0.0
        %684 = vmatprep.subr.mxu0 0.0
        %685 = vmatpush1.msra.mxu0 0.0
        %686 = vmatprep.mubr.f32.mxu0 0.0
        %687 = vmatmul.mubr.f32.gmra.mrb[0].mxu0 %v596
        %v688 = vpop.f32.mrb[0].mxu0
        %v689 = vadd.f32 0.0, %v688
        %v690 = vpop.f32.mrb[0].mxu0
        %v691 = vadd.f32 0.0, %v690
        %692 = vmatprep.mubr.f32.mxu0 0.0
        %693 = vmatmul.mubr.f32.gmra.mrb[0].mxu0 %v598
        %v694 = vpop.f32.mrb[0].mxu0
        %v695 = vadd.f32 0.0, %v694
        %v696 = vpop.f32.mrb[0].mxu0
        %v697 = vadd.f32 0.0, %v696
        %698 = vmatprep.mubr.f32.mxu0 0.0
        %699 = vmatmul.mubr.f32.gmra.mrb[0].mxu0 %v600
        %v700 = vpop.f32.mrb[0].mxu0
        %v701 = vadd.f32 0.0, %v700
        %v702 = vpop.f32.mrb[0].mxu0
        %v703 = vadd.f32 0.0, %v702
        %704 = vmatprep.mubr.f32.mxu0 0.0
        %705 = vmatmul.mubr.f32.gmra.mrb[0].mxu0 %v602
        %v706 = vpop.f32.mrb[0].mxu0
        %v707 = vadd.f32 0.0, %v706
        %v708 = vpop.f32.mrb[0].mxu0
        %v709 = vadd.f32 0.0, %v708
        %710 = vmatprep.mubr.f32.mxu0 0.0
        %711 = vmatmul.mubr.f32.gmra.mrb[0].mxu0 %v604
        %v712 = vpop.f32.mrb[0].mxu0
        %v713 = vadd.f32 0.0, %v712
        %v714 = vpop.f32.mrb[0].mxu0
        %v715 = vadd.f32 0.0, %v714
        %716 = vmatprep.mubr.f32.mxu0 0.0
        %717 = vmatmul.mubr.f32.gmra.mrb[0].mxu0 %v606
        %v718 = vpop.f32.mrb[0].mxu0
        %v719 = vadd.f32 0.0, %v718
        %v720 = vpop.f32.mrb[0].mxu0
        %v721 = vadd.f32 0.0, %v720
        %722 = vmatprep.mubr.f32.mxu0 0.0
        %723 = vmatmul.mubr.f32.gmra.mrb[0].mxu0 %v608
        %v724 = vpop.f32.mrb[0].mxu0
        %v725 = vadd.f32 0.0, %v724
        %v726 = vpop.f32.mrb[0].mxu0
        %v727 = vadd.f32 0.0, %v726
        %728 = vmatprep.mubr.f32.mxu0 0.0
        %729 = vmatmul.mubr.f32.gmra.mrb[0].mxu0 %v610
        %v730 = vpop.f32.mrb[0].mxu0
        %v731 = vadd.f32 0.0, %v730
        %v732 = vpop.f32.mrb[0].mxu0
        %v733 = vadd.f32 0.0, %v732
        %734 = vdwg.mxu0
        %735 = vmatprep.subr.mxu0 0.0
        %736 = vmatpush1.msra.mxu0 %v549
        %737 = vmatprep.subr.mxu0 0.0
        %738 = vmatpush1.msra.mxu0 %v552
        %739 = vmatprep.subr.mxu0 0.0
        %740 = vmatpush1.msra.mxu0 %v555
        %741 = vmatprep.subr.mxu0 0.0
        %742 = vmatpush1.msra.mxu0 %v558
        %743 = vmatprep.subr.mxu0 0.0
        %744 = vmatpush1.msra.mxu0 %v561
        %745 = vmatprep.subr.mxu0 0.0
        %746 = vmatpush1.msra.mxu0 %v564
        %747 = vmatprep.subr.mxu0 0.0
        %748 = vmatpush1.msra.mxu0 %v567
        %749 = vmatprep.subr.mxu0 0.0
        %750 = vmatpush1.msra.mxu0 %v620
        %751 = vmatprep.subr.mxu0 0.0
        %752 = vmatpush1.msra.mxu0 0.0
        %753 = vmatprep.subr.mxu0 0.0
        %754 = vmatpush1.msra.mxu0 0.0
        %755 = vmatprep.subr.mxu0 0.0
        %756 = vmatpush1.msra.mxu0 0.0
        %757 = vmatprep.subr.mxu0 0.0
        %758 = vmatpush1.msra.mxu0 0.0
        %759 = vmatprep.subr.mxu0 0.0
        %760 = vmatpush1.msra.mxu0 0.0
        %761 = vmatprep.subr.mxu0 0.0
        %762 = vmatpush1.msra.mxu0 0.0
        %763 = vmatprep.subr.mxu0 0.0
        %764 = vmatpush1.msra.mxu0 0.0
        %765 = vmatprep.subr.mxu0 0.0
        %766 = vmatpush1.msra.mxu0 0.0
        %767 = vmatprep.subr.mxu0 0.0
        %768 = vmatpush1.msra.mxu0 0.0
        %769 = vmatprep.subr.mxu0 0.0
        %770 = vmatpush1.msra.mxu0 0.0
        %771 = vmatprep.subr.mxu0 0.0
        %772 = vmatpush1.msra.mxu0 0.0
        %773 = vmatprep.subr.mxu0 0.0
        %774 = vmatpush1.msra.mxu0 0.0
        %775 = vmatprep.subr.mxu0 0.0
        %776 = vmatpush1.msra.mxu0 0.0
        %777 = vmatprep.subr.mxu0 0.0
        %778 = vmatpush1.msra.mxu0 0.0
        %779 = vmatprep.subr.mxu0 0.0
        %780 = vmatpush1.msra.mxu0 0.0
        %781 = vmatprep.subr.mxu0 0.0
        %782 = vmatpush1.msra.mxu0 0.0
        %783 = vmatprep.subr.mxu0 0.0
        %784 = vmatpush1.msra.mxu0 0.0
        %785 = vmatprep.subr.mxu0 0.0
        %786 = vmatpush1.msra.mxu0 0.0
        %787 = vmatprep.subr.mxu0 0.0
        %788 = vmatpush1.msra.mxu0 0.0
        %789 = vmatprep.subr.mxu0 0.0
        %790 = vmatpush1.msra.mxu0 0.0
        %791 = vmatprep.subr.mxu0 0.0
        %792 = vmatpush1.msra.mxu0 0.0
        %793 = vmatprep.subr.mxu0 0.0
        %794 = vmatpush1.msra.mxu0 0.0
        %795 = vmatprep.subr.mxu0 0.0
        %796 = vmatpush1.msra.mxu0 0.0
        %797 = vmatprep.subr.mxu0 0.0
        %798 = vmatpush1.msra.mxu0 0.0
        %799 = vmatprep.mubr.f32.mxu0 0.0
        %800 = vmatmul.mubr.f32.gmra.mrb[0].mxu0 %v596
        %v801 = vpop.f32.mrb[0].mxu0
        %v802 = vadd.f32 0.0, %v801
        %v803 = vpop.f32.mrb[0].mxu0
        %804 = vmatprep.mubr.f32.mxu0 0.0
        %805 = vmatmul.mubr.f32.gmra.mrb[0].mxu0 %v598
        %v806 = vpop.f32.mrb[0].mxu0
        %v807 = vadd.f32 0.0, %v806
        %v808 = vpop.f32.mrb[0].mxu0
        %809 = vmatprep.mubr.f32.mxu0 0.0
        %810 = vmatmul.mubr.f32.gmra.mrb[0].mxu0 %v600
        %v811 = vpop.f32.mrb[0].mxu0
        %v812 = vadd.f32 0.0, %v811
        %v813 = vpop.f32.mrb[0].mxu0
        %814 = vmatprep.mubr.f32.mxu0 0.0
        %815 = vmatmul.mubr.f32.gmra.mrb[0].mxu0 %v602
        %v816 = vpop.f32.mrb[0].mxu0
        %v817 = vadd.f32 0.0, %v816
        %v818 = vpop.f32.mrb[0].mxu0
        %819 = vmatprep.mubr.f32.mxu0 0.0
        %820 = vmatmul.mubr.f32.gmra.mrb[0].mxu0 %v604
        %v821 = vpop.f32.mrb[0].mxu0
        %v822 = vadd.f32 0.0, %v821
        %v823 = vpop.f32.mrb[0].mxu0
        %824 = vmatprep.mubr.f32.mxu0 0.0
        %825 = vmatmul.mubr.f32.gmra.mrb[0].mxu0 %v606
        %v826 = vpop.f32.mrb[0].mxu0
        %v827 = vadd.f32 0.0, %v826
        %v828 = vpop.f32.mrb[0].mxu0
        %829 = vmatprep.mubr.f32.mxu0 0.0
        %830 = vmatmul.mubr.f32.gmra.mrb[0].mxu0 %v608
        %v831 = vpop.f32.mrb[0].mxu0
        %v832 = vadd.f32 0.0, %v831
        %v833 = vpop.f32.mrb[0].mxu0
        %834 = vmatprep.mubr.f32.mxu0 0.0
        %835 = vmatmul.mubr.f32.gmra.mrb[0].mxu0 %v610
        %v836 = vpop.f32.mrb[0].mxu0
        %v837 = vadd.f32 0.0, %v836
        %v838 = vpop.f32.mrb[0].mxu0
        %839 = vdwg.mxu0
        %v840 = vsel %vm595, %v514, 0
        %v842 = vsel %vm595, %v515, 0
        %v844 = vsel %vm595, %v516, 0
        %v846 = vsel %vm595, %v517, 0
        %v848 = vsel %vm595, %v518, 0
        %v850 = vsel %vm595, %v519, 0
        %v852 = vsel %vm595, %v520, 0
        %v854 = vsel %vm595, %v521, 0
        %v857 = vsel %vm612, %v543, 0
        %v860 = vsel %vm612, %v544, 0
        %v863 = vsel %vm612, %v545, 0
        %865 = vmatprep.subr.mxu0 %v523
        %866 = vmatpush1.msra.mxu0 %v522
        %867 = vmatprep.subr.mxu0 %v526
        %868 = vmatpush1.msra.mxu0 %v525
        %869 = vmatprep.subr.mxu0 %v529
        %870 = vmatpush1.msra.mxu0 %v528
        %871 = vmatprep.subr.mxu0 %v532
        %872 = vmatpush1.msra.mxu0 %v531
        %873 = vmatprep.subr.mxu0 %v535
        %874 = vmatpush1.msra.mxu0 %v534
        %875 = vmatprep.subr.mxu0 %v538
        %876 = vmatpush1.msra.mxu0 %v537
        %877 = vmatprep.subr.mxu0 %v541
        %878 = vmatpush1.msra.mxu0 %v540
        %879 = vmatprep.subr.mxu0 %v860
        %880 = vmatpush1.msra.mxu0 %v857
        %881 = vmatprep.subr.mxu0 0.0
        %882 = vmatpush1.msra.mxu0 0.0
        %883 = vmatprep.subr.mxu0 0.0
        %884 = vmatpush1.msra.mxu0 0.0
        %885 = vmatprep.subr.mxu0 0.0
        %886 = vmatpush1.msra.mxu0 0.0
        %887 = vmatprep.subr.mxu0 0.0
        %888 = vmatpush1.msra.mxu0 0.0
        %889 = vmatprep.subr.mxu0 0.0
        %890 = vmatpush1.msra.mxu0 0.0
        %891 = vmatprep.subr.mxu0 0.0
        %892 = vmatpush1.msra.mxu0 0.0
        %893 = vmatprep.subr.mxu0 0.0
        %894 = vmatpush1.msra.mxu0 0.0
        %895 = vmatprep.subr.mxu0 0.0
        %896 = vmatpush1.msra.mxu0 0.0
        %897 = vmatprep.subr.mxu0 0.0
        %898 = vmatpush1.msra.mxu0 0.0
        %899 = vmatprep.subr.mxu0 0.0
        %900 = vmatpush1.msra.mxu0 0.0
        %901 = vmatprep.subr.mxu0 0.0
        %902 = vmatpush1.msra.mxu0 0.0
        %903 = vmatprep.subr.mxu0 0.0
        %904 = vmatpush1.msra.mxu0 0.0
        %905 = vmatprep.subr.mxu0 0.0
        %906 = vmatpush1.msra.mxu0 0.0
        %907 = vmatprep.subr.mxu0 0.0
        %908 = vmatpush1.msra.mxu0 0.0
        %909 = vmatprep.subr.mxu0 0.0
        %910 = vmatpush1.msra.mxu0 0.0
        %911 = vmatprep.subr.mxu0 0.0
        %912 = vmatpush1.msra.mxu0 0.0
        %913 = vmatprep.subr.mxu0 0.0
        %914 = vmatpush1.msra.mxu0 0.0
        %915 = vmatprep.subr.mxu0 0.0
        %916 = vmatpush1.msra.mxu0 0.0
        %917 = vmatprep.subr.mxu0 0.0
        %918 = vmatpush1.msra.mxu0 0.0
        %919 = vmatprep.subr.mxu0 0.0
        %920 = vmatpush1.msra.mxu0 0.0
        %921 = vmatprep.subr.mxu0 0.0
        %922 = vmatpush1.msra.mxu0 0.0
        %923 = vmatprep.subr.mxu0 0.0
        %924 = vmatpush1.msra.mxu0 0.0
        %925 = vmatprep.subr.mxu0 0.0
        %926 = vmatpush1.msra.mxu0 0.0
        %927 = vmatprep.subr.mxu0 0.0
        %928 = vmatpush1.msra.mxu0 0.0
        %929 = vmatprep.mubr.f32.mxu0 0.0
        %930 = vmatmul.mubr.f32.gmra.mrb[0].mxu0 %v840
        %v931 = vpop.f32.mrb[0].mxu0
        %v932 = vadd.f32 %v689, %v931
        %v933 = vpop.f32.mrb[0].mxu0
        %v934 = vadd.f32 %v691, %v933
        %935 = vmatprep.mubr.f32.mxu0 0.0
        %936 = vmatmul.mubr.f32.gmra.mrb[0].mxu0 %v842
        %v937 = vpop.f32.mrb[0].mxu0
        %v938 = vadd.f32 %v695, %v937
        %v939 = vpop.f32.mrb[0].mxu0
        %v940 = vadd.f32 %v697, %v939
        %941 = vmatprep.mubr.f32.mxu0 0.0
        %942 = vmatmul.mubr.f32.gmra.mrb[0].mxu0 %v844
        %v943 = vpop.f32.mrb[0].mxu0
        %v944 = vadd.f32 %v701, %v943
        %v945 = vpop.f32.mrb[0].mxu0
        %v946 = vadd.f32 %v703, %v945
        %947 = vmatprep.mubr.f32.mxu0 0.0
        %948 = vmatmul.mubr.f32.gmra.mrb[0].mxu0 %v846
        %v949 = vpop.f32.mrb[0].mxu0
        %v950 = vadd.f32 %v707, %v949
        %v951 = vpop.f32.mrb[0].mxu0
        %v952 = vadd.f32 %v709, %v951
        %953 = vmatprep.mubr.f32.mxu0 0.0
        %954 = vmatmul.mubr.f32.gmra.mrb[0].mxu0 %v848
        %v955 = vpop.f32.mrb[0].mxu0
        %v956 = vadd.f32 %v713, %v955
        %v957 = vpop.f32.mrb[0].mxu0
        %v958 = vadd.f32 %v715, %v957
        %959 = vmatprep.mubr.f32.mxu0 0.0
        %960 = vmatmul.mubr.f32.gmra.mrb[0].mxu0 %v850
        %v961 = vpop.f32.mrb[0].mxu0
        %v962 = vadd.f32 %v719, %v961
        %v963 = vpop.f32.mrb[0].mxu0
        %v964 = vadd.f32 %v721, %v963
        %965 = vmatprep.mubr.f32.mxu0 0.0
        %966 = vmatmul.mubr.f32.gmra.mrb[0].mxu0 %v852
        %v967 = vpop.f32.mrb[0].mxu0
        %v968 = vadd.f32 %v725, %v967
        %v969 = vpop.f32.mrb[0].mxu0
        %v970 = vadd.f32 %v727, %v969
        %971 = vmatprep.mubr.f32.mxu0 0.0
        %972 = vmatmul.mubr.f32.gmra.mrb[0].mxu0 %v854
        %v973 = vpop.f32.mrb[0].mxu0
        %v974 = vadd.f32 %v731, %v973
        %v975 = vpop.f32.mrb[0].mxu0
        %v976 = vadd.f32 %v733, %v975
        %977 = vdwg.mxu0
        %978 = vmatprep.subr.mxu0 0.0
        %979 = vmatpush1.msra.mxu0 %v524
        %980 = vmatprep.subr.mxu0 0.0
        %981 = vmatpush1.msra.mxu0 %v527
        %982 = vmatprep.subr.mxu0 0.0
        %983 = vmatpush1.msra.mxu0 %v530
        %984 = vmatprep.subr.mxu0 0.0
        %985 = vmatpush1.msra.mxu0 %v533
        %986 = vmatprep.subr.mxu0 0.0
        %987 = vmatpush1.msra.mxu0 %v536
        %988 = vmatprep.subr.mxu0 0.0
        %989 = vmatpush1.msra.mxu0 %v539
        %990 = vmatprep.subr.mxu0 0.0
        %991 = vmatpush1.msra.mxu0 %v542
        %992 = vmatprep.subr.mxu0 0.0
        %993 = vmatpush1.msra.mxu0 %v863
        %994 = vmatprep.subr.mxu0 0.0
        %995 = vmatpush1.msra.mxu0 0.0
        %996 = vmatprep.subr.mxu0 0.0
        %997 = vmatpush1.msra.mxu0 0.0
        %998 = vmatprep.subr.mxu0 0.0
        %999 = vmatpush1.msra.mxu0 0.0
        %1000 = vmatprep.subr.mxu0 0.0
        %1001 = vmatpush1.msra.mxu0 0.0
        %1002 = vmatprep.subr.mxu0 0.0
        %1003 = vmatpush1.msra.mxu0 0.0
        %1004 = vmatprep.subr.mxu0 0.0
        %1005 = vmatpush1.msra.mxu0 0.0
        %1006 = vmatprep.subr.mxu0 0.0
        %1007 = vmatpush1.msra.mxu0 0.0
        %1008 = vmatprep.subr.mxu0 0.0
        %1009 = vmatpush1.msra.mxu0 0.0
        %1010 = vmatprep.subr.mxu0 0.0
        %1011 = vmatpush1.msra.mxu0 0.0
        %1012 = vmatprep.subr.mxu0 0.0
        %1013 = vmatpush1.msra.mxu0 0.0
        %1014 = vmatprep.subr.mxu0 0.0
        %1015 = vmatpush1.msra.mxu0 0.0
        %1016 = vmatprep.subr.mxu0 0.0
        %1017 = vmatpush1.msra.mxu0 0.0
        %1018 = vmatprep.subr.mxu0 0.0
        %1019 = vmatpush1.msra.mxu0 0.0
        %1020 = vmatprep.subr.mxu0 0.0
        %1021 = vmatpush1.msra.mxu0 0.0
        %1022 = vmatprep.subr.mxu0 0.0
        %1023 = vmatpush1.msra.mxu0 0.0
        %1024 = vmatprep.subr.mxu0 0.0
        %1025 = vmatpush1.msra.mxu0 0.0
        %1026 = vmatprep.subr.mxu0 0.0
        %1027 = vmatpush1.msra.mxu0 0.0
        %1028 = vmatprep.subr.mxu0 0.0
        %1029 = vmatpush1.msra.mxu0 0.0
        %1030 = vmatprep.subr.mxu0 0.0
        %1031 = vmatpush1.msra.mxu0 0.0
        %1032 = vmatprep.subr.mxu0 0.0
        %1033 = vmatpush1.msra.mxu0 0.0
        %1034 = vmatprep.subr.mxu0 0.0
        %1035 = vmatpush1.msra.mxu0 0.0
        %1036 = vmatprep.subr.mxu0 0.0
        %1037 = vmatpush1.msra.mxu0 0.0
        %1038 = vmatprep.subr.mxu0 0.0
        %1039 = vmatpush1.msra.mxu0 0.0
        %1040 = vmatprep.subr.mxu0 0.0
        %1041 = vmatpush1.msra.mxu0 0.0
        %1042 = vmatprep.mubr.f32.mxu0 0.0
        %1043 = vmatmul.mubr.f32.gmra.mrb[0].mxu0 %v840
        %v1044 = vpop.f32.mrb[0].mxu0
        %v1045 = vadd.f32 %v802, %v1044
        %v1046 = vpop.f32.mrb[0].mxu0
        %1047 = vmatprep.mubr.f32.mxu0 0.0
        %1048 = vmatmul.mubr.f32.gmra.mrb[0].mxu0 %v842
        %v1049 = vpop.f32.mrb[0].mxu0
        %v1050 = vadd.f32 %v807, %v1049
        %v1051 = vpop.f32.mrb[0].mxu0
        %1052 = vmatprep.mubr.f32.mxu0 0.0
        %1053 = vmatmul.mubr.f32.gmra.mrb[0].mxu0 %v844
        %v1054 = vpop.f32.mrb[0].mxu0
        %v1055 = vadd.f32 %v812, %v1054
        %v1056 = vpop.f32.mrb[0].mxu0
        %1057 = vmatprep.mubr.f32.mxu0 0.0
        %1058 = vmatmul.mubr.f32.gmra.mrb[0].mxu0 %v846
        %v1059 = vpop.f32.mrb[0].mxu0
        %v1060 = vadd.f32 %v817, %v1059
        %v1061 = vpop.f32.mrb[0].mxu0
        %1062 = vmatprep.mubr.f32.mxu0 0.0
        %1063 = vmatmul.mubr.f32.gmra.mrb[0].mxu0 %v848
        %v1064 = vpop.f32.mrb[0].mxu0
        %v1065 = vadd.f32 %v822, %v1064
        %v1066 = vpop.f32.mrb[0].mxu0
        %1067 = vmatprep.mubr.f32.mxu0 0.0
        %1068 = vmatmul.mubr.f32.gmra.mrb[0].mxu0 %v850
        %v1069 = vpop.f32.mrb[0].mxu0
        %v1070 = vadd.f32 %v827, %v1069
        %v1071 = vpop.f32.mrb[0].mxu0
        %1072 = vmatprep.mubr.f32.mxu0 0.0
        %1073 = vmatmul.mubr.f32.gmra.mrb[0].mxu0 %v852
        %v1074 = vpop.f32.mrb[0].mxu0
        %v1075 = vadd.f32 %v832, %v1074
        %v1076 = vpop.f32.mrb[0].mxu0
        %1077 = vmatprep.mubr.f32.mxu0 0.0
        %1078 = vmatmul.mubr.f32.gmra.mrb[0].mxu0 %v854
        %v1079 = vpop.f32.mrb[0].mxu0
        %v1080 = vadd.f32 %v837, %v1079
        %v1081 = vpop.f32.mrb[0].mxu0
        %1082 = vdwg.mxu0
        %s1083 = scalar_lea.vmem %s1, 384
        %v1084 = vld [vmem:[%s1083] sm:$0xff]
        %v1085 = vld [vmem:[%s1083 + $0x8] sm:$0xff]
        %v1086 = vld [vmem:[%s1083 + $0x10] sm:$0xff]
        %v1087 = vld [vmem:[%s1083 + $0x18] sm:$0xff]
        %v1088 = vld [vmem:[%s1083 + $0x20] sm:$0xff]
        %v1089 = vld [vmem:[%s1083 + $0x28] sm:$0xff]
        %v1090 = vld [vmem:[%s1083 + $0x30] sm:$0xff]
        %v1091 = vld [vmem:[%s1083 + $0x38] sm:$0xff]
        %v1092 = vld [vmem:[%s1083 + $0x40] sm:$0xff]
        %v1093 = vld [vmem:[%s1083 + $0x48] sm:$0xff]
        %v1094 = vld [vmem:[%s1083 + $0x50] sm:$0xff]
        %v1095 = vld [vmem:[%s1083 + $0x58] sm:$0xff]
        %v1096 = vld [vmem:[%s1083 + $0x60] sm:$0xff]
        %v1097 = vld [vmem:[%s1083 + $0x68] sm:$0xff]
        %v1098 = vld [vmem:[%s1083 + $0x70] sm:$0xff]
        %v1099 = vld [vmem:[%s1083 + $0x78] sm:$0xff]
        %v1100 = vld [vmem:[%s1083 + $0x80] sm:$0xff]
        %v1101 = vld [vmem:[%s1083 + $0x88] sm:$0xff]
        %v1102 = vld [vmem:[%s1083 + $0x90] sm:$0xff]
        %v1103 = vld [vmem:[%s1083 + $0x98] sm:$0xff]
        %v1104 = vld [vmem:[%s1083 + $0xa0] sm:$0xff]
        %v1105 = vld [vmem:[%s1083 + $0xa8] sm:$0x3f]
        %v1106 = vld [vmem:[%s1083 + $0xb0] sm:$0x3f]
        %v1107 = vld [vmem:[%s1083 + $0xb8] sm:$0x3f]
        %v1108 = vrot.slane %v514, 2
        %v1109 = vrot.slane %v515, 2
        %v1110 = vsel %vm612, %v1108, %v1109
        %v1111 = vrot.slane %v516, 2
        %v1112 = vsel %vm612, %v1109, %v1111
        %v1113 = vrot.slane %v517, 2
        %v1114 = vsel %vm612, %v1111, %v1113
        %v1115 = vrot.slane %v518, 2
        %v1116 = vsel %vm612, %v1113, %v1115
        %v1117 = vrot.slane %v519, 2
        %v1118 = vsel %vm612, %v1115, %v1117
        %v1119 = vrot.slane %v520, 2
        %v1120 = vsel %vm612, %v1117, %v1119
        %v1121 = vrot.slane %v521, 2
        %v1122 = vsel %vm612, %v1119, %v1121
        %v1123 = vsel %vm595, %v1110, 0
        %v1125 = vsel %vm595, %v1112, 0
        %v1127 = vsel %vm595, %v1114, 0
        %v1129 = vsel %vm595, %v1116, 0
        %v1131 = vsel %vm595, %v1118, 0
        %v1133 = vsel %vm595, %v1120, 0
        %v1135 = vsel %vm595, %v1122, 0
        %v1137 = vsel %vm595, %v1121, 0
        %v1140 = vsel %vm612, %v1105, 0
        %v1143 = vsel %vm612, %v1106, 0
        %v1146 = vsel %vm612, %v1107, 0
        %1148 = vmatprep.subr.mxu0 %v1085
        %1149 = vmatpush1.msra.mxu0 %v1084
        %1150 = vmatprep.subr.mxu0 %v1088
        %1151 = vmatpush1.msra.mxu0 %v1087
        %1152 = vmatprep.subr.mxu0 %v1091
        %1153 = vmatpush1.msra.mxu0 %v1090
        %1154 = vmatprep.subr.mxu0 %v1094
        %1155 = vmatpush1.msra.mxu0 %v1093
        %1156 = vmatprep.subr.mxu0 %v1097
        %1157 = vmatpush1.msra.mxu0 %v1096
        %1158 = vmatprep.subr.mxu0 %v1100
        %1159 = vmatpush1.msra.mxu0 %v1099
        %1160 = vmatprep.subr.mxu0 %v1103
        %1161 = vmatpush1.msra.mxu0 %v1102
        %1162 = vmatprep.subr.mxu0 %v1143
        %1163 = vmatpush1.msra.mxu0 %v1140
        %1164 = vmatprep.subr.mxu0 0.0
        %1165 = vmatpush1.msra.mxu0 0.0
        %1166 = vmatprep.subr.mxu0 0.0
        %1167 = vmatpush1.msra.mxu0 0.0
        %1168 = vmatprep.subr.mxu0 0.0
        %1169 = vmatpush1.msra.mxu0 0.0
        %1170 = vmatprep.subr.mxu0 0.0
        %1171 = vmatpush1.msra.mxu0 0.0
        %1172 = vmatprep.subr.mxu0 0.0
        %1173 = vmatpush1.msra.mxu0 0.0
        %1174 = vmatprep.subr.mxu0 0.0
        %1175 = vmatpush1.msra.mxu0 0.0
        %1176 = vmatprep.subr.mxu0 0.0
        %1177 = vmatpush1.msra.mxu0 0.0
        %1178 = vmatprep.subr.mxu0 0.0
        %1179 = vmatpush1.msra.mxu0 0.0
        %1180 = vmatprep.subr.mxu0 0.0
        %1181 = vmatpush1.msra.mxu0 0.0
        %1182 = vmatprep.subr.mxu0 0.0
        %1183 = vmatpush1.msra.mxu0 0.0
        %1184 = vmatprep.subr.mxu0 0.0
        %1185 = vmatpush1.msra.mxu0 0.0
        %1186 = vmatprep.subr.mxu0 0.0
        %1187 = vmatpush1.msra.mxu0 0.0
        %1188 = vmatprep.subr.mxu0 0.0
        %1189 = vmatpush1.msra.mxu0 0.0
        %1190 = vmatprep.subr.mxu0 0.0
        %1191 = vmatpush1.msra.mxu0 0.0
        %1192 = vmatprep.subr.mxu0 0.0
        %1193 = vmatpush1.msra.mxu0 0.0
        %1194 = vmatprep.subr.mxu0 0.0
        %1195 = vmatpush1.msra.mxu0 0.0
        %1196 = vmatprep.subr.mxu0 0.0
        %1197 = vmatpush1.msra.mxu0 0.0
        %1198 = vmatprep.subr.mxu0 0.0
        %1199 = vmatpush1.msra.mxu0 0.0
        %1200 = vmatprep.subr.mxu0 0.0
        %1201 = vmatpush1.msra.mxu0 0.0
        %1202 = vmatprep.subr.mxu0 0.0
        %1203 = vmatpush1.msra.mxu0 0.0
        %1204 = vmatprep.subr.mxu0 0.0
        %1205 = vmatpush1.msra.mxu0 0.0
        %1206 = vmatprep.subr.mxu0 0.0
        %1207 = vmatpush1.msra.mxu0 0.0
        %1208 = vmatprep.subr.mxu0 0.0
        %1209 = vmatpush1.msra.mxu0 0.0
        %1210 = vmatprep.subr.mxu0 0.0
        %1211 = vmatpush1.msra.mxu0 0.0
        %1212 = vmatprep.mubr.f32.mxu0 0.0
        %1213 = vmatmul.mubr.f32.gmra.mrb[0].mxu0 %v1123
        %v1214 = vpop.f32.mrb[0].mxu0
        %v1215 = vadd.f32 0.0, %v1214
        %v1216 = vpop.f32.mrb[0].mxu0
        %v1217 = vadd.f32 0.0, %v1216
        %1218 = vmatprep.mubr.f32.mxu0 0.0
        %1219 = vmatmul.mubr.f32.gmra.mrb[0].mxu0 %v1125
        %v1220 = vpop.f32.mrb[0].mxu0
        %v1221 = vadd.f32 0.0, %v1220
        %v1222 = vpop.f32.mrb[0].mxu0
        %v1223 = vadd.f32 0.0, %v1222
        %1224 = vmatprep.mubr.f32.mxu0 0.0
        %1225 = vmatmul.mubr.f32.gmra.mrb[0].mxu0 %v1127
        %v1226 = vpop.f32.mrb[0].mxu0
        %v1227 = vadd.f32 0.0, %v1226
        %v1228 = vpop.f32.mrb[0].mxu0
        %v1229 = vadd.f32 0.0, %v1228
        %1230 = vmatprep.mubr.f32.mxu0 0.0
        %1231 = vmatmul.mubr.f32.gmra.mrb[0].mxu0 %v1129
        %v1232 = vpop.f32.mrb[0].mxu0
        %v1233 = vadd.f32 0.0, %v1232
        %v1234 = vpop.f32.mrb[0].mxu0
        %v1235 = vadd.f32 0.0, %v1234
        %1236 = vmatprep.mubr.f32.mxu0 0.0
        %1237 = vmatmul.mubr.f32.gmra.mrb[0].mxu0 %v1131
        %v1238 = vpop.f32.mrb[0].mxu0
        %v1239 = vadd.f32 0.0, %v1238
        %v1240 = vpop.f32.mrb[0].mxu0
        %v1241 = vadd.f32 0.0, %v1240
        %1242 = vmatprep.mubr.f32.mxu0 0.0
        %1243 = vmatmul.mubr.f32.gmra.mrb[0].mxu0 %v1133
        %v1244 = vpop.f32.mrb[0].mxu0
        %v1245 = vadd.f32 0.0, %v1244
        %v1246 = vpop.f32.mrb[0].mxu0
        %v1247 = vadd.f32 0.0, %v1246
        %1248 = vmatprep.mubr.f32.mxu0 0.0
        %1249 = vmatmul.mubr.f32.gmra.mrb[0].mxu0 %v1135
        %v1250 = vpop.f32.mrb[0].mxu0
        %v1251 = vadd.f32 0.0, %v1250
        %v1252 = vpop.f32.mrb[0].mxu0
        %v1253 = vadd.f32 0.0, %v1252
        %1254 = vmatprep.mubr.f32.mxu0 0.0
        %1255 = vmatmul.mubr.f32.gmra.mrb[0].mxu0 %v1137
        %v1256 = vpop.f32.mrb[0].mxu0
        %v1257 = vadd.f32 0.0, %v1256
        %v1258 = vpop.f32.mrb[0].mxu0
        %v1259 = vadd.f32 0.0, %v1258
        %1260 = vdwg.mxu0
        %1261 = vmatprep.subr.mxu0 0.0
        %1262 = vmatpush1.msra.mxu0 %v1086
        %1263 = vmatprep.subr.mxu0 0.0
        %1264 = vmatpush1.msra.mxu0 %v1089
        %1265 = vmatprep.subr.mxu0 0.0
        %1266 = vmatpush1.msra.mxu0 %v1092
        %1267 = vmatprep.subr.mxu0 0.0
        %1268 = vmatpush1.msra.mxu0 %v1095
        %1269 = vmatprep.subr.mxu0 0.0
        %1270 = vmatpush1.msra.mxu0 %v1098
        %1271 = vmatprep.subr.mxu0 0.0
        %1272 = vmatpush1.msra.mxu0 %v1101
        %1273 = vmatprep.subr.mxu0 0.0
        %1274 = vmatpush1.msra.mxu0 %v1104
        %1275 = vmatprep.subr.mxu0 0.0
        %1276 = vmatpush1.msra.mxu0 %v1146
        %1277 = vmatprep.subr.mxu0 0.0
        %1278 = vmatpush1.msra.mxu0 0.0
        %1279 = vmatprep.subr.mxu0 0.0
        %1280 = vmatpush1.msra.mxu0 0.0
        %1281 = vmatprep.subr.mxu0 0.0
        %1282 = vmatpush1.msra.mxu0 0.0
        %1283 = vmatprep.subr.mxu0 0.0
        %1284 = vmatpush1.msra.mxu0 0.0
        %1285 = vmatprep.subr.mxu0 0.0
        %1286 = vmatpush1.msra.mxu0 0.0
        %1287 = vmatprep.subr.mxu0 0.0
        %1288 = vmatpush1.msra.mxu0 0.0
        %1289 = vmatprep.subr.mxu0 0.0
        %1290 = vmatpush1.msra.mxu0 0.0
        %1291 = vmatprep.subr.mxu0 0.0
        %1292 = vmatpush1.msra.mxu0 0.0
        %1293 = vmatprep.subr.mxu0 0.0
        %1294 = vmatpush1.msra.mxu0 0.0
        %1295 = vmatprep.subr.mxu0 0.0
        %1296 = vmatpush1.msra.mxu0 0.0
        %1297 = vmatprep.subr.mxu0 0.0
        %1298 = vmatpush1.msra.mxu0 0.0
        %1299 = vmatprep.subr.mxu0 0.0
        %1300 = vmatpush1.msra.mxu0 0.0
        %1301 = vmatprep.subr.mxu0 0.0
        %1302 = vmatpush1.msra.mxu0 0.0
        %1303 = vmatprep.subr.mxu0 0.0
        %1304 = vmatpush1.msra.mxu0 0.0
        %1305 = vmatprep.subr.mxu0 0.0
        %1306 = vmatpush1.msra.mxu0 0.0
        %1307 = vmatprep.subr.mxu0 0.0
        %1308 = vmatpush1.msra.mxu0 0.0
        %1309 = vmatprep.subr.mxu0 0.0
        %1310 = vmatpush1.msra.mxu0 0.0
        %1311 = vmatprep.subr.mxu0 0.0
        %1312 = vmatpush1.msra.mxu0 0.0
        %1313 = vmatprep.subr.mxu0 0.0
        %1314 = vmatpush1.msra.mxu0 0.0
        %1315 = vmatprep.subr.mxu0 0.0
        %1316 = vmatpush1.msra.mxu0 0.0
        %1317 = vmatprep.subr.mxu0 0.0
        %1318 = vmatpush1.msra.mxu0 0.0
        %1319 = vmatprep.subr.mxu0 0.0
        %1320 = vmatpush1.msra.mxu0 0.0
        %1321 = vmatprep.subr.mxu0 0.0
        %1322 = vmatpush1.msra.mxu0 0.0
        %1323 = vmatprep.subr.mxu0 0.0
        %1324 = vmatpush1.msra.mxu0 0.0
        %1325 = vmatprep.mubr.f32.mxu0 0.0
        %1326 = vmatmul.mubr.f32.gmra.mrb[0].mxu0 %v1123
        %v1327 = vpop.f32.mrb[0].mxu0
        %v1328 = vadd.f32 0.0, %v1327
        %v1329 = vpop.f32.mrb[0].mxu0
        %1330 = vmatprep.mubr.f32.mxu0 0.0
        %1331 = vmatmul.mubr.f32.gmra.mrb[0].mxu0 %v1125
        %v1332 = vpop.f32.mrb[0].mxu0
        %v1333 = vadd.f32 0.0, %v1332
        %v1334 = vpop.f32.mrb[0].mxu0
        %1335 = vmatprep.mubr.f32.mxu0 0.0
        %1336 = vmatmul.mubr.f32.gmra.mrb[0].mxu0 %v1127
        %v1337 = vpop.f32.mrb[0].mxu0
        %v1338 = vadd.f32 0.0, %v1337
        %v1339 = vpop.f32.mrb[0].mxu0
        %1340 = vmatprep.mubr.f32.mxu0 0.0
        %1341 = vmatmul.mubr.f32.gmra.mrb[0].mxu0 %v1129
        %v1342 = vpop.f32.mrb[0].mxu0
        %v1343 = vadd.f32 0.0, %v1342
        %v1344 = vpop.f32.mrb[0].mxu0
        %1345 = vmatprep.mubr.f32.mxu0 0.0
        %1346 = vmatmul.mubr.f32.gmra.mrb[0].mxu0 %v1131
        %v1347 = vpop.f32.mrb[0].mxu0
        %v1348 = vadd.f32 0.0, %v1347
        %v1349 = vpop.f32.mrb[0].mxu0
        %1350 = vmatprep.mubr.f32.mxu0 0.0
        %1351 = vmatmul.mubr.f32.gmra.mrb[0].mxu0 %v1133
        %v1352 = vpop.f32.mrb[0].mxu0
        %v1353 = vadd.f32 0.0, %v1352
        %v1354 = vpop.f32.mrb[0].mxu0
        %1355 = vmatprep.mubr.f32.mxu0 0.0
        %1356 = vmatmul.mubr.f32.gmra.mrb[0].mxu0 %v1135
        %v1357 = vpop.f32.mrb[0].mxu0
        %v1358 = vadd.f32 0.0, %v1357
        %v1359 = vpop.f32.mrb[0].mxu0
        %1360 = vmatprep.mubr.f32.mxu0 0.0
        %1361 = vmatmul.mubr.f32.gmra.mrb[0].mxu0 %v1137
        %v1362 = vpop.f32.mrb[0].mxu0
        %v1363 = vadd.f32 0.0, %v1362
        %v1364 = vpop.f32.mrb[0].mxu0
        %1365 = vdwg.mxu0
        %v1366 = vadd.f32 %v932, %v1215
        %v1367 = vadd.f32 %v934, %v1217
        %v1368 = vadd.f32 %v1045, %v1328
        %v1369 = vadd.f32 %v938, %v1221
        %v1370 = vadd.f32 %v940, %v1223
        %v1371 = vadd.f32 %v1050, %v1333
        %v1372 = vadd.f32 %v944, %v1227
        %v1373 = vadd.f32 %v946, %v1229
        %v1374 = vadd.f32 %v1055, %v1338
        %v1375 = vadd.f32 %v950, %v1233
        %v1376 = vadd.f32 %v952, %v1235
        %v1377 = vadd.f32 %v1060, %v1343
        %v1378 = vadd.f32 %v956, %v1239
        %v1379 = vadd.f32 %v958, %v1241
        %v1380 = vadd.f32 %v1065, %v1348
        %v1381 = vadd.f32 %v962, %v1245
        %v1382 = vadd.f32 %v964, %v1247
        %v1383 = vadd.f32 %v1070, %v1353
        %v1384 = vadd.f32 %v968, %v1251
        %v1385 = vadd.f32 %v970, %v1253
        %v1386 = vadd.f32 %v1075, %v1358
        %v1387 = vadd.f32 %v974, %v1257
        %v1388 = vadd.f32 %v976, %v1259
        %v1389 = vadd.f32 %v1080, %v1363
        %v1390 = vld [vmem:[%s2] sm:$0x7]
        %v1392 = vlaneseq
        %v1393 = vshrl.u32 %v1392, 7
        %v1394 = vsub.s32 0, %v1393
        %v1395 = vrot.slane %v1390, %v1394
        %v1396 = vlaneseq
        %v1397 = vshrl.u32 %v1396, 7
        %v1398 = vsub.s32 1, %v1397
        %v1399 = vrot.slane %v1390, %v1398
        %v1400 = vlaneseq
        %v1401 = vshrl.u32 %v1400, 7
        %v1402 = vsub.s32 2, %v1401
        %v1403 = vrot.slane %v1390, %v1402
        %v1407 = vadd.f32 %v1366, %v1395
        %v1408 = vadd.f32 %v1367, %v1399
        %v1409 = vadd.f32 %v1368, %v1403
        %v1410 = vadd.f32 %v1369, %v1395
        %v1411 = vadd.f32 %v1370, %v1399
        %v1412 = vadd.f32 %v1371, %v1403
        %v1413 = vadd.f32 %v1372, %v1395
        %v1414 = vadd.f32 %v1373, %v1399
        %v1415 = vadd.f32 %v1374, %v1403
        %v1416 = vadd.f32 %v1375, %v1395
        %v1417 = vadd.f32 %v1376, %v1399
        %v1418 = vadd.f32 %v1377, %v1403
        %v1419 = vadd.f32 %v1378, %v1395
        %v1420 = vadd.f32 %v1379, %v1399
        %v1421 = vadd.f32 %v1380, %v1403
        %v1422 = vadd.f32 %v1381, %v1395
        %v1423 = vadd.f32 %v1382, %v1399
        %v1424 = vadd.f32 %v1383, %v1403
        %v1425 = vadd.f32 %v1384, %v1395
        %v1426 = vadd.f32 %v1385, %v1399
        %v1427 = vadd.f32 %v1386, %v1403
        %v1428 = vadd.f32 %v1387, %v1395
        %v1429 = vadd.f32 %v1388, %v1399
        %v1430 = vadd.f32 %v1389, %v1403
        %v1431 = vmax.f32 %v1407, 0.0
        %v1432 = vmax.f32 %v1408, 0.0
        %v1433 = vmax.f32 %v1409, 0.0
        %v1434 = vmax.f32 %v1410, 0.0
        %v1435 = vmax.f32 %v1411, 0.0
        %v1436 = vmax.f32 %v1412, 0.0
        %v1437 = vmax.f32 %v1413, 0.0
        %v1438 = vmax.f32 %v1414, 0.0
        %v1439 = vmax.f32 %v1415, 0.0
        %v1440 = vmax.f32 %v1416, 0.0
        %v1441 = vmax.f32 %v1417, 0.0
        %v1442 = vmax.f32 %v1418, 0.0
        %v1443 = vmax.f32 %v1419, 0.0
        %v1444 = vmax.f32 %v1420, 0.0
        %v1445 = vmax.f32 %v1421, 0.0
        %v1446 = vmax.f32 %v1422, 0.0
        %v1447 = vmax.f32 %v1423, 0.0
        %v1448 = vmax.f32 %v1424, 0.0
        %v1449 = vmax.f32 %v1425, 0.0
        %v1450 = vmax.f32 %v1426, 0.0
        %v1451 = vmax.f32 %v1427, 0.0
        %v1452 = vmax.f32 %v1428, 0.0
        %v1453 = vmax.f32 %v1429, 0.0
        %v1454 = vmax.f32 %v1430, 0.0
        %v1455 = vld [vmem:[%s5] sm:$0xff]
        %v1456 = vld [vmem:[%s5 + $0x8] sm:$0xff]
        %v1457 = vld [vmem:[%s5 + $0x10] sm:$0xff]
        %v1458 = vld [vmem:[%s5 + $0x18] sm:$0xff]
        %v1459 = vld [vmem:[%s5 + $0x20] sm:$0xff]
        %v1460 = vld [vmem:[%s5 + $0x28] sm:$0xff]
        %v1461 = vld [vmem:[%s5 + $0x30] sm:$0xff]
        %v1462 = vld [vmem:[%s5 + $0x38] sm:$0xff]
        %v1463 = vld [vmem:[%s5 + $0x40] sm:$0xff]
        %v1464 = vld [vmem:[%s5 + $0x48] sm:$0xff]
        %v1465 = vld [vmem:[%s5 + $0x50] sm:$0xff]
        %v1466 = vld [vmem:[%s5 + $0x58] sm:$0xff]
        %v1467 = vld [vmem:[%s5 + $0x60] sm:$0xff]
        %v1468 = vld [vmem:[%s5 + $0x68] sm:$0xff]
        %v1469 = vld [vmem:[%s5 + $0x70] sm:$0xff]
        %v1470 = vld [vmem:[%s5 + $0x78] sm:$0xff]
        %v1471 = vld [vmem:[%s5 + $0x80] sm:$0xff]
        %v1472 = vld [vmem:[%s5 + $0x88] sm:$0xff]
        %v1473 = vld [vmem:[%s5 + $0x90] sm:$0xff]
        %v1474 = vld [vmem:[%s5 + $0x98] sm:$0xff]
        %v1475 = vld [vmem:[%s5 + $0xa0] sm:$0xff]
        %v1476 = vld [vmem:[%s5 + $0xa8] sm:$0xff]
        %v1477 = vld [vmem:[%s5 + $0xb0] sm:$0xff]
        %v1478 = vld [vmem:[%s5 + $0xb8] sm:$0xff]
        %v1479 = vld [vmem:[%s5 + $0xc0] sm:$0xff]
        %v1480 = vld [vmem:[%s5 + $0xc8] sm:$0xff]
        %v1481 = vld [vmem:[%s5 + $0xd0] sm:$0xff]
        %v1482 = vld [vmem:[%s5 + $0xd8] sm:$0xff]
        %v1483 = vld [vmem:[%s5 + $0xe0] sm:$0xff]
        %v1484 = vld [vmem:[%s5 + $0xe8] sm:$0xff]
        %v1485 = vld [vmem:[%s5 + $0xf0] sm:$0xff]
        %v1486 = vld [vmem:[%s5 + $0xf8] sm:$0xff]
        %v1487 = vld [vmem:[%s5 + $0x100] sm:$0xff]
        %v1488 = vld [vmem:[%s5 + $0x108] sm:$0xff]
        %v1489 = vld [vmem:[%s5 + $0x110] sm:$0xff]
        %v1490 = vld [vmem:[%s5 + $0x118] sm:$0xff]
        %v1491 = vld [vmem:[%s5 + $0x120] sm:$0xff]
        %v1492 = vld [vmem:[%s5 + $0x128] sm:$0xff]
        %v1493 = vld [vmem:[%s5 + $0x130] sm:$0xff]
        %v1494 = vld [vmem:[%s5 + $0x138] sm:$0xff]
        %v1495 = vld [vmem:[%s5 + $0x140] sm:$0xff]
        %v1496 = vld [vmem:[%s5 + $0x148] sm:$0xff]
        %v1497 = vld [vmem:[%s5 + $0x150] sm:$0xff]
        %v1498 = vld [vmem:[%s5 + $0x158] sm:$0xff]
        %v1499 = vld [vmem:[%s5 + $0x160] sm:$0xff]
        %v1500 = vld [vmem:[%s5 + $0x168] sm:$0xff]
        %v1501 = vld [vmem:[%s5 + $0x170] sm:$0xff]
        %v1502 = vld [vmem:[%s5 + $0x178] sm:$0xff]
        %v1503 = vld [vmem:[%s5 + $0x180] sm:$0xff]
        %v1504 = vld [vmem:[%s5 + $0x188] sm:$0xff]
        %v1505 = vld [vmem:[%s5 + $0x190] sm:$0xff]
        %v1506 = vld [vmem:[%s5 + $0x198] sm:$0xff]
        %v1507 = vld [vmem:[%s5 + $0x1a0] sm:$0xff]
        %v1508 = vld [vmem:[%s5 + $0x1a8] sm:$0xff]
        %v1509 = vld [vmem:[%s5 + $0x1b0] sm:$0xff]
        %v1510 = vld [vmem:[%s5 + $0x1b8] sm:$0xff]
        %v1511 = vld [vmem:[%s5 + $0x1c0] sm:$0xff]
        %v1512 = vld [vmem:[%s5 + $0x1c8] sm:$0xff]
        %v1513 = vld [vmem:[%s5 + $0x1d0] sm:$0xff]
        %v1514 = vld [vmem:[%s5 + $0x1d8] sm:$0xff]
        %v1515 = vld [vmem:[%s5 + $0x1e0] sm:$0xff]
        %v1516 = vld [vmem:[%s5 + $0x1e8] sm:$0xff]
        %v1517 = vld [vmem:[%s5 + $0x1f0] sm:$0xff]
        %v1518 = vld [vmem:[%s5 + $0x1f8] sm:$0xff]
        %v1519 = vld [vmem:[%s5 + $0x200] sm:$0xff]
        %v1520 = vld [vmem:[%s5 + $0x208] sm:$0xff]
        %v1521 = vld [vmem:[%s5 + $0x210] sm:$0xff]
        %v1522 = vld [vmem:[%s5 + $0x218] sm:$0xff]
        %v1523 = vld [vmem:[%s5 + $0x220] sm:$0xff]
        %v1524 = vld [vmem:[%s5 + $0x228] sm:$0xff]
        %v1525 = vld [vmem:[%s5 + $0x230] sm:$0xff]
        %v1526 = vld [vmem:[%s5 + $0x238] sm:$0xff]
        %v1527 = vld [vmem:[%s5 + $0x240] sm:$0xff]
        %v1528 = vld [vmem:[%s5 + $0x248] sm:$0xff]
        %v1529 = vld [vmem:[%s5 + $0x250] sm:$0xff]
        %v1530 = vld [vmem:[%s5 + $0x258] sm:$0xff]
        %v1531 = vld [vmem:[%s5 + $0x260] sm:$0xff]
        %v1532 = vld [vmem:[%s5 + $0x268] sm:$0xff]
        %v1533 = vld [vmem:[%s5 + $0x270] sm:$0xff]
        %v1534 = vld [vmem:[%s5 + $0x278] sm:$0xff]
        %v1535 = vld [vmem:[%s5 + $0x280] sm:$0xff]
        %v1536 = vld [vmem:[%s5 + $0x288] sm:$0xff]
        %v1537 = vld [vmem:[%s5 + $0x290] sm:$0xff]
        %v1538 = vld [vmem:[%s5 + $0x298] sm:$0xff]
        %v1539 = vld [vmem:[%s5 + $0x2a0] sm:$0xff]
        %v1540 = vld [vmem:[%s5 + $0x2a8] sm:$0xff]
        %v1541 = vld [vmem:[%s5 + $0x2b0] sm:$0xff]
        %v1542 = vld [vmem:[%s5 + $0x2b8] sm:$0xff]
        %v1543 = vld [vmem:[%s5 + $0x2c0] sm:$0xff]
        %v1544 = vld [vmem:[%s5 + $0x2c8] sm:$0xff]
        %vm1545 = vcmask 850944
        %v1547 = vsel %vm1545, %v1433, 0
        %v1550 = vsel %vm1545, %v1436, 0
        %v1553 = vsel %vm1545, %v1439, 0
        %v1556 = vsel %vm1545, %v1442, 0
        %v1559 = vsel %vm1545, %v1445, 0
        %v1562 = vsel %vm1545, %v1448, 0
        %v1565 = vsel %vm1545, %v1451, 0
        %v1568 = vsel %vm1545, %v1454, 0
        %1570 = vmatprep.subr.mxu0 %v1456
        %1571 = vmatpush1.msra.mxu0 %v1455
        %1572 = vmatprep.subr.mxu0 %v1458
        %1573 = vmatpush1.msra.mxu0 %v1457
        %1574 = vmatprep.subr.mxu0 %v1460
        %1575 = vmatpush1.msra.mxu0 %v1459
        %1576 = vmatprep.subr.mxu0 %v1462
        %1577 = vmatpush1.msra.mxu0 %v1461
        %1578 = vmatprep.subr.mxu0 %v1464
        %1579 = vmatpush1.msra.mxu0 %v1463
        %1580 = vmatprep.subr.mxu0 %v1466
        %1581 = vmatpush1.msra.mxu0 %v1465
        %1582 = vmatprep.subr.mxu0 %v1468
        %1583 = vmatpush1.msra.mxu0 %v1467
        %1584 = vmatprep.subr.mxu0 %v1470
        %1585 = vmatpush1.msra.mxu0 %v1469
        %1586 = vmatprep.subr.mxu0 %v1472
        %1587 = vmatpush1.msra.mxu0 %v1471
        %1588 = vmatprep.subr.mxu0 %v1474
        %1589 = vmatpush1.msra.mxu0 %v1473
        %1590 = vmatprep.subr.mxu0 %v1476
        %1591 = vmatpush1.msra.mxu0 %v1475
        %1592 = vmatprep.subr.mxu0 %v1478
        %1593 = vmatpush1.msra.mxu0 %v1477
        %1594 = vmatprep.subr.mxu0 %v1480
        %1595 = vmatpush1.msra.mxu0 %v1479
        %1596 = vmatprep.subr.mxu0 %v1482
        %1597 = vmatpush1.msra.mxu0 %v1481
        %1598 = vmatprep.subr.mxu0 %v1484
        %1599 = vmatpush1.msra.mxu0 %v1483
        %1600 = vmatprep.subr.mxu0 %v1486
        %1601 = vmatpush1.msra.mxu0 %v1485
        %1602 = vmatprep.subr.mxu0 %v1488
        %1603 = vmatpush1.msra.mxu0 %v1487
        %1604 = vmatprep.subr.mxu0 %v1490
        %1605 = vmatpush1.msra.mxu0 %v1489
        %1606 = vmatprep.subr.mxu0 %v1492
        %1607 = vmatpush1.msra.mxu0 %v1491
        %1608 = vmatprep.subr.mxu0 %v1494
        %1609 = vmatpush1.msra.mxu0 %v1493
        %1610 = vmatprep.subr.mxu0 %v1496
        %1611 = vmatpush1.msra.mxu0 %v1495
        %1612 = vmatprep.subr.mxu0 %v1498
        %1613 = vmatpush1.msra.mxu0 %v1497
        %1614 = vmatprep.subr.mxu0 %v1500
        %1615 = vmatpush1.msra.mxu0 %v1499
        %1616 = vmatprep.subr.mxu0 %v1502
        %1617 = vmatpush1.msra.mxu0 %v1501
        %1618 = vmatprep.subr.mxu0 %v1504
        %1619 = vmatpush1.msra.mxu0 %v1503
        %1620 = vmatprep.subr.mxu0 %v1506
        %1621 = vmatpush1.msra.mxu0 %v1505
        %1622 = vmatprep.subr.mxu0 %v1508
        %1623 = vmatpush1.msra.mxu0 %v1507
        %1624 = vmatprep.subr.mxu0 %v1510
        %1625 = vmatpush1.msra.mxu0 %v1509
        %1626 = vmatprep.subr.mxu0 %v1512
        %1627 = vmatpush1.msra.mxu0 %v1511
        %1628 = vmatprep.subr.mxu0 %v1514
        %1629 = vmatpush1.msra.mxu0 %v1513
        %1630 = vmatprep.subr.mxu0 %v1516
        %1631 = vmatpush1.msra.mxu0 %v1515
        %1632 = vmatprep.subr.mxu0 %v1518
        %1633 = vmatpush1.msra.mxu0 %v1517
        %1634 = vmatprep.mubr.f32.mxu0 %v1432
        %1635 = vmatmul.mubr.f32.gmra.mrb[0].mxu0 %v1431
        %v1636 = vpop.f32.mrb[0].mxu0
        %v1637 = vadd.f32 0.0, %v1636
        %v1638 = vpop.f32.mrb[0].mxu0
        %v1639 = vadd.f32 0.0, %v1638
        %1640 = vmatprep.mubr.f32.mxu0 %v1435
        %1641 = vmatmul.mubr.f32.gmra.mrb[0].mxu0 %v1434
        %v1642 = vpop.f32.mrb[0].mxu0
        %v1643 = vadd.f32 0.0, %v1642
        %v1644 = vpop.f32.mrb[0].mxu0
        %v1645 = vadd.f32 0.0, %v1644
        %1646 = vmatprep.mubr.f32.mxu0 %v1438
        %1647 = vmatmul.mubr.f32.gmra.mrb[0].mxu0 %v1437
        %v1648 = vpop.f32.mrb[0].mxu0
        %v1649 = vadd.f32 0.0, %v1648
        %v1650 = vpop.f32.mrb[0].mxu0
        %v1651 = vadd.f32 0.0, %v1650
        %1652 = vmatprep.mubr.f32.mxu0 %v1441
        %1653 = vmatmul.mubr.f32.gmra.mrb[0].mxu0 %v1440
        %v1654 = vpop.f32.mrb[0].mxu0
        %v1655 = vadd.f32 0.0, %v1654
        %v1656 = vpop.f32.mrb[0].mxu0
        %v1657 = vadd.f32 0.0, %v1656
        %1658 = vmatprep.mubr.f32.mxu0 %v1444
        %1659 = vmatmul.mubr.f32.gmra.mrb[0].mxu0 %v1443
        %v1660 = vpop.f32.mrb[0].mxu0
        %v1661 = vadd.f32 0.0, %v1660
        %v1662 = vpop.f32.mrb[0].mxu0
        %v1663 = vadd.f32 0.0, %v1662
        %1664 = vmatprep.mubr.f32.mxu0 %v1447
        %1665 = vmatmul.mubr.f32.gmra.mrb[0].mxu0 %v1446
        %v1666 = vpop.f32.mrb[0].mxu0
        %v1667 = vadd.f32 0.0, %v1666
        %v1668 = vpop.f32.mrb[0].mxu0
        %v1669 = vadd.f32 0.0, %v1668
        %1670 = vmatprep.mubr.f32.mxu0 %v1450
        %1671 = vmatmul.mubr.f32.gmra.mrb[0].mxu0 %v1449
        %v1672 = vpop.f32.mrb[0].mxu0
        %v1673 = vadd.f32 0.0, %v1672
        %v1674 = vpop.f32.mrb[0].mxu0
        %v1675 = vadd.f32 0.0, %v1674
        %1676 = vmatprep.mubr.f32.mxu0 %v1453
        %1677 = vmatmul.mubr.f32.gmra.mrb[0].mxu0 %v1452
        %v1678 = vpop.f32.mrb[0].mxu0
        %v1679 = vadd.f32 0.0, %v1678
        %v1680 = vpop.f32.mrb[0].mxu0
        %v1681 = vadd.f32 0.0, %v1680
        %1682 = vdwg.mxu0
        %1683 = vmatprep.subr.mxu0 %v1520
        %1684 = vmatpush1.msra.mxu0 %v1519
        %1685 = vmatprep.subr.mxu0 %v1522
        %1686 = vmatpush1.msra.mxu0 %v1521
        %1687 = vmatprep.subr.mxu0 %v1524
        %1688 = vmatpush1.msra.mxu0 %v1523
        %1689 = vmatprep.subr.mxu0 %v1526
        %1690 = vmatpush1.msra.mxu0 %v1525
        %1691 = vmatprep.subr.mxu0 %v1528
        %1692 = vmatpush1.msra.mxu0 %v1527
        %1693 = vmatprep.subr.mxu0 %v1530
        %1694 = vmatpush1.msra.mxu0 %v1529
        %1695 = vmatprep.subr.mxu0 %v1532
        %1696 = vmatpush1.msra.mxu0 %v1531
        %1697 = vmatprep.subr.mxu0 %v1534
        %1698 = vmatpush1.msra.mxu0 %v1533
        %1699 = vmatprep.subr.mxu0 %v1536
        %1700 = vmatpush1.msra.mxu0 %v1535
        %1701 = vmatprep.subr.mxu0 %v1538
        %1702 = vmatpush1.msra.mxu0 %v1537
        %1703 = vmatprep.subr.mxu0 %v1540
        %1704 = vmatpush1.msra.mxu0 %v1539
        %1705 = vmatprep.subr.mxu0 %v1542
        %1706 = vmatpush1.msra.mxu0 %v1541
        %1707 = vmatprep.subr.mxu0 %v1544
        %1708 = vmatpush1.msra.mxu0 %v1543
        %1709 = vmatprep.subr.mxu0 0.0
        %1710 = vmatpush1.msra.mxu0 0.0
        %1711 = vmatprep.subr.mxu0 0.0
        %1712 = vmatpush1.msra.mxu0 0.0
        %1713 = vmatprep.subr.mxu0 0.0
        %1714 = vmatpush1.msra.mxu0 0.0
        %1715 = vmatprep.subr.mxu0 0.0
        %1716 = vmatpush1.msra.mxu0 0.0
        %1717 = vmatprep.subr.mxu0 0.0
        %1718 = vmatpush1.msra.mxu0 0.0
        %1719 = vmatprep.subr.mxu0 0.0
        %1720 = vmatpush1.msra.mxu0 0.0
        %1721 = vmatprep.subr.mxu0 0.0
        %1722 = vmatpush1.msra.mxu0 0.0
        %1723 = vmatprep.subr.mxu0 0.0
        %1724 = vmatpush1.msra.mxu0 0.0
        %1725 = vmatprep.subr.mxu0 0.0
        %1726 = vmatpush1.msra.mxu0 0.0
        %1727 = vmatprep.subr.mxu0 0.0
        %1728 = vmatpush1.msra.mxu0 0.0
        %1729 = vmatprep.subr.mxu0 0.0
        %1730 = vmatpush1.msra.mxu0 0.0
        %1731 = vmatprep.subr.mxu0 0.0
        %1732 = vmatpush1.msra.mxu0 0.0
        %1733 = vmatprep.subr.mxu0 0.0
        %1734 = vmatpush1.msra.mxu0 0.0
        %1735 = vmatprep.subr.mxu0 0.0
        %1736 = vmatpush1.msra.mxu0 0.0
        %1737 = vmatprep.subr.mxu0 0.0
        %1738 = vmatpush1.msra.mxu0 0.0
        %1739 = vmatprep.subr.mxu0 0.0
        %1740 = vmatpush1.msra.mxu0 0.0
        %1741 = vmatprep.subr.mxu0 0.0
        %1742 = vmatpush1.msra.mxu0 0.0
        %1743 = vmatprep.subr.mxu0 0.0
        %1744 = vmatpush1.msra.mxu0 0.0
        %1745 = vmatprep.subr.mxu0 0.0
        %1746 = vmatpush1.msra.mxu0 0.0
        %1747 = vmatprep.mubr.f32.mxu0 0.0
        %1748 = vmatmul.mubr.f32.gmra.mrb[0].mxu0 %v1547
        %v1749 = vpop.f32.mrb[0].mxu0
        %v1750 = vadd.f32 %v1637, %v1749
        %v1751 = vpop.f32.mrb[0].mxu0
        %v1752 = vadd.f32 %v1639, %v1751
        %1753 = vmatprep.mubr.f32.mxu0 0.0
        %1754 = vmatmul.mubr.f32.gmra.mrb[0].mxu0 %v1550
        %v1755 = vpop.f32.mrb[0].mxu0
        %v1756 = vadd.f32 %v1643, %v1755
        %v1757 = vpop.f32.mrb[0].mxu0
        %v1758 = vadd.f32 %v1645, %v1757
        %1759 = vmatprep.mubr.f32.mxu0 0.0
        %1760 = vmatmul.mubr.f32.gmra.mrb[0].mxu0 %v1553
        %v1761 = vpop.f32.mrb[0].mxu0
        %v1762 = vadd.f32 %v1649, %v1761
        %v1763 = vpop.f32.mrb[0].mxu0
        %v1764 = vadd.f32 %v1651, %v1763
        %1765 = vmatprep.mubr.f32.mxu0 0.0
        %1766 = vmatmul.mubr.f32.gmra.mrb[0].mxu0 %v1556
        %v1767 = vpop.f32.mrb[0].mxu0
        %v1768 = vadd.f32 %v1655, %v1767
        %v1769 = vpop.f32.mrb[0].mxu0
        %v1770 = vadd.f32 %v1657, %v1769
        %1771 = vmatprep.mubr.f32.mxu0 0.0
        %1772 = vmatmul.mubr.f32.gmra.mrb[0].mxu0 %v1559
        %v1773 = vpop.f32.mrb[0].mxu0
        %v1774 = vadd.f32 %v1661, %v1773
        %v1775 = vpop.f32.mrb[0].mxu0
        %v1776 = vadd.f32 %v1663, %v1775
        %1777 = vmatprep.mubr.f32.mxu0 0.0
        %1778 = vmatmul.mubr.f32.gmra.mrb[0].mxu0 %v1562
        %v1779 = vpop.f32.mrb[0].mxu0
        %v1780 = vadd.f32 %v1667, %v1779
        %v1781 = vpop.f32.mrb[0].mxu0
        %v1782 = vadd.f32 %v1669, %v1781
        %1783 = vmatprep.mubr.f32.mxu0 0.0
        %1784 = vmatmul.mubr.f32.gmra.mrb[0].mxu0 %v1565
        %v1785 = vpop.f32.mrb[0].mxu0
        %v1786 = vadd.f32 %v1673, %v1785
        %v1787 = vpop.f32.mrb[0].mxu0
        %v1788 = vadd.f32 %v1675, %v1787
        %1789 = vmatprep.mubr.f32.mxu0 0.0
        %1790 = vmatmul.mubr.f32.gmra.mrb[0].mxu0 %v1568
        %v1791 = vpop.f32.mrb[0].mxu0
        %v1792 = vadd.f32 %v1679, %v1791
        %v1793 = vpop.f32.mrb[0].mxu0
        %v1794 = vadd.f32 %v1681, %v1793
        %1795 = vdwg.mxu0
        %v1796 = vld [vmem:[%s6] sm:$0xff]
        %v1797 = vld [vmem:[%s6 + $0x8] sm:$0xff]
        %v1798 = vld [vmem:[%s6 + $0x10] sm:$0xff]
        %v1799 = vld [vmem:[%s6 + $0x18] sm:$0xff]
        %v1800 = vld [vmem:[%s6 + $0x20] sm:$0xff]
        %v1801 = vld [vmem:[%s6 + $0x28] sm:$0xff]
        %v1802 = vld [vmem:[%s6 + $0x30] sm:$0xff]
        %v1803 = vld [vmem:[%s6 + $0x38] sm:$0xff]
        %v1804 = vld [vmem:[%s6 + $0x40] sm:$0xff]
        %v1805 = vld [vmem:[%s6 + $0x48] sm:$0xff]
        %v1806 = vld [vmem:[%s6 + $0x50] sm:$0xff]
        %v1807 = vld [vmem:[%s6 + $0x58] sm:$0xff]
        %v1808 = vld [vmem:[%s6 + $0x60] sm:$0xff]
        %v1809 = vld [vmem:[%s6 + $0x68] sm:$0xff]
        %v1810 = vld [vmem:[%s6 + $0x70] sm:$0xff]
        %v1811 = vld [vmem:[%s6 + $0x78] sm:$0xff]
        %v1812 = vld [vmem:[%s6 + $0x80] sm:$0xff]
        %v1813 = vld [vmem:[%s6 + $0x88] sm:$0xff]
        %v1814 = vld [vmem:[%s6 + $0x90] sm:$0xff]
        %v1815 = vld [vmem:[%s6 + $0x98] sm:$0xff]
        %v1816 = vld [vmem:[%s6 + $0xa0] sm:$0xff]
        %v1817 = vld [vmem:[%s6 + $0xa8] sm:$0xff]
        %v1818 = vld [vmem:[%s6 + $0xb0] sm:$0xff]
        %v1819 = vld [vmem:[%s6 + $0xb8] sm:$0xff]
        %v1820 = vld [vmem:[%s6 + $0xc0] sm:$0xff]
        %v1821 = vld [vmem:[%s6 + $0xc8] sm:$0xff]
        %v1822 = vld [vmem:[%s6 + $0xd0] sm:$0xff]
        %v1823 = vld [vmem:[%s6 + $0xd8] sm:$0xff]
        %v1824 = vld [vmem:[%s6 + $0xe0] sm:$0xff]
        %v1825 = vld [vmem:[%s6 + $0xe8] sm:$0xff]
        %v1826 = vld [vmem:[%s6 + $0xf0] sm:$0xff]
        %v1827 = vld [vmem:[%s6 + $0xf8] sm:$0xff]
        %v1828 = vld [vmem:[%s6 + $0x100] sm:$0xff]
        %v1829 = vld [vmem:[%s6 + $0x108] sm:$0xff]
        %v1830 = vld [vmem:[%s6 + $0x110] sm:$0xff]
        %v1831 = vld [vmem:[%s6 + $0x118] sm:$0xff]
        %v1832 = vld [vmem:[%s6 + $0x120] sm:$0xff]
        %v1833 = vld [vmem:[%s6 + $0x128] sm:$0xff]
        %v1834 = vld [vmem:[%s6 + $0x130] sm:$0xff]
        %v1835 = vld [vmem:[%s6 + $0x138] sm:$0xff]
        %v1836 = vld [vmem:[%s6 + $0x140] sm:$0xff]
        %v1837 = vld [vmem:[%s6 + $0x148] sm:$0xff]
        %v1838 = vld [vmem:[%s6 + $0x150] sm:$0xff]
        %v1839 = vld [vmem:[%s6 + $0x158] sm:$0xff]
        %v1840 = vld [vmem:[%s6 + $0x160] sm:$0xff]
        %v1841 = vld [vmem:[%s6 + $0x168] sm:$0xff]
        %v1842 = vld [vmem:[%s6 + $0x170] sm:$0xff]
        %v1843 = vld [vmem:[%s6 + $0x178] sm:$0xff]
        %v1844 = vld [vmem:[%s6 + $0x180] sm:$0xff]
        %v1845 = vld [vmem:[%s6 + $0x188] sm:$0xff]
        %v1846 = vld [vmem:[%s6 + $0x190] sm:$0xff]
        %v1847 = vld [vmem:[%s6 + $0x198] sm:$0xff]
        %v1848 = vld [vmem:[%s6 + $0x1a0] sm:$0xff]
        %v1849 = vld [vmem:[%s6 + $0x1a8] sm:$0xff]
        %v1850 = vld [vmem:[%s6 + $0x1b0] sm:$0xff]
        %v1851 = vld [vmem:[%s6 + $0x1b8] sm:$0xff]
        %v1852 = vld [vmem:[%s6 + $0x1c0] sm:$0xff]
        %v1853 = vld [vmem:[%s6 + $0x1c8] sm:$0xff]
        %v1854 = vld [vmem:[%s6 + $0x1d0] sm:$0xff]
        %v1855 = vld [vmem:[%s6 + $0x1d8] sm:$0xff]
        %v1856 = vld [vmem:[%s6 + $0x1e0] sm:$0xff]
        %v1857 = vld [vmem:[%s6 + $0x1e8] sm:$0xff]
        %v1858 = vld [vmem:[%s6 + $0x1f0] sm:$0xff]
        %v1859 = vld [vmem:[%s6 + $0x1f8] sm:$0xff]
        %v1860 = vld [vmem:[%s6 + $0x200] sm:$0xff]
        %v1861 = vld [vmem:[%s6 + $0x208] sm:$0xff]
        %v1862 = vld [vmem:[%s6 + $0x210] sm:$0xff]
        %v1863 = vld [vmem:[%s6 + $0x218] sm:$0xff]
        %v1864 = vld [vmem:[%s6 + $0x220] sm:$0xff]
        %v1865 = vld [vmem:[%s6 + $0x228] sm:$0xff]
        %v1866 = vld [vmem:[%s6 + $0x230] sm:$0xff]
        %v1867 = vld [vmem:[%s6 + $0x238] sm:$0xff]
        %v1868 = vld [vmem:[%s6 + $0x240] sm:$0xff]
        %v1869 = vld [vmem:[%s6 + $0x248] sm:$0xff]
        %v1870 = vld [vmem:[%s6 + $0x250] sm:$0xff]
        %v1871 = vld [vmem:[%s6 + $0x258] sm:$0xff]
        %v1872 = vld [vmem:[%s6 + $0x260] sm:$0xff]
        %v1873 = vld [vmem:[%s6 + $0x268] sm:$0xff]
        %v1874 = vld [vmem:[%s6 + $0x270] sm:$0xff]
        %v1875 = vld [vmem:[%s6 + $0x278] sm:$0xff]
        %v1876 = vld [vmem:[%s6 + $0x280] sm:$0xff]
        %v1877 = vld [vmem:[%s6 + $0x288] sm:$0xff]
        %v1878 = vld [vmem:[%s6 + $0x290] sm:$0xff]
        %v1879 = vld [vmem:[%s6 + $0x298] sm:$0xff]
        %v1880 = vld [vmem:[%s6 + $0x2a0] sm:$0xff]
        %v1881 = vld [vmem:[%s6 + $0x2a8] sm:$0xff]
        %v1882 = vld [vmem:[%s6 + $0x2b0] sm:$0xff]
        %v1883 = vld [vmem:[%s6 + $0x2b8] sm:$0xff]
        %v1884 = vld [vmem:[%s6 + $0x2c0] sm:$0xff]
        %v1885 = vld [vmem:[%s6 + $0x2c8] sm:$0xff]
        %1886 = vmatprep.subr.mxu0 %v1797
        %1887 = vmatpush1.msra.mxu0 %v1796
        %1888 = vmatprep.subr.mxu0 %v1799
        %1889 = vmatpush1.msra.mxu0 %v1798
        %1890 = vmatprep.subr.mxu0 %v1801
        %1891 = vmatpush1.msra.mxu0 %v1800
        %1892 = vmatprep.subr.mxu0 %v1803
        %1893 = vmatpush1.msra.mxu0 %v1802
        %1894 = vmatprep.subr.mxu0 %v1805
        %1895 = vmatpush1.msra.mxu0 %v1804
        %1896 = vmatprep.subr.mxu0 %v1807
        %1897 = vmatpush1.msra.mxu0 %v1806
        %1898 = vmatprep.subr.mxu0 %v1809
        %1899 = vmatpush1.msra.mxu0 %v1808
        %1900 = vmatprep.subr.mxu0 %v1811
        %1901 = vmatpush1.msra.mxu0 %v1810
        %1902 = vmatprep.subr.mxu0 %v1813
        %1903 = vmatpush1.msra.mxu0 %v1812
        %1904 = vmatprep.subr.mxu0 %v1815
        %1905 = vmatpush1.msra.mxu0 %v1814
        %1906 = vmatprep.subr.mxu0 %v1817
        %1907 = vmatpush1.msra.mxu0 %v1816
        %1908 = vmatprep.subr.mxu0 %v1819
        %1909 = vmatpush1.msra.mxu0 %v1818
        %1910 = vmatprep.subr.mxu0 %v1821
        %1911 = vmatpush1.msra.mxu0 %v1820
        %1912 = vmatprep.subr.mxu0 %v1823
        %1913 = vmatpush1.msra.mxu0 %v1822
        %1914 = vmatprep.subr.mxu0 %v1825
        %1915 = vmatpush1.msra.mxu0 %v1824
        %1916 = vmatprep.subr.mxu0 %v1827
        %1917 = vmatpush1.msra.mxu0 %v1826
        %1918 = vmatprep.subr.mxu0 %v1829
        %1919 = vmatpush1.msra.mxu0 %v1828
        %1920 = vmatprep.subr.mxu0 %v1831
        %1921 = vmatpush1.msra.mxu0 %v1830
        %1922 = vmatprep.subr.mxu0 %v1833
        %1923 = vmatpush1.msra.mxu0 %v1832
        %1924 = vmatprep.subr.mxu0 %v1835
        %1925 = vmatpush1.msra.mxu0 %v1834
        %1926 = vmatprep.subr.mxu0 %v1837
        %1927 = vmatpush1.msra.mxu0 %v1836
        %1928 = vmatprep.subr.mxu0 %v1839
        %1929 = vmatpush1.msra.mxu0 %v1838
        %1930 = vmatprep.subr.mxu0 %v1841
        %1931 = vmatpush1.msra.mxu0 %v1840
        %1932 = vmatprep.subr.mxu0 %v1843
        %1933 = vmatpush1.msra.mxu0 %v1842
        %1934 = vmatprep.subr.mxu0 %v1845
        %1935 = vmatpush1.msra.mxu0 %v1844
        %1936 = vmatprep.subr.mxu0 %v1847
        %1937 = vmatpush1.msra.mxu0 %v1846
        %1938 = vmatprep.subr.mxu0 %v1849
        %1939 = vmatpush1.msra.mxu0 %v1848
        %1940 = vmatprep.subr.mxu0 %v1851
        %1941 = vmatpush1.msra.mxu0 %v1850
        %1942 = vmatprep.subr.mxu0 %v1853
        %1943 = vmatpush1.msra.mxu0 %v1852
        %1944 = vmatprep.subr.mxu0 %v1855
        %1945 = vmatpush1.msra.mxu0 %v1854
        %1946 = vmatprep.subr.mxu0 %v1857
        %1947 = vmatpush1.msra.mxu0 %v1856
        %1948 = vmatprep.subr.mxu0 %v1859
        %1949 = vmatpush1.msra.mxu0 %v1858
        %1950 = vmatprep.mubr.f32.mxu0 %v1432
        %1951 = vmatmul.mubr.f32.gmra.mrb[0].mxu0 %v1431
        %v1952 = vpop.f32.mrb[0].mxu0
        %v1953 = vadd.f32 0.0, %v1952
        %v1954 = vpop.f32.mrb[0].mxu0
        %v1955 = vadd.f32 0.0, %v1954
        %1956 = vmatprep.mubr.f32.mxu0 %v1435
        %1957 = vmatmul.mubr.f32.gmra.mrb[0].mxu0 %v1434
        %v1958 = vpop.f32.mrb[0].mxu0
        %v1959 = vadd.f32 0.0, %v1958
        %v1960 = vpop.f32.mrb[0].mxu0
        %v1961 = vadd.f32 0.0, %v1960
        %1962 = vmatprep.mubr.f32.mxu0 %v1438
        %1963 = vmatmul.mubr.f32.gmra.mrb[0].mxu0 %v1437
        %v1964 = vpop.f32.mrb[0].mxu0
        %v1965 = vadd.f32 0.0, %v1964
        %v1966 = vpop.f32.mrb[0].mxu0
        %v1967 = vadd.f32 0.0, %v1966
        %1968 = vmatprep.mubr.f32.mxu0 %v1441
        %1969 = vmatmul.mubr.f32.gmra.mrb[0].mxu0 %v1440
        %v1970 = vpop.f32.mrb[0].mxu0
        %v1971 = vadd.f32 0.0, %v1970
        %v1972 = vpop.f32.mrb[0].mxu0
        %v1973 = vadd.f32 0.0, %v1972
        %1974 = vmatprep.mubr.f32.mxu0 %v1444
        %1975 = vmatmul.mubr.f32.gmra.mrb[0].mxu0 %v1443
        %v1976 = vpop.f32.mrb[0].mxu0
        %v1977 = vadd.f32 0.0, %v1976
        %v1978 = vpop.f32.mrb[0].mxu0
        %v1979 = vadd.f32 0.0, %v1978
        %1980 = vmatprep.mubr.f32.mxu0 %v1447
        %1981 = vmatmul.mubr.f32.gmra.mrb[0].mxu0 %v1446
        %v1982 = vpop.f32.mrb[0].mxu0
        %v1983 = vadd.f32 0.0, %v1982
        %v1984 = vpop.f32.mrb[0].mxu0
        %v1985 = vadd.f32 0.0, %v1984
        %1986 = vmatprep.mubr.f32.mxu0 %v1450
        %1987 = vmatmul.mubr.f32.gmra.mrb[0].mxu0 %v1449
        %v1988 = vpop.f32.mrb[0].mxu0
        %v1989 = vadd.f32 0.0, %v1988
        %v1990 = vpop.f32.mrb[0].mxu0
        %v1991 = vadd.f32 0.0, %v1990
        %1992 = vmatprep.mubr.f32.mxu0 %v1453
        %1993 = vmatmul.mubr.f32.gmra.mrb[0].mxu0 %v1452
        %v1994 = vpop.f32.mrb[0].mxu0
        %v1995 = vadd.f32 0.0, %v1994
        %v1996 = vpop.f32.mrb[0].mxu0
        %v1997 = vadd.f32 0.0, %v1996
        %1998 = vdwg.mxu0
        %1999 = vmatprep.subr.mxu0 %v1861
        %2000 = vmatpush1.msra.mxu0 %v1860
        %2001 = vmatprep.subr.mxu0 %v1863
        %2002 = vmatpush1.msra.mxu0 %v1862
        %2003 = vmatprep.subr.mxu0 %v1865
        %2004 = vmatpush1.msra.mxu0 %v1864
        %2005 = vmatprep.subr.mxu0 %v1867
        %2006 = vmatpush1.msra.mxu0 %v1866
        %2007 = vmatprep.subr.mxu0 %v1869
        %2008 = vmatpush1.msra.mxu0 %v1868
        %2009 = vmatprep.subr.mxu0 %v1871
        %2010 = vmatpush1.msra.mxu0 %v1870
        %2011 = vmatprep.subr.mxu0 %v1873
        %2012 = vmatpush1.msra.mxu0 %v1872
        %2013 = vmatprep.subr.mxu0 %v1875
        %2014 = vmatpush1.msra.mxu0 %v1874
        %2015 = vmatprep.subr.mxu0 %v1877
        %2016 = vmatpush1.msra.mxu0 %v1876
        %2017 = vmatprep.subr.mxu0 %v1879
        %2018 = vmatpush1.msra.mxu0 %v1878
        %2019 = vmatprep.subr.mxu0 %v1881
        %2020 = vmatpush1.msra.mxu0 %v1880
        %2021 = vmatprep.subr.mxu0 %v1883
        %2022 = vmatpush1.msra.mxu0 %v1882
        %2023 = vmatprep.subr.mxu0 %v1885
        %2024 = vmatpush1.msra.mxu0 %v1884
        %2025 = vmatprep.subr.mxu0 0.0
        %2026 = vmatpush1.msra.mxu0 0.0
        %2027 = vmatprep.subr.mxu0 0.0
        %2028 = vmatpush1.msra.mxu0 0.0
        %2029 = vmatprep.subr.mxu0 0.0
        %2030 = vmatpush1.msra.mxu0 0.0
        %2031 = vmatprep.subr.mxu0 0.0
        %2032 = vmatpush1.msra.mxu0 0.0
        %2033 = vmatprep.subr.mxu0 0.0
        %2034 = vmatpush1.msra.mxu0 0.0
        %2035 = vmatprep.subr.mxu0 0.0
        %2036 = vmatpush1.msra.mxu0 0.0
        %2037 = vmatprep.subr.mxu0 0.0
        %2038 = vmatpush1.msra.mxu0 0.0
        %2039 = vmatprep.subr.mxu0 0.0
        %2040 = vmatpush1.msra.mxu0 0.0
        %2041 = vmatprep.subr.mxu0 0.0
        %2042 = vmatpush1.msra.mxu0 0.0
        %2043 = vmatprep.subr.mxu0 0.0
        %2044 = vmatpush1.msra.mxu0 0.0
        %2045 = vmatprep.subr.mxu0 0.0
        %2046 = vmatpush1.msra.mxu0 0.0
        %2047 = vmatprep.subr.mxu0 0.0
        %2048 = vmatpush1.msra.mxu0 0.0
        %2049 = vmatprep.subr.mxu0 0.0
        %2050 = vmatpush1.msra.mxu0 0.0
        %2051 = vmatprep.subr.mxu0 0.0
        %2052 = vmatpush1.msra.mxu0 0.0
        %2053 = vmatprep.subr.mxu0 0.0
        %2054 = vmatpush1.msra.mxu0 0.0
        %2055 = vmatprep.subr.mxu0 0.0
        %2056 = vmatpush1.msra.mxu0 0.0
        %2057 = vmatprep.subr.mxu0 0.0
        %2058 = vmatpush1.msra.mxu0 0.0
        %2059 = vmatprep.subr.mxu0 0.0
        %2060 = vmatpush1.msra.mxu0 0.0
        %2061 = vmatprep.subr.mxu0 0.0
        %2062 = vmatpush1.msra.mxu0 0.0
        %2063 = vmatprep.mubr.f32.mxu0 0.0
        %2064 = vmatmul.mubr.f32.gmra.mrb[0].mxu0 %v1547
        %v2065 = vpop.f32.mrb[0].mxu0
        %v2066 = vadd.f32 %v1953, %v2065
        %v2067 = vpop.f32.mrb[0].mxu0
        %v2068 = vadd.f32 %v1955, %v2067
        %2069 = vmatprep.mubr.f32.mxu0 0.0
        %2070 = vmatmul.mubr.f32.gmra.mrb[0].mxu0 %v1550
        %v2071 = vpop.f32.mrb[0].mxu0
        %v2072 = vadd.f32 %v1959, %v2071
        %v2073 = vpop.f32.mrb[0].mxu0
        %v2074 = vadd.f32 %v1961, %v2073
        %2075 = vmatprep.mubr.f32.mxu0 0.0
        %2076 = vmatmul.mubr.f32.gmra.mrb[0].mxu0 %v1553
        %v2077 = vpop.f32.mrb[0].mxu0
        %v2078 = vadd.f32 %v1965, %v2077
        %v2079 = vpop.f32.mrb[0].mxu0
        %v2080 = vadd.f32 %v1967, %v2079
        %2081 = vmatprep.mubr.f32.mxu0 0.0
        %2082 = vmatmul.mubr.f32.gmra.mrb[0].mxu0 %v1556
        %v2083 = vpop.f32.mrb[0].mxu0
        %v2084 = vadd.f32 %v1971, %v2083
        %v2085 = vpop.f32.mrb[0].mxu0
        %v2086 = vadd.f32 %v1973, %v2085
        %2087 = vmatprep.mubr.f32.mxu0 0.0
        %2088 = vmatmul.mubr.f32.gmra.mrb[0].mxu0 %v1559
        %v2089 = vpop.f32.mrb[0].mxu0
        %v2090 = vadd.f32 %v1977, %v2089
        %v2091 = vpop.f32.mrb[0].mxu0
        %v2092 = vadd.f32 %v1979, %v2091
        %2093 = vmatprep.mubr.f32.mxu0 0.0
        %2094 = vmatmul.mubr.f32.gmra.mrb[0].mxu0 %v1562
        %v2095 = vpop.f32.mrb[0].mxu0
        %v2096 = vadd.f32 %v1983, %v2095
        %v2097 = vpop.f32.mrb[0].mxu0
        %v2098 = vadd.f32 %v1985, %v2097
        %2099 = vmatprep.mubr.f32.mxu0 0.0
        %2100 = vmatmul.mubr.f32.gmra.mrb[0].mxu0 %v1565
        %v2101 = vpop.f32.mrb[0].mxu0
        %v2102 = vadd.f32 %v1989, %v2101
        %v2103 = vpop.f32.mrb[0].mxu0
        %v2104 = vadd.f32 %v1991, %v2103
        %2105 = vmatprep.mubr.f32.mxu0 0.0
        %2106 = vmatmul.mubr.f32.gmra.mrb[0].mxu0 %v1568
        %v2107 = vpop.f32.mrb[0].mxu0
        %v2108 = vadd.f32 %v1995, %v2107
        %v2109 = vpop.f32.mrb[0].mxu0
        %v2110 = vadd.f32 %v1997, %v2109
        %2111 = vdwg.mxu0
        %v2112 = vmax.f32 %v1750, %v2066
        %v2113 = vmax.f32 %v1752, %v2068
        %v2114 = vmax.f32 %v1756, %v2072
        %v2115 = vmax.f32 %v1758, %v2074
        %v2116 = vmax.f32 %v1762, %v2078
        %v2117 = vmax.f32 %v1764, %v2080
        %v2118 = vmax.f32 %v1768, %v2084
        %v2119 = vmax.f32 %v1770, %v2086
        %v2120 = vmax.f32 %v1774, %v2090
        %v2121 = vmax.f32 %v1776, %v2092
        %v2122 = vmax.f32 %v1780, %v2096
        %v2123 = vmax.f32 %v1782, %v2098
        %v2124 = vmax.f32 %v1786, %v2102
        %v2125 = vmax.f32 %v1788, %v2104
        %v2126 = vmax.f32 %v1792, %v2108
        %v2127 = vmax.f32 %v1794, %v2110
        %v2128 = vld [vmem:[%s7] sm:$0xff]
        %v2129 = vld [vmem:[%s7 + $0x8] sm:$0xff]
        %v2130 = vld [vmem:[%s7 + $0x10] sm:$0xff]
        %v2131 = vld [vmem:[%s7 + $0x18] sm:$0x3f]
        %vm2132 = vcmask 490496
        %v2134 = vsel %vm2132, %v2128, 0
        %v2137 = vsel %vm2132, %v2129, 0
        %v2140 = vsel %vm2132, %v2130, 0
        %v2143 = vsel %vm2132, %v2131, 0
        %vm2145 = vcmask 1043456
        %v2147 = vsel %vm2145, %v2126, 0
        %v2150 = vsel %vm2145, %v2127, 0
        %2152 = vmatprep.subr.mxu0 %v2113
        %2153 = vmatpush1.msra.mxu0 %v2112
        %2154 = vmatprep.subr.mxu0 %v2115
        %2155 = vmatpush1.msra.mxu0 %v2114
        %2156 = vmatprep.subr.mxu0 %v2117
        %2157 = vmatpush1.msra.mxu0 %v2116
        %2158 = vmatprep.subr.mxu0 %v2119
        %2159 = vmatpush1.msra.mxu0 %v2118
        %2160 = vmatprep.subr.mxu0 %v2121
        %2161 = vmatpush1.msra.mxu0 %v2120
        %2162 = vmatprep.subr.mxu0 %v2123
        %2163 = vmatpush1.msra.mxu0 %v2122
        %2164 = vmatprep.subr.mxu0 %v2125
        %2165 = vmatpush1.msra.mxu0 %v2124
        %2166 = vmatprep.subr.mxu0 %v2150
        %2167 = vmatpush1.msra.mxu0 %v2147
        %2168 = vmatprep.subr.mxu0 0.0
        %2169 = vmatpush1.msra.mxu0 0.0
        %2170 = vmatprep.subr.mxu0 0.0
        %2171 = vmatpush1.msra.mxu0 0.0
        %2172 = vmatprep.subr.mxu0 0.0
        %2173 = vmatpush1.msra.mxu0 0.0
        %2174 = vmatprep.subr.mxu0 0.0
        %2175 = vmatpush1.msra.mxu0 0.0
        %2176 = vmatprep.subr.mxu0 0.0
        %2177 = vmatpush1.msra.mxu0 0.0
        %2178 = vmatprep.subr.mxu0 0.0
        %2179 = vmatpush1.msra.mxu0 0.0
        %2180 = vmatprep.subr.mxu0 0.0
        %2181 = vmatpush1.msra.mxu0 0.0
        %2182 = vmatprep.subr.mxu0 0.0
        %2183 = vmatpush1.msra.mxu0 0.0
        %2184 = vmatprep.subr.mxu0 0.0
        %2185 = vmatpush1.msra.mxu0 0.0
        %2186 = vmatprep.subr.mxu0 0.0
        %2187 = vmatpush1.msra.mxu0 0.0
        %2188 = vmatprep.subr.mxu0 0.0
        %2189 = vmatpush1.msra.mxu0 0.0
        %2190 = vmatprep.subr.mxu0 0.0
        %2191 = vmatpush1.msra.mxu0 0.0
        %2192 = vmatprep.subr.mxu0 0.0
        %2193 = vmatpush1.msra.mxu0 0.0
        %2194 = vmatprep.subr.mxu0 0.0
        %2195 = vmatpush1.msra.mxu0 0.0
        %2196 = vmatprep.subr.mxu0 0.0
        %2197 = vmatpush1.msra.mxu0 0.0
        %2198 = vmatprep.subr.mxu0 0.0
        %2199 = vmatpush1.msra.mxu0 0.0
        %2200 = vmatprep.subr.mxu0 0.0
        %2201 = vmatpush1.msra.mxu0 0.0
        %2202 = vmatprep.subr.mxu0 0.0
        %2203 = vmatpush1.msra.mxu0 0.0
        %2204 = vmatprep.subr.mxu0 0.0
        %2205 = vmatpush1.msra.mxu0 0.0
        %2206 = vmatprep.subr.mxu0 0.0
        %2207 = vmatpush1.msra.mxu0 0.0
        %2208 = vmatprep.subr.mxu0 0.0
        %2209 = vmatpush1.msra.mxu0 0.0
        %2210 = vmatprep.subr.mxu0 0.0
        %2211 = vmatpush1.msra.mxu0 0.0
        %2212 = vmatprep.subr.mxu0 0.0
        %2213 = vmatpush1.msra.mxu0 0.0
        %2214 = vmatprep.subr.mxu0 0.0
        %2215 = vmatpush1.msra.mxu0 0.0
        %2216 = vmatprep.mubr.f32.mxu0 0.0
        %2217 = vmatmul.mubr.f32.gmra.mrb[0].mxu0 %v2134
        %v2218 = vpop.f32.mrb[0].mxu0
        %v2219 = vadd.f32 0.0, %v2218
        %v2220 = vpop.f32.mrb[0].mxu0
        %v2221 = vadd.f32 0.0, %v2220
        %2222 = vmatprep.mubr.f32.mxu0 0.0
        %2223 = vmatmul.mubr.f32.gmra.mrb[0].mxu0 %v2137
        %v2224 = vpop.f32.mrb[0].mxu0
        %v2225 = vadd.f32 0.0, %v2224
        %v2226 = vpop.f32.mrb[0].mxu0
        %v2227 = vadd.f32 0.0, %v2226
        %2228 = vmatprep.mubr.f32.mxu0 0.0
        %2229 = vmatmul.mubr.f32.gmra.mrb[0].mxu0 %v2140
        %v2230 = vpop.f32.mrb[0].mxu0
        %v2231 = vadd.f32 0.0, %v2230
        %v2232 = vpop.f32.mrb[0].mxu0
        %v2233 = vadd.f32 0.0, %v2232
        %2234 = vmatprep.mubr.f32.mxu0 0.0
        %2235 = vmatmul.mubr.f32.gmra.mrb[0].mxu0 %v2143
        %v2236 = vpop.f32.mrb[0].mxu0
        %v2237 = vadd.f32 0.0, %v2236
        %v2238 = vpop.f32.mrb[0].mxu0
        %v2239 = vadd.f32 0.0, %v2238
        %2240 = vdwg.mxu0
        %v2241 = vld [vmem:[#allocation2] sm:$0xff]
        %v2242 = vld [vmem:[#allocation2 + $0x8] sm:$0xff]
        %v2243 = vld [vmem:[#allocation2 + $0x10] sm:$0xff]
        %v2244 = vld [vmem:[#allocation2 + $0x18] sm:$0x3f]
        %v2246 = vsel %vm2132, %v2241, 0
        %v2249 = vsel %vm2132, %v2242, 0
        %v2252 = vsel %vm2132, %v2243, 0
        %v2255 = vsel %vm2132, %v2244, 0
        %2257 = vmatprep.subr.mxu0 %v2113
        %2258 = vmatpush1.msra.mxu0 %v2112
        %2259 = vmatprep.subr.mxu0 %v2115
        %2260 = vmatpush1.msra.mxu0 %v2114
        %2261 = vmatprep.subr.mxu0 %v2117
        %2262 = vmatpush1.msra.mxu0 %v2116
        %2263 = vmatprep.subr.mxu0 %v2119
        %2264 = vmatpush1.msra.mxu0 %v2118
        %2265 = vmatprep.subr.mxu0 %v2121
        %2266 = vmatpush1.msra.mxu0 %v2120
        %2267 = vmatprep.subr.mxu0 %v2123
        %2268 = vmatpush1.msra.mxu0 %v2122
        %2269 = vmatprep.subr.mxu0 %v2125
        %2270 = vmatpush1.msra.mxu0 %v2124
        %2271 = vmatprep.subr.mxu0 %v2150
        %2272 = vmatpush1.msra.mxu0 %v2147
        %2273 = vmatprep.subr.mxu0 0.0
        %2274 = vmatpush1.msra.mxu0 0.0
        %2275 = vmatprep.subr.mxu0 0.0
        %2276 = vmatpush1.msra.mxu0 0.0
        %2277 = vmatprep.subr.mxu0 0.0
        %2278 = vmatpush1.msra.mxu0 0.0
        %2279 = vmatprep.subr.mxu0 0.0
        %2280 = vmatpush1.msra.mxu0 0.0
        %2281 = vmatprep.subr.mxu0 0.0
        %2282 = vmatpush1.msra.mxu0 0.0
        %2283 = vmatprep.subr.mxu0 0.0
        %2284 = vmatpush1.msra.mxu0 0.0
        %2285 = vmatprep.subr.mxu0 0.0
        %2286 = vmatpush1.msra.mxu0 0.0
        %2287 = vmatprep.subr.mxu0 0.0
        %2288 = vmatpush1.msra.mxu0 0.0
        %2289 = vmatprep.subr.mxu0 0.0
        %2290 = vmatpush1.msra.mxu0 0.0
        %2291 = vmatprep.subr.mxu0 0.0
        %2292 = vmatpush1.msra.mxu0 0.0
        %2293 = vmatprep.subr.mxu0 0.0
        %2294 = vmatpush1.msra.mxu0 0.0
        %2295 = vmatprep.subr.mxu0 0.0
        %2296 = vmatpush1.msra.mxu0 0.0
        %2297 = vmatprep.subr.mxu0 0.0
        %2298 = vmatpush1.msra.mxu0 0.0
        %2299 = vmatprep.subr.mxu0 0.0
        %2300 = vmatpush1.msra.mxu0 0.0
        %2301 = vmatprep.subr.mxu0 0.0
        %2302 = vmatpush1.msra.mxu0 0.0
        %2303 = vmatprep.subr.mxu0 0.0
        %2304 = vmatpush1.msra.mxu0 0.0
        %2305 = vmatprep.subr.mxu0 0.0
        %2306 = vmatpush1.msra.mxu0 0.0
        %2307 = vmatprep.subr.mxu0 0.0
        %2308 = vmatpush1.msra.mxu0 0.0
        %2309 = vmatprep.subr.mxu0 0.0
        %2310 = vmatpush1.msra.mxu0 0.0
        %2311 = vmatprep.subr.mxu0 0.0
        %2312 = vmatpush1.msra.mxu0 0.0
        %2313 = vmatprep.subr.mxu0 0.0
        %2314 = vmatpush1.msra.mxu0 0.0
        %2315 = vmatprep.subr.mxu0 0.0
        %2316 = vmatpush1.msra.mxu0 0.0
        %2317 = vmatprep.subr.mxu0 0.0
        %2318 = vmatpush1.msra.mxu0 0.0
        %2319 = vmatprep.subr.mxu0 0.0
        %2320 = vmatpush1.msra.mxu0 0.0
        %2321 = vmatprep.mubr.f32.mxu0 0.0
        %2322 = vmatmul.mubr.f32.gmra.mrb[0].mxu0 %v2246
        %v2323 = vpop.f32.mrb[0].mxu0
        %v2324 = vadd.f32 0.0, %v2323
        %v2325 = vpop.f32.mrb[0].mxu0
        %v2326 = vadd.f32 0.0, %v2325
        %2327 = vmatprep.mubr.f32.mxu0 0.0
        %2328 = vmatmul.mubr.f32.gmra.mrb[0].mxu0 %v2249
        %v2329 = vpop.f32.mrb[0].mxu0
        %v2330 = vadd.f32 0.0, %v2329
        %v2331 = vpop.f32.mrb[0].mxu0
        %v2332 = vadd.f32 0.0, %v2331
        %2333 = vmatprep.mubr.f32.mxu0 0.0
        %2334 = vmatmul.mubr.f32.gmra.mrb[0].mxu0 %v2252
        %v2335 = vpop.f32.mrb[0].mxu0
        %v2336 = vadd.f32 0.0, %v2335
        %v2337 = vpop.f32.mrb[0].mxu0
        %v2338 = vadd.f32 0.0, %v2337
        %2339 = vmatprep.mubr.f32.mxu0 0.0
        %2340 = vmatmul.mubr.f32.gmra.mrb[0].mxu0 %v2255
        %v2341 = vpop.f32.mrb[0].mxu0
        %v2342 = vadd.f32 0.0, %v2341
        %v2343 = vpop.f32.mrb[0].mxu0
        %v2344 = vadd.f32 0.0, %v2343
        %2345 = vdwg.mxu0
        %v2346 = vmax.f32 %v2219, %v2324
        %v2347 = vmax.f32 %v2221, %v2326
        %v2348 = vmax.f32 %v2225, %v2330
        %v2349 = vmax.f32 %v2227, %v2332
        %v2350 = vmax.f32 %v2231, %v2336
        %v2351 = vmax.f32 %v2233, %v2338
        %v2352 = vmax.f32 %v2237, %v2342
        %v2353 = vmax.f32 %v2239, %v2344
        %v2354 = vld [vmem:[%s3] sm:$0xff]
        %v2355 = vld [vmem:[%s3 + $0x8] sm:$0xff]
        %v2356 = vld [vmem:[%s3 + $0x10] sm:$0xff]
        %v2357 = vld [vmem:[%s3 + $0x18] sm:$0xff]
        %v2358 = vld [vmem:[%s3 + $0x20] sm:$0xff]
        %v2359 = vld [vmem:[%s3 + $0x28] sm:$0xff]
        %v2360 = vld [vmem:[%s3 + $0x30] sm:$0xff]
        %v2361 = vld [vmem:[%s3 + $0x38] sm:$0xff]
        %v2362 = vld [vmem:[%s3 + $0x40] sm:$0xff]
        %v2363 = vld [vmem:[%s3 + $0x48] sm:$0xff]
        %v2364 = vld [vmem:[%s3 + $0x50] sm:$0xff]
        %v2365 = vld [vmem:[%s3 + $0x58] sm:$0xff]
        %v2366 = vld [vmem:[%s3 + $0x60] sm:$0xff]
        %v2367 = vld [vmem:[%s3 + $0x68] sm:$0xff]
        %v2368 = vld [vmem:[%s3 + $0x70] sm:$0xff]
        %v2369 = vld [vmem:[%s3 + $0x78] sm:$0xff]
        %v2370 = vld [vmem:[%s3 + $0x80] sm:$0xff]
        %v2371 = vld [vmem:[%s3 + $0x88] sm:$0xff]
        %v2372 = vld [vmem:[%s3 + $0x90] sm:$0xff]
        %v2373 = vld [vmem:[%s3 + $0x98] sm:$0xff]
        %v2374 = vld [vmem:[%s3 + $0xa0] sm:$0xff]
        %v2375 = vld [vmem:[%s3 + $0xa8] sm:$0xff]
        %v2376 = vld [vmem:[%s3 + $0xb0] sm:$0xff]
        %v2377 = vld [vmem:[%s3 + $0xb8] sm:$0xff]
        %v2378 = vld [vmem:[%s3 + $0xc0] sm:$0xff]
        %v2379 = vld [vmem:[%s3 + $0xc8] sm:$0xff]
        %v2380 = vld [vmem:[%s3 + $0xd0] sm:$0xff]
        %v2381 = vld [vmem:[%s3 + $0xd8] sm:$0xff]
        %v2382 = vld [vmem:[%s3 + $0xe0] sm:$0xff]
        %v2383 = vld [vmem:[%s3 + $0xe8] sm:$0xff]
        %v2384 = vld [vmem:[%s3 + $0xf0] sm:$0xff]
        %v2385 = vld [vmem:[%s3 + $0xf8] sm:$0xff]
        %v2386 = vld [vmem:[%s3 + $0x100] sm:$0xff]
        %v2387 = vld [vmem:[%s3 + $0x108] sm:$0xff]
        %v2388 = vld [vmem:[%s3 + $0x110] sm:$0xff]
        %v2389 = vld [vmem:[%s3 + $0x118] sm:$0xff]
        %v2390 = vld [vmem:[%s3 + $0x120] sm:$0xff]
        %v2391 = vld [vmem:[%s3 + $0x128] sm:$0xff]
        %v2392 = vld [vmem:[%s3 + $0x130] sm:$0xff]
        %v2393 = vld [vmem:[%s3 + $0x138] sm:$0xff]
        %v2394 = vld [vmem:[%s3 + $0x140] sm:$0xff]
        %v2395 = vld [vmem:[%s3 + $0x148] sm:$0xff]
        %v2396 = vld [vmem:[%s3 + $0x150] sm:$0xff]
        %v2397 = vld [vmem:[%s3 + $0x158] sm:$0xff]
        %v2398 = vld [vmem:[%s3 + $0x160] sm:$0xff]
        %v2399 = vld [vmem:[%s3 + $0x168] sm:$0xff]
        %v2400 = vld [vmem:[%s3 + $0x170] sm:$0xff]
        %v2401 = vld [vmem:[%s3 + $0x178] sm:$0xff]
        %v2402 = vld [vmem:[%s3 + $0x180] sm:$0xff]
        %v2403 = vld [vmem:[%s3 + $0x188] sm:$0xff]
        %v2404 = vld [vmem:[%s3 + $0x190] sm:$0xff]
        %v2405 = vld [vmem:[%s3 + $0x198] sm:$0xff]
        %v2406 = vld [vmem:[%s3 + $0x1a0] sm:$0xff]
        %v2407 = vld [vmem:[%s3 + $0x1a8] sm:$0xff]
        %v2408 = vld [vmem:[%s3 + $0x1b0] sm:$0xff]
        %v2409 = vld [vmem:[%s3 + $0x1b8] sm:$0xff]
        %v2410 = vld [vmem:[%s3 + $0x1c0] sm:$0xff]
        %v2411 = vld [vmem:[%s3 + $0x1c8] sm:$0xff]
        %v2412 = vld [vmem:[%s3 + $0x1d0] sm:$0xff]
        %v2413 = vld [vmem:[%s3 + $0x1d8] sm:$0xff]
        %v2414 = vld [vmem:[%s3 + $0x1e0] sm:$0xff]
        %v2415 = vld [vmem:[%s3 + $0x1e8] sm:$0xff]
        %v2416 = vld [vmem:[%s3 + $0x1f0] sm:$0xff]
        %v2417 = vld [vmem:[%s3 + $0x1f8] sm:$0xff]
        %v2418 = vld [vmem:[%s3 + $0x200] sm:$0xff]
        %v2419 = vld [vmem:[%s3 + $0x208] sm:$0xff]
        %v2420 = vld [vmem:[%s3 + $0x210] sm:$0xff]
        %v2421 = vld [vmem:[%s3 + $0x218] sm:$0xff]
        %v2422 = vld [vmem:[%s3 + $0x220] sm:$0xff]
        %v2423 = vld [vmem:[%s3 + $0x228] sm:$0xff]
        %v2424 = vld [vmem:[%s3 + $0x230] sm:$0xff]
        %v2425 = vld [vmem:[%s3 + $0x238] sm:$0xff]
        %v2426 = vld [vmem:[%s3 + $0x240] sm:$0xff]
        %v2427 = vld [vmem:[%s3 + $0x248] sm:$0xff]
        %v2428 = vld [vmem:[%s3 + $0x250] sm:$0xff]
        %v2429 = vld [vmem:[%s3 + $0x258] sm:$0xff]
        %v2430 = vld [vmem:[%s3 + $0x260] sm:$0xff]
        %v2431 = vld [vmem:[%s3 + $0x268] sm:$0xff]
        %v2432 = vld [vmem:[%s3 + $0x270] sm:$0xff]
        %v2433 = vld [vmem:[%s3 + $0x278] sm:$0xff]
        %v2434 = vld [vmem:[%s3 + $0x280] sm:$0xff]
        %v2435 = vld [vmem:[%s3 + $0x288] sm:$0xff]
        %v2436 = vld [vmem:[%s3 + $0x290] sm:$0xff]
        %v2437 = vld [vmem:[%s3 + $0x298] sm:$0xff]
        %v2438 = vld [vmem:[%s3 + $0x2a0] sm:$0xff]
        %v2439 = vld [vmem:[%s3 + $0x2a8] sm:$0xff]
        %v2440 = vld [vmem:[%s3 + $0x2b0] sm:$0xff]
        %v2441 = vld [vmem:[%s3 + $0x2b8] sm:$0xff]
        %v2442 = vld [vmem:[%s3 + $0x2c0] sm:$0xf]
        %v2443 = vld [vmem:[%s3 + $0x2c8] sm:$0xf]
        %v2444 = vld [vmem:[%s3 + $0x2d0] sm:$0xf]
        %v2445 = vld [vmem:[%s3 + $0x2d8] sm:$0xf]
        %s2446 = scalar_lea.vmem %s3, 736
        %v2447 = vld [vmem:[%s2446] sm:$0xff]
        %v2448 = vld [vmem:[%s2446 + $0x8] sm:$0xff]
        %v2449 = vld [vmem:[%s2446 + $0x10] sm:$0xff]
        %v2450 = vld [vmem:[%s2446 + $0x18] sm:$0xff]
        %v2451 = vld [vmem:[%s2446 + $0x20] sm:$0xff]
        %v2452 = vld [vmem:[%s2446 + $0x28] sm:$0xff]
        %v2453 = vld [vmem:[%s2446 + $0x30] sm:$0xff]
        %v2454 = vld [vmem:[%s2446 + $0x38] sm:$0xff]
        %v2455 = vld [vmem:[%s2446 + $0x40] sm:$0xff]
        %v2456 = vld [vmem:[%s2446 + $0x48] sm:$0xff]
        %v2457 = vld [vmem:[%s2446 + $0x50] sm:$0xff]
        %v2458 = vld [vmem:[%s2446 + $0x58] sm:$0xff]
        %v2459 = vld [vmem:[%s2446 + $0x60] sm:$0xff]
        %v2460 = vld [vmem:[%s2446 + $0x68] sm:$0xff]
        %v2461 = vld [vmem:[%s2446 + $0x70] sm:$0xff]
        %v2462 = vld [vmem:[%s2446 + $0x78] sm:$0xff]
        %v2463 = vld [vmem:[%s2446 + $0x80] sm:$0xff]
        %v2464 = vld [vmem:[%s2446 + $0x88] sm:$0xff]
        %v2465 = vld [vmem:[%s2446 + $0x90] sm:$0xff]
        %v2466 = vld [vmem:[%s2446 + $0x98] sm:$0xff]
        %v2467 = vld [vmem:[%s2446 + $0xa0] sm:$0xff]
        %v2468 = vld [vmem:[%s2446 + $0xa8] sm:$0xff]
        %v2469 = vld [vmem:[%s2446 + $0xb0] sm:$0xff]
        %v2470 = vld [vmem:[%s2446 + $0xb8] sm:$0xff]
        %v2471 = vld [vmem:[%s2446 + $0xc0] sm:$0xff]
        %v2472 = vld [vmem:[%s2446 + $0xc8] sm:$0xff]
        %v2473 = vld [vmem:[%s2446 + $0xd0] sm:$0xff]
        %v2474 = vld [vmem:[%s2446 + $0xd8] sm:$0xff]
        %v2475 = vld [vmem:[%s2446 + $0xe0] sm:$0xff]
        %v2476 = vld [vmem:[%s2446 + $0xe8] sm:$0xff]
        %v2477 = vld [vmem:[%s2446 + $0xf0] sm:$0xff]
        %v2478 = vld [vmem:[%s2446 + $0xf8] sm:$0xff]
        %v2479 = vld [vmem:[%s2446 + $0x100] sm:$0xff]
        %v2480 = vld [vmem:[%s2446 + $0x108] sm:$0xff]
        %v2481 = vld [vmem:[%s2446 + $0x110] sm:$0xff]
        %v2482 = vld [vmem:[%s2446 + $0x118] sm:$0xff]
        %v2483 = vld [vmem:[%s2446 + $0x120] sm:$0xff]
        %v2484 = vld [vmem:[%s2446 + $0x128] sm:$0xff]
        %v2485 = vld [vmem:[%s2446 + $0x130] sm:$0xff]
        %v2486 = vld [vmem:[%s2446 + $0x138] sm:$0xff]
        %v2487 = vld [vmem:[%s2446 + $0x140] sm:$0xff]
        %v2488 = vld [vmem:[%s2446 + $0x148] sm:$0xff]
        %v2489 = vld [vmem:[%s2446 + $0x150] sm:$0xff]
        %v2490 = vld [vmem:[%s2446 + $0x158] sm:$0xff]
        %v2491 = vld [vmem:[%s2446 + $0x160] sm:$0xff]
        %v2492 = vld [vmem:[%s2446 + $0x168] sm:$0xff]
        %v2493 = vld [vmem:[%s2446 + $0x170] sm:$0xff]
        %v2494 = vld [vmem:[%s2446 + $0x178] sm:$0xff]
        %v2495 = vld [vmem:[%s2446 + $0x180] sm:$0xff]
        %v2496 = vld [vmem:[%s2446 + $0x188] sm:$0xff]
        %v2497 = vld [vmem:[%s2446 + $0x190] sm:$0xff]
        %v2498 = vld [vmem:[%s2446 + $0x198] sm:$0xff]
        %v2499 = vld [vmem:[%s2446 + $0x1a0] sm:$0xff]
        %v2500 = vld [vmem:[%s2446 + $0x1a8] sm:$0xff]
        %v2501 = vld [vmem:[%s2446 + $0x1b0] sm:$0xff]
        %v2502 = vld [vmem:[%s2446 + $0x1b8] sm:$0xff]
        %v2503 = vld [vmem:[%s2446 + $0x1c0] sm:$0xff]
        %v2504 = vld [vmem:[%s2446 + $0x1c8] sm:$0xff]
        %v2505 = vld [vmem:[%s2446 + $0x1d0] sm:$0xff]
        %v2506 = vld [vmem:[%s2446 + $0x1d8] sm:$0xff]
        %v2507 = vld [vmem:[%s2446 + $0x1e0] sm:$0xff]
        %v2508 = vld [vmem:[%s2446 + $0x1e8] sm:$0xff]
        %v2509 = vld [vmem:[%s2446 + $0x1f0] sm:$0xff]
        %v2510 = vld [vmem:[%s2446 + $0x1f8] sm:$0xff]
        %v2511 = vld [vmem:[%s2446 + $0x200] sm:$0xff]
        %v2512 = vld [vmem:[%s2446 + $0x208] sm:$0xff]
        %v2513 = vld [vmem:[%s2446 + $0x210] sm:$0xff]
        %v2514 = vld [vmem:[%s2446 + $0x218] sm:$0xff]
        %v2515 = vld [vmem:[%s2446 + $0x220] sm:$0xff]
        %v2516 = vld [vmem:[%s2446 + $0x228] sm:$0xff]
        %v2517 = vld [vmem:[%s2446 + $0x230] sm:$0xff]
        %v2518 = vld [vmem:[%s2446 + $0x238] sm:$0xff]
        %v2519 = vld [vmem:[%s2446 + $0x240] sm:$0xff]
        %v2520 = vld [vmem:[%s2446 + $0x248] sm:$0xff]
        %v2521 = vld [vmem:[%s2446 + $0x250] sm:$0xff]
        %v2522 = vld [vmem:[%s2446 + $0x258] sm:$0xff]
        %v2523 = vld [vmem:[%s2446 + $0x260] sm:$0xff]
        %v2524 = vld [vmem:[%s2446 + $0x268] sm:$0xff]
        %v2525 = vld [vmem:[%s2446 + $0x270] sm:$0xff]
        %v2526 = vld [vmem:[%s2446 + $0x278] sm:$0xff]
        %v2527 = vld [vmem:[%s2446 + $0x280] sm:$0xff]
        %v2528 = vld [vmem:[%s2446 + $0x288] sm:$0xff]
        %v2529 = vld [vmem:[%s2446 + $0x290] sm:$0xff]
        %v2530 = vld [vmem:[%s2446 + $0x298] sm:$0xff]
        %v2531 = vld [vmem:[%s2446 + $0x2a0] sm:$0xff]
        %v2532 = vld [vmem:[%s2446 + $0x2a8] sm:$0xff]
        %v2533 = vld [vmem:[%s2446 + $0x2b0] sm:$0xff]
        %v2534 = vld [vmem:[%s2446 + $0x2b8] sm:$0xff]
        %v2535 = vld [vmem:[%s2446 + $0x2c0] sm:$0xf]
        %v2536 = vld [vmem:[%s2446 + $0x2c8] sm:$0xf]
        %v2537 = vld [vmem:[%s2446 + $0x2d0] sm:$0xf]
        %v2538 = vld [vmem:[%s2446 + $0x2d8] sm:$0xf]
        %v2547 = vrot.slane %v2346, 1
        %v2548 = vrot.slane %v2348, 1
        %v2549 = vsel %vm579, %v2547, %v2548
        %v2550 = vrot.slane %v2347, 1
        %v2551 = vrot.slane %v2349, 1
        %v2552 = vsel %vm579, %v2550, %v2551
        %v2553 = vrot.slane %v2350, 1
        %v2554 = vsel %vm579, %v2548, %v2553
        %v2555 = vrot.slane %v2351, 1
        %v2556 = vsel %vm579, %v2551, %v2555
        %v2557 = vrot.slane %v2352, 1
        %v2558 = vsel %vm579, %v2553, %v2557
        %v2559 = vrot.slane %v2353, 1
        %v2560 = vsel %vm579, %v2555, %v2559
        %vm2565 = vcmask 424960
        %v2566 = vsel %vm2565, %v2552, 0
        %v2568 = vsel %vm2565, %v2556, 0
        %v2570 = vsel %vm2565, %v2560, 0
        %v2572 = vsel %vm2565, %v2559, 0
        %v2575 = vsel %vm2145, %v2535, 0
        %v2578 = vsel %vm2145, %v2536, 0
        %v2581 = vsel %vm2145, %v2537, 0
        %v2584 = vsel %vm2145, %v2538, 0
        %2586 = vmatprep.subr.mxu0 %v2448
        %2587 = vmatpush1.msra.mxu0 %v2447
        %2588 = vmatprep.subr.mxu0 %v2452
        %2589 = vmatpush1.msra.mxu0 %v2451
        %2590 = vmatprep.subr.mxu0 %v2456
        %2591 = vmatpush1.msra.mxu0 %v2455
        %2592 = vmatprep.subr.mxu0 %v2460
        %2593 = vmatpush1.msra.mxu0 %v2459
        %2594 = vmatprep.subr.mxu0 %v2464
        %2595 = vmatpush1.msra.mxu0 %v2463
        %2596 = vmatprep.subr.mxu0 %v2468
        %2597 = vmatpush1.msra.mxu0 %v2467
        %2598 = vmatprep.subr.mxu0 %v2472
        %2599 = vmatpush1.msra.mxu0 %v2471
        %2600 = vmatprep.subr.mxu0 %v2476
        %2601 = vmatpush1.msra.mxu0 %v2475
        %2602 = vmatprep.subr.mxu0 %v2480
        %2603 = vmatpush1.msra.mxu0 %v2479
        %2604 = vmatprep.subr.mxu0 %v2484
        %2605 = vmatpush1.msra.mxu0 %v2483
        %2606 = vmatprep.subr.mxu0 %v2488
        %2607 = vmatpush1.msra.mxu0 %v2487
        %2608 = vmatprep.subr.mxu0 %v2492
        %2609 = vmatpush1.msra.mxu0 %v2491
        %2610 = vmatprep.subr.mxu0 %v2496
        %2611 = vmatpush1.msra.mxu0 %v2495
        %2612 = vmatprep.subr.mxu0 %v2500
        %2613 = vmatpush1.msra.mxu0 %v2499
        %2614 = vmatprep.subr.mxu0 %v2504
        %2615 = vmatpush1.msra.mxu0 %v2503
        %2616 = vmatprep.subr.mxu0 %v2508
        %2617 = vmatpush1.msra.mxu0 %v2507
        %2618 = vmatprep.subr.mxu0 %v2512
        %2619 = vmatpush1.msra.mxu0 %v2511
        %2620 = vmatprep.subr.mxu0 %v2516
        %2621 = vmatpush1.msra.mxu0 %v2515
        %2622 = vmatprep.subr.mxu0 %v2520
        %2623 = vmatpush1.msra.mxu0 %v2519
        %2624 = vmatprep.subr.mxu0 %v2524
        %2625 = vmatpush1.msra.mxu0 %v2523
        %2626 = vmatprep.subr.mxu0 %v2528
        %2627 = vmatpush1.msra.mxu0 %v2527
        %2628 = vmatprep.subr.mxu0 %v2532
        %2629 = vmatpush1.msra.mxu0 %v2531
        %2630 = vmatprep.subr.mxu0 %v2578
        %2631 = vmatpush1.msra.mxu0 %v2575
        %2632 = vmatprep.subr.mxu0 0.0
        %2633 = vmatpush1.msra.mxu0 0.0
        %2634 = vmatprep.subr.mxu0 0.0
        %2635 = vmatpush1.msra.mxu0 0.0
        %2636 = vmatprep.subr.mxu0 0.0
        %2637 = vmatpush1.msra.mxu0 0.0
        %2638 = vmatprep.subr.mxu0 0.0
        %2639 = vmatpush1.msra.mxu0 0.0
        %2640 = vmatprep.subr.mxu0 0.0
        %2641 = vmatpush1.msra.mxu0 0.0
        %2642 = vmatprep.subr.mxu0 0.0
        %2643 = vmatpush1.msra.mxu0 0.0
        %2644 = vmatprep.subr.mxu0 0.0
        %2645 = vmatpush1.msra.mxu0 0.0
        %2646 = vmatprep.subr.mxu0 0.0
        %2647 = vmatpush1.msra.mxu0 0.0
        %2648 = vmatprep.subr.mxu0 0.0
        %2649 = vmatpush1.msra.mxu0 0.0
        %2650 = vmatprep.mubr.f32.mxu0 %v2566
        %2651 = vmatmul.mubr.f32.gmra.mrb[0].mxu0 %v2549
        %v2652 = vpop.f32.mrb[0].mxu0
        %v2653 = vadd.f32 0.0, %v2652
        %v2654 = vpop.f32.mrb[0].mxu0
        %v2655 = vadd.f32 0.0, %v2654
        %2656 = vmatprep.mubr.f32.mxu0 %v2568
        %2657 = vmatmul.mubr.f32.gmra.mrb[0].mxu0 %v2554
        %v2658 = vpop.f32.mrb[0].mxu0
        %v2659 = vadd.f32 0.0, %v2658
        %v2660 = vpop.f32.mrb[0].mxu0
        %v2661 = vadd.f32 0.0, %v2660
        %2662 = vmatprep.mubr.f32.mxu0 %v2570
        %2663 = vmatmul.mubr.f32.gmra.mrb[0].mxu0 %v2558
        %v2664 = vpop.f32.mrb[0].mxu0
        %v2665 = vadd.f32 0.0, %v2664
        %v2666 = vpop.f32.mrb[0].mxu0
        %v2667 = vadd.f32 0.0, %v2666
        %2668 = vmatprep.mubr.f32.mxu0 %v2572
        %2669 = vmatmul.mubr.f32.gmra.mrb[0].mxu0 %v2557
        %v2670 = vpop.f32.mrb[0].mxu0
        %v2671 = vadd.f32 0.0, %v2670
        %v2672 = vpop.f32.mrb[0].mxu0
        %v2673 = vadd.f32 0.0, %v2672
        %2674 = vdwg.mxu0
        %2675 = vmatprep.subr.mxu0 %v2450
        %2676 = vmatpush1.msra.mxu0 %v2449
        %2677 = vmatprep.subr.mxu0 %v2454
        %2678 = vmatpush1.msra.mxu0 %v2453
        %2679 = vmatprep.subr.mxu0 %v2458
        %2680 = vmatpush1.msra.mxu0 %v2457
        %2681 = vmatprep.subr.mxu0 %v2462
        %2682 = vmatpush1.msra.mxu0 %v2461
        %2683 = vmatprep.subr.mxu0 %v2466
        %2684 = vmatpush1.msra.mxu0 %v2465
        %2685 = vmatprep.subr.mxu0 %v2470
        %2686 = vmatpush1.msra.mxu0 %v2469
        %2687 = vmatprep.subr.mxu0 %v2474
        %2688 = vmatpush1.msra.mxu0 %v2473
        %2689 = vmatprep.subr.mxu0 %v2478
        %2690 = vmatpush1.msra.mxu0 %v2477
        %2691 = vmatprep.subr.mxu0 %v2482
        %2692 = vmatpush1.msra.mxu0 %v2481
        %2693 = vmatprep.subr.mxu0 %v2486
        %2694 = vmatpush1.msra.mxu0 %v2485
        %2695 = vmatprep.subr.mxu0 %v2490
        %2696 = vmatpush1.msra.mxu0 %v2489
        %2697 = vmatprep.subr.mxu0 %v2494
        %2698 = vmatpush1.msra.mxu0 %v2493
        %2699 = vmatprep.subr.mxu0 %v2498
        %2700 = vmatpush1.msra.mxu0 %v2497
        %2701 = vmatprep.subr.mxu0 %v2502
        %2702 = vmatpush1.msra.mxu0 %v2501
        %2703 = vmatprep.subr.mxu0 %v2506
        %2704 = vmatpush1.msra.mxu0 %v2505
        %2705 = vmatprep.subr.mxu0 %v2510
        %2706 = vmatpush1.msra.mxu0 %v2509
        %2707 = vmatprep.subr.mxu0 %v2514
        %2708 = vmatpush1.msra.mxu0 %v2513
        %2709 = vmatprep.subr.mxu0 %v2518
        %2710 = vmatpush1.msra.mxu0 %v2517
        %2711 = vmatprep.subr.mxu0 %v2522
        %2712 = vmatpush1.msra.mxu0 %v2521
        %2713 = vmatprep.subr.mxu0 %v2526
        %2714 = vmatpush1.msra.mxu0 %v2525
        %2715 = vmatprep.subr.mxu0 %v2530
        %2716 = vmatpush1.msra.mxu0 %v2529
        %2717 = vmatprep.subr.mxu0 %v2534
        %2718 = vmatpush1.msra.mxu0 %v2533
        %2719 = vmatprep.subr.mxu0 %v2584
        %2720 = vmatpush1.msra.mxu0 %v2581
        %2721 = vmatprep.subr.mxu0 0.0
        %2722 = vmatpush1.msra.mxu0 0.0
        %2723 = vmatprep.subr.mxu0 0.0
        %2724 = vmatpush1.msra.mxu0 0.0
        %2725 = vmatprep.subr.mxu0 0.0
        %2726 = vmatpush1.msra.mxu0 0.0
        %2727 = vmatprep.subr.mxu0 0.0
        %2728 = vmatpush1.msra.mxu0 0.0
        %2729 = vmatprep.subr.mxu0 0.0
        %2730 = vmatpush1.msra.mxu0 0.0
        %2731 = vmatprep.subr.mxu0 0.0
        %2732 = vmatpush1.msra.mxu0 0.0
        %2733 = vmatprep.subr.mxu0 0.0
        %2734 = vmatpush1.msra.mxu0 0.0
        %2735 = vmatprep.subr.mxu0 0.0
        %2736 = vmatpush1.msra.mxu0 0.0
        %2737 = vmatprep.subr.mxu0 0.0
        %2738 = vmatpush1.msra.mxu0 0.0
        %2739 = vmatprep.mubr.f32.mxu0 %v2566
        %2740 = vmatmul.mubr.f32.gmra.mrb[0].mxu0 %v2549
        %v2741 = vpop.f32.mrb[0].mxu0
        %v2742 = vadd.f32 0.0, %v2741
        %v2743 = vpop.f32.mrb[0].mxu0
        %v2744 = vadd.f32 0.0, %v2743
        %2745 = vmatprep.mubr.f32.mxu0 %v2568
        %2746 = vmatmul.mubr.f32.gmra.mrb[0].mxu0 %v2554
        %v2747 = vpop.f32.mrb[0].mxu0
        %v2748 = vadd.f32 0.0, %v2747
        %v2749 = vpop.f32.mrb[0].mxu0
        %v2750 = vadd.f32 0.0, %v2749
        %2751 = vmatprep.mubr.f32.mxu0 %v2570
        %2752 = vmatmul.mubr.f32.gmra.mrb[0].mxu0 %v2558
        %v2753 = vpop.f32.mrb[0].mxu0
        %v2754 = vadd.f32 0.0, %v2753
        %v2755 = vpop.f32.mrb[0].mxu0
        %v2756 = vadd.f32 0.0, %v2755
        %2757 = vmatprep.mubr.f32.mxu0 %v2572
        %2758 = vmatmul.mubr.f32.gmra.mrb[0].mxu0 %v2557
        %v2759 = vpop.f32.mrb[0].mxu0
        %v2760 = vadd.f32 0.0, %v2759
        %v2761 = vpop.f32.mrb[0].mxu0
        %v2762 = vadd.f32 0.0, %v2761
        %2763 = vdwg.mxu0
        %v2764 = vsel %vm2565, %v2347, 0
        %v2766 = vsel %vm2565, %v2349, 0
        %v2768 = vsel %vm2565, %v2351, 0
        %v2770 = vsel %vm2565, %v2353, 0
        %v2773 = vsel %vm2145, %v2442, 0
        %v2776 = vsel %vm2145, %v2443, 0
        %v2779 = vsel %vm2145, %v2444, 0
        %v2782 = vsel %vm2145, %v2445, 0
        %2784 = vmatprep.subr.mxu0 %v2355
        %2785 = vmatpush1.msra.mxu0 %v2354
        %2786 = vmatprep.subr.mxu0 %v2359
        %2787 = vmatpush1.msra.mxu0 %v2358
        %2788 = vmatprep.subr.mxu0 %v2363
        %2789 = vmatpush1.msra.mxu0 %v2362
        %2790 = vmatprep.subr.mxu0 %v2367
        %2791 = vmatpush1.msra.mxu0 %v2366
        %2792 = vmatprep.subr.mxu0 %v2371
        %2793 = vmatpush1.msra.mxu0 %v2370
        %2794 = vmatprep.subr.mxu0 %v2375
        %2795 = vmatpush1.msra.mxu0 %v2374
        %2796 = vmatprep.subr.mxu0 %v2379
        %2797 = vmatpush1.msra.mxu0 %v2378
        %2798 = vmatprep.subr.mxu0 %v2383
        %2799 = vmatpush1.msra.mxu0 %v2382
        %2800 = vmatprep.subr.mxu0 %v2387
        %2801 = vmatpush1.msra.mxu0 %v2386
        %2802 = vmatprep.subr.mxu0 %v2391
        %2803 = vmatpush1.msra.mxu0 %v2390
        %2804 = vmatprep.subr.mxu0 %v2395
        %2805 = vmatpush1.msra.mxu0 %v2394
        %2806 = vmatprep.subr.mxu0 %v2399
        %2807 = vmatpush1.msra.mxu0 %v2398
        %2808 = vmatprep.subr.mxu0 %v2403
        %2809 = vmatpush1.msra.mxu0 %v2402
        %2810 = vmatprep.subr.mxu0 %v2407
        %2811 = vmatpush1.msra.mxu0 %v2406
        %2812 = vmatprep.subr.mxu0 %v2411
        %2813 = vmatpush1.msra.mxu0 %v2410
        %2814 = vmatprep.subr.mxu0 %v2415
        %2815 = vmatpush1.msra.mxu0 %v2414
        %2816 = vmatprep.subr.mxu0 %v2419
        %2817 = vmatpush1.msra.mxu0 %v2418
        %2818 = vmatprep.subr.mxu0 %v2423
        %2819 = vmatpush1.msra.mxu0 %v2422
        %2820 = vmatprep.subr.mxu0 %v2427
        %2821 = vmatpush1.msra.mxu0 %v2426
        %2822 = vmatprep.subr.mxu0 %v2431
        %2823 = vmatpush1.msra.mxu0 %v2430
        %2824 = vmatprep.subr.mxu0 %v2435
        %2825 = vmatpush1.msra.mxu0 %v2434
        %2826 = vmatprep.subr.mxu0 %v2439
        %2827 = vmatpush1.msra.mxu0 %v2438
        %2828 = vmatprep.subr.mxu0 %v2776
        %2829 = vmatpush1.msra.mxu0 %v2773
        %2830 = vmatprep.subr.mxu0 0.0
        %2831 = vmatpush1.msra.mxu0 0.0
        %2832 = vmatprep.subr.mxu0 0.0
        %2833 = vmatpush1.msra.mxu0 0.0
        %2834 = vmatprep.subr.mxu0 0.0
        %2835 = vmatpush1.msra.mxu0 0.0
        %2836 = vmatprep.subr.mxu0 0.0
        %2837 = vmatpush1.msra.mxu0 0.0
        %2838 = vmatprep.subr.mxu0 0.0
        %2839 = vmatpush1.msra.mxu0 0.0
        %2840 = vmatprep.subr.mxu0 0.0
        %2841 = vmatpush1.msra.mxu0 0.0
        %2842 = vmatprep.subr.mxu0 0.0
        %2843 = vmatpush1.msra.mxu0 0.0
        %2844 = vmatprep.subr.mxu0 0.0
        %2845 = vmatpush1.msra.mxu0 0.0
        %2846 = vmatprep.subr.mxu0 0.0
        %2847 = vmatpush1.msra.mxu0 0.0
        %2848 = vmatprep.mubr.f32.mxu0 %v2764
        %2849 = vmatmul.mubr.f32.gmra.mrb[0].mxu0 %v2346
        %v2850 = vpop.f32.mrb[0].mxu0
        %v2851 = vadd.f32 %v2653, %v2850
        %v2852 = vpop.f32.mrb[0].mxu0
        %v2853 = vadd.f32 %v2655, %v2852
        %2854 = vmatprep.mubr.f32.mxu0 %v2766
        %2855 = vmatmul.mubr.f32.gmra.mrb[0].mxu0 %v2348
        %v2856 = vpop.f32.mrb[0].mxu0
        %v2857 = vadd.f32 %v2659, %v2856
        %v2858 = vpop.f32.mrb[0].mxu0
        %v2859 = vadd.f32 %v2661, %v2858
        %2860 = vmatprep.mubr.f32.mxu0 %v2768
        %2861 = vmatmul.mubr.f32.gmra.mrb[0].mxu0 %v2350
        %v2862 = vpop.f32.mrb[0].mxu0
        %v2863 = vadd.f32 %v2665, %v2862
        %v2864 = vpop.f32.mrb[0].mxu0
        %v2865 = vadd.f32 %v2667, %v2864
        %2866 = vmatprep.mubr.f32.mxu0 %v2770
        %2867 = vmatmul.mubr.f32.gmra.mrb[0].mxu0 %v2352
        %v2868 = vpop.f32.mrb[0].mxu0
        %v2869 = vadd.f32 %v2671, %v2868
        %v2870 = vpop.f32.mrb[0].mxu0
        %v2871 = vadd.f32 %v2673, %v2870
        %2872 = vdwg.mxu0
        %2873 = vmatprep.subr.mxu0 %v2357
        %2874 = vmatpush1.msra.mxu0 %v2356
        %2875 = vmatprep.subr.mxu0 %v2361
        %2876 = vmatpush1.msra.mxu0 %v2360
        %2877 = vmatprep.subr.mxu0 %v2365
        %2878 = vmatpush1.msra.mxu0 %v2364
        %2879 = vmatprep.subr.mxu0 %v2369
        %2880 = vmatpush1.msra.mxu0 %v2368
        %2881 = vmatprep.subr.mxu0 %v2373
        %2882 = vmatpush1.msra.mxu0 %v2372
        %2883 = vmatprep.subr.mxu0 %v2377
        %2884 = vmatpush1.msra.mxu0 %v2376
        %2885 = vmatprep.subr.mxu0 %v2381
        %2886 = vmatpush1.msra.mxu0 %v2380
        %2887 = vmatprep.subr.mxu0 %v2385
        %2888 = vmatpush1.msra.mxu0 %v2384
        %2889 = vmatprep.subr.mxu0 %v2389
        %2890 = vmatpush1.msra.mxu0 %v2388
        %2891 = vmatprep.subr.mxu0 %v2393
        %2892 = vmatpush1.msra.mxu0 %v2392
        %2893 = vmatprep.subr.mxu0 %v2397
        %2894 = vmatpush1.msra.mxu0 %v2396
        %2895 = vmatprep.subr.mxu0 %v2401
        %2896 = vmatpush1.msra.mxu0 %v2400
        %2897 = vmatprep.subr.mxu0 %v2405
        %2898 = vmatpush1.msra.mxu0 %v2404
        %2899 = vmatprep.subr.mxu0 %v2409
        %2900 = vmatpush1.msra.mxu0 %v2408
        %2901 = vmatprep.subr.mxu0 %v2413
        %2902 = vmatpush1.msra.mxu0 %v2412
        %2903 = vmatprep.subr.mxu0 %v2417
        %2904 = vmatpush1.msra.mxu0 %v2416
        %2905 = vmatprep.subr.mxu0 %v2421
        %2906 = vmatpush1.msra.mxu0 %v2420
        %2907 = vmatprep.subr.mxu0 %v2425
        %2908 = vmatpush1.msra.mxu0 %v2424
        %2909 = vmatprep.subr.mxu0 %v2429
        %2910 = vmatpush1.msra.mxu0 %v2428
        %2911 = vmatprep.subr.mxu0 %v2433
        %2912 = vmatpush1.msra.mxu0 %v2432
        %2913 = vmatprep.subr.mxu0 %v2437
        %2914 = vmatpush1.msra.mxu0 %v2436
        %2915 = vmatprep.subr.mxu0 %v2441
        %2916 = vmatpush1.msra.mxu0 %v2440
        %2917 = vmatprep.subr.mxu0 %v2782
        %2918 = vmatpush1.msra.mxu0 %v2779
        %2919 = vmatprep.subr.mxu0 0.0
        %2920 = vmatpush1.msra.mxu0 0.0
        %2921 = vmatprep.subr.mxu0 0.0
        %2922 = vmatpush1.msra.mxu0 0.0
        %2923 = vmatprep.subr.mxu0 0.0
        %2924 = vmatpush1.msra.mxu0 0.0
        %2925 = vmatprep.subr.mxu0 0.0
        %2926 = vmatpush1.msra.mxu0 0.0
        %2927 = vmatprep.subr.mxu0 0.0
        %2928 = vmatpush1.msra.mxu0 0.0
        %2929 = vmatprep.subr.mxu0 0.0
        %2930 = vmatpush1.msra.mxu0 0.0
        %2931 = vmatprep.subr.mxu0 0.0
        %2932 = vmatpush1.msra.mxu0 0.0
        %2933 = vmatprep.subr.mxu0 0.0
        %2934 = vmatpush1.msra.mxu0 0.0
        %2935 = vmatprep.subr.mxu0 0.0
        %2936 = vmatpush1.msra.mxu0 0.0
        %2937 = vmatprep.mubr.f32.mxu0 %v2764
        %2938 = vmatmul.mubr.f32.gmra.mrb[0].mxu0 %v2346
        %v2939 = vpop.f32.mrb[0].mxu0
        %v2940 = vadd.f32 %v2742, %v2939
        %v2941 = vpop.f32.mrb[0].mxu0
        %v2942 = vadd.f32 %v2744, %v2941
        %2943 = vmatprep.mubr.f32.mxu0 %v2766
        %2944 = vmatmul.mubr.f32.gmra.mrb[0].mxu0 %v2348
        %v2945 = vpop.f32.mrb[0].mxu0
        %v2946 = vadd.f32 %v2748, %v2945
        %v2947 = vpop.f32.mrb[0].mxu0
        %v2948 = vadd.f32 %v2750, %v2947
        %2949 = vmatprep.mubr.f32.mxu0 %v2768
        %2950 = vmatmul.mubr.f32.gmra.mrb[0].mxu0 %v2350
        %v2951 = vpop.f32.mrb[0].mxu0
        %v2952 = vadd.f32 %v2754, %v2951
        %v2953 = vpop.f32.mrb[0].mxu0
        %v2954 = vadd.f32 %v2756, %v2953
        %2955 = vmatprep.mubr.f32.mxu0 %v2770
        %2956 = vmatmul.mubr.f32.gmra.mrb[0].mxu0 %v2352
        %v2957 = vpop.f32.mrb[0].mxu0
        %v2958 = vadd.f32 %v2760, %v2957
        %v2959 = vpop.f32.mrb[0].mxu0
        %v2960 = vadd.f32 %v2762, %v2959
        %2961 = vdwg.mxu0
        %s2962 = scalar_lea.vmem %s3, 1472
        %v2963 = vld [vmem:[%s2962] sm:$0xff]
        %v2964 = vld [vmem:[%s2962 + $0x8] sm:$0xff]
        %v2965 = vld [vmem:[%s2962 + $0x10] sm:$0xff]
        %v2966 = vld [vmem:[%s2962 + $0x18] sm:$0xff]
        %v2967 = vld [vmem:[%s2962 + $0x20] sm:$0xff]
        %v2968 = vld [vmem:[%s2962 + $0x28] sm:$0xff]
        %v2969 = vld [vmem:[%s2962 + $0x30] sm:$0xff]
        %v2970 = vld [vmem:[%s2962 + $0x38] sm:$0xff]
        %v2971 = vld [vmem:[%s2962 + $0x40] sm:$0xff]
        %v2972 = vld [vmem:[%s2962 + $0x48] sm:$0xff]
        %v2973 = vld [vmem:[%s2962 + $0x50] sm:$0xff]
        %v2974 = vld [vmem:[%s2962 + $0x58] sm:$0xff]
        %v2975 = vld [vmem:[%s2962 + $0x60] sm:$0xff]
        %v2976 = vld [vmem:[%s2962 + $0x68] sm:$0xff]
        %v2977 = vld [vmem:[%s2962 + $0x70] sm:$0xff]
        %v2978 = vld [vmem:[%s2962 + $0x78] sm:$0xff]
        %v2979 = vld [vmem:[%s2962 + $0x80] sm:$0xff]
        %v2980 = vld [vmem:[%s2962 + $0x88] sm:$0xff]
        %v2981 = vld [vmem:[%s2962 + $0x90] sm:$0xff]
        %v2982 = vld [vmem:[%s2962 + $0x98] sm:$0xff]
        %v2983 = vld [vmem:[%s2962 + $0xa0] sm:$0xff]
        %v2984 = vld [vmem:[%s2962 + $0xa8] sm:$0xff]
        %v2985 = vld [vmem:[%s2962 + $0xb0] sm:$0xff]
        %v2986 = vld [vmem:[%s2962 + $0xb8] sm:$0xff]
        %v2987 = vld [vmem:[%s2962 + $0xc0] sm:$0xff]
        %v2988 = vld [vmem:[%s2962 + $0xc8] sm:$0xff]
        %v2989 = vld [vmem:[%s2962 + $0xd0] sm:$0xff]
        %v2990 = vld [vmem:[%s2962 + $0xd8] sm:$0xff]
        %v2991 = vld [vmem:[%s2962 + $0xe0] sm:$0xff]
        %v2992 = vld [vmem:[%s2962 + $0xe8] sm:$0xff]
        %v2993 = vld [vmem:[%s2962 + $0xf0] sm:$0xff]
        %v2994 = vld [vmem:[%s2962 + $0xf8] sm:$0xff]
        %v2995 = vld [vmem:[%s2962 + $0x100] sm:$0xff]
        %v2996 = vld [vmem:[%s2962 + $0x108] sm:$0xff]
        %v2997 = vld [vmem:[%s2962 + $0x110] sm:$0xff]
        %v2998 = vld [vmem:[%s2962 + $0x118] sm:$0xff]
        %v2999 = vld [vmem:[%s2962 + $0x120] sm:$0xff]
        %v3000 = vld [vmem:[%s2962 + $0x128] sm:$0xff]
        %v3001 = vld [vmem:[%s2962 + $0x130] sm:$0xff]
        %v3002 = vld [vmem:[%s2962 + $0x138] sm:$0xff]
        %v3003 = vld [vmem:[%s2962 + $0x140] sm:$0xff]
        %v3004 = vld [vmem:[%s2962 + $0x148] sm:$0xff]
        %v3005 = vld [vmem:[%s2962 + $0x150] sm:$0xff]
        %v3006 = vld [vmem:[%s2962 + $0x158] sm:$0xff]
        %v3007 = vld [vmem:[%s2962 + $0x160] sm:$0xff]
        %v3008 = vld [vmem:[%s2962 + $0x168] sm:$0xff]
        %v3009 = vld [vmem:[%s2962 + $0x170] sm:$0xff]
        %v3010 = vld [vmem:[%s2962 + $0x178] sm:$0xff]
        %v3011 = vld [vmem:[%s2962 + $0x180] sm:$0xff]
        %v3012 = vld [vmem:[%s2962 + $0x188] sm:$0xff]
        %v3013 = vld [vmem:[%s2962 + $0x190] sm:$0xff]
        %v3014 = vld [vmem:[%s2962 + $0x198] sm:$0xff]
        %v3015 = vld [vmem:[%s2962 + $0x1a0] sm:$0xff]
        %v3016 = vld [vmem:[%s2962 + $0x1a8] sm:$0xff]
        %v3017 = vld [vmem:[%s2962 + $0x1b0] sm:$0xff]
        %v3018 = vld [vmem:[%s2962 + $0x1b8] sm:$0xff]
        %v3019 = vld [vmem:[%s2962 + $0x1c0] sm:$0xff]
        %v3020 = vld [vmem:[%s2962 + $0x1c8] sm:$0xff]
        %v3021 = vld [vmem:[%s2962 + $0x1d0] sm:$0xff]
        %v3022 = vld [vmem:[%s2962 + $0x1d8] sm:$0xff]
        %v3023 = vld [vmem:[%s2962 + $0x1e0] sm:$0xff]
        %v3024 = vld [vmem:[%s2962 + $0x1e8] sm:$0xff]
        %v3025 = vld [vmem:[%s2962 + $0x1f0] sm:$0xff]
        %v3026 = vld [vmem:[%s2962 + $0x1f8] sm:$0xff]
        %v3027 = vld [vmem:[%s2962 + $0x200] sm:$0xff]
        %v3028 = vld [vmem:[%s2962 + $0x208] sm:$0xff]
        %v3029 = vld [vmem:[%s2962 + $0x210] sm:$0xff]
        %v3030 = vld [vmem:[%s2962 + $0x218] sm:$0xff]
        %v3031 = vld [vmem:[%s2962 + $0x220] sm:$0xff]
        %v3032 = vld [vmem:[%s2962 + $0x228] sm:$0xff]
        %v3033 = vld [vmem:[%s2962 + $0x230] sm:$0xff]
        %v3034 = vld [vmem:[%s2962 + $0x238] sm:$0xff]
        %v3035 = vld [vmem:[%s2962 + $0x240] sm:$0xff]
        %v3036 = vld [vmem:[%s2962 + $0x248] sm:$0xff]
        %v3037 = vld [vmem:[%s2962 + $0x250] sm:$0xff]
        %v3038 = vld [vmem:[%s2962 + $0x258] sm:$0xff]
        %v3039 = vld [vmem:[%s2962 + $0x260] sm:$0xff]
        %v3040 = vld [vmem:[%s2962 + $0x268] sm:$0xff]
        %v3041 = vld [vmem:[%s2962 + $0x270] sm:$0xff]
        %v3042 = vld [vmem:[%s2962 + $0x278] sm:$0xff]
        %v3043 = vld [vmem:[%s2962 + $0x280] sm:$0xff]
        %v3044 = vld [vmem:[%s2962 + $0x288] sm:$0xff]
        %v3045 = vld [vmem:[%s2962 + $0x290] sm:$0xff]
        %v3046 = vld [vmem:[%s2962 + $0x298] sm:$0xff]
        %v3047 = vld [vmem:[%s2962 + $0x2a0] sm:$0xff]
        %v3048 = vld [vmem:[%s2962 + $0x2a8] sm:$0xff]
        %v3049 = vld [vmem:[%s2962 + $0x2b0] sm:$0xff]
        %v3050 = vld [vmem:[%s2962 + $0x2b8] sm:$0xff]
        %v3051 = vld [vmem:[%s2962 + $0x2c0] sm:$0xf]
        %v3052 = vld [vmem:[%s2962 + $0x2c8] sm:$0xf]
        %v3053 = vld [vmem:[%s2962 + $0x2d0] sm:$0xf]
        %v3054 = vld [vmem:[%s2962 + $0x2d8] sm:$0xf]
        %v3055 = vrot.slane %v2346, 2
        %v3056 = vrot.slane %v2348, 2
        %v3057 = vsel %vm612, %v3055, %v3056
        %v3058 = vrot.slane %v2347, 2
        %v3059 = vrot.slane %v2349, 2
        %v3060 = vsel %vm612, %v3058, %v3059
        %v3061 = vrot.slane %v2350, 2
        %v3062 = vsel %vm612, %v3056, %v3061
        %v3063 = vrot.slane %v2351, 2
        %v3064 = vsel %vm612, %v3059, %v3063
        %v3065 = vrot.slane %v2352, 2
        %v3066 = vsel %vm612, %v3061, %v3065
        %v3067 = vrot.slane %v2353, 2
        %v3068 = vsel %vm612, %v3063, %v3067
        %v3073 = vsel %vm2565, %v3060, 0
        %v3075 = vsel %vm2565, %v3064, 0
        %v3077 = vsel %vm2565, %v3068, 0
        %v3079 = vsel %vm2565, %v3067, 0
        %v3082 = vsel %vm2145, %v3051, 0
        %v3085 = vsel %vm2145, %v3052, 0
        %v3088 = vsel %vm2145, %v3053, 0
        %v3091 = vsel %vm2145, %v3054, 0
        %3093 = vmatprep.subr.mxu0 %v2964
        %3094 = vmatpush1.msra.mxu0 %v2963
        %3095 = vmatprep.subr.mxu0 %v2968
        %3096 = vmatpush1.msra.mxu0 %v2967
        %3097 = vmatprep.subr.mxu0 %v2972
        %3098 = vmatpush1.msra.mxu0 %v2971
        %3099 = vmatprep.subr.mxu0 %v2976
        %3100 = vmatpush1.msra.mxu0 %v2975
        %3101 = vmatprep.subr.mxu0 %v2980
        %3102 = vmatpush1.msra.mxu0 %v2979
        %3103 = vmatprep.subr.mxu0 %v2984
        %3104 = vmatpush1.msra.mxu0 %v2983
        %3105 = vmatprep.subr.mxu0 %v2988
        %3106 = vmatpush1.msra.mxu0 %v2987
        %3107 = vmatprep.subr.mxu0 %v2992
        %3108 = vmatpush1.msra.mxu0 %v2991
        %3109 = vmatprep.subr.mxu0 %v2996
        %3110 = vmatpush1.msra.mxu0 %v2995
        %3111 = vmatprep.subr.mxu0 %v3000
        %3112 = vmatpush1.msra.mxu0 %v2999
        %3113 = vmatprep.subr.mxu0 %v3004
        %3114 = vmatpush1.msra.mxu0 %v3003
        %3115 = vmatprep.subr.mxu0 %v3008
        %3116 = vmatpush1.msra.mxu0 %v3007
        %3117 = vmatprep.subr.mxu0 %v3012
        %3118 = vmatpush1.msra.mxu0 %v3011
        %3119 = vmatprep.subr.mxu0 %v3016
        %3120 = vmatpush1.msra.mxu0 %v3015
        %3121 = vmatprep.subr.mxu0 %v3020
        %3122 = vmatpush1.msra.mxu0 %v3019
        %3123 = vmatprep.subr.mxu0 %v3024
        %3124 = vmatpush1.msra.mxu0 %v3023
        %3125 = vmatprep.subr.mxu0 %v3028
        %3126 = vmatpush1.msra.mxu0 %v3027
        %3127 = vmatprep.subr.mxu0 %v3032
        %3128 = vmatpush1.msra.mxu0 %v3031
        %3129 = vmatprep.subr.mxu0 %v3036
        %3130 = vmatpush1.msra.mxu0 %v3035
        %3131 = vmatprep.subr.mxu0 %v3040
        %3132 = vmatpush1.msra.mxu0 %v3039
        %3133 = vmatprep.subr.mxu0 %v3044
        %3134 = vmatpush1.msra.mxu0 %v3043
        %3135 = vmatprep.subr.mxu0 %v3048
        %3136 = vmatpush1.msra.mxu0 %v3047
        %3137 = vmatprep.subr.mxu0 %v3085
        %3138 = vmatpush1.msra.mxu0 %v3082
        %3139 = vmatprep.subr.mxu0 0.0
        %3140 = vmatpush1.msra.mxu0 0.0
        %3141 = vmatprep.subr.mxu0 0.0
        %3142 = vmatpush1.msra.mxu0 0.0
        %3143 = vmatprep.subr.mxu0 0.0
        %3144 = vmatpush1.msra.mxu0 0.0
        %3145 = vmatprep.subr.mxu0 0.0
        %3146 = vmatpush1.msra.mxu0 0.0
        %3147 = vmatprep.subr.mxu0 0.0
        %3148 = vmatpush1.msra.mxu0 0.0
        %3149 = vmatprep.subr.mxu0 0.0
        %3150 = vmatpush1.msra.mxu0 0.0
        %3151 = vmatprep.subr.mxu0 0.0
        %3152 = vmatpush1.msra.mxu0 0.0
        %3153 = vmatprep.subr.mxu0 0.0
        %3154 = vmatpush1.msra.mxu0 0.0
        %3155 = vmatprep.subr.mxu0 0.0
        %3156 = vmatpush1.msra.mxu0 0.0
        %3157 = vmatprep.mubr.f32.mxu0 %v3073
        %3158 = vmatmul.mubr.f32.gmra.mrb[0].mxu0 %v3057
        %v3159 = vpop.f32.mrb[0].mxu0
        %v3160 = vadd.f32 0.0, %v3159
        %v3161 = vpop.f32.mrb[0].mxu0
        %v3162 = vadd.f32 0.0, %v3161
        %3163 = vmatprep.mubr.f32.mxu0 %v3075
        %3164 = vmatmul.mubr.f32.gmra.mrb[0].mxu0 %v3062
        %v3165 = vpop.f32.mrb[0].mxu0
        %v3166 = vadd.f32 0.0, %v3165
        %v3167 = vpop.f32.mrb[0].mxu0
        %v3168 = vadd.f32 0.0, %v3167
        %3169 = vmatprep.mubr.f32.mxu0 %v3077
        %3170 = vmatmul.mubr.f32.gmra.mrb[0].mxu0 %v3066
        %v3171 = vpop.f32.mrb[0].mxu0
        %v3172 = vadd.f32 0.0, %v3171
        %v3173 = vpop.f32.mrb[0].mxu0
        %v3174 = vadd.f32 0.0, %v3173
        %3175 = vmatprep.mubr.f32.mxu0 %v3079
        %3176 = vmatmul.mubr.f32.gmra.mrb[0].mxu0 %v3065
        %v3177 = vpop.f32.mrb[0].mxu0
        %v3178 = vadd.f32 0.0, %v3177
        %v3179 = vpop.f32.mrb[0].mxu0
        %v3180 = vadd.f32 0.0, %v3179
        %3181 = vdwg.mxu0
        %3182 = vmatprep.subr.mxu0 %v2966
        %3183 = vmatpush1.msra.mxu0 %v2965
        %3184 = vmatprep.subr.mxu0 %v2970
        %3185 = vmatpush1.msra.mxu0 %v2969
        %3186 = vmatprep.subr.mxu0 %v2974
        %3187 = vmatpush1.msra.mxu0 %v2973
        %3188 = vmatprep.subr.mxu0 %v2978
        %3189 = vmatpush1.msra.mxu0 %v2977
        %3190 = vmatprep.subr.mxu0 %v2982
        %3191 = vmatpush1.msra.mxu0 %v2981
        %3192 = vmatprep.subr.mxu0 %v2986
        %3193 = vmatpush1.msra.mxu0 %v2985
        %3194 = vmatprep.subr.mxu0 %v2990
        %3195 = vmatpush1.msra.mxu0 %v2989
        %3196 = vmatprep.subr.mxu0 %v2994
        %3197 = vmatpush1.msra.mxu0 %v2993
        %3198 = vmatprep.subr.mxu0 %v2998
        %3199 = vmatpush1.msra.mxu0 %v2997
        %3200 = vmatprep.subr.mxu0 %v3002
        %3201 = vmatpush1.msra.mxu0 %v3001
        %3202 = vmatprep.subr.mxu0 %v3006
        %3203 = vmatpush1.msra.mxu0 %v3005
        %3204 = vmatprep.subr.mxu0 %v3010
        %3205 = vmatpush1.msra.mxu0 %v3009
        %3206 = vmatprep.subr.mxu0 %v3014
        %3207 = vmatpush1.msra.mxu0 %v3013
        %3208 = vmatprep.subr.mxu0 %v3018
        %3209 = vmatpush1.msra.mxu0 %v3017
        %3210 = vmatprep.subr.mxu0 %v3022
        %3211 = vmatpush1.msra.mxu0 %v3021
        %3212 = vmatprep.subr.mxu0 %v3026
        %3213 = vmatpush1.msra.mxu0 %v3025
        %3214 = vmatprep.subr.mxu0 %v3030
        %3215 = vmatpush1.msra.mxu0 %v3029
        %3216 = vmatprep.subr.mxu0 %v3034
        %3217 = vmatpush1.msra.mxu0 %v3033
        %3218 = vmatprep.subr.mxu0 %v3038
        %3219 = vmatpush1.msra.mxu0 %v3037
        %3220 = vmatprep.subr.mxu0 %v3042
        %3221 = vmatpush1.msra.mxu0 %v3041
        %3222 = vmatprep.subr.mxu0 %v3046
        %3223 = vmatpush1.msra.mxu0 %v3045
        %3224 = vmatprep.subr.mxu0 %v3050
        %3225 = vmatpush1.msra.mxu0 %v3049
        %3226 = vmatprep.subr.mxu0 %v3091
        %3227 = vmatpush1.msra.mxu0 %v3088
        %3228 = vmatprep.subr.mxu0 0.0
        %3229 = vmatpush1.msra.mxu0 0.0
        %3230 = vmatprep.subr.mxu0 0.0
        %3231 = vmatpush1.msra.mxu0 0.0
        %3232 = vmatprep.subr.mxu0 0.0
        %3233 = vmatpush1.msra.mxu0 0.0
        %3234 = vmatprep.subr.mxu0 0.0
        %3235 = vmatpush1.msra.mxu0 0.0
        %3236 = vmatprep.subr.mxu0 0.0
        %3237 = vmatpush1.msra.mxu0 0.0
        %3238 = vmatprep.subr.mxu0 0.0
        %3239 = vmatpush1.msra.mxu0 0.0
        %3240 = vmatprep.subr.mxu0 0.0
        %3241 = vmatpush1.msra.mxu0 0.0
        %3242 = vmatprep.subr.mxu0 0.0
        %3243 = vmatpush1.msra.mxu0 0.0
        %3244 = vmatprep.subr.mxu0 0.0
        %3245 = vmatpush1.msra.mxu0 0.0
        %3246 = vmatprep.mubr.f32.mxu0 %v3073
        %3247 = vmatmul.mubr.f32.gmra.mrb[0].mxu0 %v3057
        %v3248 = vpop.f32.mrb[0].mxu0
        %v3249 = vadd.f32 0.0, %v3248
        %v3250 = vpop.f32.mrb[0].mxu0
        %v3251 = vadd.f32 0.0, %v3250
        %3252 = vmatprep.mubr.f32.mxu0 %v3075
        %3253 = vmatmul.mubr.f32.gmra.mrb[0].mxu0 %v3062
        %v3254 = vpop.f32.mrb[0].mxu0
        %v3255 = vadd.f32 0.0, %v3254
        %v3256 = vpop.f32.mrb[0].mxu0
        %v3257 = vadd.f32 0.0, %v3256
        %3258 = vmatprep.mubr.f32.mxu0 %v3077
        %3259 = vmatmul.mubr.f32.gmra.mrb[0].mxu0 %v3066
        %v3260 = vpop.f32.mrb[0].mxu0
        %v3261 = vadd.f32 0.0, %v3260
        %v3262 = vpop.f32.mrb[0].mxu0
        %v3263 = vadd.f32 0.0, %v3262
        %3264 = vmatprep.mubr.f32.mxu0 %v3079
        %3265 = vmatmul.mubr.f32.gmra.mrb[0].mxu0 %v3065
        %v3266 = vpop.f32.mrb[0].mxu0
        %v3267 = vadd.f32 0.0, %v3266
        %v3268 = vpop.f32.mrb[0].mxu0
        %v3269 = vadd.f32 0.0, %v3268
        %3270 = vdwg.mxu0
        %v3271 = vadd.f32 %v2851, %v3160
        %v3272 = vadd.f32 %v2853, %v3162
        %v3273 = vadd.f32 %v2940, %v3249
        %v3274 = vadd.f32 %v2942, %v3251
        %v3275 = vadd.f32 %v2857, %v3166
        %v3276 = vadd.f32 %v2859, %v3168
        %v3277 = vadd.f32 %v2946, %v3255
        %v3278 = vadd.f32 %v2948, %v3257
        %v3279 = vadd.f32 %v2863, %v3172
        %v3280 = vadd.f32 %v2865, %v3174
        %v3281 = vadd.f32 %v2952, %v3261
        %v3282 = vadd.f32 %v2954, %v3263
        %v3283 = vadd.f32 %v2869, %v3178
        %v3284 = vadd.f32 %v2871, %v3180
        %v3285 = vadd.f32 %v2958, %v3267
        %v3286 = vadd.f32 %v2960, %v3269
        %v3287 = vld [vmem:[%s4] sm:$0xf]
        %v3289 = vlaneseq
        %v3290 = vshrl.u32 %v3289, 7
        %v3291 = vsub.s32 0, %v3290
        %v3292 = vrot.slane %v3287, %v3291
        %v3293 = vlaneseq
        %v3294 = vshrl.u32 %v3293, 7
        %v3295 = vsub.s32 1, %v3294
        %v3296 = vrot.slane %v3287, %v3295
        %v3297 = vlaneseq
        %v3298 = vshrl.u32 %v3297, 7
        %v3299 = vsub.s32 2, %v3298
        %v3300 = vrot.slane %v3287, %v3299
        %v3301 = vlaneseq
        %v3302 = vshrl.u32 %v3301, 7
        %v3303 = vsub.s32 3, %v3302
        %v3304 = vrot.slane %v3287, %v3303
        %v3309 = vadd.f32 %v3271, %v3292
        %v3310 = vadd.f32 %v3272, %v3296
        %v3311 = vadd.f32 %v3273, %v3300
        %v3312 = vadd.f32 %v3274, %v3304
        %v3313 = vadd.f32 %v3275, %v3292
        %v3314 = vadd.f32 %v3276, %v3296
        %v3315 = vadd.f32 %v3277, %v3300
        %v3316 = vadd.f32 %v3278, %v3304
        %v3317 = vadd.f32 %v3279, %v3292
        %v3318 = vadd.f32 %v3280, %v3296
        %v3319 = vadd.f32 %v3281, %v3300
        %v3320 = vadd.f32 %v3282, %v3304
        %v3321 = vadd.f32 %v3283, %v3292
        %v3322 = vadd.f32 %v3284, %v3296
        %v3323 = vadd.f32 %v3285, %v3300
        %v3324 = vadd.f32 %v3286, %v3304
        %v3325 = vmax.f32 %v3309, 0.0
        %v3326 = vmax.f32 %v3310, 0.0
        %v3327 = vmax.f32 %v3311, 0.0
        %v3328 = vmax.f32 %v3312, 0.0
        %v3329 = vmax.f32 %v3313, 0.0
        %v3330 = vmax.f32 %v3314, 0.0
        %v3331 = vmax.f32 %v3315, 0.0
        %v3332 = vmax.f32 %v3316, 0.0
        %v3333 = vmax.f32 %v3317, 0.0
        %v3334 = vmax.f32 %v3318, 0.0
        %v3335 = vmax.f32 %v3319, 0.0
        %v3336 = vmax.f32 %v3320, 0.0
        %v3337 = vmax.f32 %v3321, 0.0
        %v3338 = vmax.f32 %v3322, 0.0
        %v3339 = vmax.f32 %v3323, 0.0
        %v3340 = vmax.f32 %v3324, 0.0
        %v3341 = vld [vmem:[#allocation4] sm:$0xff]
        %v3342 = vld [vmem:[#allocation4 + $0x8] sm:$0xff]
        %v3343 = vld [vmem:[#allocation4 + $0x10] sm:$0xff]
        %v3344 = vld [vmem:[#allocation4 + $0x18] sm:$0xff]
        %v3345 = vld [vmem:[#allocation4 + $0x20] sm:$0xff]
        %v3346 = vld [vmem:[#allocation4 + $0x28] sm:$0xff]
        %v3347 = vld [vmem:[#allocation4 + $0x30] sm:$0xff]
        %v3348 = vld [vmem:[#allocation4 + $0x38] sm:$0xff]
        %v3349 = vld [vmem:[#allocation4 + $0x40] sm:$0xff]
        %v3350 = vld [vmem:[#allocation4 + $0x48] sm:$0xff]
        %v3351 = vld [vmem:[#allocation4 + $0x50] sm:$0xff]
        %v3352 = vld [vmem:[#allocation4 + $0x58] sm:$0xff]
        %v3353 = vld [vmem:[#allocation4 + $0x60] sm:$0xff]
        %v3354 = vld [vmem:[#allocation4 + $0x68] sm:$0xff]
        %v3355 = vld [vmem:[#allocation4 + $0x70] sm:$0xff]
        %v3356 = vld [vmem:[#allocation4 + $0x78] sm:$0xff]
        %v3357 = vld [vmem:[#allocation4 + $0x80] sm:$0xff]
        %v3358 = vld [vmem:[#allocation4 + $0x88] sm:$0xff]
        %v3359 = vld [vmem:[#allocation4 + $0x90] sm:$0xff]
        %v3360 = vld [vmem:[#allocation4 + $0x98] sm:$0xff]
        %v3361 = vld [vmem:[#allocation4 + $0xa0] sm:$0xff]
        %v3362 = vld [vmem:[#allocation4 + $0xa8] sm:$0xff]
        %v3363 = vld [vmem:[#allocation4 + $0xb0] sm:$0xff]
        %v3364 = vld [vmem:[#allocation4 + $0xb8] sm:$0xff]
        %v3365 = vld [vmem:[#allocation4 + $0xc0] sm:$0xff]
        %v3366 = vld [vmem:[#allocation4 + $0xc8] sm:$0xff]
        %v3367 = vld [vmem:[#allocation4 + $0xd0] sm:$0xff]
        %v3368 = vld [vmem:[#allocation4 + $0xd8] sm:$0xff]
        %v3369 = vld [vmem:[#allocation4 + $0xe0] sm:$0xff]
        %v3370 = vld [vmem:[#allocation4 + $0xe8] sm:$0xff]
        %v3371 = vld [vmem:[#allocation4 + $0xf0] sm:$0xff]
        %v3372 = vld [vmem:[#allocation4 + $0xf8] sm:$0xff]
        %v3373 = vld [vmem:[#allocation4 + $0x100] sm:$0xff]
        %v3374 = vld [vmem:[#allocation4 + $0x108] sm:$0xff]
        %v3375 = vld [vmem:[#allocation4 + $0x110] sm:$0xff]
        %v3376 = vld [vmem:[#allocation4 + $0x118] sm:$0xff]
        %v3377 = vld [vmem:[#allocation4 + $0x120] sm:$0xff]
        %v3378 = vld [vmem:[#allocation4 + $0x128] sm:$0xff]
        %v3379 = vld [vmem:[#allocation4 + $0x130] sm:$0xff]
        %v3380 = vld [vmem:[#allocation4 + $0x138] sm:$0xff]
        %v3381 = vld [vmem:[#allocation4 + $0x140] sm:$0xff]
        %v3382 = vld [vmem:[#allocation4 + $0x148] sm:$0xff]
        %v3383 = vld [vmem:[#allocation4 + $0x150] sm:$0xff]
        %v3384 = vld [vmem:[#allocation4 + $0x158] sm:$0xff]
        %v3385 = vld [vmem:[#allocation4 + $0x160] sm:$0xff]
        %v3386 = vld [vmem:[#allocation4 + $0x168] sm:$0xff]
        %v3387 = vld [vmem:[#allocation4 + $0x170] sm:$0xff]
        %v3388 = vld [vmem:[#allocation4 + $0x178] sm:$0xff]
        %v3389 = vld [vmem:[#allocation4 + $0x180] sm:$0xff]
        %v3390 = vld [vmem:[#allocation4 + $0x188] sm:$0xff]
        %v3391 = vld [vmem:[#allocation4 + $0x190] sm:$0xff]
        %v3392 = vld [vmem:[#allocation4 + $0x198] sm:$0xff]
        %v3393 = vld [vmem:[#allocation4 + $0x1a0] sm:$0xff]
        %v3394 = vld [vmem:[#allocation4 + $0x1a8] sm:$0xff]
        %v3395 = vld [vmem:[#allocation4 + $0x1b0] sm:$0xff]
        %v3396 = vld [vmem:[#allocation4 + $0x1b8] sm:$0xff]
        %v3397 = vld [vmem:[#allocation4 + $0x1c0] sm:$0xff]
        %v3398 = vld [vmem:[#allocation4 + $0x1c8] sm:$0xff]
        %v3399 = vld [vmem:[#allocation4 + $0x1d0] sm:$0xff]
        %v3400 = vld [vmem:[#allocation4 + $0x1d8] sm:$0xff]
        %v3401 = vld [vmem:[#allocation4 + $0x1e0] sm:$0xff]
        %v3402 = vld [vmem:[#allocation4 + $0x1e8] sm:$0xff]
        %v3403 = vld [vmem:[#allocation4 + $0x1f0] sm:$0xff]
        %v3404 = vld [vmem:[#allocation4 + $0x1f8] sm:$0xff]
        %v3405 = vld [vmem:[#allocation4 + $0x200] sm:$0xff]
        %v3406 = vld [vmem:[#allocation4 + $0x208] sm:$0xff]
        %v3407 = vld [vmem:[#allocation4 + $0x210] sm:$0xff]
        %v3408 = vld [vmem:[#allocation4 + $0x218] sm:$0xff]
        %v3409 = vld [vmem:[#allocation4 + $0x220] sm:$0xff]
        %v3410 = vld [vmem:[#allocation4 + $0x228] sm:$0xff]
        %v3411 = vld [vmem:[#allocation4 + $0x230] sm:$0xff]
        %v3412 = vld [vmem:[#allocation4 + $0x238] sm:$0xff]
        %v3413 = vld [vmem:[#allocation4 + $0x240] sm:$0xff]
        %v3414 = vld [vmem:[#allocation4 + $0x248] sm:$0xff]
        %v3415 = vld [vmem:[#allocation4 + $0x250] sm:$0xff]
        %v3416 = vld [vmem:[#allocation4 + $0x258] sm:$0xff]
        %v3417 = vld [vmem:[#allocation4 + $0x260] sm:$0xff]
        %v3418 = vld [vmem:[#allocation4 + $0x268] sm:$0xff]
        %v3419 = vld [vmem:[#allocation4 + $0x270] sm:$0xff]
        %v3420 = vld [vmem:[#allocation4 + $0x278] sm:$0xff]
        %v3421 = vld [vmem:[#allocation4 + $0x280] sm:$0xff]
        %v3422 = vld [vmem:[#allocation4 + $0x288] sm:$0xff]
        %v3423 = vld [vmem:[#allocation4 + $0x290] sm:$0xff]
        %v3424 = vld [vmem:[#allocation4 + $0x298] sm:$0xff]
        %v3425 = vld [vmem:[#allocation4 + $0x2a0] sm:$0xff]
        %v3426 = vld [vmem:[#allocation4 + $0x2a8] sm:$0xff]
        %v3427 = vld [vmem:[#allocation4 + $0x2b0] sm:$0xff]
        %v3428 = vld [vmem:[#allocation4 + $0x2b8] sm:$0xff]
        %v3429 = vld [vmem:[#allocation4 + $0x2c0] sm:$0xff]
        %v3430 = vld [vmem:[#allocation4 + $0x2c8] sm:$0xff]
        %v3431 = vld [vmem:[#allocation4 + $0x2d0] sm:$0xff]
        %v3432 = vld [vmem:[#allocation4 + $0x2d8] sm:$0xff]
        %v3433 = vld [vmem:[#allocation4 + $0x2e0] sm:$0xff]
        %v3434 = vld [vmem:[#allocation4 + $0x2e8] sm:$0xff]
        %v3435 = vld [vmem:[#allocation4 + $0x2f0] sm:$0xff]
        %v3436 = vld [vmem:[#allocation4 + $0x2f8] sm:$0xff]
        %v3437 = vld [vmem:[#allocation4 + $0x300] sm:$0xff]
        %v3438 = vld [vmem:[#allocation4 + $0x308] sm:$0xff]
        %v3439 = vld [vmem:[#allocation4 + $0x310] sm:$0xff]
        %v3440 = vld [vmem:[#allocation4 + $0x318] sm:$0xff]
        %v3441 = vld [vmem:[#allocation4 + $0x320] sm:$0xff]
        %v3442 = vld [vmem:[#allocation4 + $0x328] sm:$0xff]
        %v3443 = vld [vmem:[#allocation4 + $0x330] sm:$0xff]
        %v3444 = vld [vmem:[#allocation4 + $0x338] sm:$0xff]
        %v3445 = vld [vmem:[#allocation4 + $0x340] sm:$0xff]
        %v3446 = vld [vmem:[#allocation4 + $0x348] sm:$0xff]
        %v3447 = vld [vmem:[#allocation4 + $0x350] sm:$0xff]
        %v3448 = vld [vmem:[#allocation4 + $0x358] sm:$0xff]
        %v3449 = vld [vmem:[#allocation4 + $0x360] sm:$0xff]
        %v3450 = vld [vmem:[#allocation4 + $0x368] sm:$0xff]
        %v3451 = vld [vmem:[#allocation4 + $0x370] sm:$0xff]
        %v3452 = vld [vmem:[#allocation4 + $0x378] sm:$0xff]
        %vm3453 = vcmask 523264
        %v3455 = vsel %vm3453, %v3328, 0
        %v3458 = vsel %vm3453, %v3332, 0
        %v3461 = vsel %vm3453, %v3336, 0
        %v3464 = vsel %vm3453, %v3340, 0
        %3466 = vmatprep.subr.mxu0 %v3342
        %3467 = vmatpush1.msra.mxu0 %v3341
        %3468 = vmatprep.subr.mxu0 %v3344
        %3469 = vmatpush1.msra.mxu0 %v3343
        %3470 = vmatprep.subr.mxu0 %v3346
        %3471 = vmatpush1.msra.mxu0 %v3345
        %3472 = vmatprep.subr.mxu0 %v3348
        %3473 = vmatpush1.msra.mxu0 %v3347
        %3474 = vmatprep.subr.mxu0 %v3350
        %3475 = vmatpush1.msra.mxu0 %v3349
        %3476 = vmatprep.subr.mxu0 %v3352
        %3477 = vmatpush1.msra.mxu0 %v3351
        %3478 = vmatprep.subr.mxu0 %v3354
        %3479 = vmatpush1.msra.mxu0 %v3353
        %3480 = vmatprep.subr.mxu0 %v3356
        %3481 = vmatpush1.msra.mxu0 %v3355
        %3482 = vmatprep.subr.mxu0 %v3358
        %3483 = vmatpush1.msra.mxu0 %v3357
        %3484 = vmatprep.subr.mxu0 %v3360
        %3485 = vmatpush1.msra.mxu0 %v3359
        %3486 = vmatprep.subr.mxu0 %v3362
        %3487 = vmatpush1.msra.mxu0 %v3361
        %3488 = vmatprep.subr.mxu0 %v3364
        %3489 = vmatpush1.msra.mxu0 %v3363
        %3490 = vmatprep.subr.mxu0 %v3366
        %3491 = vmatpush1.msra.mxu0 %v3365
        %3492 = vmatprep.subr.mxu0 %v3368
        %3493 = vmatpush1.msra.mxu0 %v3367
        %3494 = vmatprep.subr.mxu0 %v3370
        %3495 = vmatpush1.msra.mxu0 %v3369
        %3496 = vmatprep.subr.mxu0 %v3372
        %3497 = vmatpush1.msra.mxu0 %v3371
        %3498 = vmatprep.subr.mxu0 %v3374
        %3499 = vmatpush1.msra.mxu0 %v3373
        %3500 = vmatprep.subr.mxu0 %v3376
        %3501 = vmatpush1.msra.mxu0 %v3375
        %3502 = vmatprep.subr.mxu0 %v3378
        %3503 = vmatpush1.msra.mxu0 %v3377
        %3504 = vmatprep.subr.mxu0 %v3380
        %3505 = vmatpush1.msra.mxu0 %v3379
        %3506 = vmatprep.subr.mxu0 %v3382
        %3507 = vmatpush1.msra.mxu0 %v3381
        %3508 = vmatprep.subr.mxu0 %v3384
        %3509 = vmatpush1.msra.mxu0 %v3383
        %3510 = vmatprep.subr.mxu0 %v3386
        %3511 = vmatpush1.msra.mxu0 %v3385
        %3512 = vmatprep.subr.mxu0 %v3388
        %3513 = vmatpush1.msra.mxu0 %v3387
        %3514 = vmatprep.subr.mxu0 %v3390
        %3515 = vmatpush1.msra.mxu0 %v3389
        %3516 = vmatprep.subr.mxu0 %v3392
        %3517 = vmatpush1.msra.mxu0 %v3391
        %3518 = vmatprep.subr.mxu0 %v3394
        %3519 = vmatpush1.msra.mxu0 %v3393
        %3520 = vmatprep.subr.mxu0 %v3396
        %3521 = vmatpush1.msra.mxu0 %v3395
        %3522 = vmatprep.subr.mxu0 %v3398
        %3523 = vmatpush1.msra.mxu0 %v3397
        %3524 = vmatprep.subr.mxu0 %v3400
        %3525 = vmatpush1.msra.mxu0 %v3399
        %3526 = vmatprep.subr.mxu0 %v3402
        %3527 = vmatpush1.msra.mxu0 %v3401
        %3528 = vmatprep.subr.mxu0 %v3404
        %3529 = vmatpush1.msra.mxu0 %v3403
        %3530 = vmatprep.mubr.f32.mxu0 %v3326
        %3531 = vmatmul.mubr.f32.gmra.mrb[0].mxu0 %v3325
        %v3532 = vpop.f32.mrb[0].mxu0
        %v3533 = vadd.f32 0.0, %v3532
        %v3534 = vpop.f32.mrb[0].mxu0
        %v3535 = vadd.f32 0.0, %v3534
        %3536 = vmatprep.mubr.f32.mxu0 %v3330
        %3537 = vmatmul.mubr.f32.gmra.mrb[0].mxu0 %v3329
        %v3538 = vpop.f32.mrb[0].mxu0
        %v3539 = vadd.f32 0.0, %v3538
        %v3540 = vpop.f32.mrb[0].mxu0
        %v3541 = vadd.f32 0.0, %v3540
        %3542 = vmatprep.mubr.f32.mxu0 %v3334
        %3543 = vmatmul.mubr.f32.gmra.mrb[0].mxu0 %v3333
        %v3544 = vpop.f32.mrb[0].mxu0
        %v3545 = vadd.f32 0.0, %v3544
        %v3546 = vpop.f32.mrb[0].mxu0
        %v3547 = vadd.f32 0.0, %v3546
        %3548 = vmatprep.mubr.f32.mxu0 %v3338
        %3549 = vmatmul.mubr.f32.gmra.mrb[0].mxu0 %v3337
        %v3550 = vpop.f32.mrb[0].mxu0
        %v3551 = vadd.f32 0.0, %v3550
        %v3552 = vpop.f32.mrb[0].mxu0
        %v3553 = vadd.f32 0.0, %v3552
        %3554 = vdwg.mxu0
        %3555 = vmatprep.subr.mxu0 %v3406
        %3556 = vmatpush1.msra.mxu0 %v3405
        %3557 = vmatprep.subr.mxu0 %v3408
        %3558 = vmatpush1.msra.mxu0 %v3407
        %3559 = vmatprep.subr.mxu0 %v3410
        %3560 = vmatpush1.msra.mxu0 %v3409
        %3561 = vmatprep.subr.mxu0 %v3412
        %3562 = vmatpush1.msra.mxu0 %v3411
        %3563 = vmatprep.subr.mxu0 %v3414
        %3564 = vmatpush1.msra.mxu0 %v3413
        %3565 = vmatprep.subr.mxu0 %v3416
        %3566 = vmatpush1.msra.mxu0 %v3415
        %3567 = vmatprep.subr.mxu0 %v3418
        %3568 = vmatpush1.msra.mxu0 %v3417
        %3569 = vmatprep.subr.mxu0 %v3420
        %3570 = vmatpush1.msra.mxu0 %v3419
        %3571 = vmatprep.subr.mxu0 %v3422
        %3572 = vmatpush1.msra.mxu0 %v3421
        %3573 = vmatprep.subr.mxu0 %v3424
        %3574 = vmatpush1.msra.mxu0 %v3423
        %3575 = vmatprep.subr.mxu0 %v3426
        %3576 = vmatpush1.msra.mxu0 %v3425
        %3577 = vmatprep.subr.mxu0 %v3428
        %3578 = vmatpush1.msra.mxu0 %v3427
        %3579 = vmatprep.subr.mxu0 %v3430
        %3580 = vmatpush1.msra.mxu0 %v3429
        %3581 = vmatprep.subr.mxu0 %v3432
        %3582 = vmatpush1.msra.mxu0 %v3431
        %3583 = vmatprep.subr.mxu0 %v3434
        %3584 = vmatpush1.msra.mxu0 %v3433
        %3585 = vmatprep.subr.mxu0 %v3436
        %3586 = vmatpush1.msra.mxu0 %v3435
        %3587 = vmatprep.subr.mxu0 %v3438
        %3588 = vmatpush1.msra.mxu0 %v3437
        %3589 = vmatprep.subr.mxu0 %v3440
        %3590 = vmatpush1.msra.mxu0 %v3439
        %3591 = vmatprep.subr.mxu0 %v3442
        %3592 = vmatpush1.msra.mxu0 %v3441
        %3593 = vmatprep.subr.mxu0 %v3444
        %3594 = vmatpush1.msra.mxu0 %v3443
        %3595 = vmatprep.subr.mxu0 %v3446
        %3596 = vmatpush1.msra.mxu0 %v3445
        %3597 = vmatprep.subr.mxu0 %v3448
        %3598 = vmatpush1.msra.mxu0 %v3447
        %3599 = vmatprep.subr.mxu0 %v3450
        %3600 = vmatpush1.msra.mxu0 %v3449
        %3601 = vmatprep.subr.mxu0 %v3452
        %3602 = vmatpush1.msra.mxu0 %v3451
        %3603 = vmatprep.subr.mxu0 0.0
        %3604 = vmatpush1.msra.mxu0 0.0
        %3605 = vmatprep.subr.mxu0 0.0
        %3606 = vmatpush1.msra.mxu0 0.0
        %3607 = vmatprep.subr.mxu0 0.0
        %3608 = vmatpush1.msra.mxu0 0.0
        %3609 = vmatprep.subr.mxu0 0.0
        %3610 = vmatpush1.msra.mxu0 0.0
        %3611 = vmatprep.subr.mxu0 0.0
        %3612 = vmatpush1.msra.mxu0 0.0
        %3613 = vmatprep.subr.mxu0 0.0
        %3614 = vmatpush1.msra.mxu0 0.0
        %3615 = vmatprep.subr.mxu0 0.0
        %3616 = vmatpush1.msra.mxu0 0.0
        %3617 = vmatprep.subr.mxu0 0.0
        %3618 = vmatpush1.msra.mxu0 0.0
        %3619 = vmatprep.mubr.f32.mxu0 %v3455
        %3620 = vmatmul.mubr.f32.gmra.mrb[0].mxu0 %v3327
        %v3621 = vpop.f32.mrb[0].mxu0
        %v3622 = vadd.f32 %v3533, %v3621
        %v3623 = vpop.f32.mrb[0].mxu0
        %v3624 = vadd.f32 %v3535, %v3623
        %3625 = vmatprep.mubr.f32.mxu0 %v3458
        %3626 = vmatmul.mubr.f32.gmra.mrb[0].mxu0 %v3331
        %v3627 = vpop.f32.mrb[0].mxu0
        %v3628 = vadd.f32 %v3539, %v3627
        %v3629 = vpop.f32.mrb[0].mxu0
        %v3630 = vadd.f32 %v3541, %v3629
        %3631 = vmatprep.mubr.f32.mxu0 %v3461
        %3632 = vmatmul.mubr.f32.gmra.mrb[0].mxu0 %v3335
        %v3633 = vpop.f32.mrb[0].mxu0
        %v3634 = vadd.f32 %v3545, %v3633
        %v3635 = vpop.f32.mrb[0].mxu0
        %v3636 = vadd.f32 %v3547, %v3635
        %3637 = vmatprep.mubr.f32.mxu0 %v3464
        %3638 = vmatmul.mubr.f32.gmra.mrb[0].mxu0 %v3339
        %v3639 = vpop.f32.mrb[0].mxu0
        %v3640 = vadd.f32 %v3551, %v3639
        %v3641 = vpop.f32.mrb[0].mxu0
        %v3642 = vadd.f32 %v3553, %v3641
        %3643 = vdwg.mxu0
        %v3644 = vld [vmem:[#allocation6] sm:$0xff]
        %v3645 = vld [vmem:[#allocation6 + $0x8] sm:$0xff]
        %v3646 = vld [vmem:[#allocation6 + $0x10] sm:$0xff]
        %v3647 = vld [vmem:[#allocation6 + $0x18] sm:$0xff]
        %v3648 = vld [vmem:[#allocation6 + $0x20] sm:$0xff]
        %v3649 = vld [vmem:[#allocation6 + $0x28] sm:$0xff]
        %v3650 = vld [vmem:[#allocation6 + $0x30] sm:$0xff]
        %v3651 = vld [vmem:[#allocation6 + $0x38] sm:$0xff]
        %v3652 = vld [vmem:[#allocation6 + $0x40] sm:$0xff]
        %v3653 = vld [vmem:[#allocation6 + $0x48] sm:$0xff]
        %v3654 = vld [vmem:[#allocation6 + $0x50] sm:$0xff]
        %v3655 = vld [vmem:[#allocation6 + $0x58] sm:$0xff]
        %v3656 = vld [vmem:[#allocation6 + $0x60] sm:$0xff]
        %v3657 = vld [vmem:[#allocation6 + $0x68] sm:$0xff]
        %v3658 = vld [vmem:[#allocation6 + $0x70] sm:$0xff]
        %v3659 = vld [vmem:[#allocation6 + $0x78] sm:$0xff]
        %v3660 = vld [vmem:[#allocation6 + $0x80] sm:$0xff]
        %v3661 = vld [vmem:[#allocation6 + $0x88] sm:$0xff]
        %v3662 = vld [vmem:[#allocation6 + $0x90] sm:$0xff]
        %v3663 = vld [vmem:[#allocation6 + $0x98] sm:$0xff]
        %v3664 = vld [vmem:[#allocation6 + $0xa0] sm:$0xff]
        %v3665 = vld [vmem:[#allocation6 + $0xa8] sm:$0xff]
        %v3666 = vld [vmem:[#allocation6 + $0xb0] sm:$0xff]
        %v3667 = vld [vmem:[#allocation6 + $0xb8] sm:$0xff]
        %v3668 = vld [vmem:[#allocation6 + $0xc0] sm:$0xff]
        %v3669 = vld [vmem:[#allocation6 + $0xc8] sm:$0xff]
        %v3670 = vld [vmem:[#allocation6 + $0xd0] sm:$0xff]
        %v3671 = vld [vmem:[#allocation6 + $0xd8] sm:$0xff]
        %v3672 = vld [vmem:[#allocation6 + $0xe0] sm:$0xff]
        %v3673 = vld [vmem:[#allocation6 + $0xe8] sm:$0xff]
        %v3674 = vld [vmem:[#allocation6 + $0xf0] sm:$0xff]
        %v3675 = vld [vmem:[#allocation6 + $0xf8] sm:$0xff]
        %v3676 = vld [vmem:[#allocation6 + $0x100] sm:$0xff]
        %v3677 = vld [vmem:[#allocation6 + $0x108] sm:$0xff]
        %v3678 = vld [vmem:[#allocation6 + $0x110] sm:$0xff]
        %v3679 = vld [vmem:[#allocation6 + $0x118] sm:$0xff]
        %v3680 = vld [vmem:[#allocation6 + $0x120] sm:$0xff]
        %v3681 = vld [vmem:[#allocation6 + $0x128] sm:$0xff]
        %v3682 = vld [vmem:[#allocation6 + $0x130] sm:$0xff]
        %v3683 = vld [vmem:[#allocation6 + $0x138] sm:$0xff]
        %v3684 = vld [vmem:[#allocation6 + $0x140] sm:$0xff]
        %v3685 = vld [vmem:[#allocation6 + $0x148] sm:$0xff]
        %v3686 = vld [vmem:[#allocation6 + $0x150] sm:$0xff]
        %v3687 = vld [vmem:[#allocation6 + $0x158] sm:$0xff]
        %v3688 = vld [vmem:[#allocation6 + $0x160] sm:$0xff]
        %v3689 = vld [vmem:[#allocation6 + $0x168] sm:$0xff]
        %v3690 = vld [vmem:[#allocation6 + $0x170] sm:$0xff]
        %v3691 = vld [vmem:[#allocation6 + $0x178] sm:$0xff]
        %v3692 = vld [vmem:[#allocation6 + $0x180] sm:$0xff]
        %v3693 = vld [vmem:[#allocation6 + $0x188] sm:$0xff]
        %v3694 = vld [vmem:[#allocation6 + $0x190] sm:$0xff]
        %v3695 = vld [vmem:[#allocation6 + $0x198] sm:$0xff]
        %v3696 = vld [vmem:[#allocation6 + $0x1a0] sm:$0xff]
        %v3697 = vld [vmem:[#allocation6 + $0x1a8] sm:$0xff]
        %v3698 = vld [vmem:[#allocation6 + $0x1b0] sm:$0xff]
        %v3699 = vld [vmem:[#allocation6 + $0x1b8] sm:$0xff]
        %v3700 = vld [vmem:[#allocation6 + $0x1c0] sm:$0xff]
        %v3701 = vld [vmem:[#allocation6 + $0x1c8] sm:$0xff]
        %v3702 = vld [vmem:[#allocation6 + $0x1d0] sm:$0xff]
        %v3703 = vld [vmem:[#allocation6 + $0x1d8] sm:$0xff]
        %v3704 = vld [vmem:[#allocation6 + $0x1e0] sm:$0xff]
        %v3705 = vld [vmem:[#allocation6 + $0x1e8] sm:$0xff]
        %v3706 = vld [vmem:[#allocation6 + $0x1f0] sm:$0xff]
        %v3707 = vld [vmem:[#allocation6 + $0x1f8] sm:$0xff]
        %v3708 = vld [vmem:[#allocation6 + $0x200] sm:$0xff]
        %v3709 = vld [vmem:[#allocation6 + $0x208] sm:$0xff]
        %v3710 = vld [vmem:[#allocation6 + $0x210] sm:$0xff]
        %v3711 = vld [vmem:[#allocation6 + $0x218] sm:$0xff]
        %v3712 = vld [vmem:[#allocation6 + $0x220] sm:$0xff]
        %v3713 = vld [vmem:[#allocation6 + $0x228] sm:$0xff]
        %v3714 = vld [vmem:[#allocation6 + $0x230] sm:$0xff]
        %v3715 = vld [vmem:[#allocation6 + $0x238] sm:$0xff]
        %v3716 = vld [vmem:[#allocation6 + $0x240] sm:$0xff]
        %v3717 = vld [vmem:[#allocation6 + $0x248] sm:$0xff]
        %v3718 = vld [vmem:[#allocation6 + $0x250] sm:$0xff]
        %v3719 = vld [vmem:[#allocation6 + $0x258] sm:$0xff]
        %v3720 = vld [vmem:[#allocation6 + $0x260] sm:$0xff]
        %v3721 = vld [vmem:[#allocation6 + $0x268] sm:$0xff]
        %v3722 = vld [vmem:[#allocation6 + $0x270] sm:$0xff]
        %v3723 = vld [vmem:[#allocation6 + $0x278] sm:$0xff]
        %v3724 = vld [vmem:[#allocation6 + $0x280] sm:$0xff]
        %v3725 = vld [vmem:[#allocation6 + $0x288] sm:$0xff]
        %v3726 = vld [vmem:[#allocation6 + $0x290] sm:$0xff]
        %v3727 = vld [vmem:[#allocation6 + $0x298] sm:$0xff]
        %v3728 = vld [vmem:[#allocation6 + $0x2a0] sm:$0xff]
        %v3729 = vld [vmem:[#allocation6 + $0x2a8] sm:$0xff]
        %v3730 = vld [vmem:[#allocation6 + $0x2b0] sm:$0xff]
        %v3731 = vld [vmem:[#allocation6 + $0x2b8] sm:$0xff]
        %v3732 = vld [vmem:[#allocation6 + $0x2c0] sm:$0xff]
        %v3733 = vld [vmem:[#allocation6 + $0x2c8] sm:$0xff]
        %v3734 = vld [vmem:[#allocation6 + $0x2d0] sm:$0xff]
        %v3735 = vld [vmem:[#allocation6 + $0x2d8] sm:$0xff]
        %v3736 = vld [vmem:[#allocation6 + $0x2e0] sm:$0xff]
        %v3737 = vld [vmem:[#allocation6 + $0x2e8] sm:$0xff]
        %v3738 = vld [vmem:[#allocation6 + $0x2f0] sm:$0xff]
        %v3739 = vld [vmem:[#allocation6 + $0x2f8] sm:$0xff]
        %v3740 = vld [vmem:[#allocation6 + $0x300] sm:$0xff]
        %v3741 = vld [vmem:[#allocation6 + $0x308] sm:$0xff]
        %v3742 = vld [vmem:[#allocation6 + $0x310] sm:$0xff]
        %v3743 = vld [vmem:[#allocation6 + $0x318] sm:$0xff]
        %v3744 = vld [vmem:[#allocation6 + $0x320] sm:$0xff]
        %v3745 = vld [vmem:[#allocation6 + $0x328] sm:$0xff]
        %v3746 = vld [vmem:[#allocation6 + $0x330] sm:$0xff]
        %v3747 = vld [vmem:[#allocation6 + $0x338] sm:$0xff]
        %v3748 = vld [vmem:[#allocation6 + $0x340] sm:$0xff]
        %v3749 = vld [vmem:[#allocation6 + $0x348] sm:$0xff]
        %v3750 = vld [vmem:[#allocation6 + $0x350] sm:$0xff]
        %v3751 = vld [vmem:[#allocation6 + $0x358] sm:$0xff]
        %v3752 = vld [vmem:[#allocation6 + $0x360] sm:$0xff]
        %v3753 = vld [vmem:[#allocation6 + $0x368] sm:$0xff]
        %v3754 = vld [vmem:[#allocation6 + $0x370] sm:$0xff]
        %v3755 = vld [vmem:[#allocation6 + $0x378] sm:$0xff]
        %3756 = vmatprep.subr.mxu0 %v3645
        %3757 = vmatpush1.msra.mxu0 %v3644
        %3758 = vmatprep.subr.mxu0 %v3647
        %3759 = vmatpush1.msra.mxu0 %v3646
        %3760 = vmatprep.subr.mxu0 %v3649
        %3761 = vmatpush1.msra.mxu0 %v3648
        %3762 = vmatprep.subr.mxu0 %v3651
        %3763 = vmatpush1.msra.mxu0 %v3650
        %3764 = vmatprep.subr.mxu0 %v3653
        %3765 = vmatpush1.msra.mxu0 %v3652
        %3766 = vmatprep.subr.mxu0 %v3655
        %3767 = vmatpush1.msra.mxu0 %v3654
        %3768 = vmatprep.subr.mxu0 %v3657
        %3769 = vmatpush1.msra.mxu0 %v3656
        %3770 = vmatprep.subr.mxu0 %v3659
        %3771 = vmatpush1.msra.mxu0 %v3658
        %3772 = vmatprep.subr.mxu0 %v3661
        %3773 = vmatpush1.msra.mxu0 %v3660
        %3774 = vmatprep.subr.mxu0 %v3663
        %3775 = vmatpush1.msra.mxu0 %v3662
        %3776 = vmatprep.subr.mxu0 %v3665
        %3777 = vmatpush1.msra.mxu0 %v3664
        %3778 = vmatprep.subr.mxu0 %v3667
        %3779 = vmatpush1.msra.mxu0 %v3666
        %3780 = vmatprep.subr.mxu0 %v3669
        %3781 = vmatpush1.msra.mxu0 %v3668
        %3782 = vmatprep.subr.mxu0 %v3671
        %3783 = vmatpush1.msra.mxu0 %v3670
        %3784 = vmatprep.subr.mxu0 %v3673
        %3785 = vmatpush1.msra.mxu0 %v3672
        %3786 = vmatprep.subr.mxu0 %v3675
        %3787 = vmatpush1.msra.mxu0 %v3674
        %3788 = vmatprep.subr.mxu0 %v3677
        %3789 = vmatpush1.msra.mxu0 %v3676
        %3790 = vmatprep.subr.mxu0 %v3679
        %3791 = vmatpush1.msra.mxu0 %v3678
        %3792 = vmatprep.subr.mxu0 %v3681
        %3793 = vmatpush1.msra.mxu0 %v3680
        %3794 = vmatprep.subr.mxu0 %v3683
        %3795 = vmatpush1.msra.mxu0 %v3682
        %3796 = vmatprep.subr.mxu0 %v3685
        %3797 = vmatpush1.msra.mxu0 %v3684
        %3798 = vmatprep.subr.mxu0 %v3687
        %3799 = vmatpush1.msra.mxu0 %v3686
        %3800 = vmatprep.subr.mxu0 %v3689
        %3801 = vmatpush1.msra.mxu0 %v3688
        %3802 = vmatprep.subr.mxu0 %v3691
        %3803 = vmatpush1.msra.mxu0 %v3690
        %3804 = vmatprep.subr.mxu0 %v3693
        %3805 = vmatpush1.msra.mxu0 %v3692
        %3806 = vmatprep.subr.mxu0 %v3695
        %3807 = vmatpush1.msra.mxu0 %v3694
        %3808 = vmatprep.subr.mxu0 %v3697
        %3809 = vmatpush1.msra.mxu0 %v3696
        %3810 = vmatprep.subr.mxu0 %v3699
        %3811 = vmatpush1.msra.mxu0 %v3698
        %3812 = vmatprep.subr.mxu0 %v3701
        %3813 = vmatpush1.msra.mxu0 %v3700
        %3814 = vmatprep.subr.mxu0 %v3703
        %3815 = vmatpush1.msra.mxu0 %v3702
        %3816 = vmatprep.subr.mxu0 %v3705
        %3817 = vmatpush1.msra.mxu0 %v3704
        %3818 = vmatprep.subr.mxu0 %v3707
        %3819 = vmatpush1.msra.mxu0 %v3706
        %3820 = vmatprep.mubr.f32.mxu0 %v3326
        %3821 = vmatmul.mubr.f32.gmra.mrb[0].mxu0 %v3325
        %v3822 = vpop.f32.mrb[0].mxu0
        %v3823 = vadd.f32 0.0, %v3822
        %v3824 = vpop.f32.mrb[0].mxu0
        %v3825 = vadd.f32 0.0, %v3824
        %3826 = vmatprep.mubr.f32.mxu0 %v3330
        %3827 = vmatmul.mubr.f32.gmra.mrb[0].mxu0 %v3329
        %v3828 = vpop.f32.mrb[0].mxu0
        %v3829 = vadd.f32 0.0, %v3828
        %v3830 = vpop.f32.mrb[0].mxu0
        %v3831 = vadd.f32 0.0, %v3830
        %3832 = vmatprep.mubr.f32.mxu0 %v3334
        %3833 = vmatmul.mubr.f32.gmra.mrb[0].mxu0 %v3333
        %v3834 = vpop.f32.mrb[0].mxu0
        %v3835 = vadd.f32 0.0, %v3834
        %v3836 = vpop.f32.mrb[0].mxu0
        %v3837 = vadd.f32 0.0, %v3836
        %3838 = vmatprep.mubr.f32.mxu0 %v3338
        %3839 = vmatmul.mubr.f32.gmra.mrb[0].mxu0 %v3337
        %v3840 = vpop.f32.mrb[0].mxu0
        %v3841 = vadd.f32 0.0, %v3840
        %v3842 = vpop.f32.mrb[0].mxu0
        %v3843 = vadd.f32 0.0, %v3842
        %3844 = vdwg.mxu0
        %3845 = vmatprep.subr.mxu0 %v3709
        %3846 = vmatpush1.msra.mxu0 %v3708
        %3847 = vmatprep.subr.mxu0 %v3711
        %3848 = vmatpush1.msra.mxu0 %v3710
        %3849 = vmatprep.subr.mxu0 %v3713
        %3850 = vmatpush1.msra.mxu0 %v3712
        %3851 = vmatprep.subr.mxu0 %v3715
        %3852 = vmatpush1.msra.mxu0 %v3714
        %3853 = vmatprep.subr.mxu0 %v3717
        %3854 = vmatpush1.msra.mxu0 %v3716
        %3855 = vmatprep.subr.mxu0 %v3719
        %3856 = vmatpush1.msra.mxu0 %v3718
        %3857 = vmatprep.subr.mxu0 %v3721
        %3858 = vmatpush1.msra.mxu0 %v3720
        %3859 = vmatprep.subr.mxu0 %v3723
        %3860 = vmatpush1.msra.mxu0 %v3722
        %3861 = vmatprep.subr.mxu0 %v3725
        %3862 = vmatpush1.msra.mxu0 %v3724
        %3863 = vmatprep.subr.mxu0 %v3727
        %3864 = vmatpush1.msra.mxu0 %v3726
        %3865 = vmatprep.subr.mxu0 %v3729
        %3866 = vmatpush1.msra.mxu0 %v3728
        %3867 = vmatprep.subr.mxu0 %v3731
        %3868 = vmatpush1.msra.mxu0 %v3730
        %3869 = vmatprep.subr.mxu0 %v3733
        %3870 = vmatpush1.msra.mxu0 %v3732
        %3871 = vmatprep.subr.mxu0 %v3735
        %3872 = vmatpush1.msra.mxu0 %v3734
        %3873 = vmatprep.subr.mxu0 %v3737
        %3874 = vmatpush1.msra.mxu0 %v3736
        %3875 = vmatprep.subr.mxu0 %v3739
        %3876 = vmatpush1.msra.mxu0 %v3738
        %3877 = vmatprep.subr.mxu0 %v3741
        %3878 = vmatpush1.msra.mxu0 %v3740
        %3879 = vmatprep.subr.mxu0 %v3743
        %3880 = vmatpush1.msra.mxu0 %v3742
        %3881 = vmatprep.subr.mxu0 %v3745
        %3882 = vmatpush1.msra.mxu0 %v3744
        %3883 = vmatprep.subr.mxu0 %v3747
        %3884 = vmatpush1.msra.mxu0 %v3746
        %3885 = vmatprep.subr.mxu0 %v3749
        %3886 = vmatpush1.msra.mxu0 %v3748
        %3887 = vmatprep.subr.mxu0 %v3751
        %3888 = vmatpush1.msra.mxu0 %v3750
        %3889 = vmatprep.subr.mxu0 %v3753
        %3890 = vmatpush1.msra.mxu0 %v3752
        %3891 = vmatprep.subr.mxu0 %v3755
        %3892 = vmatpush1.msra.mxu0 %v3754
        %3893 = vmatprep.subr.mxu0 0.0
        %3894 = vmatpush1.msra.mxu0 0.0
        %3895 = vmatprep.subr.mxu0 0.0
        %3896 = vmatpush1.msra.mxu0 0.0
        %3897 = vmatprep.subr.mxu0 0.0
        %3898 = vmatpush1.msra.mxu0 0.0
        %3899 = vmatprep.subr.mxu0 0.0
        %3900 = vmatpush1.msra.mxu0 0.0
        %3901 = vmatprep.subr.mxu0 0.0
        %3902 = vmatpush1.msra.mxu0 0.0
        %3903 = vmatprep.subr.mxu0 0.0
        %3904 = vmatpush1.msra.mxu0 0.0
        %3905 = vmatprep.subr.mxu0 0.0
        %3906 = vmatpush1.msra.mxu0 0.0
        %3907 = vmatprep.subr.mxu0 0.0
        %3908 = vmatpush1.msra.mxu0 0.0
        %3909 = vmatprep.mubr.f32.mxu0 %v3455
        %3910 = vmatmul.mubr.f32.gmra.mrb[0].mxu0 %v3327
        %v3911 = vpop.f32.mrb[0].mxu0
        %v3912 = vadd.f32 %v3823, %v3911
        %v3913 = vpop.f32.mrb[0].mxu0
        %v3914 = vadd.f32 %v3825, %v3913
        %3915 = vmatprep.mubr.f32.mxu0 %v3458
        %3916 = vmatmul.mubr.f32.gmra.mrb[0].mxu0 %v3331
        %v3917 = vpop.f32.mrb[0].mxu0
        %v3918 = vadd.f32 %v3829, %v3917
        %v3919 = vpop.f32.mrb[0].mxu0
        %v3920 = vadd.f32 %v3831, %v3919
        %3921 = vmatprep.mubr.f32.mxu0 %v3461
        %3922 = vmatmul.mubr.f32.gmra.mrb[0].mxu0 %v3335
        %v3923 = vpop.f32.mrb[0].mxu0
        %v3924 = vadd.f32 %v3835, %v3923
        %v3925 = vpop.f32.mrb[0].mxu0
        %v3926 = vadd.f32 %v3837, %v3925
        %3927 = vmatprep.mubr.f32.mxu0 %v3464
        %3928 = vmatmul.mubr.f32.gmra.mrb[0].mxu0 %v3339
        %v3929 = vpop.f32.mrb[0].mxu0
        %v3930 = vadd.f32 %v3841, %v3929
        %v3931 = vpop.f32.mrb[0].mxu0
        %v3932 = vadd.f32 %v3843, %v3931
        %3933 = vdwg.mxu0
        %v3934 = vmax.f32 %v3622, %v3912
        %v3935 = vmax.f32 %v3624, %v3914
        %v3936 = vmax.f32 %v3628, %v3918
        %v3937 = vmax.f32 %v3630, %v3920
        %v3938 = vmax.f32 %v3634, %v3924
        %v3939 = vmax.f32 %v3636, %v3926
        %v3940 = vmax.f32 %v3640, %v3930
        %v3941 = vmax.f32 %v3642, %v3932
        %v3942 = vld [vmem:[#allocation7] sm:$0xff]
        %v3943 = vld [vmem:[#allocation7 + $0x8] sm:$0x3f]
        %vm3944 = vcmask 228352
        %v3946 = vsel %vm3944, %v3942, 0
        %v3949 = vsel %vm3944, %v3943, 0
        %v3952 = vsel %vm2145, %v3940, 0
        %v3955 = vsel %vm2145, %v3941, 0
        %3957 = vmatprep.subr.mxu0 %v3935
        %3958 = vmatpush1.msra.mxu0 %v3934
        %3959 = vmatprep.subr.mxu0 %v3937
        %3960 = vmatpush1.msra.mxu0 %v3936
        %3961 = vmatprep.subr.mxu0 %v3939
        %3962 = vmatpush1.msra.mxu0 %v3938
        %3963 = vmatprep.subr.mxu0 %v3955
        %3964 = vmatpush1.msra.mxu0 %v3952
        %3965 = vmatprep.subr.mxu0 0.0
        %3966 = vmatpush1.msra.mxu0 0.0
        %3967 = vmatprep.subr.mxu0 0.0
        %3968 = vmatpush1.msra.mxu0 0.0
        %3969 = vmatprep.subr.mxu0 0.0
        %3970 = vmatpush1.msra.mxu0 0.0
        %3971 = vmatprep.subr.mxu0 0.0
        %3972 = vmatpush1.msra.mxu0 0.0
        %3973 = vmatprep.subr.mxu0 0.0
        %3974 = vmatpush1.msra.mxu0 0.0
        %3975 = vmatprep.subr.mxu0 0.0
        %3976 = vmatpush1.msra.mxu0 0.0
        %3977 = vmatprep.subr.mxu0 0.0
        %3978 = vmatpush1.msra.mxu0 0.0
        %3979 = vmatprep.subr.mxu0 0.0
        %3980 = vmatpush1.msra.mxu0 0.0
        %3981 = vmatprep.subr.mxu0 0.0
        %3982 = vmatpush1.msra.mxu0 0.0
        %3983 = vmatprep.subr.mxu0 0.0
        %3984 = vmatpush1.msra.mxu0 0.0
        %3985 = vmatprep.subr.mxu0 0.0
        %3986 = vmatpush1.msra.mxu0 0.0
        %3987 = vmatprep.subr.mxu0 0.0
        %3988 = vmatpush1.msra.mxu0 0.0
        %3989 = vmatprep.subr.mxu0 0.0
        %3990 = vmatpush1.msra.mxu0 0.0
        %3991 = vmatprep.subr.mxu0 0.0
        %3992 = vmatpush1.msra.mxu0 0.0
        %3993 = vmatprep.subr.mxu0 0.0
        %3994 = vmatpush1.msra.mxu0 0.0
        %3995 = vmatprep.subr.mxu0 0.0
        %3996 = vmatpush1.msra.mxu0 0.0
        %3997 = vmatprep.subr.mxu0 0.0
        %3998 = vmatpush1.msra.mxu0 0.0
        %3999 = vmatprep.subr.mxu0 0.0
        %4000 = vmatpush1.msra.mxu0 0.0
        %4001 = vmatprep.subr.mxu0 0.0
        %4002 = vmatpush1.msra.mxu0 0.0
        %4003 = vmatprep.subr.mxu0 0.0
        %4004 = vmatpush1.msra.mxu0 0.0
        %4005 = vmatprep.subr.mxu0 0.0
        %4006 = vmatpush1.msra.mxu0 0.0
        %4007 = vmatprep.subr.mxu0 0.0
        %4008 = vmatpush1.msra.mxu0 0.0
        %4009 = vmatprep.subr.mxu0 0.0
        %4010 = vmatpush1.msra.mxu0 0.0
        %4011 = vmatprep.subr.mxu0 0.0
        %4012 = vmatpush1.msra.mxu0 0.0
        %4013 = vmatprep.subr.mxu0 0.0
        %4014 = vmatpush1.msra.mxu0 0.0
        %4015 = vmatprep.subr.mxu0 0.0
        %4016 = vmatpush1.msra.mxu0 0.0
        %4017 = vmatprep.subr.mxu0 0.0
        %4018 = vmatpush1.msra.mxu0 0.0
        %4019 = vmatprep.subr.mxu0 0.0
        %4020 = vmatpush1.msra.mxu0 0.0
        %4021 = vmatprep.mubr.f32.mxu0 0.0
        %4022 = vmatmul.mubr.f32.gmra.mrb[0].mxu0 %v3946
        %v4023 = vpop.f32.mrb[0].mxu0
        %v4024 = vadd.f32 0.0, %v4023
        %v4025 = vpop.f32.mrb[0].mxu0
        %v4026 = vadd.f32 0.0, %v4025
        %4027 = vmatprep.mubr.f32.mxu0 0.0
        %4028 = vmatmul.mubr.f32.gmra.mrb[0].mxu0 %v3949
        %v4029 = vpop.f32.mrb[0].mxu0
        %v4030 = vadd.f32 0.0, %v4029
        %v4031 = vpop.f32.mrb[0].mxu0
        %v4032 = vadd.f32 0.0, %v4031
        %4033 = vdwg.mxu0
        %v4034 = vld [vmem:[#allocation9] sm:$0xff]
        %v4035 = vld [vmem:[#allocation9 + $0x8] sm:$0x3f]
        %v4037 = vsel %vm3944, %v4034, 0
        %v4040 = vsel %vm3944, %v4035, 0
        %4042 = vmatprep.subr.mxu0 %v3935
        %4043 = vmatpush1.msra.mxu0 %v3934
        %4044 = vmatprep.subr.mxu0 %v3937
        %4045 = vmatpush1.msra.mxu0 %v3936
        %4046 = vmatprep.subr.mxu0 %v3939
        %4047 = vmatpush1.msra.mxu0 %v3938
        %4048 = vmatprep.subr.mxu0 %v3955
        %4049 = vmatpush1.msra.mxu0 %v3952
        %4050 = vmatprep.subr.mxu0 0.0
        %4051 = vmatpush1.msra.mxu0 0.0
        %4052 = vmatprep.subr.mxu0 0.0
        %4053 = vmatpush1.msra.mxu0 0.0
        %4054 = vmatprep.subr.mxu0 0.0
        %4055 = vmatpush1.msra.mxu0 0.0
        %4056 = vmatprep.subr.mxu0 0.0
        %4057 = vmatpush1.msra.mxu0 0.0
        %4058 = vmatprep.subr.mxu0 0.0
        %4059 = vmatpush1.msra.mxu0 0.0
        %4060 = vmatprep.subr.mxu0 0.0
        %4061 = vmatpush1.msra.mxu0 0.0
        %4062 = vmatprep.subr.mxu0 0.0
        %4063 = vmatpush1.msra.mxu0 0.0
        %4064 = vmatprep.subr.mxu0 0.0
        %4065 = vmatpush1.msra.mxu0 0.0
        %4066 = vmatprep.subr.mxu0 0.0
        %4067 = vmatpush1.msra.mxu0 0.0
        %4068 = vmatprep.subr.mxu0 0.0
        %4069 = vmatpush1.msra.mxu0 0.0
        %4070 = vmatprep.subr.mxu0 0.0
        %4071 = vmatpush1.msra.mxu0 0.0
        %4072 = vmatprep.subr.mxu0 0.0
        %4073 = vmatpush1.msra.mxu0 0.0
        %4074 = vmatprep.subr.mxu0 0.0
        %4075 = vmatpush1.msra.mxu0 0.0
        %4076 = vmatprep.subr.mxu0 0.0
        %4077 = vmatpush1.msra.mxu0 0.0
        %4078 = vmatprep.subr.mxu0 0.0
        %4079 = vmatpush1.msra.mxu0 0.0
        %4080 = vmatprep.subr.mxu0 0.0
        %4081 = vmatpush1.msra.mxu0 0.0
        %4082 = vmatprep.subr.mxu0 0.0
        %4083 = vmatpush1.msra.mxu0 0.0
        %4084 = vmatprep.subr.mxu0 0.0
        %4085 = vmatpush1.msra.mxu0 0.0
        %4086 = vmatprep.subr.mxu0 0.0
        %4087 = vmatpush1.msra.mxu0 0.0
        %4088 = vmatprep.subr.mxu0 0.0
        %4089 = vmatpush1.msra.mxu0 0.0
        %4090 = vmatprep.subr.mxu0 0.0
        %4091 = vmatpush1.msra.mxu0 0.0
        %4092 = vmatprep.subr.mxu0 0.0
        %4093 = vmatpush1.msra.mxu0 0.0
        %4094 = vmatprep.subr.mxu0 0.0
        %4095 = vmatpush1.msra.mxu0 0.0
        %4096 = vmatprep.subr.mxu0 0.0
        %4097 = vmatpush1.msra.mxu0 0.0
        %4098 = vmatprep.subr.mxu0 0.0
        %4099 = vmatpush1.msra.mxu0 0.0
        %4100 = vmatprep.subr.mxu0 0.0
        %4101 = vmatpush1.msra.mxu0 0.0
        %4102 = vmatprep.subr.mxu0 0.0
        %4103 = vmatpush1.msra.mxu0 0.0
        %4104 = vmatprep.subr.mxu0 0.0
        %4105 = vmatpush1.msra.mxu0 0.0
        %4106 = vmatprep.mubr.f32.mxu0 0.0
        %4107 = vmatmul.mubr.f32.gmra.mrb[0].mxu0 %v4037
        %v4108 = vpop.f32.mrb[0].mxu0
        %v4109 = vadd.f32 0.0, %v4108
        %v4110 = vpop.f32.mrb[0].mxu0
        %v4111 = vadd.f32 0.0, %v4110
        %4112 = vmatprep.mubr.f32.mxu0 0.0
        %4113 = vmatmul.mubr.f32.gmra.mrb[0].mxu0 %v4040
        %v4114 = vpop.f32.mrb[0].mxu0
        %v4115 = vadd.f32 0.0, %v4114
        %v4116 = vpop.f32.mrb[0].mxu0
        %v4117 = vadd.f32 0.0, %v4116
        %4118 = vdwg.mxu0
        %v4119 = vmax.f32 %v4024, %v4109
        %v4120 = vmax.f32 %v4026, %v4111
        %v4121 = vmax.f32 %v4030, %v4115
        %v4122 = vmax.f32 %v4032, %v4117
        %4123 = vst [vmem:[%s513] sm:$0xff] %v4119
        %vm4124 = vcmask 785408
        %4125 = vst.msk [vmem:[%s513 + $0x8] sm:$0xff] %vm4124, %v4120
        %4126 = vst [vmem:[%s513 + $0x10] sm:$0x3f] %v4121
        %vm4127 = vcmask 783360
        %4128 = vst.msk [vmem:[%s513 + $0x18] sm:$0x3f] %vm4127, %v4122
        %p4129 = scmp.lt.s32.totalorder %s27, 1
        %s4130 = scalar_select %p4129, %s27, 1
        %s4131 = smul.addr %s4130, 4
        %s4132 = smul.addr %s4131, 8
        %s4133 = scalar_lea.vmem %s13, %s4132
        // Predicated region
        $region93: #{train_forward.2} parent=71 // pred_check
          %p4134 = pneg %p323
        $region94: #{train_forward.2} parent=71 // pred_check_branch
          %4136 = sbr.rel (%p4134) target = $region96
        $region95: #{train_forward.2} parent=71 // pred_region
          _
        $region96: #{train_forward.2} parent=71 // pred_fallthru
          _
      $region72: #{train_forward.2} parent=5 // pred_fallthru
        _
      %p4137 = scmp.le.s32.totalorder 2, %s22
      // Predicated region
      $region97: #{train_forward.2} parent=5 // pred_check
        %p4138 = pneg %p4137
      $region98: #{train_forward.2} parent=5 // pred_check_branch
        %4140 = sbr.rel (%p4138) target = $region100
      $region99: #{train_forward.2} parent=5 // pred_region
        %s4141 = ssub.s32 %s22, 2
        // Predicated region
        $region101: #{train_forward.2} parent=99 // pred_check
          %p4142 = pneg %p329
        $region102: #{train_forward.2} parent=99 // pred_check_branch
          %4144 = sbr.rel (%p4142) target = $region104
        $region103: #{train_forward.2} parent=99 // pred_region
          %p4145 = scmp.lt.s32.totalorder %s28, 1
          %s4146 = scalar_select %p4145, %s28, 1
          %s4147 = smul.addr %s4146, 4
          %s4148 = smul.addr %s4147, 8
          %s4149 = scalar_lea.vmem %s13, %s4148
        $region104: #{train_forward.2} parent=99 // pred_fallthru
          _
      $region100: #{train_forward.2} parent=5 // pred_fallthru
        _
    $region6: #{train_forward.2} parent=1 // loop_footer
      %s26 = sadd.s32 1, %s22
    $region7: #{train_forward.2} parent=1 // loop_footer_branch
      %21 = sbr.rel target = $region3
    $region8: #{train_forward.2} parent=1 // loop_exit
      _
    %4150 = vsyncpa [#allocation3], 1
    %s4151 = scalar_lea.sflag [#allocation3], 1
    %4152 = vsyncpa %s4151, 1
    %4153 = vsyncpa [#allocation5], 1
    %4154 = vsyncpa [#allocation8], 1

</llo_original>
